<compile_context>
chip_gen: v6e
topology: v6e:2x2x1
jax: 0.10.0
libtpu: 0.0.40
codegen_flags: <defaults>
</compile_context>

<pallas_src>
import math

import jax
import jax.numpy as jnp
from jax.experimental import pallas as pl
from jax.experimental.pallas import tpu as pltpu

# ---- static config -------------------------------------------------------
B, S, L = 2, 8, 16          # batch, query seqlen, cross (kv) seqlen
DIM = 32                    # model dim
N_HEAD = 4
N_LOCAL_HEADS = 2
HEAD_DIM = DIM // N_HEAD    # 8
KV_SIZE = N_LOCAL_HEADS * HEAD_DIM       # 16
KV_DIM = 2 * KV_SIZE                     # 32  (k and v concatenated)
EPS = 1e-5
NEG_BIG = -1e30             # additive "masked out" value for cross-batch keys


# ---- kernel --------------------------------------------------------------
def cross_attention_kernel(xf_ref, csf_ref, mask_ref, wqkv_ref, wo_ref, nw_ref,
                           o_ref):
    """Single grid step: whole (tiny) problem lives in VMEM.

    xf_ref   : (B*S, DIM)                        flattened queries input
    csf_ref  : (B*L, DIM)                        flattened cross states
    mask_ref : (B*S, B*L)                        block-diagonal additive mask
    wqkv_ref : (N_HEAD + 2*N_LOCAL_HEADS, DIM, HEAD_DIM)
               [0..N_HEAD)            -> per-query-head Wq
               [N_HEAD..N_HEAD+NLH)   -> per-kv-head Wk
               [N_HEAD+NLH..)         -> per-kv-head Wv
    wo_ref   : (N_HEAD, HEAD_DIM, DIM)           per-head output projection
    nw_ref   : (2, HEAD_DIM)                     row 0 = q_norm.w, row 1 = k_norm.w
    """
    xf = xf_ref[...]          # (B*S, DIM)
    csf = csf_ref[...]        # (B*L, DIM)
    bigmask = mask_ref[...]   # (B*S, B*L)
    qw = nw_ref[0:1, :]       # (1, HEAD_DIM)
    kw = nw_ref[1:2, :]       # (1, HEAD_DIM)

    def rms(v, w):
        return v * jax.lax.rsqrt(jnp.mean(v * v, axis=-1, keepdims=True) + EPS) * w

    rep = N_HEAD // N_LOCAL_HEADS
    scale = 1.0 / math.sqrt(HEAD_DIM)

    # Shared KV heads: project once, normalize K once per kv head (hoisted).
    k_heads = []
    v_heads = []
    for kvh in range(N_LOCAL_HEADS):
        k_h = jnp.dot(csf, wqkv_ref[N_HEAD + kvh],
                      preferred_element_type=jnp.float32)                 # (B*L, HD)
        v_h = jnp.dot(csf, wqkv_ref[N_HEAD + N_LOCAL_HEADS + kvh],
                      preferred_element_type=jnp.float32)                 # (B*L, HD)
        k_heads.append(rms(k_h, kw))
        v_heads.append(v_h)

    acc = jnp.zeros((B * S, DIM), dtype=jnp.float32)
    for h in range(N_HEAD):                      # static, fully unrolled
        # --- q head projection + RMSNorm(head_dim) ---
        q_h = jnp.dot(xf, wqkv_ref[h], preferred_element_type=jnp.float32)  # (B*S, HD)
        q_h = rms(q_h, qw)

        k_h = k_heads[h // rep]
        v_h = v_heads[h // rep]

        # --- scaled dot-product attention (transpose folded into MXU operand) ---
        scores = jax.lax.dot_general(
            q_h, k_h, dimension_numbers=(((1,), (1,)), ((), ())),
            preferred_element_type=jnp.float32) * scale + bigmask           # (B*S, B*L)
        scores = scores - jnp.max(scores, axis=-1, keepdims=True)
        p = jnp.exp(scores)
        # Exact normalization (the approx-reciprocal EUP path introduced ~2e-4 error).
        p = p / jnp.sum(p, axis=-1, keepdims=True)
        y_h = jnp.dot(p, v_h, preferred_element_type=jnp.float32)           # (B*S, HD)

        # --- output projection: accumulate sum_h y_h @ Wo_h (no concatenate) ---
        acc = acc + jnp.dot(y_h, wo_ref[h], preferred_element_type=jnp.float32)

    o_ref[...] = acc


# ---- wrapper -------------------------------------------------------------
def cross_attention(x, cross_states, mask, wq_t, wkv_t, wo_t, q_norm_w, k_norm_w):
    """Matches CrossAttention.forward semantics (weights pre-transposed to (in, out))."""
    # Flatten batch into the row axis (free contiguous reshapes in XLA).
    xf = x.reshape(B * S, DIM)
    csf = cross_states.reshape(B * L, DIM)

    # Block-diagonal additive mask so attention never crosses batch elements.
    eye = jnp.eye(B, dtype=jnp.float32)
    bigmask = jnp.where(eye[:, None, :, None] > 0,
                        mask[:, :, None, :],
                        jnp.float32(NEG_BIG)).reshape(B * S, B * L)

    # Per-head weight stacks (leading-dim indexed inside the kernel).
    wq_heads = wq_t.reshape(DIM, N_HEAD, HEAD_DIM).transpose(1, 0, 2)        # (NH, DIM, HD)
    wk_heads = wkv_t[:, :KV_SIZE].reshape(DIM, N_LOCAL_HEADS, HEAD_DIM).transpose(1, 0, 2)
    wv_heads = wkv_t[:, KV_SIZE:].reshape(DIM, N_LOCAL_HEADS, HEAD_DIM).transpose(1, 0, 2)
    wqkv_heads = jnp.concatenate([wq_heads, wk_heads, wv_heads], axis=0)     # (NH+2*NLH, DIM, HD)
    wo_heads = wo_t.reshape(N_HEAD, HEAD_DIM, DIM)                           # (NH, HD, DIM)
    norm_w = jnp.concatenate([q_norm_w, k_norm_w], axis=0)                   # (2, HD)

    grid_spec = pltpu.PrefetchScalarGridSpec(
        num_scalar_prefetch=0,
        grid=(1,),
        in_specs=[
            pl.BlockSpec((B * S, DIM), lambda i: (0, 0)),                 # x (flattened)
            pl.BlockSpec((B * L, DIM), lambda i: (0, 0)),                 # cross (flattened)
            pl.BlockSpec((B * S, B * L), lambda i: (0, 0)),               # block-diag mask
            pl.BlockSpec((N_HEAD + 2 * N_LOCAL_HEADS, DIM, HEAD_DIM),
                         lambda i: (0, 0, 0)),                            # fused Wq/Wk/Wv
            pl.BlockSpec((N_HEAD, HEAD_DIM, DIM), lambda i: (0, 0, 0)),   # per-head Wo
            pl.BlockSpec((2, HEAD_DIM), lambda i: (0, 0)),                # fused norm weights
        ],
        out_specs=pl.BlockSpec((B * S, DIM), lambda i: (0, 0)),
    )
    out_flat = pl.pallas_call(
        cross_attention_kernel,
        out_shape=jax.ShapeDtypeStruct((B * S, DIM), jnp.float32),
        grid_spec=grid_spec,
    )(xf, csf, bigmask, wqkv_heads, wo_heads, norm_w)
    return out_flat.reshape(B, S, DIM)


# ---- plain-JAX reference (for correctness check) -------------------------
def reference(x, cross_states, mask, wq_t, wkv_t, wo_t, q_norm_w, k_norm_w):
    hp = jax.lax.Precision.HIGHEST

    def rms_norm(v, w):
        return v * jax.lax.rsqrt(jnp.mean(v * v, axis=-1, keepdims=True) + EPS) * w[0]

    q = jnp.dot(x, wq_t, precision=hp)                               # (B, S, DIM)
    q = q.reshape(B, S, N_HEAD, HEAD_DIM).transpose(0, 2, 1, 3)      # (B, H, S, hd)
    q = rms_norm(q, q_norm_w)

    kv = jnp.dot(cross_states, wkv_t, precision=hp)                  # (B, L, KV_DIM)
    k = kv[..., :KV_SIZE].reshape(B, L, N_LOCAL_HEADS, HEAD_DIM).transpose(0, 2, 1, 3)
    v = kv[..., KV_SIZE:].reshape(B, L, N_LOCAL_HEADS, HEAD_DIM).transpose(0, 2, 1, 3)
    rep = N_HEAD // N_LOCAL_HEADS
    k = jnp.repeat(k, rep, axis=1)
    v = jnp.repeat(v, rep, axis=1)
    k = rms_norm(k, k_norm_w)

    scores = jnp.einsum("bhsd,bhld->bhsl", q, k, precision=hp) / math.sqrt(HEAD_DIM)
    scores = scores + mask[:, None, :, :]
    p = jax.nn.softmax(scores, axis=-1)
    y = jnp.einsum("bhsl,bhld->bhsd", p, v, precision=hp)
    y = y.transpose(0, 2, 1, 3).reshape(B, S, DIM)
    return jnp.dot(y, wo_t, precision=hp)


# ---- main ----------------------------------------------------------------
if __name__ == "__main__":
    # The Pallas kernel accumulates in f32; make the pure-JAX reference do the
    # same so the correctness comparison is apples-to-apples.
    jax.config.update("jax_default_matmul_precision", "highest")

    key = jax.random.PRNGKey(0)
    ks = jax.random.split(key, 8)

    x = jax.random.normal(ks[0], (B, S, DIM), dtype=jnp.float32)
    cross_states = jax.random.normal(ks[1], (B, L, DIM), dtype=jnp.float32)
    # additive float mask (zeros => no masking), shape (B, S, L); mask.shape[-1] == L
    mask = jnp.zeros((B, S, L), dtype=jnp.float32)

    # deterministic parameter init; weights pre-transposed to (in, out)
    wq_t = jax.random.normal(ks[2], (DIM, DIM), dtype=jnp.float32) * 0.05
    wkv_t = jax.random.normal(ks[3], (DIM, KV_DIM), dtype=jnp.float32) * 0.05
    wo_t = jax.random.normal(ks[4], (DIM, DIM), dtype=jnp.float32) * 0.05
    q_norm_w = jnp.ones((1, HEAD_DIM), dtype=jnp.float32) + \
        0.1 * jax.random.normal(ks[5], (1, HEAD_DIM), dtype=jnp.float32)
    k_norm_w = jnp.ones((1, HEAD_DIM), dtype=jnp.float32) + \
        0.1 * jax.random.normal(ks[6], (1, HEAD_DIM), dtype=jnp.float32)

    out = cross_attention(x, cross_states, mask, wq_t, wkv_t, wo_t, q_norm_w, k_norm_w)
    out = jax.block_until_ready(out)

    ref = reference(x, cross_states, mask, wq_t, wkv_t, wo_t, q_norm_w, k_norm_w)
    assert out.shape == (B, S, DIM)
    err = float(jnp.max(jnp.abs(out - ref)))
    assert jnp.allclose(out, ref, atol=2e-4, rtol=2e-4), err

    print("KERNEL_OK")
</pallas_src>

<mosaic_0001>
module attributes {stable_mosaic.version = 11 : i64} {
  func.func @cross_attention_kernel(%arg0: i32, %arg1: memref<16x32xf32, #tpu.memory_space<vmem>>, %arg2: memref<32x32xf32, #tpu.memory_space<vmem>>, %arg3: memref<16x32xf32, #tpu.memory_space<vmem>>, %arg4: memref<8x32x8xf32, #tpu.memory_space<vmem>>, %arg5: memref<4x8x32xf32, #tpu.memory_space<vmem>>, %arg6: memref<2x8xf32, #tpu.memory_space<vmem>>, %arg7: memref<16x32xf32, #tpu.memory_space<vmem>>) attributes {dimension_semantics = [#tpu.dimension_semantics<arbitrary>], iteration_bounds = array<i64: 1>, scalar_prefetch = 0 : i64, scratch_operands = 0 : i64, tpu.core_type = #tpu.core_type<tc>, window_params = [{pipeline_mode = #tpu.pipeline_mode<synchronous>, transform_indices = @transform_0, window_bounds = array<i64: 16, 32>}, {pipeline_mode = #tpu.pipeline_mode<synchronous>, transform_indices = @transform_1, window_bounds = array<i64: 32, 32>}, {pipeline_mode = #tpu.pipeline_mode<synchronous>, transform_indices = @transform_2, window_bounds = array<i64: 16, 32>}, {pipeline_mode = #tpu.pipeline_mode<synchronous>, transform_indices = @transform_3, window_bounds = array<i64: 8, 32, 8>}, {pipeline_mode = #tpu.pipeline_mode<synchronous>, transform_indices = @transform_4, window_bounds = array<i64: 4, 8, 32>}, {pipeline_mode = #tpu.pipeline_mode<synchronous>, transform_indices = @transform_5, window_bounds = array<i64: 2, 8>}, {pipeline_mode = #tpu.pipeline_mode<synchronous>, transform_indices = @transform_6, window_bounds = array<i64: 16, 32>}]} {
    %c0 = arith.constant 0 : index
    %c0_0 = arith.constant 0 : index
    %0 = vector.load %arg1[%c0, %c0_0] : memref<16x32xf32, #tpu.memory_space<vmem>>, vector<16x32xf32>
    %c0_1 = arith.constant 0 : index
    %c0_2 = arith.constant 0 : index
    %1 = vector.load %arg2[%c0_1, %c0_2] : memref<32x32xf32, #tpu.memory_space<vmem>>, vector<32x32xf32>
    %c0_3 = arith.constant 0 : index
    %c0_4 = arith.constant 0 : index
    %2 = vector.load %arg3[%c0_3, %c0_4] : memref<16x32xf32, #tpu.memory_space<vmem>>, vector<16x32xf32>
    %c0_5 = arith.constant 0 : index
    %c0_6 = arith.constant 0 : index
    %3 = vector.load %arg6[%c0_5, %c0_6] : memref<2x8xf32, #tpu.memory_space<vmem>>, vector<1x8xf32>
    %c1 = arith.constant 1 : index
    %c0_7 = arith.constant 0 : index
    %4 = vector.load %arg6[%c1, %c0_7] : memref<2x8xf32, #tpu.memory_space<vmem>>, vector<1x8xf32>
    %c4 = arith.constant 4 : index
    %c0_8 = arith.constant 0 : index
    %c0_9 = arith.constant 0 : index
    %5 = vector.load %arg4[%c4, %c0_8, %c0_9] : memref<8x32x8xf32, #tpu.memory_space<vmem>>, vector<1x32x8xf32>
    %6 = vector.shape_cast %5 : vector<1x32x8xf32> to vector<32x8xf32>
    %cst = arith.constant dense<0.000000e+00> : vector<32x8xf32>
    %7 = tpu.matmul %1, %6, %cst {dimension_numbers = #tpu.dot_dimension_numbers<[1], [0], [0], [1], [0, 0, 1, 1], [], []>, precision = #tpu.contract_precision<fp32>} : vector<32x32xf32>, vector<32x8xf32>, vector<32x8xf32> -> vector<32x8xf32>
    %c6 = arith.constant 6 : index
    %c0_10 = arith.constant 0 : index
    %c0_11 = arith.constant 0 : index
    %8 = vector.load %arg4[%c6, %c0_10, %c0_11] : memref<8x32x8xf32, #tpu.memory_space<vmem>>, vector<1x32x8xf32>
    %9 = vector.shape_cast %8 : vector<1x32x8xf32> to vector<32x8xf32>
    %cst_12 = arith.constant dense<0.000000e+00> : vector<32x8xf32>
    %10 = tpu.matmul %1, %9, %cst_12 {dimension_numbers = #tpu.dot_dimension_numbers<[1], [0], [0], [1], [0, 0, 1, 1], [], []>, precision = #tpu.contract_precision<fp32>} : vector<32x32xf32>, vector<32x8xf32>, vector<32x8xf32> -> vector<32x8xf32>
    %11 = arith.mulf %7, %7 : vector<32x8xf32>
    %cst_13 = arith.constant dense<0.000000e+00> : vector<32xf32>
    %12 = vector.multi_reduction <add>, %11, %cst_13 [1] : vector<32x8xf32> to vector<32xf32>
    %13 = vector.shape_cast %12 : vector<32xf32> to vector<32x1xf32>
    %cst_14 = arith.constant 8.000000e+00 : f32
    %14 = vector.broadcast %cst_14 : f32 to vector<32x1xf32>
    %15 = arith.divf %13, %14 : vector<32x1xf32>
    %cst_15 = arith.constant 9.99999974E-6 : f32
    %16 = vector.broadcast %cst_15 : f32 to vector<32x1xf32>
    %17 = arith.addf %15, %16 : vector<32x1xf32>
    %18 = math.rsqrt %17 : vector<32x1xf32>
    %19 = vector.broadcast %18 : vector<32x1xf32> to vector<32x8xf32>
    %20 = arith.mulf %7, %19 : vector<32x8xf32>
    %21 = vector.broadcast %4 : vector<1x8xf32> to vector<32x8xf32>
    %22 = arith.mulf %20, %21 : vector<32x8xf32>
    %c5 = arith.constant 5 : index
    %c0_16 = arith.constant 0 : index
    %c0_17 = arith.constant 0 : index
    %23 = vector.load %arg4[%c5, %c0_16, %c0_17] : memref<8x32x8xf32, #tpu.memory_space<vmem>>, vector<1x32x8xf32>
    %24 = vector.shape_cast %23 : vector<1x32x8xf32> to vector<32x8xf32>
    %cst_18 = arith.constant dense<0.000000e+00> : vector<32x8xf32>
    %25 = tpu.matmul %1, %24, %cst_18 {dimension_numbers = #tpu.dot_dimension_numbers<[1], [0], [0], [1], [0, 0, 1, 1], [], []>, precision = #tpu.contract_precision<fp32>} : vector<32x32xf32>, vector<32x8xf32>, vector<32x8xf32> -> vector<32x8xf32>
    %c7 = arith.constant 7 : index
    %c0_19 = arith.constant 0 : index
    %c0_20 = arith.constant 0 : index
    %26 = vector.load %arg4[%c7, %c0_19, %c0_20] : memref<8x32x8xf32, #tpu.memory_space<vmem>>, vector<1x32x8xf32>
    %27 = vector.shape_cast %26 : vector<1x32x8xf32> to vector<32x8xf32>
    %cst_21 = arith.constant dense<0.000000e+00> : vector<32x8xf32>
    %28 = tpu.matmul %1, %27, %cst_21 {dimension_numbers = #tpu.dot_dimension_numbers<[1], [0], [0], [1], [0, 0, 1, 1], [], []>, precision = #tpu.contract_precision<fp32>} : vector<32x32xf32>, vector<32x8xf32>, vector<32x8xf32> -> vector<32x8xf32>
    %29 = arith.mulf %25, %25 : vector<32x8xf32>
    %cst_22 = arith.constant dense<0.000000e+00> : vector<32xf32>
    %30 = vector.multi_reduction <add>, %29, %cst_22 [1] : vector<32x8xf32> to vector<32xf32>
    %31 = vector.shape_cast %30 : vector<32xf32> to vector<32x1xf32>
    %cst_23 = arith.constant 8.000000e+00 : f32
    %32 = vector.broadcast %cst_23 : f32 to vector<32x1xf32>
    %33 = arith.divf %31, %32 : vector<32x1xf32>
    %cst_24 = arith.constant 9.99999974E-6 : f32
    %34 = vector.broadcast %cst_24 : f32 to vector<32x1xf32>
    %35 = arith.addf %33, %34 : vector<32x1xf32>
    %36 = math.rsqrt %35 : vector<32x1xf32>
    %37 = vector.broadcast %36 : vector<32x1xf32> to vector<32x8xf32>
    %38 = arith.mulf %25, %37 : vector<32x8xf32>
    %39 = vector.broadcast %4 : vector<1x8xf32> to vector<32x8xf32>
    %40 = arith.mulf %38, %39 : vector<32x8xf32>
    %cst_25 = arith.constant 0.000000e+00 : f32
    %41 = vector.broadcast %cst_25 : f32 to vector<16x32xf32>
    %c0_26 = arith.constant 0 : index
    %c0_27 = arith.constant 0 : index
    %c0_28 = arith.constant 0 : index
    %42 = vector.load %arg4[%c0_26, %c0_27, %c0_28] : memref<8x32x8xf32, #tpu.memory_space<vmem>>, vector<1x32x8xf32>
    %43 = vector.shape_cast %42 : vector<1x32x8xf32> to vector<32x8xf32>
    %cst_29 = arith.constant dense<0.000000e+00> : vector<16x8xf32>
    %44 = tpu.matmul %0, %43, %cst_29 {dimension_numbers = #tpu.dot_dimension_numbers<[1], [0], [0], [1], [0, 0, 1, 1], [], []>, precision = #tpu.contract_precision<fp32>} : vector<16x32xf32>, vector<32x8xf32>, vector<16x8xf32> -> vector<16x8xf32>
    %45 = arith.mulf %44, %44 : vector<16x8xf32>
    %cst_30 = arith.constant dense<0.000000e+00> : vector<16xf32>
    %46 = vector.multi_reduction <add>, %45, %cst_30 [1] : vector<16x8xf32> to vector<16xf32>
    %47 = vector.shape_cast %46 : vector<16xf32> to vector<16x1xf32>
    %cst_31 = arith.constant 8.000000e+00 : f32
    %48 = vector.broadcast %cst_31 : f32 to vector<16x1xf32>
    %49 = arith.divf %47, %48 : vector<16x1xf32>
    %cst_32 = arith.constant 9.99999974E-6 : f32
    %50 = vector.broadcast %cst_32 : f32 to vector<16x1xf32>
    %51 = arith.addf %49, %50 : vector<16x1xf32>
    %52 = math.rsqrt %51 : vector<16x1xf32>
    %53 = vector.broadcast %52 : vector<16x1xf32> to vector<16x8xf32>
    %54 = arith.mulf %44, %53 : vector<16x8xf32>
    %55 = vector.broadcast %3 : vector<1x8xf32> to vector<16x8xf32>
    %56 = arith.mulf %54, %55 : vector<16x8xf32>
    %cst_33 = arith.constant dense<0.000000e+00> : vector<16x32xf32>
    %57 = tpu.matmul %56, %22, %cst_33 {dimension_numbers = #tpu.dot_dimension_numbers<[1], [1], [0], [0], [0, 0, 1, 0], [], []>, precision = #tpu.contract_precision<fp32>} : vector<16x8xf32>, vector<32x8xf32>, vector<16x32xf32> -> vector<16x32xf32>
    %cst_34 = arith.constant 0.353553385 : f32
    %58 = vector.broadcast %cst_34 : f32 to vector<16x32xf32>
    %59 = arith.mulf %57, %58 : vector<16x32xf32>
    %60 = arith.addf %59, %2 : vector<16x32xf32>
    %cst_35 = arith.constant dense<0xFF800000> : vector<16xf32>
    %61 = vector.multi_reduction <maximumf>, %60, %cst_35 [1] : vector<16x32xf32> to vector<16xf32>
    %62 = vector.shape_cast %61 : vector<16xf32> to vector<16x1xf32>
    %63 = vector.broadcast %62 : vector<16x1xf32> to vector<16x32xf32>
    %64 = arith.subf %60, %63 : vector<16x32xf32>
    %65 = math.exp %64 : vector<16x32xf32>
    %cst_36 = arith.constant dense<0.000000e+00> : vector<16xf32>
    %66 = vector.multi_reduction <add>, %65, %cst_36 [1] : vector<16x32xf32> to vector<16xf32>
    %67 = vector.shape_cast %66 : vector<16xf32> to vector<16x1xf32>
    %68 = vector.broadcast %67 : vector<16x1xf32> to vector<16x32xf32>
    %69 = arith.divf %65, %68 : vector<16x32xf32>
    %cst_37 = arith.constant dense<0.000000e+00> : vector<16x8xf32>
    %70 = tpu.matmul %69, %10, %cst_37 {dimension_numbers = #tpu.dot_dimension_numbers<[1], [0], [0], [1], [0, 0, 1, 1], [], []>, precision = #tpu.contract_precision<fp32>} : vector<16x32xf32>, vector<32x8xf32>, vector<16x8xf32> -> vector<16x8xf32>
    %c0_38 = arith.constant 0 : index
    %c0_39 = arith.constant 0 : index
    %c0_40 = arith.constant 0 : index
    %71 = vector.load %arg5[%c0_38, %c0_39, %c0_40] : memref<4x8x32xf32, #tpu.memory_space<vmem>>, vector<1x8x32xf32>
    %72 = vector.shape_cast %71 : vector<1x8x32xf32> to vector<8x32xf32>
    %cst_41 = arith.constant dense<0.000000e+00> : vector<16x32xf32>
    %73 = tpu.matmul %70, %72, %cst_41 {dimension_numbers = #tpu.dot_dimension_numbers<[1], [0], [0], [1], [0, 0, 1, 1], [], []>, precision = #tpu.contract_precision<fp32>} : vector<16x8xf32>, vector<8x32xf32>, vector<16x32xf32> -> vector<16x32xf32>
    %74 = arith.addf %41, %73 : vector<16x32xf32>
    %c1_42 = arith.constant 1 : index
    %c0_43 = arith.constant 0 : index
    %c0_44 = arith.constant 0 : index
    %75 = vector.load %arg4[%c1_42, %c0_43, %c0_44] : memref<8x32x8xf32, #tpu.memory_space<vmem>>, vector<1x32x8xf32>
    %76 = vector.shape_cast %75 : vector<1x32x8xf32> to vector<32x8xf32>
    %cst_45 = arith.constant dense<0.000000e+00> : vector<16x8xf32>
    %77 = tpu.matmul %0, %76, %cst_45 {dimension_numbers = #tpu.dot_dimension_numbers<[1], [0], [0], [1], [0, 0, 1, 1], [], []>, precision = #tpu.contract_precision<fp32>} : vector<16x32xf32>, vector<32x8xf32>, vector<16x8xf32> -> vector<16x8xf32>
    %78 = arith.mulf %77, %77 : vector<16x8xf32>
    %cst_46 = arith.constant dense<0.000000e+00> : vector<16xf32>
    %79 = vector.multi_reduction <add>, %78, %cst_46 [1] : vector<16x8xf32> to vector<16xf32>
    %80 = vector.shape_cast %79 : vector<16xf32> to vector<16x1xf32>
    %cst_47 = arith.constant 8.000000e+00 : f32
    %81 = vector.broadcast %cst_47 : f32 to vector<16x1xf32>
    %82 = arith.divf %80, %81 : vector<16x1xf32>
    %cst_48 = arith.constant 9.99999974E-6 : f32
    %83 = vector.broadcast %cst_48 : f32 to vector<16x1xf32>
    %84 = arith.addf %82, %83 : vector<16x1xf32>
    %85 = math.rsqrt %84 : vector<16x1xf32>
    %86 = vector.broadcast %85 : vector<16x1xf32> to vector<16x8xf32>
    %87 = arith.mulf %77, %86 : vector<16x8xf32>
    %88 = vector.broadcast %3 : vector<1x8xf32> to vector<16x8xf32>
    %89 = arith.mulf %87, %88 : vector<16x8xf32>
    %cst_49 = arith.constant dense<0.000000e+00> : vector<16x32xf32>
    %90 = tpu.matmul %89, %22, %cst_49 {dimension_numbers = #tpu.dot_dimension_numbers<[1], [1], [0], [0], [0, 0, 1, 0], [], []>, precision = #tpu.contract_precision<fp32>} : vector<16x8xf32>, vector<32x8xf32>, vector<16x32xf32> -> vector<16x32xf32>
    %cst_50 = arith.constant 0.353553385 : f32
    %91 = vector.broadcast %cst_50 : f32 to vector<16x32xf32>
    %92 = arith.mulf %90, %91 : vector<16x32xf32>
    %93 = arith.addf %92, %2 : vector<16x32xf32>
    %cst_51 = arith.constant dense<0xFF800000> : vector<16xf32>
    %94 = vector.multi_reduction <maximumf>, %93, %cst_51 [1] : vector<16x32xf32> to vector<16xf32>
    %95 = vector.shape_cast %94 : vector<16xf32> to vector<16x1xf32>
    %96 = vector.broadcast %95 : vector<16x1xf32> to vector<16x32xf32>
    %97 = arith.subf %93, %96 : vector<16x32xf32>
    %98 = math.exp %97 : vector<16x32xf32>
    %cst_52 = arith.constant dense<0.000000e+00> : vector<16xf32>
    %99 = vector.multi_reduction <add>, %98, %cst_52 [1] : vector<16x32xf32> to vector<16xf32>
    %100 = vector.shape_cast %99 : vector<16xf32> to vector<16x1xf32>
    %101 = vector.broadcast %100 : vector<16x1xf32> to vector<16x32xf32>
    %102 = arith.divf %98, %101 : vector<16x32xf32>
    %cst_53 = arith.constant dense<0.000000e+00> : vector<16x8xf32>
    %103 = tpu.matmul %102, %10, %cst_53 {dimension_numbers = #tpu.dot_dimension_numbers<[1], [0], [0], [1], [0, 0, 1, 1], [], []>, precision = #tpu.contract_precision<fp32>} : vector<16x32xf32>, vector<32x8xf32>, vector<16x8xf32> -> vector<16x8xf32>
    %c1_54 = arith.constant 1 : index
    %c0_55 = arith.constant 0 : index
    %c0_56 = arith.constant 0 : index
    %104 = vector.load %arg5[%c1_54, %c0_55, %c0_56] : memref<4x8x32xf32, #tpu.memory_space<vmem>>, vector<1x8x32xf32>
    %105 = vector.shape_cast %104 : vector<1x8x32xf32> to vector<8x32xf32>
    %cst_57 = arith.constant dense<0.000000e+00> : vector<16x32xf32>
    %106 = tpu.matmul %103, %105, %cst_57 {dimension_numbers = #tpu.dot_dimension_numbers<[1], [0], [0], [1], [0, 0, 1, 1], [], []>, precision = #tpu.contract_precision<fp32>} : vector<16x8xf32>, vector<8x32xf32>, vector<16x32xf32> -> vector<16x32xf32>
    %107 = arith.addf %74, %106 : vector<16x32xf32>
    %c2 = arith.constant 2 : index
    %c0_58 = arith.constant 0 : index
    %c0_59 = arith.constant 0 : index
    %108 = vector.load %arg4[%c2, %c0_58, %c0_59] : memref<8x32x8xf32, #tpu.memory_space<vmem>>, vector<1x32x8xf32>
    %109 = vector.shape_cast %108 : vector<1x32x8xf32> to vector<32x8xf32>
    %cst_60 = arith.constant dense<0.000000e+00> : vector<16x8xf32>
    %110 = tpu.matmul %0, %109, %cst_60 {dimension_numbers = #tpu.dot_dimension_numbers<[1], [0], [0], [1], [0, 0, 1, 1], [], []>, precision = #tpu.contract_precision<fp32>} : vector<16x32xf32>, vector<32x8xf32>, vector<16x8xf32> -> vector<16x8xf32>
    %111 = arith.mulf %110, %110 : vector<16x8xf32>
    %cst_61 = arith.constant dense<0.000000e+00> : vector<16xf32>
    %112 = vector.multi_reduction <add>, %111, %cst_61 [1] : vector<16x8xf32> to vector<16xf32>
    %113 = vector.shape_cast %112 : vector<16xf32> to vector<16x1xf32>
    %cst_62 = arith.constant 8.000000e+00 : f32
    %114 = vector.broadcast %cst_62 : f32 to vector<16x1xf32>
    %115 = arith.divf %113, %114 : vector<16x1xf32>
    %cst_63 = arith.constant 9.99999974E-6 : f32
    %116 = vector.broadcast %cst_63 : f32 to vector<16x1xf32>
    %117 = arith.addf %115, %116 : vector<16x1xf32>
    %118 = math.rsqrt %117 : vector<16x1xf32>
    %119 = vector.broadcast %118 : vector<16x1xf32> to vector<16x8xf32>
    %120 = arith.mulf %110, %119 : vector<16x8xf32>
    %121 = vector.broadcast %3 : vector<1x8xf32> to vector<16x8xf32>
    %122 = arith.mulf %120, %121 : vector<16x8xf32>
    %cst_64 = arith.constant dense<0.000000e+00> : vector<16x32xf32>
    %123 = tpu.matmul %122, %40, %cst_64 {dimension_numbers = #tpu.dot_dimension_numbers<[1], [1], [0], [0], [0, 0, 1, 0], [], []>, precision = #tpu.contract_precision<fp32>} : vector<16x8xf32>, vector<32x8xf32>, vector<16x32xf32> -> vector<16x32xf32>
    %cst_65 = arith.constant 0.353553385 : f32
    %124 = vector.broadcast %cst_65 : f32 to vector<16x32xf32>
    %125 = arith.mulf %123, %124 : vector<16x32xf32>
    %126 = arith.addf %125, %2 : vector<16x32xf32>
    %cst_66 = arith.constant dense<0xFF800000> : vector<16xf32>
    %127 = vector.multi_reduction <maximumf>, %126, %cst_66 [1] : vector<16x32xf32> to vector<16xf32>
    %128 = vector.shape_cast %127 : vector<16xf32> to vector<16x1xf32>
    %129 = vector.broadcast %128 : vector<16x1xf32> to vector<16x32xf32>
    %130 = arith.subf %126, %129 : vector<16x32xf32>
    %131 = math.exp %130 : vector<16x32xf32>
    %cst_67 = arith.constant dense<0.000000e+00> : vector<16xf32>
    %132 = vector.multi_reduction <add>, %131, %cst_67 [1] : vector<16x32xf32> to vector<16xf32>
    %133 = vector.shape_cast %132 : vector<16xf32> to vector<16x1xf32>
    %134 = vector.broadcast %133 : vector<16x1xf32> to vector<16x32xf32>
    %135 = arith.divf %131, %134 : vector<16x32xf32>
    %cst_68 = arith.constant dense<0.000000e+00> : vector<16x8xf32>
    %136 = tpu.matmul %135, %28, %cst_68 {dimension_numbers = #tpu.dot_dimension_numbers<[1], [0], [0], [1], [0, 0, 1, 1], [], []>, precision = #tpu.contract_precision<fp32>} : vector<16x32xf32>, vector<32x8xf32>, vector<16x8xf32> -> vector<16x8xf32>
    %c2_69 = arith.constant 2 : index
    %c0_70 = arith.constant 0 : index
    %c0_71 = arith.constant 0 : index
    %137 = vector.load %arg5[%c2_69, %c0_70, %c0_71] : memref<4x8x32xf32, #tpu.memory_space<vmem>>, vector<1x8x32xf32>
    %138 = vector.shape_cast %137 : vector<1x8x32xf32> to vector<8x32xf32>
    %cst_72 = arith.constant dense<0.000000e+00> : vector<16x32xf32>
    %139 = tpu.matmul %136, %138, %cst_72 {dimension_numbers = #tpu.dot_dimension_numbers<[1], [0], [0], [1], [0, 0, 1, 1], [], []>, precision = #tpu.contract_precision<fp32>} : vector<16x8xf32>, vector<8x32xf32>, vector<16x32xf32> -> vector<16x32xf32>
    %140 = arith.addf %107, %139 : vector<16x32xf32>
    %c3 = arith.constant 3 : index
    %c0_73 = arith.constant 0 : index
    %c0_74 = arith.constant 0 : index
    %141 = vector.load %arg4[%c3, %c0_73, %c0_74] : memref<8x32x8xf32, #tpu.memory_space<vmem>>, vector<1x32x8xf32>
    %142 = vector.shape_cast %141 : vector<1x32x8xf32> to vector<32x8xf32>
    %cst_75 = arith.constant dense<0.000000e+00> : vector<16x8xf32>
    %143 = tpu.matmul %0, %142, %cst_75 {dimension_numbers = #tpu.dot_dimension_numbers<[1], [0], [0], [1], [0, 0, 1, 1], [], []>, precision = #tpu.contract_precision<fp32>} : vector<16x32xf32>, vector<32x8xf32>, vector<16x8xf32> -> vector<16x8xf32>
    %144 = arith.mulf %143, %143 : vector<16x8xf32>
    %cst_76 = arith.constant dense<0.000000e+00> : vector<16xf32>
    %145 = vector.multi_reduction <add>, %144, %cst_76 [1] : vector<16x8xf32> to vector<16xf32>
    %146 = vector.shape_cast %145 : vector<16xf32> to vector<16x1xf32>
    %cst_77 = arith.constant 8.000000e+00 : f32
    %147 = vector.broadcast %cst_77 : f32 to vector<16x1xf32>
    %148 = arith.divf %146, %147 : vector<16x1xf32>
    %cst_78 = arith.constant 9.99999974E-6 : f32
    %149 = vector.broadcast %cst_78 : f32 to vector<16x1xf32>
    %150 = arith.addf %148, %149 : vector<16x1xf32>
    %151 = math.rsqrt %150 : vector<16x1xf32>
    %152 = vector.broadcast %151 : vector<16x1xf32> to vector<16x8xf32>
    %153 = arith.mulf %143, %152 : vector<16x8xf32>
    %154 = vector.broadcast %3 : vector<1x8xf32> to vector<16x8xf32>
    %155 = arith.mulf %153, %154 : vector<16x8xf32>
    %cst_79 = arith.constant dense<0.000000e+00> : vector<16x32xf32>
    %156 = tpu.matmul %155, %40, %cst_79 {dimension_numbers = #tpu.dot_dimension_numbers<[1], [1], [0], [0], [0, 0, 1, 0], [], []>, precision = #tpu.contract_precision<fp32>} : vector<16x8xf32>, vector<32x8xf32>, vector<16x32xf32> -> vector<16x32xf32>
    %cst_80 = arith.constant 0.353553385 : f32
    %157 = vector.broadcast %cst_80 : f32 to vector<16x32xf32>
    %158 = arith.mulf %156, %157 : vector<16x32xf32>
    %159 = arith.addf %158, %2 : vector<16x32xf32>
    %cst_81 = arith.constant dense<0xFF800000> : vector<16xf32>
    %160 = vector.multi_reduction <maximumf>, %159, %cst_81 [1] : vector<16x32xf32> to vector<16xf32>
    %161 = vector.shape_cast %160 : vector<16xf32> to vector<16x1xf32>
    %162 = vector.broadcast %161 : vector<16x1xf32> to vector<16x32xf32>
    %163 = arith.subf %159, %162 : vector<16x32xf32>
    %164 = math.exp %163 : vector<16x32xf32>
    %cst_82 = arith.constant dense<0.000000e+00> : vector<16xf32>
    %165 = vector.multi_reduction <add>, %164, %cst_82 [1] : vector<16x32xf32> to vector<16xf32>
    %166 = vector.shape_cast %165 : vector<16xf32> to vector<16x1xf32>
    %167 = vector.broadcast %166 : vector<16x1xf32> to vector<16x32xf32>
    %168 = arith.divf %164, %167 : vector<16x32xf32>
    %cst_83 = arith.constant dense<0.000000e+00> : vector<16x8xf32>
    %169 = tpu.matmul %168, %28, %cst_83 {dimension_numbers = #tpu.dot_dimension_numbers<[1], [0], [0], [1], [0, 0, 1, 1], [], []>, precision = #tpu.contract_precision<fp32>} : vector<16x32xf32>, vector<32x8xf32>, vector<16x8xf32> -> vector<16x8xf32>
    %c3_84 = arith.constant 3 : index
    %c0_85 = arith.constant 0 : index
    %c0_86 = arith.constant 0 : index
    %170 = vector.load %arg5[%c3_84, %c0_85, %c0_86] : memref<4x8x32xf32, #tpu.memory_space<vmem>>, vector<1x8x32xf32>
    %171 = vector.shape_cast %170 : vector<1x8x32xf32> to vector<8x32xf32>
    %cst_87 = arith.constant dense<0.000000e+00> : vector<16x32xf32>
    %172 = tpu.matmul %169, %171, %cst_87 {dimension_numbers = #tpu.dot_dimension_numbers<[1], [0], [0], [1], [0, 0, 1, 1], [], []>, precision = #tpu.contract_precision<fp32>} : vector<16x8xf32>, vector<8x32xf32>, vector<16x32xf32> -> vector<16x32xf32>
    %173 = arith.addf %140, %172 : vector<16x32xf32>
    %c0_88 = arith.constant 0 : index
    %c0_89 = arith.constant 0 : index
    %174 = vector.load %arg7[%c0_88, %c0_89] : memref<16x32xf32, #tpu.memory_space<vmem>>, vector<16x32xf32>
    tpu.vector_store %arg7[%c0_88, %c0_89], %173 {strides = array<i32>} : memref<16x32xf32, #tpu.memory_space<vmem>>, vector<16x32xf32>,
    return
  }
  func.func @transform_0(%arg0: i32) -> (i32, i32) {
    %c0_i32 = arith.constant 0 : i32
    %c0_i32_0 = arith.constant 0 : i32
    %c0_i32_1 = arith.constant 0 : i32
    return %c0_i32, %c0_i32_0 : i32, i32
  }
  func.func @transform_1(%arg0: i32) -> (i32, i32) {
    %c0_i32 = arith.constant 0 : i32
    %c0_i32_0 = arith.constant 0 : i32
    %c0_i32_1 = arith.constant 0 : i32
    return %c0_i32, %c0_i32_0 : i32, i32
  }
  func.func @transform_2(%arg0: i32) -> (i32, i32) {
    %c0_i32 = arith.constant 0 : i32
    %c0_i32_0 = arith.constant 0 : i32
    %c0_i32_1 = arith.constant 0 : i32
    return %c0_i32, %c0_i32_0 : i32, i32
  }
  func.func @transform_3(%arg0: i32) -> (i32, i32, i32) {
    %c0_i32 = arith.constant 0 : i32
    %c0_i32_0 = arith.constant 0 : i32
    %c0_i32_1 = arith.constant 0 : i32
    %c0_i32_2 = arith.constant 0 : i32
    return %c0_i32, %c0_i32_0, %c0_i32_1 : i32, i32, i32
  }
  func.func @transform_4(%arg0: i32) -> (i32, i32, i32) {
    %c0_i32 = arith.constant 0 : i32
    %c0_i32_0 = arith.constant 0 : i32
    %c0_i32_1 = arith.constant 0 : i32
    %c0_i32_2 = arith.constant 0 : i32
    return %c0_i32, %c0_i32_0, %c0_i32_1 : i32, i32, i32
  }
  func.func @transform_5(%arg0: i32) -> (i32, i32) {
    %c0_i32 = arith.constant 0 : i32
    %c0_i32_0 = arith.constant 0 : i32
    %c0_i32_1 = arith.constant 0 : i32
    return %c0_i32, %c0_i32_0 : i32, i32
  }
  func.func @transform_6(%arg0: i32) -> (i32, i32) {
    %c0_i32 = arith.constant 0 : i32
    %c0_i32_0 = arith.constant 0 : i32
    %c0_i32_1 = arith.constant 0 : i32
    return %c0_i32, %c0_i32_0 : i32, i32
  }
}

</mosaic_0001>

<llo_original>
// kernel: tpu_custom_call.1
$region0: #{tpu_custom_call.1}
  #allocation0 [shape = 'u32[]', space=smem, size = 0x4, offset = 0x4, fixed_abs, tag = 'smem constant byte address 0x4 - core index']
  #allocation1 [shape = 'u32[144,128]{1,0:T(1,128)}', space=vmem, size = 0x12000, scoped, tag = 'internal scratch']
  %s0 = inlined_call_operand.vmem [shape: f32[16,32], index: 0, kind: input, shape index: {}]
  %s1 = inlined_call_operand.vmem [shape: f32[32,32], index: 1, kind: input, shape index: {}]
  %s2 = inlined_call_operand.vmem [shape: f32[16,32], index: 2, kind: input, shape index: {}]
  %s3 = inlined_call_operand.vmem [shape: f32[8,32,8], index: 3, kind: input, shape index: {}]
  %s4 = inlined_call_operand.vmem [shape: f32[4,8,32], index: 4, kind: input, shape index: {}]
  %s5 = inlined_call_operand.vmem [shape: f32[2,8], index: 5, kind: input, shape index: {}]
  %s6 = inlined_call_operand.hbm [shape: f32[16,32], index: 6, kind: output, shape index: {}]
  %s7 = sld [smem:[#allocation0]]
  $region34: #{tpu_custom_call.1} parent=0
    _
  %s9 = ssub.s32 1, %s7
  %s10 = scalar_select 0, %s9, %s7
  $region1: #{tpu_custom_call.1} parent=0
    #allocation2 [shape = 'u8[8192]{0}', space=vmem, size = 0x2000, scoped, tag = 'output window, operand 0, single buffered']
    #allocation3 [shape = 's32[1]{0}', space=sflag, size = 0x4, scoped, tag = 'scoped memory for tpu_custom_call.1']
    %11 = vsyncpa [#allocation3], 0
    // Predicated region
    $region2: #{tpu_custom_call.1} parent=1 // pred_check
      _
    $region3: #{tpu_custom_call.1} parent=1 // pred_check_branch
      %13 = sbr.rel (0) target = $region5
    $region4: #{tpu_custom_call.1} parent=1 // pred_region
      _
    $region5: #{tpu_custom_call.1} parent=1 // pred_fallthru
      _
    // Predicated region
    $region6: #{tpu_custom_call.1} parent=1 // pred_check
      _
    $region7: #{tpu_custom_call.1} parent=1 // pred_check_branch
      %15 = sbr.rel (0) target = $region9
    $region8: #{tpu_custom_call.1} parent=1 // pred_region
      _
    $region9: #{tpu_custom_call.1} parent=1 // pred_fallthru
      _
    // Predicated region
    $region10: #{tpu_custom_call.1} parent=1 // pred_check
      _
    $region11: #{tpu_custom_call.1} parent=1 // pred_check_branch
      %17 = sbr.rel (0) target = $region13
    $region12: #{tpu_custom_call.1} parent=1 // pred_region
      _
    $region13: #{tpu_custom_call.1} parent=1 // pred_fallthru
      _
    // Predicated region
    $region14: #{tpu_custom_call.1} parent=1 // pred_check
      _
    $region15: #{tpu_custom_call.1} parent=1 // pred_check_branch
      %19 = sbr.rel (0) target = $region17
    $region16: #{tpu_custom_call.1} parent=1 // pred_region
      _
    $region17: #{tpu_custom_call.1} parent=1 // pred_fallthru
      _
    // Predicated region
    $region18: #{tpu_custom_call.1} parent=1 // pred_check
      _
    $region19: #{tpu_custom_call.1} parent=1 // pred_check_branch
      %21 = sbr.rel (0) target = $region21
    $region20: #{tpu_custom_call.1} parent=1 // pred_region
      _
    $region21: #{tpu_custom_call.1} parent=1 // pred_fallthru
      _
    // Predicated region
    $region22: #{tpu_custom_call.1} parent=1 // pred_check
      _
    $region23: #{tpu_custom_call.1} parent=1 // pred_check_branch
      %23 = sbr.rel (0) target = $region25
    $region24: #{tpu_custom_call.1} parent=1 // pred_region
      _
    $region25: #{tpu_custom_call.1} parent=1 // pred_fallthru
      _
    %v24 = vld [vmem:[%s0] sm:$0xff]
    %v25 = vld [vmem:[%s0 + $0x8] sm:$0xff]
    %v26 = vld [vmem:[%s1] sm:$0xff]
    %v27 = vld [vmem:[%s1 + $0x8] sm:$0xff]
    %v28 = vld [vmem:[%s1 + $0x10] sm:$0xff]
    %v29 = vld [vmem:[%s1 + $0x18] sm:$0xff]
    %v30 = vld [vmem:[%s2] sm:$0xff]
    %v31 = vld [vmem:[%s2 + $0x8] sm:$0xff]
    %v32 = vld [vmem:[%s5] sm:$0x1]
    %v33 = vld [vmem:[%s5 + $0x1] sm:$0x1]
    %s34 = scalar_lea.vmem %s3, 128
    %v35 = vld [vmem:[%s34] sm:$0xff]
    %v36 = vld [vmem:[%s34 + $0x8] sm:$0xff]
    %v37 = vld [vmem:[%s34 + $0x10] sm:$0xff]
    %v38 = vld [vmem:[%s34 + $0x18] sm:$0xff]
    %vm39 = vcmask 261120
    %v41 = vsel %vm39, %v26, 0
    %v44 = vsel %vm39, %v27, 0
    %v47 = vsel %vm39, %v28, 0
    %v50 = vsel %vm39, %v29, 0
    %52 = vmatprep.subr.mxu0 0.0
    %53 = vmatpush1.msra.mxu0 0.0
    %54 = vmatprep.subr.mxu0 0.0
    %55 = vmatpush1.msra.mxu0 0.0
    %56 = vmatprep.subr.mxu0 0.0
    %57 = vmatpush1.msra.mxu0 0.0
    %58 = vmatprep.subr.mxu0 0.0
    %59 = vmatpush1.msra.mxu0 0.0
    %60 = vmatprep.subr.mxu0 0.0
    %61 = vmatpush1.msra.mxu0 0.0
    %62 = vmatprep.subr.mxu0 0.0
    %63 = vmatpush1.msra.mxu0 0.0
    %64 = vmatprep.subr.mxu0 0.0
    %65 = vmatpush1.msra.mxu0 0.0
    %66 = vmatprep.subr.mxu0 0.0
    %67 = vmatpush1.msra.mxu0 0.0
    %68 = vmatprep.subr.mxu0 0.0
    %69 = vmatpush1.msra.mxu0 0.0
    %70 = vmatprep.subr.mxu0 0.0
    %71 = vmatpush1.msra.mxu0 0.0
    %72 = vmatprep.subr.mxu0 0.0
    %73 = vmatpush1.msra.mxu0 0.0
    %74 = vmatprep.subr.mxu0 0.0
    %75 = vmatpush1.msra.mxu0 0.0
    %76 = vmatprep.subr.mxu0 0.0
    %v77 = vand.u32 %v38, 4294901760
    %78 = vmatpush1.msra.mxu0 %v77
    %79 = vmatprep.subr.mxu0 0.0
    %v80 = vand.u32 %v37, 4294901760
    %81 = vmatpush1.msra.mxu0 %v80
    %82 = vmatprep.subr.mxu0 0.0
    %v83 = vand.u32 %v36, 4294901760
    %84 = vmatpush1.msra.mxu0 %v83
    %85 = vmatprep.subr.mxu0 0.0
    %v86 = vand.u32 %v35, 4294901760
    %87 = vmatpush1.msra.mxu0 %v86
    %88 = vmatprep.subr.mxu0 0.0
    %89 = vmatpush2.msra.mxu0 0.0
    %90 = vmatprep.subr.mxu0 0.0
    %91 = vmatpush2.msra.mxu0 0.0
    %92 = vmatprep.subr.mxu0 0.0
    %93 = vmatpush2.msra.mxu0 0.0
    %94 = vmatprep.subr.mxu0 0.0
    %95 = vmatpush2.msra.mxu0 0.0
    %96 = vmatprep.subr.mxu0 0.0
    %97 = vmatpush2.msra.mxu0 0.0
    %98 = vmatprep.subr.mxu0 0.0
    %99 = vmatpush2.msra.mxu0 0.0
    %100 = vmatprep.subr.mxu0 0.0
    %101 = vmatpush2.msra.mxu0 0.0
    %102 = vmatprep.subr.mxu0 0.0
    %103 = vmatpush2.msra.mxu0 0.0
    %104 = vmatprep.subr.mxu0 0.0
    %105 = vmatpush2.msra.mxu0 0.0
    %106 = vmatprep.subr.mxu0 0.0
    %107 = vmatpush2.msra.mxu0 0.0
    %108 = vmatprep.subr.mxu0 0.0
    %109 = vmatpush2.msra.mxu0 0.0
    %110 = vmatprep.subr.mxu0 0.0
    %111 = vmatpush2.msra.mxu0 0.0
    %112 = vmatprep.subr.mxu0 0.0
    %113 = vmatpush2.msra.mxu0 0.0
    %114 = vmatprep.subr.mxu0 0.0
    %115 = vmatpush2.msra.mxu0 0.0
    %116 = vmatprep.subr.mxu0 0.0
    %117 = vmatpush2.msra.mxu0 0.0
    %118 = vmatprep.subr.mxu0 0.0
    %119 = vmatpush2.msra.mxu0 0.0
    %120 = vmatprep.mubr.f32.mxu0 0.0
    %v121 = vand.u32 %v41, 4294901760
    %v122 = vsub.f32 %v41, %v121
    %v123 = vand.u32 %v122, 4294901760
    %v124 = vsub.f32 %v122, %v123
    %v125 = vand.u32 %v124, 4294901760
    %126 = vmatmul.mubr.f32.gmra.mxu0 %v125
    %v127 = vpop.f32.mrf.mxu0
    %v128 = vadd.f32 0.0, %v127
    %v129 = vpop.f32.mrf.mxu0
    %130 = vmatprep.mubr.f32.mxu0 0.0
    %v131 = vand.u32 %v44, 4294901760
    %v132 = vsub.f32 %v44, %v131
    %v133 = vand.u32 %v132, 4294901760
    %v134 = vsub.f32 %v132, %v133
    %v135 = vand.u32 %v134, 4294901760
    %136 = vmatmul.mubr.f32.gmra.mxu0 %v135
    %v137 = vpop.f32.mrf.mxu0
    %v138 = vadd.f32 0.0, %v137
    %v139 = vpop.f32.mrf.mxu0
    %140 = vmatprep.mubr.f32.mxu0 0.0
    %v141 = vand.u32 %v47, 4294901760
    %v142 = vsub.f32 %v47, %v141
    %v143 = vand.u32 %v142, 4294901760
    %v144 = vsub.f32 %v142, %v143
    %v145 = vand.u32 %v144, 4294901760
    %146 = vmatmul.mubr.f32.gmra.mxu0 %v145
    %v147 = vpop.f32.mrf.mxu0
    %v148 = vadd.f32 0.0, %v147
    %v149 = vpop.f32.mrf.mxu0
    %150 = vmatprep.mubr.f32.mxu0 0.0
    %v151 = vand.u32 %v50, 4294901760
    %v152 = vsub.f32 %v50, %v151
    %v153 = vand.u32 %v152, 4294901760
    %v154 = vsub.f32 %v152, %v153
    %v155 = vand.u32 %v154, 4294901760
    %156 = vmatmul.mubr.f32.gmra.mxu0 %v155
    %v157 = vpop.f32.mrf.mxu0
    %v158 = vadd.f32 0.0, %v157
    %v159 = vpop.f32.mrf.mxu0
    %160 = vdwg.mxu0
    %161 = vmatprep.subr.mxu0 0.0
    %162 = vmatpush1.msra.mxu0 0.0
    %163 = vmatprep.subr.mxu0 0.0
    %164 = vmatpush1.msra.mxu0 0.0
    %165 = vmatprep.subr.mxu0 0.0
    %166 = vmatpush1.msra.mxu0 0.0
    %167 = vmatprep.subr.mxu0 0.0
    %168 = vmatpush1.msra.mxu0 0.0
    %169 = vmatprep.subr.mxu0 0.0
    %170 = vmatpush1.msra.mxu0 0.0
    %171 = vmatprep.subr.mxu0 0.0
    %172 = vmatpush1.msra.mxu0 0.0
    %173 = vmatprep.subr.mxu0 0.0
    %174 = vmatpush1.msra.mxu0 0.0
    %175 = vmatprep.subr.mxu0 0.0
    %176 = vmatpush1.msra.mxu0 0.0
    %177 = vmatprep.subr.mxu0 0.0
    %178 = vmatpush1.msra.mxu0 0.0
    %179 = vmatprep.subr.mxu0 0.0
    %180 = vmatpush1.msra.mxu0 0.0
    %181 = vmatprep.subr.mxu0 0.0
    %182 = vmatpush1.msra.mxu0 0.0
    %183 = vmatprep.subr.mxu0 0.0
    %184 = vmatpush1.msra.mxu0 0.0
    %185 = vmatprep.subr.mxu0 0.0
    %v186 = vand.u32 %v38, 4294901760
    %v187 = vsub.f32 %v38, %v186
    %v188 = vand.u32 %v187, 4294901760
    %v189 = vsub.f32 %v187, %v188
    %v190 = vand.u32 %v189, 4294901760
    %191 = vmatpush1.msra.mxu0 %v190
    %192 = vmatprep.subr.mxu0 0.0
    %v193 = vand.u32 %v37, 4294901760
    %v194 = vsub.f32 %v37, %v193
    %v195 = vand.u32 %v194, 4294901760
    %v196 = vsub.f32 %v194, %v195
    %v197 = vand.u32 %v196, 4294901760
    %198 = vmatpush1.msra.mxu0 %v197
    %199 = vmatprep.subr.mxu0 0.0
    %v200 = vand.u32 %v36, 4294901760
    %v201 = vsub.f32 %v36, %v200
    %v202 = vand.u32 %v201, 4294901760
    %v203 = vsub.f32 %v201, %v202
    %v204 = vand.u32 %v203, 4294901760
    %205 = vmatpush1.msra.mxu0 %v204
    %206 = vmatprep.subr.mxu0 0.0
    %v207 = vand.u32 %v35, 4294901760
    %v208 = vsub.f32 %v35, %v207
    %v209 = vand.u32 %v208, 4294901760
    %v210 = vsub.f32 %v208, %v209
    %v211 = vand.u32 %v210, 4294901760
    %212 = vmatpush1.msra.mxu0 %v211
    %213 = vmatprep.subr.mxu0 0.0
    %214 = vmatpush2.msra.mxu0 0.0
    %215 = vmatprep.subr.mxu0 0.0
    %216 = vmatpush2.msra.mxu0 0.0
    %217 = vmatprep.subr.mxu0 0.0
    %218 = vmatpush2.msra.mxu0 0.0
    %219 = vmatprep.subr.mxu0 0.0
    %220 = vmatpush2.msra.mxu0 0.0
    %221 = vmatprep.subr.mxu0 0.0
    %222 = vmatpush2.msra.mxu0 0.0
    %223 = vmatprep.subr.mxu0 0.0
    %224 = vmatpush2.msra.mxu0 0.0
    %225 = vmatprep.subr.mxu0 0.0
    %226 = vmatpush2.msra.mxu0 0.0
    %227 = vmatprep.subr.mxu0 0.0
    %228 = vmatpush2.msra.mxu0 0.0
    %229 = vmatprep.subr.mxu0 0.0
    %230 = vmatpush2.msra.mxu0 0.0
    %231 = vmatprep.subr.mxu0 0.0
    %232 = vmatpush2.msra.mxu0 0.0
    %233 = vmatprep.subr.mxu0 0.0
    %234 = vmatpush2.msra.mxu0 0.0
    %235 = vmatprep.subr.mxu0 0.0
    %236 = vmatpush2.msra.mxu0 0.0
    %237 = vmatprep.subr.mxu0 0.0
    %238 = vmatpush2.msra.mxu0 0.0
    %239 = vmatprep.subr.mxu0 0.0
    %240 = vmatpush2.msra.mxu0 0.0
    %241 = vmatprep.subr.mxu0 0.0
    %242 = vmatpush2.msra.mxu0 0.0
    %243 = vmatprep.subr.mxu0 0.0
    %244 = vmatpush2.msra.mxu0 0.0
    %245 = vmatprep.mubr.f32.mxu0 0.0
    %v246 = vand.u32 %v41, 4294901760
    %247 = vmatmul.mubr.f32.gmra.mxu0 %v246
    %v248 = vpop.f32.mrf.mxu0
    %v249 = vadd.f32 %v128, %v248
    %v250 = vpop.f32.mrf.mxu0
    %251 = vmatprep.mubr.f32.mxu0 0.0
    %v252 = vand.u32 %v44, 4294901760
    %253 = vmatmul.mubr.f32.gmra.mxu0 %v252
    %v254 = vpop.f32.mrf.mxu0
    %v255 = vadd.f32 %v138, %v254
    %v256 = vpop.f32.mrf.mxu0
    %257 = vmatprep.mubr.f32.mxu0 0.0
    %v258 = vand.u32 %v47, 4294901760
    %259 = vmatmul.mubr.f32.gmra.mxu0 %v258
    %v260 = vpop.f32.mrf.mxu0
    %v261 = vadd.f32 %v148, %v260
    %v262 = vpop.f32.mrf.mxu0
    %263 = vmatprep.mubr.f32.mxu0 0.0
    %v264 = vand.u32 %v50, 4294901760
    %265 = vmatmul.mubr.f32.gmra.mxu0 %v264
    %v266 = vpop.f32.mrf.mxu0
    %v267 = vadd.f32 %v158, %v266
    %v268 = vpop.f32.mrf.mxu0
    %269 = vdwg.mxu0
    %270 = vmatprep.subr.mxu0 0.0
    %271 = vmatpush1.msra.mxu0 0.0
    %272 = vmatprep.subr.mxu0 0.0
    %273 = vmatpush1.msra.mxu0 0.0
    %274 = vmatprep.subr.mxu0 0.0
    %275 = vmatpush1.msra.mxu0 0.0
    %276 = vmatprep.subr.mxu0 0.0
    %277 = vmatpush1.msra.mxu0 0.0
    %278 = vmatprep.subr.mxu0 0.0
    %279 = vmatpush1.msra.mxu0 0.0
    %280 = vmatprep.subr.mxu0 0.0
    %281 = vmatpush1.msra.mxu0 0.0
    %282 = vmatprep.subr.mxu0 0.0
    %283 = vmatpush1.msra.mxu0 0.0
    %284 = vmatprep.subr.mxu0 0.0
    %285 = vmatpush1.msra.mxu0 0.0
    %286 = vmatprep.subr.mxu0 0.0
    %287 = vmatpush1.msra.mxu0 0.0
    %288 = vmatprep.subr.mxu0 0.0
    %289 = vmatpush1.msra.mxu0 0.0
    %290 = vmatprep.subr.mxu0 0.0
    %291 = vmatpush1.msra.mxu0 0.0
    %292 = vmatprep.subr.mxu0 0.0
    %293 = vmatpush1.msra.mxu0 0.0
    %294 = vmatprep.subr.mxu0 0.0
    %v295 = vand.u32 %v38, 4294901760
    %v296 = vsub.f32 %v38, %v295
    %297 = vmatpush1.msra.mxu0 %v296
    %298 = vmatprep.subr.mxu0 0.0
    %v299 = vand.u32 %v37, 4294901760
    %v300 = vsub.f32 %v37, %v299
    %301 = vmatpush1.msra.mxu0 %v300
    %302 = vmatprep.subr.mxu0 0.0
    %v303 = vand.u32 %v36, 4294901760
    %v304 = vsub.f32 %v36, %v303
    %305 = vmatpush1.msra.mxu0 %v304
    %306 = vmatprep.subr.mxu0 0.0
    %v307 = vand.u32 %v35, 4294901760
    %v308 = vsub.f32 %v35, %v307
    %309 = vmatpush1.msra.mxu0 %v308
    %310 = vmatprep.subr.mxu0 0.0
    %311 = vmatpush2.msra.mxu0 0.0
    %312 = vmatprep.subr.mxu0 0.0
    %313 = vmatpush2.msra.mxu0 0.0
    %314 = vmatprep.subr.mxu0 0.0
    %315 = vmatpush2.msra.mxu0 0.0
    %316 = vmatprep.subr.mxu0 0.0
    %317 = vmatpush2.msra.mxu0 0.0
    %318 = vmatprep.subr.mxu0 0.0
    %319 = vmatpush2.msra.mxu0 0.0
    %320 = vmatprep.subr.mxu0 0.0
    %321 = vmatpush2.msra.mxu0 0.0
    %322 = vmatprep.subr.mxu0 0.0
    %323 = vmatpush2.msra.mxu0 0.0
    %324 = vmatprep.subr.mxu0 0.0
    %325 = vmatpush2.msra.mxu0 0.0
    %326 = vmatprep.subr.mxu0 0.0
    %327 = vmatpush2.msra.mxu0 0.0
    %328 = vmatprep.subr.mxu0 0.0
    %329 = vmatpush2.msra.mxu0 0.0
    %330 = vmatprep.subr.mxu0 0.0
    %331 = vmatpush2.msra.mxu0 0.0
    %332 = vmatprep.subr.mxu0 0.0
    %333 = vmatpush2.msra.mxu0 0.0
    %334 = vmatprep.subr.mxu0 0.0
    %335 = vmatpush2.msra.mxu0 0.0
    %336 = vmatprep.subr.mxu0 0.0
    %337 = vmatpush2.msra.mxu0 0.0
    %338 = vmatprep.subr.mxu0 0.0
    %339 = vmatpush2.msra.mxu0 0.0
    %340 = vmatprep.subr.mxu0 0.0
    %341 = vmatpush2.msra.mxu0 0.0
    %342 = vmatprep.mubr.f32.mxu0 0.0
    %v343 = vand.u32 %v41, 4294901760
    %v344 = vsub.f32 %v41, %v343
    %345 = vmatmul.mubr.f32.gmra.mxu0 %v344
    %v346 = vpop.f32.mrf.mxu0
    %v347 = vadd.f32 %v249, %v346
    %v348 = vpop.f32.mrf.mxu0
    %349 = vmatprep.mubr.f32.mxu0 0.0
    %v350 = vand.u32 %v44, 4294901760
    %v351 = vsub.f32 %v44, %v350
    %352 = vmatmul.mubr.f32.gmra.mxu0 %v351
    %v353 = vpop.f32.mrf.mxu0
    %v354 = vadd.f32 %v255, %v353
    %v355 = vpop.f32.mrf.mxu0
    %356 = vmatprep.mubr.f32.mxu0 0.0
    %v357 = vand.u32 %v47, 4294901760
    %v358 = vsub.f32 %v47, %v357
    %359 = vmatmul.mubr.f32.gmra.mxu0 %v358
    %v360 = vpop.f32.mrf.mxu0
    %v361 = vadd.f32 %v261, %v360
    %v362 = vpop.f32.mrf.mxu0
    %363 = vmatprep.mubr.f32.mxu0 0.0
    %v364 = vand.u32 %v50, 4294901760
    %v365 = vsub.f32 %v50, %v364
    %366 = vmatmul.mubr.f32.gmra.mxu0 %v365
    %v367 = vpop.f32.mrf.mxu0
    %v368 = vadd.f32 %v267, %v367
    %v369 = vpop.f32.mrf.mxu0
    %370 = vdwg.mxu0
    %371 = vmatprep.subr.mxu0 0.0
    %372 = vmatpush1.msra.mxu0 0.0
    %373 = vmatprep.subr.mxu0 0.0
    %374 = vmatpush1.msra.mxu0 0.0
    %375 = vmatprep.subr.mxu0 0.0
    %376 = vmatpush1.msra.mxu0 0.0
    %377 = vmatprep.subr.mxu0 0.0
    %378 = vmatpush1.msra.mxu0 0.0
    %379 = vmatprep.subr.mxu0 0.0
    %380 = vmatpush1.msra.mxu0 0.0
    %381 = vmatprep.subr.mxu0 0.0
    %382 = vmatpush1.msra.mxu0 0.0
    %383 = vmatprep.subr.mxu0 0.0
    %384 = vmatpush1.msra.mxu0 0.0
    %385 = vmatprep.subr.mxu0 0.0
    %386 = vmatpush1.msra.mxu0 0.0
    %387 = vmatprep.subr.mxu0 0.0
    %388 = vmatpush1.msra.mxu0 0.0
    %389 = vmatprep.subr.mxu0 0.0
    %390 = vmatpush1.msra.mxu0 0.0
    %391 = vmatprep.subr.mxu0 0.0
    %392 = vmatpush1.msra.mxu0 0.0
    %393 = vmatprep.subr.mxu0 0.0
    %394 = vmatpush1.msra.mxu0 0.0
    %395 = vmatprep.subr.mxu0 0.0
    %v396 = vand.u32 %v38, 4294901760
    %397 = vmatpush1.msra.mxu0 %v396
    %398 = vmatprep.subr.mxu0 0.0
    %v399 = vand.u32 %v37, 4294901760
    %400 = vmatpush1.msra.mxu0 %v399
    %401 = vmatprep.subr.mxu0 0.0
    %v402 = vand.u32 %v36, 4294901760
    %403 = vmatpush1.msra.mxu0 %v402
    %404 = vmatprep.subr.mxu0 0.0
    %v405 = vand.u32 %v35, 4294901760
    %406 = vmatpush1.msra.mxu0 %v405
    %407 = vmatprep.subr.mxu0 0.0
    %408 = vmatpush2.msra.mxu0 0.0
    %409 = vmatprep.subr.mxu0 0.0
    %410 = vmatpush2.msra.mxu0 0.0
    %411 = vmatprep.subr.mxu0 0.0
    %412 = vmatpush2.msra.mxu0 0.0
    %413 = vmatprep.subr.mxu0 0.0
    %414 = vmatpush2.msra.mxu0 0.0
    %415 = vmatprep.subr.mxu0 0.0
    %416 = vmatpush2.msra.mxu0 0.0
    %417 = vmatprep.subr.mxu0 0.0
    %418 = vmatpush2.msra.mxu0 0.0
    %419 = vmatprep.subr.mxu0 0.0
    %420 = vmatpush2.msra.mxu0 0.0
    %421 = vmatprep.subr.mxu0 0.0
    %422 = vmatpush2.msra.mxu0 0.0
    %423 = vmatprep.subr.mxu0 0.0
    %424 = vmatpush2.msra.mxu0 0.0
    %425 = vmatprep.subr.mxu0 0.0
    %426 = vmatpush2.msra.mxu0 0.0
    %427 = vmatprep.subr.mxu0 0.0
    %428 = vmatpush2.msra.mxu0 0.0
    %429 = vmatprep.subr.mxu0 0.0
    %430 = vmatpush2.msra.mxu0 0.0
    %431 = vmatprep.subr.mxu0 0.0
    %432 = vmatpush2.msra.mxu0 0.0
    %433 = vmatprep.subr.mxu0 0.0
    %434 = vmatpush2.msra.mxu0 0.0
    %435 = vmatprep.subr.mxu0 0.0
    %436 = vmatpush2.msra.mxu0 0.0
    %437 = vmatprep.subr.mxu0 0.0
    %438 = vmatpush2.msra.mxu0 0.0
    %439 = vmatprep.mubr.f32.mxu0 0.0
    %v440 = vand.u32 %v41, 4294901760
    %v441 = vsub.f32 %v41, %v440
    %v442 = vand.u32 %v441, 4294901760
    %443 = vmatmul.mubr.f32.gmra.mxu0 %v442
    %v444 = vpop.f32.mrf.mxu0
    %v445 = vadd.f32 %v347, %v444
    %v446 = vpop.f32.mrf.mxu0
    %447 = vmatprep.mubr.f32.mxu0 0.0
    %v448 = vand.u32 %v44, 4294901760
    %v449 = vsub.f32 %v44, %v448
    %v450 = vand.u32 %v449, 4294901760
    %451 = vmatmul.mubr.f32.gmra.mxu0 %v450
    %v452 = vpop.f32.mrf.mxu0
    %v453 = vadd.f32 %v354, %v452
    %v454 = vpop.f32.mrf.mxu0
    %455 = vmatprep.mubr.f32.mxu0 0.0
    %v456 = vand.u32 %v47, 4294901760
    %v457 = vsub.f32 %v47, %v456
    %v458 = vand.u32 %v457, 4294901760
    %459 = vmatmul.mubr.f32.gmra.mxu0 %v458
    %v460 = vpop.f32.mrf.mxu0
    %v461 = vadd.f32 %v361, %v460
    %v462 = vpop.f32.mrf.mxu0
    %463 = vmatprep.mubr.f32.mxu0 0.0
    %v464 = vand.u32 %v50, 4294901760
    %v465 = vsub.f32 %v50, %v464
    %v466 = vand.u32 %v465, 4294901760
    %467 = vmatmul.mubr.f32.gmra.mxu0 %v466
    %v468 = vpop.f32.mrf.mxu0
    %v469 = vadd.f32 %v368, %v468
    %v470 = vpop.f32.mrf.mxu0
    %471 = vdwg.mxu0
    %472 = vmatprep.subr.mxu0 0.0
    %473 = vmatpush1.msra.mxu0 0.0
    %474 = vmatprep.subr.mxu0 0.0
    %475 = vmatpush1.msra.mxu0 0.0
    %476 = vmatprep.subr.mxu0 0.0
    %477 = vmatpush1.msra.mxu0 0.0
    %478 = vmatprep.subr.mxu0 0.0
    %479 = vmatpush1.msra.mxu0 0.0
    %480 = vmatprep.subr.mxu0 0.0
    %481 = vmatpush1.msra.mxu0 0.0
    %482 = vmatprep.subr.mxu0 0.0
    %483 = vmatpush1.msra.mxu0 0.0
    %484 = vmatprep.subr.mxu0 0.0
    %485 = vmatpush1.msra.mxu0 0.0
    %486 = vmatprep.subr.mxu0 0.0
    %487 = vmatpush1.msra.mxu0 0.0
    %488 = vmatprep.subr.mxu0 0.0
    %489 = vmatpush1.msra.mxu0 0.0
    %490 = vmatprep.subr.mxu0 0.0
    %491 = vmatpush1.msra.mxu0 0.0
    %492 = vmatprep.subr.mxu0 0.0
    %493 = vmatpush1.msra.mxu0 0.0
    %494 = vmatprep.subr.mxu0 0.0
    %495 = vmatpush1.msra.mxu0 0.0
    %496 = vmatprep.subr.mxu0 0.0
    %v497 = vand.u32 %v38, 4294901760
    %v498 = vsub.f32 %v38, %v497
    %v499 = vand.u32 %v498, 4294901760
    %500 = vmatpush1.msra.mxu0 %v499
    %501 = vmatprep.subr.mxu0 0.0
    %v502 = vand.u32 %v37, 4294901760
    %v503 = vsub.f32 %v37, %v502
    %v504 = vand.u32 %v503, 4294901760
    %505 = vmatpush1.msra.mxu0 %v504
    %506 = vmatprep.subr.mxu0 0.0
    %v507 = vand.u32 %v36, 4294901760
    %v508 = vsub.f32 %v36, %v507
    %v509 = vand.u32 %v508, 4294901760
    %510 = vmatpush1.msra.mxu0 %v509
    %511 = vmatprep.subr.mxu0 0.0
    %v512 = vand.u32 %v35, 4294901760
    %v513 = vsub.f32 %v35, %v512
    %v514 = vand.u32 %v513, 4294901760
    %515 = vmatpush1.msra.mxu0 %v514
    %516 = vmatprep.subr.mxu0 0.0
    %517 = vmatpush2.msra.mxu0 0.0
    %518 = vmatprep.subr.mxu0 0.0
    %519 = vmatpush2.msra.mxu0 0.0
    %520 = vmatprep.subr.mxu0 0.0
    %521 = vmatpush2.msra.mxu0 0.0
    %522 = vmatprep.subr.mxu0 0.0
    %523 = vmatpush2.msra.mxu0 0.0
    %524 = vmatprep.subr.mxu0 0.0
    %525 = vmatpush2.msra.mxu0 0.0
    %526 = vmatprep.subr.mxu0 0.0
    %527 = vmatpush2.msra.mxu0 0.0
    %528 = vmatprep.subr.mxu0 0.0
    %529 = vmatpush2.msra.mxu0 0.0
    %530 = vmatprep.subr.mxu0 0.0
    %531 = vmatpush2.msra.mxu0 0.0
    %532 = vmatprep.subr.mxu0 0.0
    %533 = vmatpush2.msra.mxu0 0.0
    %534 = vmatprep.subr.mxu0 0.0
    %535 = vmatpush2.msra.mxu0 0.0
    %536 = vmatprep.subr.mxu0 0.0
    %537 = vmatpush2.msra.mxu0 0.0
    %538 = vmatprep.subr.mxu0 0.0
    %539 = vmatpush2.msra.mxu0 0.0
    %540 = vmatprep.subr.mxu0 0.0
    %541 = vmatpush2.msra.mxu0 0.0
    %542 = vmatprep.subr.mxu0 0.0
    %543 = vmatpush2.msra.mxu0 0.0
    %544 = vmatprep.subr.mxu0 0.0
    %545 = vmatpush2.msra.mxu0 0.0
    %546 = vmatprep.subr.mxu0 0.0
    %547 = vmatpush2.msra.mxu0 0.0
    %548 = vmatprep.mubr.f32.mxu0 0.0
    %v549 = vand.u32 %v41, 4294901760
    %550 = vmatmul.mubr.f32.gmra.mxu0 %v549
    %v551 = vpop.f32.mrf.mxu0
    %v552 = vadd.f32 %v445, %v551
    %v553 = vpop.f32.mrf.mxu0
    %554 = vmatprep.mubr.f32.mxu0 0.0
    %v555 = vand.u32 %v44, 4294901760
    %556 = vmatmul.mubr.f32.gmra.mxu0 %v555
    %v557 = vpop.f32.mrf.mxu0
    %v558 = vadd.f32 %v453, %v557
    %v559 = vpop.f32.mrf.mxu0
    %560 = vmatprep.mubr.f32.mxu0 0.0
    %v561 = vand.u32 %v47, 4294901760
    %562 = vmatmul.mubr.f32.gmra.mxu0 %v561
    %v563 = vpop.f32.mrf.mxu0
    %v564 = vadd.f32 %v461, %v563
    %v565 = vpop.f32.mrf.mxu0
    %566 = vmatprep.mubr.f32.mxu0 0.0
    %v567 = vand.u32 %v50, 4294901760
    %568 = vmatmul.mubr.f32.gmra.mxu0 %v567
    %v569 = vpop.f32.mrf.mxu0
    %v570 = vadd.f32 %v469, %v569
    %v571 = vpop.f32.mrf.mxu0
    %572 = vdwg.mxu0
    %573 = vmatprep.subr.mxu0 0.0
    %574 = vmatpush1.msra.mxu0 0.0
    %575 = vmatprep.subr.mxu0 0.0
    %576 = vmatpush1.msra.mxu0 0.0
    %577 = vmatprep.subr.mxu0 0.0
    %578 = vmatpush1.msra.mxu0 0.0
    %579 = vmatprep.subr.mxu0 0.0
    %580 = vmatpush1.msra.mxu0 0.0
    %581 = vmatprep.subr.mxu0 0.0
    %582 = vmatpush1.msra.mxu0 0.0
    %583 = vmatprep.subr.mxu0 0.0
    %584 = vmatpush1.msra.mxu0 0.0
    %585 = vmatprep.subr.mxu0 0.0
    %586 = vmatpush1.msra.mxu0 0.0
    %587 = vmatprep.subr.mxu0 0.0
    %588 = vmatpush1.msra.mxu0 0.0
    %589 = vmatprep.subr.mxu0 0.0
    %590 = vmatpush1.msra.mxu0 0.0
    %591 = vmatprep.subr.mxu0 0.0
    %592 = vmatpush1.msra.mxu0 0.0
    %593 = vmatprep.subr.mxu0 0.0
    %594 = vmatpush1.msra.mxu0 0.0
    %595 = vmatprep.subr.mxu0 0.0
    %596 = vmatpush1.msra.mxu0 0.0
    %597 = vmatprep.subr.mxu0 0.0
    %v598 = vand.u32 %v38, 4294901760
    %599 = vmatpush1.msra.mxu0 %v598
    %600 = vmatprep.subr.mxu0 0.0
    %v601 = vand.u32 %v37, 4294901760
    %602 = vmatpush1.msra.mxu0 %v601
    %603 = vmatprep.subr.mxu0 0.0
    %v604 = vand.u32 %v36, 4294901760
    %605 = vmatpush1.msra.mxu0 %v604
    %606 = vmatprep.subr.mxu0 0.0
    %v607 = vand.u32 %v35, 4294901760
    %608 = vmatpush1.msra.mxu0 %v607
    %609 = vmatprep.subr.mxu0 0.0
    %610 = vmatpush2.msra.mxu0 0.0
    %611 = vmatprep.subr.mxu0 0.0
    %612 = vmatpush2.msra.mxu0 0.0
    %613 = vmatprep.subr.mxu0 0.0
    %614 = vmatpush2.msra.mxu0 0.0
    %615 = vmatprep.subr.mxu0 0.0
    %616 = vmatpush2.msra.mxu0 0.0
    %617 = vmatprep.subr.mxu0 0.0
    %618 = vmatpush2.msra.mxu0 0.0
    %619 = vmatprep.subr.mxu0 0.0
    %620 = vmatpush2.msra.mxu0 0.0
    %621 = vmatprep.subr.mxu0 0.0
    %622 = vmatpush2.msra.mxu0 0.0
    %623 = vmatprep.subr.mxu0 0.0
    %624 = vmatpush2.msra.mxu0 0.0
    %625 = vmatprep.subr.mxu0 0.0
    %626 = vmatpush2.msra.mxu0 0.0
    %627 = vmatprep.subr.mxu0 0.0
    %628 = vmatpush2.msra.mxu0 0.0
    %629 = vmatprep.subr.mxu0 0.0
    %630 = vmatpush2.msra.mxu0 0.0
    %631 = vmatprep.subr.mxu0 0.0
    %632 = vmatpush2.msra.mxu0 0.0
    %633 = vmatprep.subr.mxu0 0.0
    %634 = vmatpush2.msra.mxu0 0.0
    %635 = vmatprep.subr.mxu0 0.0
    %636 = vmatpush2.msra.mxu0 0.0
    %637 = vmatprep.subr.mxu0 0.0
    %638 = vmatpush2.msra.mxu0 0.0
    %639 = vmatprep.subr.mxu0 0.0
    %640 = vmatpush2.msra.mxu0 0.0
    %641 = vmatprep.mubr.f32.mxu0 0.0
    %v642 = vand.u32 %v41, 4294901760
    %643 = vmatmul.mubr.f32.gmra.mxu0 %v642
    %v644 = vpop.f32.mrf.mxu0
    %v645 = vadd.f32 %v552, %v644
    %v646 = vpop.f32.mrf.mxu0
    %647 = vmatprep.mubr.f32.mxu0 0.0
    %v648 = vand.u32 %v44, 4294901760
    %649 = vmatmul.mubr.f32.gmra.mxu0 %v648
    %v650 = vpop.f32.mrf.mxu0
    %v651 = vadd.f32 %v558, %v650
    %v652 = vpop.f32.mrf.mxu0
    %653 = vmatprep.mubr.f32.mxu0 0.0
    %v654 = vand.u32 %v47, 4294901760
    %655 = vmatmul.mubr.f32.gmra.mxu0 %v654
    %v656 = vpop.f32.mrf.mxu0
    %v657 = vadd.f32 %v564, %v656
    %v658 = vpop.f32.mrf.mxu0
    %659 = vmatprep.mubr.f32.mxu0 0.0
    %v660 = vand.u32 %v50, 4294901760
    %661 = vmatmul.mubr.f32.gmra.mxu0 %v660
    %v662 = vpop.f32.mrf.mxu0
    %v663 = vadd.f32 %v570, %v662
    %v664 = vpop.f32.mrf.mxu0
    %665 = vdwg.mxu0
    %s666 = scalar_lea.vmem %s3, 192
    %v667 = vld [vmem:[%s666] sm:$0xff]
    %v668 = vld [vmem:[%s666 + $0x8] sm:$0xff]
    %v669 = vld [vmem:[%s666 + $0x10] sm:$0xff]
    %v670 = vld [vmem:[%s666 + $0x18] sm:$0xff]
    %671 = vmatprep.subr.mxu0 0.0
    %672 = vmatpush1.msra.mxu0 0.0
    %673 = vmatprep.subr.mxu0 0.0
    %674 = vmatpush1.msra.mxu0 0.0
    %675 = vmatprep.subr.mxu0 0.0
    %676 = vmatpush1.msra.mxu0 0.0
    %677 = vmatprep.subr.mxu0 0.0
    %678 = vmatpush1.msra.mxu0 0.0
    %679 = vmatprep.subr.mxu0 0.0
    %680 = vmatpush1.msra.mxu0 0.0
    %681 = vmatprep.subr.mxu0 0.0
    %682 = vmatpush1.msra.mxu0 0.0
    %683 = vmatprep.subr.mxu0 0.0
    %684 = vmatpush1.msra.mxu0 0.0
    %685 = vmatprep.subr.mxu0 0.0
    %686 = vmatpush1.msra.mxu0 0.0
    %687 = vmatprep.subr.mxu0 0.0
    %688 = vmatpush1.msra.mxu0 0.0
    %689 = vmatprep.subr.mxu0 0.0
    %690 = vmatpush1.msra.mxu0 0.0
    %691 = vmatprep.subr.mxu0 0.0
    %692 = vmatpush1.msra.mxu0 0.0
    %693 = vmatprep.subr.mxu0 0.0
    %694 = vmatpush1.msra.mxu0 0.0
    %695 = vmatprep.subr.mxu0 0.0
    %v696 = vand.u32 %v670, 4294901760
    %697 = vmatpush1.msra.mxu0 %v696
    %698 = vmatprep.subr.mxu0 0.0
    %v699 = vand.u32 %v669, 4294901760
    %700 = vmatpush1.msra.mxu0 %v699
    %701 = vmatprep.subr.mxu0 0.0
    %v702 = vand.u32 %v668, 4294901760
    %703 = vmatpush1.msra.mxu0 %v702
    %704 = vmatprep.subr.mxu0 0.0
    %v705 = vand.u32 %v667, 4294901760
    %706 = vmatpush1.msra.mxu0 %v705
    %707 = vmatprep.subr.mxu0 0.0
    %708 = vmatpush2.msra.mxu0 0.0
    %709 = vmatprep.subr.mxu0 0.0
    %710 = vmatpush2.msra.mxu0 0.0
    %711 = vmatprep.subr.mxu0 0.0
    %712 = vmatpush2.msra.mxu0 0.0
    %713 = vmatprep.subr.mxu0 0.0
    %714 = vmatpush2.msra.mxu0 0.0
    %715 = vmatprep.subr.mxu0 0.0
    %716 = vmatpush2.msra.mxu0 0.0
    %717 = vmatprep.subr.mxu0 0.0
    %718 = vmatpush2.msra.mxu0 0.0
    %719 = vmatprep.subr.mxu0 0.0
    %720 = vmatpush2.msra.mxu0 0.0
    %721 = vmatprep.subr.mxu0 0.0
    %722 = vmatpush2.msra.mxu0 0.0
    %723 = vmatprep.subr.mxu0 0.0
    %724 = vmatpush2.msra.mxu0 0.0
    %725 = vmatprep.subr.mxu0 0.0
    %726 = vmatpush2.msra.mxu0 0.0
    %727 = vmatprep.subr.mxu0 0.0
    %728 = vmatpush2.msra.mxu0 0.0
    %729 = vmatprep.subr.mxu0 0.0
    %730 = vmatpush2.msra.mxu0 0.0
    %731 = vmatprep.subr.mxu0 0.0
    %732 = vmatpush2.msra.mxu0 0.0
    %733 = vmatprep.subr.mxu0 0.0
    %734 = vmatpush2.msra.mxu0 0.0
    %735 = vmatprep.subr.mxu0 0.0
    %736 = vmatpush2.msra.mxu0 0.0
    %737 = vmatprep.subr.mxu0 0.0
    %738 = vmatpush2.msra.mxu0 0.0
    %739 = vmatprep.mubr.f32.mxu0 0.0
    %v740 = vand.u32 %v41, 4294901760
    %v741 = vsub.f32 %v41, %v740
    %v742 = vand.u32 %v741, 4294901760
    %v743 = vsub.f32 %v741, %v742
    %v744 = vand.u32 %v743, 4294901760
    %745 = vmatmul.mubr.f32.gmra.mxu0 %v744
    %v746 = vpop.f32.mrf.mxu0
    %v747 = vadd.f32 0.0, %v746
    %v748 = vpop.f32.mrf.mxu0
    %749 = vmatprep.mubr.f32.mxu0 0.0
    %v750 = vand.u32 %v44, 4294901760
    %v751 = vsub.f32 %v44, %v750
    %v752 = vand.u32 %v751, 4294901760
    %v753 = vsub.f32 %v751, %v752
    %v754 = vand.u32 %v753, 4294901760
    %755 = vmatmul.mubr.f32.gmra.mxu0 %v754
    %v756 = vpop.f32.mrf.mxu0
    %v757 = vadd.f32 0.0, %v756
    %v758 = vpop.f32.mrf.mxu0
    %759 = vmatprep.mubr.f32.mxu0 0.0
    %v760 = vand.u32 %v47, 4294901760
    %v761 = vsub.f32 %v47, %v760
    %v762 = vand.u32 %v761, 4294901760
    %v763 = vsub.f32 %v761, %v762
    %v764 = vand.u32 %v763, 4294901760
    %765 = vmatmul.mubr.f32.gmra.mxu0 %v764
    %v766 = vpop.f32.mrf.mxu0
    %v767 = vadd.f32 0.0, %v766
    %v768 = vpop.f32.mrf.mxu0
    %769 = vmatprep.mubr.f32.mxu0 0.0
    %v770 = vand.u32 %v50, 4294901760
    %v771 = vsub.f32 %v50, %v770
    %v772 = vand.u32 %v771, 4294901760
    %v773 = vsub.f32 %v771, %v772
    %v774 = vand.u32 %v773, 4294901760
    %775 = vmatmul.mubr.f32.gmra.mxu0 %v774
    %v776 = vpop.f32.mrf.mxu0
    %v777 = vadd.f32 0.0, %v776
    %v778 = vpop.f32.mrf.mxu0
    %779 = vdwg.mxu0
    %780 = vmatprep.subr.mxu0 0.0
    %781 = vmatpush1.msra.mxu0 0.0
    %782 = vmatprep.subr.mxu0 0.0
    %783 = vmatpush1.msra.mxu0 0.0
    %784 = vmatprep.subr.mxu0 0.0
    %785 = vmatpush1.msra.mxu0 0.0
    %786 = vmatprep.subr.mxu0 0.0
    %787 = vmatpush1.msra.mxu0 0.0
    %788 = vmatprep.subr.mxu0 0.0
    %789 = vmatpush1.msra.mxu0 0.0
    %790 = vmatprep.subr.mxu0 0.0
    %791 = vmatpush1.msra.mxu0 0.0
    %792 = vmatprep.subr.mxu0 0.0
    %793 = vmatpush1.msra.mxu0 0.0
    %794 = vmatprep.subr.mxu0 0.0
    %795 = vmatpush1.msra.mxu0 0.0
    %796 = vmatprep.subr.mxu0 0.0
    %797 = vmatpush1.msra.mxu0 0.0
    %798 = vmatprep.subr.mxu0 0.0
    %799 = vmatpush1.msra.mxu0 0.0
    %800 = vmatprep.subr.mxu0 0.0
    %801 = vmatpush1.msra.mxu0 0.0
    %802 = vmatprep.subr.mxu0 0.0
    %803 = vmatpush1.msra.mxu0 0.0
    %804 = vmatprep.subr.mxu0 0.0
    %v805 = vand.u32 %v670, 4294901760
    %v806 = vsub.f32 %v670, %v805
    %v807 = vand.u32 %v806, 4294901760
    %v808 = vsub.f32 %v806, %v807
    %v809 = vand.u32 %v808, 4294901760
    %810 = vmatpush1.msra.mxu0 %v809
    %811 = vmatprep.subr.mxu0 0.0
    %v812 = vand.u32 %v669, 4294901760
    %v813 = vsub.f32 %v669, %v812
    %v814 = vand.u32 %v813, 4294901760
    %v815 = vsub.f32 %v813, %v814
    %v816 = vand.u32 %v815, 4294901760
    %817 = vmatpush1.msra.mxu0 %v816
    %818 = vmatprep.subr.mxu0 0.0
    %v819 = vand.u32 %v668, 4294901760
    %v820 = vsub.f32 %v668, %v819
    %v821 = vand.u32 %v820, 4294901760
    %v822 = vsub.f32 %v820, %v821
    %v823 = vand.u32 %v822, 4294901760
    %824 = vmatpush1.msra.mxu0 %v823
    %825 = vmatprep.subr.mxu0 0.0
    %v826 = vand.u32 %v667, 4294901760
    %v827 = vsub.f32 %v667, %v826
    %v828 = vand.u32 %v827, 4294901760
    %v829 = vsub.f32 %v827, %v828
    %v830 = vand.u32 %v829, 4294901760
    %831 = vmatpush1.msra.mxu0 %v830
    %832 = vmatprep.subr.mxu0 0.0
    %833 = vmatpush2.msra.mxu0 0.0
    %834 = vmatprep.subr.mxu0 0.0
    %835 = vmatpush2.msra.mxu0 0.0
    %836 = vmatprep.subr.mxu0 0.0
    %837 = vmatpush2.msra.mxu0 0.0
    %838 = vmatprep.subr.mxu0 0.0
    %839 = vmatpush2.msra.mxu0 0.0
    %840 = vmatprep.subr.mxu0 0.0
    %841 = vmatpush2.msra.mxu0 0.0
    %842 = vmatprep.subr.mxu0 0.0
    %843 = vmatpush2.msra.mxu0 0.0
    %844 = vmatprep.subr.mxu0 0.0
    %845 = vmatpush2.msra.mxu0 0.0
    %846 = vmatprep.subr.mxu0 0.0
    %847 = vmatpush2.msra.mxu0 0.0
    %848 = vmatprep.subr.mxu0 0.0
    %849 = vmatpush2.msra.mxu0 0.0
    %850 = vmatprep.subr.mxu0 0.0
    %851 = vmatpush2.msra.mxu0 0.0
    %852 = vmatprep.subr.mxu0 0.0
    %853 = vmatpush2.msra.mxu0 0.0
    %854 = vmatprep.subr.mxu0 0.0
    %855 = vmatpush2.msra.mxu0 0.0
    %856 = vmatprep.subr.mxu0 0.0
    %857 = vmatpush2.msra.mxu0 0.0
    %858 = vmatprep.subr.mxu0 0.0
    %859 = vmatpush2.msra.mxu0 0.0
    %860 = vmatprep.subr.mxu0 0.0
    %861 = vmatpush2.msra.mxu0 0.0
    %862 = vmatprep.subr.mxu0 0.0
    %863 = vmatpush2.msra.mxu0 0.0
    %864 = vmatprep.mubr.f32.mxu0 0.0
    %v865 = vand.u32 %v41, 4294901760
    %866 = vmatmul.mubr.f32.gmra.mxu0 %v865
    %v867 = vpop.f32.mrf.mxu0
    %v868 = vadd.f32 %v747, %v867
    %v869 = vpop.f32.mrf.mxu0
    %870 = vmatprep.mubr.f32.mxu0 0.0
    %v871 = vand.u32 %v44, 4294901760
    %872 = vmatmul.mubr.f32.gmra.mxu0 %v871
    %v873 = vpop.f32.mrf.mxu0
    %v874 = vadd.f32 %v757, %v873
    %v875 = vpop.f32.mrf.mxu0
    %876 = vmatprep.mubr.f32.mxu0 0.0
    %v877 = vand.u32 %v47, 4294901760
    %878 = vmatmul.mubr.f32.gmra.mxu0 %v877
    %v879 = vpop.f32.mrf.mxu0
    %v880 = vadd.f32 %v767, %v879
    %v881 = vpop.f32.mrf.mxu0
    %882 = vmatprep.mubr.f32.mxu0 0.0
    %v883 = vand.u32 %v50, 4294901760
    %884 = vmatmul.mubr.f32.gmra.mxu0 %v883
    %v885 = vpop.f32.mrf.mxu0
    %v886 = vadd.f32 %v777, %v885
    %v887 = vpop.f32.mrf.mxu0
    %888 = vdwg.mxu0
    %889 = vmatprep.subr.mxu0 0.0
    %890 = vmatpush1.msra.mxu0 0.0
    %891 = vmatprep.subr.mxu0 0.0
    %892 = vmatpush1.msra.mxu0 0.0
    %893 = vmatprep.subr.mxu0 0.0
    %894 = vmatpush1.msra.mxu0 0.0
    %895 = vmatprep.subr.mxu0 0.0
    %896 = vmatpush1.msra.mxu0 0.0
    %897 = vmatprep.subr.mxu0 0.0
    %898 = vmatpush1.msra.mxu0 0.0
    %899 = vmatprep.subr.mxu0 0.0
    %900 = vmatpush1.msra.mxu0 0.0
    %901 = vmatprep.subr.mxu0 0.0
    %902 = vmatpush1.msra.mxu0 0.0
    %903 = vmatprep.subr.mxu0 0.0
    %904 = vmatpush1.msra.mxu0 0.0
    %905 = vmatprep.subr.mxu0 0.0
    %906 = vmatpush1.msra.mxu0 0.0
    %907 = vmatprep.subr.mxu0 0.0
    %908 = vmatpush1.msra.mxu0 0.0
    %909 = vmatprep.subr.mxu0 0.0
    %910 = vmatpush1.msra.mxu0 0.0
    %911 = vmatprep.subr.mxu0 0.0
    %912 = vmatpush1.msra.mxu0 0.0
    %913 = vmatprep.subr.mxu0 0.0
    %v914 = vand.u32 %v670, 4294901760
    %v915 = vsub.f32 %v670, %v914
    %916 = vmatpush1.msra.mxu0 %v915
    %917 = vmatprep.subr.mxu0 0.0
    %v918 = vand.u32 %v669, 4294901760
    %v919 = vsub.f32 %v669, %v918
    %920 = vmatpush1.msra.mxu0 %v919
    %921 = vmatprep.subr.mxu0 0.0
    %v922 = vand.u32 %v668, 4294901760
    %v923 = vsub.f32 %v668, %v922
    %924 = vmatpush1.msra.mxu0 %v923
    %925 = vmatprep.subr.mxu0 0.0
    %v926 = vand.u32 %v667, 4294901760
    %v927 = vsub.f32 %v667, %v926
    %928 = vmatpush1.msra.mxu0 %v927
    %929 = vmatprep.subr.mxu0 0.0
    %930 = vmatpush2.msra.mxu0 0.0
    %931 = vmatprep.subr.mxu0 0.0
    %932 = vmatpush2.msra.mxu0 0.0
    %933 = vmatprep.subr.mxu0 0.0
    %934 = vmatpush2.msra.mxu0 0.0
    %935 = vmatprep.subr.mxu0 0.0
    %936 = vmatpush2.msra.mxu0 0.0
    %937 = vmatprep.subr.mxu0 0.0
    %938 = vmatpush2.msra.mxu0 0.0
    %939 = vmatprep.subr.mxu0 0.0
    %940 = vmatpush2.msra.mxu0 0.0
    %941 = vmatprep.subr.mxu0 0.0
    %942 = vmatpush2.msra.mxu0 0.0
    %943 = vmatprep.subr.mxu0 0.0
    %944 = vmatpush2.msra.mxu0 0.0
    %945 = vmatprep.subr.mxu0 0.0
    %946 = vmatpush2.msra.mxu0 0.0
    %947 = vmatprep.subr.mxu0 0.0
    %948 = vmatpush2.msra.mxu0 0.0
    %949 = vmatprep.subr.mxu0 0.0
    %950 = vmatpush2.msra.mxu0 0.0
    %951 = vmatprep.subr.mxu0 0.0
    %952 = vmatpush2.msra.mxu0 0.0
    %953 = vmatprep.subr.mxu0 0.0
    %954 = vmatpush2.msra.mxu0 0.0
    %955 = vmatprep.subr.mxu0 0.0
    %956 = vmatpush2.msra.mxu0 0.0
    %957 = vmatprep.subr.mxu0 0.0
    %958 = vmatpush2.msra.mxu0 0.0
    %959 = vmatprep.subr.mxu0 0.0
    %960 = vmatpush2.msra.mxu0 0.0
    %961 = vmatprep.mubr.f32.mxu0 0.0
    %v962 = vand.u32 %v41, 4294901760
    %v963 = vsub.f32 %v41, %v962
    %964 = vmatmul.mubr.f32.gmra.mxu0 %v963
    %v965 = vpop.f32.mrf.mxu0
    %v966 = vadd.f32 %v868, %v965
    %v967 = vpop.f32.mrf.mxu0
    %968 = vmatprep.mubr.f32.mxu0 0.0
    %v969 = vand.u32 %v44, 4294901760
    %v970 = vsub.f32 %v44, %v969
    %971 = vmatmul.mubr.f32.gmra.mxu0 %v970
    %v972 = vpop.f32.mrf.mxu0
    %v973 = vadd.f32 %v874, %v972
    %v974 = vpop.f32.mrf.mxu0
    %975 = vmatprep.mubr.f32.mxu0 0.0
    %v976 = vand.u32 %v47, 4294901760
    %v977 = vsub.f32 %v47, %v976
    %978 = vmatmul.mubr.f32.gmra.mxu0 %v977
    %v979 = vpop.f32.mrf.mxu0
    %v980 = vadd.f32 %v880, %v979
    %v981 = vpop.f32.mrf.mxu0
    %982 = vmatprep.mubr.f32.mxu0 0.0
    %v983 = vand.u32 %v50, 4294901760
    %v984 = vsub.f32 %v50, %v983
    %985 = vmatmul.mubr.f32.gmra.mxu0 %v984
    %v986 = vpop.f32.mrf.mxu0
    %v987 = vadd.f32 %v886, %v986
    %v988 = vpop.f32.mrf.mxu0
    %989 = vdwg.mxu0
    %990 = vmatprep.subr.mxu0 0.0
    %991 = vmatpush1.msra.mxu0 0.0
    %992 = vmatprep.subr.mxu0 0.0
    %993 = vmatpush1.msra.mxu0 0.0
    %994 = vmatprep.subr.mxu0 0.0
    %995 = vmatpush1.msra.mxu0 0.0
    %996 = vmatprep.subr.mxu0 0.0
    %997 = vmatpush1.msra.mxu0 0.0
    %998 = vmatprep.subr.mxu0 0.0
    %999 = vmatpush1.msra.mxu0 0.0
    %1000 = vmatprep.subr.mxu0 0.0
    %1001 = vmatpush1.msra.mxu0 0.0
    %1002 = vmatprep.subr.mxu0 0.0
    %1003 = vmatpush1.msra.mxu0 0.0
    %1004 = vmatprep.subr.mxu0 0.0
    %1005 = vmatpush1.msra.mxu0 0.0
    %1006 = vmatprep.subr.mxu0 0.0
    %1007 = vmatpush1.msra.mxu0 0.0
    %1008 = vmatprep.subr.mxu0 0.0
    %1009 = vmatpush1.msra.mxu0 0.0
    %1010 = vmatprep.subr.mxu0 0.0
    %1011 = vmatpush1.msra.mxu0 0.0
    %1012 = vmatprep.subr.mxu0 0.0
    %1013 = vmatpush1.msra.mxu0 0.0
    %1014 = vmatprep.subr.mxu0 0.0
    %v1015 = vand.u32 %v670, 4294901760
    %1016 = vmatpush1.msra.mxu0 %v1015
    %1017 = vmatprep.subr.mxu0 0.0
    %v1018 = vand.u32 %v669, 4294901760
    %1019 = vmatpush1.msra.mxu0 %v1018
    %1020 = vmatprep.subr.mxu0 0.0
    %v1021 = vand.u32 %v668, 4294901760
    %1022 = vmatpush1.msra.mxu0 %v1021
    %1023 = vmatprep.subr.mxu0 0.0
    %v1024 = vand.u32 %v667, 4294901760
    %1025 = vmatpush1.msra.mxu0 %v1024
    %1026 = vmatprep.subr.mxu0 0.0
    %1027 = vmatpush2.msra.mxu0 0.0
    %1028 = vmatprep.subr.mxu0 0.0
    %1029 = vmatpush2.msra.mxu0 0.0
    %1030 = vmatprep.subr.mxu0 0.0
    %1031 = vmatpush2.msra.mxu0 0.0
    %1032 = vmatprep.subr.mxu0 0.0
    %1033 = vmatpush2.msra.mxu0 0.0
    %1034 = vmatprep.subr.mxu0 0.0
    %1035 = vmatpush2.msra.mxu0 0.0
    %1036 = vmatprep.subr.mxu0 0.0
    %1037 = vmatpush2.msra.mxu0 0.0
    %1038 = vmatprep.subr.mxu0 0.0
    %1039 = vmatpush2.msra.mxu0 0.0
    %1040 = vmatprep.subr.mxu0 0.0
    %1041 = vmatpush2.msra.mxu0 0.0
    %1042 = vmatprep.subr.mxu0 0.0
    %1043 = vmatpush2.msra.mxu0 0.0
    %1044 = vmatprep.subr.mxu0 0.0
    %1045 = vmatpush2.msra.mxu0 0.0
    %1046 = vmatprep.subr.mxu0 0.0
    %1047 = vmatpush2.msra.mxu0 0.0
    %1048 = vmatprep.subr.mxu0 0.0
    %1049 = vmatpush2.msra.mxu0 0.0
    %1050 = vmatprep.subr.mxu0 0.0
    %1051 = vmatpush2.msra.mxu0 0.0
    %1052 = vmatprep.subr.mxu0 0.0
    %1053 = vmatpush2.msra.mxu0 0.0
    %1054 = vmatprep.subr.mxu0 0.0
    %1055 = vmatpush2.msra.mxu0 0.0
    %1056 = vmatprep.subr.mxu0 0.0
    %1057 = vmatpush2.msra.mxu0 0.0
    %1058 = vmatprep.mubr.f32.mxu0 0.0
    %v1059 = vand.u32 %v41, 4294901760
    %v1060 = vsub.f32 %v41, %v1059
    %v1061 = vand.u32 %v1060, 4294901760
    %1062 = vmatmul.mubr.f32.gmra.mxu0 %v1061
    %v1063 = vpop.f32.mrf.mxu0
    %v1064 = vadd.f32 %v966, %v1063
    %v1065 = vpop.f32.mrf.mxu0
    %1066 = vmatprep.mubr.f32.mxu0 0.0
    %v1067 = vand.u32 %v44, 4294901760
    %v1068 = vsub.f32 %v44, %v1067
    %v1069 = vand.u32 %v1068, 4294901760
    %1070 = vmatmul.mubr.f32.gmra.mxu0 %v1069
    %v1071 = vpop.f32.mrf.mxu0
    %v1072 = vadd.f32 %v973, %v1071
    %v1073 = vpop.f32.mrf.mxu0
    %1074 = vmatprep.mubr.f32.mxu0 0.0
    %v1075 = vand.u32 %v47, 4294901760
    %v1076 = vsub.f32 %v47, %v1075
    %v1077 = vand.u32 %v1076, 4294901760
    %1078 = vmatmul.mubr.f32.gmra.mxu0 %v1077
    %v1079 = vpop.f32.mrf.mxu0
    %v1080 = vadd.f32 %v980, %v1079
    %v1081 = vpop.f32.mrf.mxu0
    %1082 = vmatprep.mubr.f32.mxu0 0.0
    %v1083 = vand.u32 %v50, 4294901760
    %v1084 = vsub.f32 %v50, %v1083
    %v1085 = vand.u32 %v1084, 4294901760
    %1086 = vmatmul.mubr.f32.gmra.mxu0 %v1085
    %v1087 = vpop.f32.mrf.mxu0
    %v1088 = vadd.f32 %v987, %v1087
    %v1089 = vpop.f32.mrf.mxu0
    %1090 = vdwg.mxu0
    %1091 = vmatprep.subr.mxu0 0.0
    %1092 = vmatpush1.msra.mxu0 0.0
    %1093 = vmatprep.subr.mxu0 0.0
    %1094 = vmatpush1.msra.mxu0 0.0
    %1095 = vmatprep.subr.mxu0 0.0
    %1096 = vmatpush1.msra.mxu0 0.0
    %1097 = vmatprep.subr.mxu0 0.0
    %1098 = vmatpush1.msra.mxu0 0.0
    %1099 = vmatprep.subr.mxu0 0.0
    %1100 = vmatpush1.msra.mxu0 0.0
    %1101 = vmatprep.subr.mxu0 0.0
    %1102 = vmatpush1.msra.mxu0 0.0
    %1103 = vmatprep.subr.mxu0 0.0
    %1104 = vmatpush1.msra.mxu0 0.0
    %1105 = vmatprep.subr.mxu0 0.0
    %1106 = vmatpush1.msra.mxu0 0.0
    %1107 = vmatprep.subr.mxu0 0.0
    %1108 = vmatpush1.msra.mxu0 0.0
    %1109 = vmatprep.subr.mxu0 0.0
    %1110 = vmatpush1.msra.mxu0 0.0
    %1111 = vmatprep.subr.mxu0 0.0
    %1112 = vmatpush1.msra.mxu0 0.0
    %1113 = vmatprep.subr.mxu0 0.0
    %1114 = vmatpush1.msra.mxu0 0.0
    %1115 = vmatprep.subr.mxu0 0.0
    %v1116 = vand.u32 %v670, 4294901760
    %v1117 = vsub.f32 %v670, %v1116
    %v1118 = vand.u32 %v1117, 4294901760
    %1119 = vmatpush1.msra.mxu0 %v1118
    %1120 = vmatprep.subr.mxu0 0.0
    %v1121 = vand.u32 %v669, 4294901760
    %v1122 = vsub.f32 %v669, %v1121
    %v1123 = vand.u32 %v1122, 4294901760
    %1124 = vmatpush1.msra.mxu0 %v1123
    %1125 = vmatprep.subr.mxu0 0.0
    %v1126 = vand.u32 %v668, 4294901760
    %v1127 = vsub.f32 %v668, %v1126
    %v1128 = vand.u32 %v1127, 4294901760
    %1129 = vmatpush1.msra.mxu0 %v1128
    %1130 = vmatprep.subr.mxu0 0.0
    %v1131 = vand.u32 %v667, 4294901760
    %v1132 = vsub.f32 %v667, %v1131
    %v1133 = vand.u32 %v1132, 4294901760
    %1134 = vmatpush1.msra.mxu0 %v1133
    %1135 = vmatprep.subr.mxu0 0.0
    %1136 = vmatpush2.msra.mxu0 0.0
    %1137 = vmatprep.subr.mxu0 0.0
    %1138 = vmatpush2.msra.mxu0 0.0
    %1139 = vmatprep.subr.mxu0 0.0
    %1140 = vmatpush2.msra.mxu0 0.0
    %1141 = vmatprep.subr.mxu0 0.0
    %1142 = vmatpush2.msra.mxu0 0.0
    %1143 = vmatprep.subr.mxu0 0.0
    %1144 = vmatpush2.msra.mxu0 0.0
    %1145 = vmatprep.subr.mxu0 0.0
    %1146 = vmatpush2.msra.mxu0 0.0
    %1147 = vmatprep.subr.mxu0 0.0
    %1148 = vmatpush2.msra.mxu0 0.0
    %1149 = vmatprep.subr.mxu0 0.0
    %1150 = vmatpush2.msra.mxu0 0.0
    %1151 = vmatprep.subr.mxu0 0.0
    %1152 = vmatpush2.msra.mxu0 0.0
    %1153 = vmatprep.subr.mxu0 0.0
    %1154 = vmatpush2.msra.mxu0 0.0
    %1155 = vmatprep.subr.mxu0 0.0
    %1156 = vmatpush2.msra.mxu0 0.0
    %1157 = vmatprep.subr.mxu0 0.0
    %1158 = vmatpush2.msra.mxu0 0.0
    %1159 = vmatprep.subr.mxu0 0.0
    %1160 = vmatpush2.msra.mxu0 0.0
    %1161 = vmatprep.subr.mxu0 0.0
    %1162 = vmatpush2.msra.mxu0 0.0
    %1163 = vmatprep.subr.mxu0 0.0
    %1164 = vmatpush2.msra.mxu0 0.0
    %1165 = vmatprep.subr.mxu0 0.0
    %1166 = vmatpush2.msra.mxu0 0.0
    %1167 = vmatprep.mubr.f32.mxu0 0.0
    %v1168 = vand.u32 %v41, 4294901760
    %1169 = vmatmul.mubr.f32.gmra.mxu0 %v1168
    %v1170 = vpop.f32.mrf.mxu0
    %v1171 = vadd.f32 %v1064, %v1170
    %v1172 = vpop.f32.mrf.mxu0
    %1173 = vmatprep.mubr.f32.mxu0 0.0
    %v1174 = vand.u32 %v44, 4294901760
    %1175 = vmatmul.mubr.f32.gmra.mxu0 %v1174
    %v1176 = vpop.f32.mrf.mxu0
    %v1177 = vadd.f32 %v1072, %v1176
    %v1178 = vpop.f32.mrf.mxu0
    %1179 = vmatprep.mubr.f32.mxu0 0.0
    %v1180 = vand.u32 %v47, 4294901760
    %1181 = vmatmul.mubr.f32.gmra.mxu0 %v1180
    %v1182 = vpop.f32.mrf.mxu0
    %v1183 = vadd.f32 %v1080, %v1182
    %v1184 = vpop.f32.mrf.mxu0
    %1185 = vmatprep.mubr.f32.mxu0 0.0
    %v1186 = vand.u32 %v50, 4294901760
    %1187 = vmatmul.mubr.f32.gmra.mxu0 %v1186
    %v1188 = vpop.f32.mrf.mxu0
    %v1189 = vadd.f32 %v1088, %v1188
    %v1190 = vpop.f32.mrf.mxu0
    %1191 = vdwg.mxu0
    %1192 = vmatprep.subr.mxu0 0.0
    %1193 = vmatpush1.msra.mxu0 0.0
    %1194 = vmatprep.subr.mxu0 0.0
    %1195 = vmatpush1.msra.mxu0 0.0
    %1196 = vmatprep.subr.mxu0 0.0
    %1197 = vmatpush1.msra.mxu0 0.0
    %1198 = vmatprep.subr.mxu0 0.0
    %1199 = vmatpush1.msra.mxu0 0.0
    %1200 = vmatprep.subr.mxu0 0.0
    %1201 = vmatpush1.msra.mxu0 0.0
    %1202 = vmatprep.subr.mxu0 0.0
    %1203 = vmatpush1.msra.mxu0 0.0
    %1204 = vmatprep.subr.mxu0 0.0
    %1205 = vmatpush1.msra.mxu0 0.0
    %1206 = vmatprep.subr.mxu0 0.0
    %1207 = vmatpush1.msra.mxu0 0.0
    %1208 = vmatprep.subr.mxu0 0.0
    %1209 = vmatpush1.msra.mxu0 0.0
    %1210 = vmatprep.subr.mxu0 0.0
    %1211 = vmatpush1.msra.mxu0 0.0
    %1212 = vmatprep.subr.mxu0 0.0
    %1213 = vmatpush1.msra.mxu0 0.0
    %1214 = vmatprep.subr.mxu0 0.0
    %1215 = vmatpush1.msra.mxu0 0.0
    %1216 = vmatprep.subr.mxu0 0.0
    %v1217 = vand.u32 %v670, 4294901760
    %1218 = vmatpush1.msra.mxu0 %v1217
    %1219 = vmatprep.subr.mxu0 0.0
    %v1220 = vand.u32 %v669, 4294901760
    %1221 = vmatpush1.msra.mxu0 %v1220
    %1222 = vmatprep.subr.mxu0 0.0
    %v1223 = vand.u32 %v668, 4294901760
    %1224 = vmatpush1.msra.mxu0 %v1223
    %1225 = vmatprep.subr.mxu0 0.0
    %v1226 = vand.u32 %v667, 4294901760
    %1227 = vmatpush1.msra.mxu0 %v1226
    %1228 = vmatprep.subr.mxu0 0.0
    %1229 = vmatpush2.msra.mxu0 0.0
    %1230 = vmatprep.subr.mxu0 0.0
    %1231 = vmatpush2.msra.mxu0 0.0
    %1232 = vmatprep.subr.mxu0 0.0
    %1233 = vmatpush2.msra.mxu0 0.0
    %1234 = vmatprep.subr.mxu0 0.0
    %1235 = vmatpush2.msra.mxu0 0.0
    %1236 = vmatprep.subr.mxu0 0.0
    %1237 = vmatpush2.msra.mxu0 0.0
    %1238 = vmatprep.subr.mxu0 0.0
    %1239 = vmatpush2.msra.mxu0 0.0
    %1240 = vmatprep.subr.mxu0 0.0
    %1241 = vmatpush2.msra.mxu0 0.0
    %1242 = vmatprep.subr.mxu0 0.0
    %1243 = vmatpush2.msra.mxu0 0.0
    %1244 = vmatprep.subr.mxu0 0.0
    %1245 = vmatpush2.msra.mxu0 0.0
    %1246 = vmatprep.subr.mxu0 0.0
    %1247 = vmatpush2.msra.mxu0 0.0
    %1248 = vmatprep.subr.mxu0 0.0
    %1249 = vmatpush2.msra.mxu0 0.0
    %1250 = vmatprep.subr.mxu0 0.0
    %1251 = vmatpush2.msra.mxu0 0.0
    %1252 = vmatprep.subr.mxu0 0.0
    %1253 = vmatpush2.msra.mxu0 0.0
    %1254 = vmatprep.subr.mxu0 0.0
    %1255 = vmatpush2.msra.mxu0 0.0
    %1256 = vmatprep.subr.mxu0 0.0
    %1257 = vmatpush2.msra.mxu0 0.0
    %1258 = vmatprep.subr.mxu0 0.0
    %1259 = vmatpush2.msra.mxu0 0.0
    %1260 = vmatprep.mubr.f32.mxu0 0.0
    %v1261 = vand.u32 %v41, 4294901760
    %1262 = vmatmul.mubr.f32.gmra.mxu0 %v1261
    %v1263 = vpop.f32.mrf.mxu0
    %v1264 = vadd.f32 %v1171, %v1263
    %v1265 = vpop.f32.mrf.mxu0
    %1266 = vmatprep.mubr.f32.mxu0 0.0
    %v1267 = vand.u32 %v44, 4294901760
    %1268 = vmatmul.mubr.f32.gmra.mxu0 %v1267
    %v1269 = vpop.f32.mrf.mxu0
    %v1270 = vadd.f32 %v1177, %v1269
    %v1271 = vpop.f32.mrf.mxu0
    %1272 = vmatprep.mubr.f32.mxu0 0.0
    %v1273 = vand.u32 %v47, 4294901760
    %1274 = vmatmul.mubr.f32.gmra.mxu0 %v1273
    %v1275 = vpop.f32.mrf.mxu0
    %v1276 = vadd.f32 %v1183, %v1275
    %v1277 = vpop.f32.mrf.mxu0
    %1278 = vmatprep.mubr.f32.mxu0 0.0
    %v1279 = vand.u32 %v50, 4294901760
    %1280 = vmatmul.mubr.f32.gmra.mxu0 %v1279
    %v1281 = vpop.f32.mrf.mxu0
    %v1282 = vadd.f32 %v1189, %v1281
    %v1283 = vpop.f32.mrf.mxu0
    %1284 = vdwg.mxu0
    %v1285 = vmul.f32 %v645, %v645
    %v1286 = vmul.f32 %v651, %v651
    %v1287 = vmul.f32 %v657, %v657
    %v1288 = vmul.f32 %v663, %v663
    %vm1289 = vcmask 64512
    %v1290 = vsel %vm1289, %v1285, 0.0
    %1291 = vadd.xlane.f32.xlu0 %v1290
    %v1292 = vpop.xlane.xlu0 %1291
    %v1293 = vsel %vm1289, %v1286, 0.0
    %1294 = vadd.xlane.f32.xlu0 %v1293
    %v1295 = vpop.xlane.xlu0 %1294
    %v1296 = vsel %vm1289, %v1287, 0.0
    %1297 = vadd.xlane.f32.xlu0 %v1296
    %v1298 = vpop.xlane.xlu0 %1297
    %v1299 = vsel %vm1289, %v1288, 0.0
    %1300 = vadd.xlane.f32.xlu0 %v1299
    %v1301 = vpop.xlane.xlu0 %1300
    %v1302 = vrcp.pop 8.0
    %v1303 = vmul.f32 %v1292, %v1302
    %v1304 = vmul.f32 %v1295, %v1302
    %v1305 = vmul.f32 %v1298, %v1302
    %v1306 = vmul.f32 %v1301, %v1302
    %v1307 = vadd.f32 %v1303, 1e-05
    %v1308 = vadd.f32 %v1304, 1e-05
    %v1309 = vadd.f32 %v1305, 1e-05
    %v1310 = vadd.f32 %v1306, 1e-05
    %v1311 = vrsqrt.pop %v1307
    %v1312 = vrsqrt.pop %v1308
    %v1313 = vrsqrt.pop %v1309
    %v1314 = vrsqrt.pop %v1310
    %v1315 = vmul.f32 %v645, %v1311
    %v1316 = vmul.f32 %v651, %v1312
    %v1317 = vmul.f32 %v657, %v1313
    %v1318 = vmul.f32 %v663, %v1314
    %v1319 = vlaneseq
    %v1320 = vshrl.u32 %v1319, 7
    %v1321 = vsub.s32 0, %v1320
    %v1322 = vrot.slane %v33, %v1321
    %v1323 = vmul.f32 %v1315, %v1322
    %v1324 = vmul.f32 %v1316, %v1322
    %v1325 = vmul.f32 %v1317, %v1322
    %v1326 = vmul.f32 %v1318, %v1322
    %s1327 = scalar_lea.vmem %s3, 160
    %v1328 = vld [vmem:[%s1327] sm:$0xff]
    %v1329 = vld [vmem:[%s1327 + $0x8] sm:$0xff]
    %v1330 = vld [vmem:[%s1327 + $0x10] sm:$0xff]
    %v1331 = vld [vmem:[%s1327 + $0x18] sm:$0xff]
    %1332 = vmatprep.subr.mxu0 0.0
    %1333 = vmatpush1.msra.mxu0 0.0
    %1334 = vmatprep.subr.mxu0 0.0
    %1335 = vmatpush1.msra.mxu0 0.0
    %1336 = vmatprep.subr.mxu0 0.0
    %1337 = vmatpush1.msra.mxu0 0.0
    %1338 = vmatprep.subr.mxu0 0.0
    %1339 = vmatpush1.msra.mxu0 0.0
    %1340 = vmatprep.subr.mxu0 0.0
    %1341 = vmatpush1.msra.mxu0 0.0
    %1342 = vmatprep.subr.mxu0 0.0
    %1343 = vmatpush1.msra.mxu0 0.0
    %1344 = vmatprep.subr.mxu0 0.0
    %1345 = vmatpush1.msra.mxu0 0.0
    %1346 = vmatprep.subr.mxu0 0.0
    %1347 = vmatpush1.msra.mxu0 0.0
    %1348 = vmatprep.subr.mxu0 0.0
    %1349 = vmatpush1.msra.mxu0 0.0
    %1350 = vmatprep.subr.mxu0 0.0
    %1351 = vmatpush1.msra.mxu0 0.0
    %1352 = vmatprep.subr.mxu0 0.0
    %1353 = vmatpush1.msra.mxu0 0.0
    %1354 = vmatprep.subr.mxu0 0.0
    %1355 = vmatpush1.msra.mxu0 0.0
    %1356 = vmatprep.subr.mxu0 0.0
    %v1357 = vand.u32 %v1331, 4294901760
    %1358 = vmatpush1.msra.mxu0 %v1357
    %1359 = vmatprep.subr.mxu0 0.0
    %v1360 = vand.u32 %v1330, 4294901760
    %1361 = vmatpush1.msra.mxu0 %v1360
    %1362 = vmatprep.subr.mxu0 0.0
    %v1363 = vand.u32 %v1329, 4294901760
    %1364 = vmatpush1.msra.mxu0 %v1363
    %1365 = vmatprep.subr.mxu0 0.0
    %v1366 = vand.u32 %v1328, 4294901760
    %1367 = vmatpush1.msra.mxu0 %v1366
    %1368 = vmatprep.subr.mxu0 0.0
    %1369 = vmatpush2.msra.mxu0 0.0
    %1370 = vmatprep.subr.mxu0 0.0
    %1371 = vmatpush2.msra.mxu0 0.0
    %1372 = vmatprep.subr.mxu0 0.0
    %1373 = vmatpush2.msra.mxu0 0.0
    %1374 = vmatprep.subr.mxu0 0.0
    %1375 = vmatpush2.msra.mxu0 0.0
    %1376 = vmatprep.subr.mxu0 0.0
    %1377 = vmatpush2.msra.mxu0 0.0
    %1378 = vmatprep.subr.mxu0 0.0
    %1379 = vmatpush2.msra.mxu0 0.0
    %1380 = vmatprep.subr.mxu0 0.0
    %1381 = vmatpush2.msra.mxu0 0.0
    %1382 = vmatprep.subr.mxu0 0.0
    %1383 = vmatpush2.msra.mxu0 0.0
    %1384 = vmatprep.subr.mxu0 0.0
    %1385 = vmatpush2.msra.mxu0 0.0
    %1386 = vmatprep.subr.mxu0 0.0
    %1387 = vmatpush2.msra.mxu0 0.0
    %1388 = vmatprep.subr.mxu0 0.0
    %1389 = vmatpush2.msra.mxu0 0.0
    %1390 = vmatprep.subr.mxu0 0.0
    %1391 = vmatpush2.msra.mxu0 0.0
    %1392 = vmatprep.subr.mxu0 0.0
    %1393 = vmatpush2.msra.mxu0 0.0
    %1394 = vmatprep.subr.mxu0 0.0
    %1395 = vmatpush2.msra.mxu0 0.0
    %1396 = vmatprep.subr.mxu0 0.0
    %1397 = vmatpush2.msra.mxu0 0.0
    %1398 = vmatprep.subr.mxu0 0.0
    %1399 = vmatpush2.msra.mxu0 0.0
    %1400 = vmatprep.mubr.f32.mxu0 0.0
    %v1401 = vand.u32 %v41, 4294901760
    %v1402 = vsub.f32 %v41, %v1401
    %v1403 = vand.u32 %v1402, 4294901760
    %v1404 = vsub.f32 %v1402, %v1403
    %v1405 = vand.u32 %v1404, 4294901760
    %1406 = vmatmul.mubr.f32.gmra.mxu0 %v1405
    %v1407 = vpop.f32.mrf.mxu0
    %v1408 = vadd.f32 0.0, %v1407
    %v1409 = vpop.f32.mrf.mxu0
    %1410 = vmatprep.mubr.f32.mxu0 0.0
    %v1411 = vand.u32 %v44, 4294901760
    %v1412 = vsub.f32 %v44, %v1411
    %v1413 = vand.u32 %v1412, 4294901760
    %v1414 = vsub.f32 %v1412, %v1413
    %v1415 = vand.u32 %v1414, 4294901760
    %1416 = vmatmul.mubr.f32.gmra.mxu0 %v1415
    %v1417 = vpop.f32.mrf.mxu0
    %v1418 = vadd.f32 0.0, %v1417
    %v1419 = vpop.f32.mrf.mxu0
    %1420 = vmatprep.mubr.f32.mxu0 0.0
    %v1421 = vand.u32 %v47, 4294901760
    %v1422 = vsub.f32 %v47, %v1421
    %v1423 = vand.u32 %v1422, 4294901760
    %v1424 = vsub.f32 %v1422, %v1423
    %v1425 = vand.u32 %v1424, 4294901760
    %1426 = vmatmul.mubr.f32.gmra.mxu0 %v1425
    %v1427 = vpop.f32.mrf.mxu0
    %v1428 = vadd.f32 0.0, %v1427
    %v1429 = vpop.f32.mrf.mxu0
    %1430 = vmatprep.mubr.f32.mxu0 0.0
    %v1431 = vand.u32 %v50, 4294901760
    %v1432 = vsub.f32 %v50, %v1431
    %v1433 = vand.u32 %v1432, 4294901760
    %v1434 = vsub.f32 %v1432, %v1433
    %v1435 = vand.u32 %v1434, 4294901760
    %1436 = vmatmul.mubr.f32.gmra.mxu0 %v1435
    %v1437 = vpop.f32.mrf.mxu0
    %v1438 = vadd.f32 0.0, %v1437
    %v1439 = vpop.f32.mrf.mxu0
    %1440 = vdwg.mxu0
    %1441 = vmatprep.subr.mxu0 0.0
    %1442 = vmatpush1.msra.mxu0 0.0
    %1443 = vmatprep.subr.mxu0 0.0
    %1444 = vmatpush1.msra.mxu0 0.0
    %1445 = vmatprep.subr.mxu0 0.0
    %1446 = vmatpush1.msra.mxu0 0.0
    %1447 = vmatprep.subr.mxu0 0.0
    %1448 = vmatpush1.msra.mxu0 0.0
    %1449 = vmatprep.subr.mxu0 0.0
    %1450 = vmatpush1.msra.mxu0 0.0
    %1451 = vmatprep.subr.mxu0 0.0
    %1452 = vmatpush1.msra.mxu0 0.0
    %1453 = vmatprep.subr.mxu0 0.0
    %1454 = vmatpush1.msra.mxu0 0.0
    %1455 = vmatprep.subr.mxu0 0.0
    %1456 = vmatpush1.msra.mxu0 0.0
    %1457 = vmatprep.subr.mxu0 0.0
    %1458 = vmatpush1.msra.mxu0 0.0
    %1459 = vmatprep.subr.mxu0 0.0
    %1460 = vmatpush1.msra.mxu0 0.0
    %1461 = vmatprep.subr.mxu0 0.0
    %1462 = vmatpush1.msra.mxu0 0.0
    %1463 = vmatprep.subr.mxu0 0.0
    %1464 = vmatpush1.msra.mxu0 0.0
    %1465 = vmatprep.subr.mxu0 0.0
    %v1466 = vand.u32 %v1331, 4294901760
    %v1467 = vsub.f32 %v1331, %v1466
    %v1468 = vand.u32 %v1467, 4294901760
    %v1469 = vsub.f32 %v1467, %v1468
    %v1470 = vand.u32 %v1469, 4294901760
    %1471 = vmatpush1.msra.mxu0 %v1470
    %1472 = vmatprep.subr.mxu0 0.0
    %v1473 = vand.u32 %v1330, 4294901760
    %v1474 = vsub.f32 %v1330, %v1473
    %v1475 = vand.u32 %v1474, 4294901760
    %v1476 = vsub.f32 %v1474, %v1475
    %v1477 = vand.u32 %v1476, 4294901760
    %1478 = vmatpush1.msra.mxu0 %v1477
    %1479 = vmatprep.subr.mxu0 0.0
    %v1480 = vand.u32 %v1329, 4294901760
    %v1481 = vsub.f32 %v1329, %v1480
    %v1482 = vand.u32 %v1481, 4294901760
    %v1483 = vsub.f32 %v1481, %v1482
    %v1484 = vand.u32 %v1483, 4294901760
    %1485 = vmatpush1.msra.mxu0 %v1484
    %1486 = vmatprep.subr.mxu0 0.0
    %v1487 = vand.u32 %v1328, 4294901760
    %v1488 = vsub.f32 %v1328, %v1487
    %v1489 = vand.u32 %v1488, 4294901760
    %v1490 = vsub.f32 %v1488, %v1489
    %v1491 = vand.u32 %v1490, 4294901760
    %1492 = vmatpush1.msra.mxu0 %v1491
    %1493 = vmatprep.subr.mxu0 0.0
    %1494 = vmatpush2.msra.mxu0 0.0
    %1495 = vmatprep.subr.mxu0 0.0
    %1496 = vmatpush2.msra.mxu0 0.0
    %1497 = vmatprep.subr.mxu0 0.0
    %1498 = vmatpush2.msra.mxu0 0.0
    %1499 = vmatprep.subr.mxu0 0.0
    %1500 = vmatpush2.msra.mxu0 0.0
    %1501 = vmatprep.subr.mxu0 0.0
    %1502 = vmatpush2.msra.mxu0 0.0
    %1503 = vmatprep.subr.mxu0 0.0
    %1504 = vmatpush2.msra.mxu0 0.0
    %1505 = vmatprep.subr.mxu0 0.0
    %1506 = vmatpush2.msra.mxu0 0.0
    %1507 = vmatprep.subr.mxu0 0.0
    %1508 = vmatpush2.msra.mxu0 0.0
    %1509 = vmatprep.subr.mxu0 0.0
    %1510 = vmatpush2.msra.mxu0 0.0
    %1511 = vmatprep.subr.mxu0 0.0
    %1512 = vmatpush2.msra.mxu0 0.0
    %1513 = vmatprep.subr.mxu0 0.0
    %1514 = vmatpush2.msra.mxu0 0.0
    %1515 = vmatprep.subr.mxu0 0.0
    %1516 = vmatpush2.msra.mxu0 0.0
    %1517 = vmatprep.subr.mxu0 0.0
    %1518 = vmatpush2.msra.mxu0 0.0
    %1519 = vmatprep.subr.mxu0 0.0
    %1520 = vmatpush2.msra.mxu0 0.0
    %1521 = vmatprep.subr.mxu0 0.0
    %1522 = vmatpush2.msra.mxu0 0.0
    %1523 = vmatprep.subr.mxu0 0.0
    %1524 = vmatpush2.msra.mxu0 0.0
    %1525 = vmatprep.mubr.f32.mxu0 0.0
    %v1526 = vand.u32 %v41, 4294901760
    %1527 = vmatmul.mubr.f32.gmra.mxu0 %v1526
    %v1528 = vpop.f32.mrf.mxu0
    %v1529 = vadd.f32 %v1408, %v1528
    %v1530 = vpop.f32.mrf.mxu0
    %1531 = vmatprep.mubr.f32.mxu0 0.0
    %v1532 = vand.u32 %v44, 4294901760
    %1533 = vmatmul.mubr.f32.gmra.mxu0 %v1532
    %v1534 = vpop.f32.mrf.mxu0
    %v1535 = vadd.f32 %v1418, %v1534
    %v1536 = vpop.f32.mrf.mxu0
    %1537 = vmatprep.mubr.f32.mxu0 0.0
    %v1538 = vand.u32 %v47, 4294901760
    %1539 = vmatmul.mubr.f32.gmra.mxu0 %v1538
    %v1540 = vpop.f32.mrf.mxu0
    %v1541 = vadd.f32 %v1428, %v1540
    %v1542 = vpop.f32.mrf.mxu0
    %1543 = vmatprep.mubr.f32.mxu0 0.0
    %v1544 = vand.u32 %v50, 4294901760
    %1545 = vmatmul.mubr.f32.gmra.mxu0 %v1544
    %v1546 = vpop.f32.mrf.mxu0
    %v1547 = vadd.f32 %v1438, %v1546
    %v1548 = vpop.f32.mrf.mxu0
    %1549 = vdwg.mxu0
    %1550 = vmatprep.subr.mxu0 0.0
    %1551 = vmatpush1.msra.mxu0 0.0
    %1552 = vmatprep.subr.mxu0 0.0
    %1553 = vmatpush1.msra.mxu0 0.0
    %1554 = vmatprep.subr.mxu0 0.0
    %1555 = vmatpush1.msra.mxu0 0.0
    %1556 = vmatprep.subr.mxu0 0.0
    %1557 = vmatpush1.msra.mxu0 0.0
    %1558 = vmatprep.subr.mxu0 0.0
    %1559 = vmatpush1.msra.mxu0 0.0
    %1560 = vmatprep.subr.mxu0 0.0
    %1561 = vmatpush1.msra.mxu0 0.0
    %1562 = vmatprep.subr.mxu0 0.0
    %1563 = vmatpush1.msra.mxu0 0.0
    %1564 = vmatprep.subr.mxu0 0.0
    %1565 = vmatpush1.msra.mxu0 0.0
    %1566 = vmatprep.subr.mxu0 0.0
    %1567 = vmatpush1.msra.mxu0 0.0
    %1568 = vmatprep.subr.mxu0 0.0
    %1569 = vmatpush1.msra.mxu0 0.0
    %1570 = vmatprep.subr.mxu0 0.0
    %1571 = vmatpush1.msra.mxu0 0.0
    %1572 = vmatprep.subr.mxu0 0.0
    %1573 = vmatpush1.msra.mxu0 0.0
    %1574 = vmatprep.subr.mxu0 0.0
    %v1575 = vand.u32 %v1331, 4294901760
    %v1576 = vsub.f32 %v1331, %v1575
    %1577 = vmatpush1.msra.mxu0 %v1576
    %1578 = vmatprep.subr.mxu0 0.0
    %v1579 = vand.u32 %v1330, 4294901760
    %v1580 = vsub.f32 %v1330, %v1579
    %1581 = vmatpush1.msra.mxu0 %v1580
    %1582 = vmatprep.subr.mxu0 0.0
    %v1583 = vand.u32 %v1329, 4294901760
    %v1584 = vsub.f32 %v1329, %v1583
    %1585 = vmatpush1.msra.mxu0 %v1584
    %1586 = vmatprep.subr.mxu0 0.0
    %v1587 = vand.u32 %v1328, 4294901760
    %v1588 = vsub.f32 %v1328, %v1587
    %1589 = vmatpush1.msra.mxu0 %v1588
    %1590 = vmatprep.subr.mxu0 0.0
    %1591 = vmatpush2.msra.mxu0 0.0
    %1592 = vmatprep.subr.mxu0 0.0
    %1593 = vmatpush2.msra.mxu0 0.0
    %1594 = vmatprep.subr.mxu0 0.0
    %1595 = vmatpush2.msra.mxu0 0.0
    %1596 = vmatprep.subr.mxu0 0.0
    %1597 = vmatpush2.msra.mxu0 0.0
    %1598 = vmatprep.subr.mxu0 0.0
    %1599 = vmatpush2.msra.mxu0 0.0
    %1600 = vmatprep.subr.mxu0 0.0
    %1601 = vmatpush2.msra.mxu0 0.0
    %1602 = vmatprep.subr.mxu0 0.0
    %1603 = vmatpush2.msra.mxu0 0.0
    %1604 = vmatprep.subr.mxu0 0.0
    %1605 = vmatpush2.msra.mxu0 0.0
    %1606 = vmatprep.subr.mxu0 0.0
    %1607 = vmatpush2.msra.mxu0 0.0
    %1608 = vmatprep.subr.mxu0 0.0
    %1609 = vmatpush2.msra.mxu0 0.0
    %1610 = vmatprep.subr.mxu0 0.0
    %1611 = vmatpush2.msra.mxu0 0.0
    %1612 = vmatprep.subr.mxu0 0.0
    %1613 = vmatpush2.msra.mxu0 0.0
    %1614 = vmatprep.subr.mxu0 0.0
    %1615 = vmatpush2.msra.mxu0 0.0
    %1616 = vmatprep.subr.mxu0 0.0
    %1617 = vmatpush2.msra.mxu0 0.0
    %1618 = vmatprep.subr.mxu0 0.0
    %1619 = vmatpush2.msra.mxu0 0.0
    %1620 = vmatprep.subr.mxu0 0.0
    %1621 = vmatpush2.msra.mxu0 0.0
    %1622 = vmatprep.mubr.f32.mxu0 0.0
    %v1623 = vand.u32 %v41, 4294901760
    %v1624 = vsub.f32 %v41, %v1623
    %1625 = vmatmul.mubr.f32.gmra.mxu0 %v1624
    %v1626 = vpop.f32.mrf.mxu0
    %v1627 = vadd.f32 %v1529, %v1626
    %v1628 = vpop.f32.mrf.mxu0
    %1629 = vmatprep.mubr.f32.mxu0 0.0
    %v1630 = vand.u32 %v44, 4294901760
    %v1631 = vsub.f32 %v44, %v1630
    %1632 = vmatmul.mubr.f32.gmra.mxu0 %v1631
    %v1633 = vpop.f32.mrf.mxu0
    %v1634 = vadd.f32 %v1535, %v1633
    %v1635 = vpop.f32.mrf.mxu0
    %1636 = vmatprep.mubr.f32.mxu0 0.0
    %v1637 = vand.u32 %v47, 4294901760
    %v1638 = vsub.f32 %v47, %v1637
    %1639 = vmatmul.mubr.f32.gmra.mxu0 %v1638
    %v1640 = vpop.f32.mrf.mxu0
    %v1641 = vadd.f32 %v1541, %v1640
    %v1642 = vpop.f32.mrf.mxu0
    %1643 = vmatprep.mubr.f32.mxu0 0.0
    %v1644 = vand.u32 %v50, 4294901760
    %v1645 = vsub.f32 %v50, %v1644
    %1646 = vmatmul.mubr.f32.gmra.mxu0 %v1645
    %v1647 = vpop.f32.mrf.mxu0
    %v1648 = vadd.f32 %v1547, %v1647
    %v1649 = vpop.f32.mrf.mxu0
    %1650 = vdwg.mxu0
    %1651 = vmatprep.subr.mxu0 0.0
    %1652 = vmatpush1.msra.mxu0 0.0
    %1653 = vmatprep.subr.mxu0 0.0
    %1654 = vmatpush1.msra.mxu0 0.0
    %1655 = vmatprep.subr.mxu0 0.0
    %1656 = vmatpush1.msra.mxu0 0.0
    %1657 = vmatprep.subr.mxu0 0.0
    %1658 = vmatpush1.msra.mxu0 0.0
    %1659 = vmatprep.subr.mxu0 0.0
    %1660 = vmatpush1.msra.mxu0 0.0
    %1661 = vmatprep.subr.mxu0 0.0
    %1662 = vmatpush1.msra.mxu0 0.0
    %1663 = vmatprep.subr.mxu0 0.0
    %1664 = vmatpush1.msra.mxu0 0.0
    %1665 = vmatprep.subr.mxu0 0.0
    %1666 = vmatpush1.msra.mxu0 0.0
    %1667 = vmatprep.subr.mxu0 0.0
    %1668 = vmatpush1.msra.mxu0 0.0
    %1669 = vmatprep.subr.mxu0 0.0
    %1670 = vmatpush1.msra.mxu0 0.0
    %1671 = vmatprep.subr.mxu0 0.0
    %1672 = vmatpush1.msra.mxu0 0.0
    %1673 = vmatprep.subr.mxu0 0.0
    %1674 = vmatpush1.msra.mxu0 0.0
    %1675 = vmatprep.subr.mxu0 0.0
    %v1676 = vand.u32 %v1331, 4294901760
    %1677 = vmatpush1.msra.mxu0 %v1676
    %1678 = vmatprep.subr.mxu0 0.0
    %v1679 = vand.u32 %v1330, 4294901760
    %1680 = vmatpush1.msra.mxu0 %v1679
    %1681 = vmatprep.subr.mxu0 0.0
    %v1682 = vand.u32 %v1329, 4294901760
    %1683 = vmatpush1.msra.mxu0 %v1682
    %1684 = vmatprep.subr.mxu0 0.0
    %v1685 = vand.u32 %v1328, 4294901760
    %1686 = vmatpush1.msra.mxu0 %v1685
    %1687 = vmatprep.subr.mxu0 0.0
    %1688 = vmatpush2.msra.mxu0 0.0
    %1689 = vmatprep.subr.mxu0 0.0
    %1690 = vmatpush2.msra.mxu0 0.0
    %1691 = vmatprep.subr.mxu0 0.0
    %1692 = vmatpush2.msra.mxu0 0.0
    %1693 = vmatprep.subr.mxu0 0.0
    %1694 = vmatpush2.msra.mxu0 0.0
    %1695 = vmatprep.subr.mxu0 0.0
    %1696 = vmatpush2.msra.mxu0 0.0
    %1697 = vmatprep.subr.mxu0 0.0
    %1698 = vmatpush2.msra.mxu0 0.0
    %1699 = vmatprep.subr.mxu0 0.0
    %1700 = vmatpush2.msra.mxu0 0.0
    %1701 = vmatprep.subr.mxu0 0.0
    %1702 = vmatpush2.msra.mxu0 0.0
    %1703 = vmatprep.subr.mxu0 0.0
    %1704 = vmatpush2.msra.mxu0 0.0
    %1705 = vmatprep.subr.mxu0 0.0
    %1706 = vmatpush2.msra.mxu0 0.0
    %1707 = vmatprep.subr.mxu0 0.0
    %1708 = vmatpush2.msra.mxu0 0.0
    %1709 = vmatprep.subr.mxu0 0.0
    %1710 = vmatpush2.msra.mxu0 0.0
    %1711 = vmatprep.subr.mxu0 0.0
    %1712 = vmatpush2.msra.mxu0 0.0
    %1713 = vmatprep.subr.mxu0 0.0
    %1714 = vmatpush2.msra.mxu0 0.0
    %1715 = vmatprep.subr.mxu0 0.0
    %1716 = vmatpush2.msra.mxu0 0.0
    %1717 = vmatprep.subr.mxu0 0.0
    %1718 = vmatpush2.msra.mxu0 0.0
    %1719 = vmatprep.mubr.f32.mxu0 0.0
    %v1720 = vand.u32 %v41, 4294901760
    %v1721 = vsub.f32 %v41, %v1720
    %v1722 = vand.u32 %v1721, 4294901760
    %1723 = vmatmul.mubr.f32.gmra.mxu0 %v1722
    %v1724 = vpop.f32.mrf.mxu0
    %v1725 = vadd.f32 %v1627, %v1724
    %v1726 = vpop.f32.mrf.mxu0
    %1727 = vmatprep.mubr.f32.mxu0 0.0
    %v1728 = vand.u32 %v44, 4294901760
    %v1729 = vsub.f32 %v44, %v1728
    %v1730 = vand.u32 %v1729, 4294901760
    %1731 = vmatmul.mubr.f32.gmra.mxu0 %v1730
    %v1732 = vpop.f32.mrf.mxu0
    %v1733 = vadd.f32 %v1634, %v1732
    %v1734 = vpop.f32.mrf.mxu0
    %1735 = vmatprep.mubr.f32.mxu0 0.0
    %v1736 = vand.u32 %v47, 4294901760
    %v1737 = vsub.f32 %v47, %v1736
    %v1738 = vand.u32 %v1737, 4294901760
    %1739 = vmatmul.mubr.f32.gmra.mxu0 %v1738
    %v1740 = vpop.f32.mrf.mxu0
    %v1741 = vadd.f32 %v1641, %v1740
    %v1742 = vpop.f32.mrf.mxu0
    %1743 = vmatprep.mubr.f32.mxu0 0.0
    %v1744 = vand.u32 %v50, 4294901760
    %v1745 = vsub.f32 %v50, %v1744
    %v1746 = vand.u32 %v1745, 4294901760
    %1747 = vmatmul.mubr.f32.gmra.mxu0 %v1746
    %v1748 = vpop.f32.mrf.mxu0
    %v1749 = vadd.f32 %v1648, %v1748
    %v1750 = vpop.f32.mrf.mxu0
    %1751 = vdwg.mxu0
    %1752 = vmatprep.subr.mxu0 0.0
    %1753 = vmatpush1.msra.mxu0 0.0
    %1754 = vmatprep.subr.mxu0 0.0
    %1755 = vmatpush1.msra.mxu0 0.0
    %1756 = vmatprep.subr.mxu0 0.0
    %1757 = vmatpush1.msra.mxu0 0.0
    %1758 = vmatprep.subr.mxu0 0.0
    %1759 = vmatpush1.msra.mxu0 0.0
    %1760 = vmatprep.subr.mxu0 0.0
    %1761 = vmatpush1.msra.mxu0 0.0
    %1762 = vmatprep.subr.mxu0 0.0
    %1763 = vmatpush1.msra.mxu0 0.0
    %1764 = vmatprep.subr.mxu0 0.0
    %1765 = vmatpush1.msra.mxu0 0.0
    %1766 = vmatprep.subr.mxu0 0.0
    %1767 = vmatpush1.msra.mxu0 0.0
    %1768 = vmatprep.subr.mxu0 0.0
    %1769 = vmatpush1.msra.mxu0 0.0
    %1770 = vmatprep.subr.mxu0 0.0
    %1771 = vmatpush1.msra.mxu0 0.0
    %1772 = vmatprep.subr.mxu0 0.0
    %1773 = vmatpush1.msra.mxu0 0.0
    %1774 = vmatprep.subr.mxu0 0.0
    %1775 = vmatpush1.msra.mxu0 0.0
    %1776 = vmatprep.subr.mxu0 0.0
    %v1777 = vand.u32 %v1331, 4294901760
    %v1778 = vsub.f32 %v1331, %v1777
    %v1779 = vand.u32 %v1778, 4294901760
    %1780 = vmatpush1.msra.mxu0 %v1779
    %1781 = vmatprep.subr.mxu0 0.0
    %v1782 = vand.u32 %v1330, 4294901760
    %v1783 = vsub.f32 %v1330, %v1782
    %v1784 = vand.u32 %v1783, 4294901760
    %1785 = vmatpush1.msra.mxu0 %v1784
    %1786 = vmatprep.subr.mxu0 0.0
    %v1787 = vand.u32 %v1329, 4294901760
    %v1788 = vsub.f32 %v1329, %v1787
    %v1789 = vand.u32 %v1788, 4294901760
    %1790 = vmatpush1.msra.mxu0 %v1789
    %1791 = vmatprep.subr.mxu0 0.0
    %v1792 = vand.u32 %v1328, 4294901760
    %v1793 = vsub.f32 %v1328, %v1792
    %v1794 = vand.u32 %v1793, 4294901760
    %1795 = vmatpush1.msra.mxu0 %v1794
    %1796 = vmatprep.subr.mxu0 0.0
    %1797 = vmatpush2.msra.mxu0 0.0
    %1798 = vmatprep.subr.mxu0 0.0
    %1799 = vmatpush2.msra.mxu0 0.0
    %1800 = vmatprep.subr.mxu0 0.0
    %1801 = vmatpush2.msra.mxu0 0.0
    %1802 = vmatprep.subr.mxu0 0.0
    %1803 = vmatpush2.msra.mxu0 0.0
    %1804 = vmatprep.subr.mxu0 0.0
    %1805 = vmatpush2.msra.mxu0 0.0
    %1806 = vmatprep.subr.mxu0 0.0
    %1807 = vmatpush2.msra.mxu0 0.0
    %1808 = vmatprep.subr.mxu0 0.0
    %1809 = vmatpush2.msra.mxu0 0.0
    %1810 = vmatprep.subr.mxu0 0.0
    %1811 = vmatpush2.msra.mxu0 0.0
    %1812 = vmatprep.subr.mxu0 0.0
    %1813 = vmatpush2.msra.mxu0 0.0
    %1814 = vmatprep.subr.mxu0 0.0
    %1815 = vmatpush2.msra.mxu0 0.0
    %1816 = vmatprep.subr.mxu0 0.0
    %1817 = vmatpush2.msra.mxu0 0.0
    %1818 = vmatprep.subr.mxu0 0.0
    %1819 = vmatpush2.msra.mxu0 0.0
    %1820 = vmatprep.subr.mxu0 0.0
    %1821 = vmatpush2.msra.mxu0 0.0
    %1822 = vmatprep.subr.mxu0 0.0
    %1823 = vmatpush2.msra.mxu0 0.0
    %1824 = vmatprep.subr.mxu0 0.0
    %1825 = vmatpush2.msra.mxu0 0.0
    %1826 = vmatprep.subr.mxu0 0.0
    %1827 = vmatpush2.msra.mxu0 0.0
    %1828 = vmatprep.mubr.f32.mxu0 0.0
    %v1829 = vand.u32 %v41, 4294901760
    %1830 = vmatmul.mubr.f32.gmra.mxu0 %v1829
    %v1831 = vpop.f32.mrf.mxu0
    %v1832 = vadd.f32 %v1725, %v1831
    %v1833 = vpop.f32.mrf.mxu0
    %1834 = vmatprep.mubr.f32.mxu0 0.0
    %v1835 = vand.u32 %v44, 4294901760
    %1836 = vmatmul.mubr.f32.gmra.mxu0 %v1835
    %v1837 = vpop.f32.mrf.mxu0
    %v1838 = vadd.f32 %v1733, %v1837
    %v1839 = vpop.f32.mrf.mxu0
    %1840 = vmatprep.mubr.f32.mxu0 0.0
    %v1841 = vand.u32 %v47, 4294901760
    %1842 = vmatmul.mubr.f32.gmra.mxu0 %v1841
    %v1843 = vpop.f32.mrf.mxu0
    %v1844 = vadd.f32 %v1741, %v1843
    %v1845 = vpop.f32.mrf.mxu0
    %1846 = vmatprep.mubr.f32.mxu0 0.0
    %v1847 = vand.u32 %v50, 4294901760
    %1848 = vmatmul.mubr.f32.gmra.mxu0 %v1847
    %v1849 = vpop.f32.mrf.mxu0
    %v1850 = vadd.f32 %v1749, %v1849
    %v1851 = vpop.f32.mrf.mxu0
    %1852 = vdwg.mxu0
    %1853 = vmatprep.subr.mxu0 0.0
    %1854 = vmatpush1.msra.mxu0 0.0
    %1855 = vmatprep.subr.mxu0 0.0
    %1856 = vmatpush1.msra.mxu0 0.0
    %1857 = vmatprep.subr.mxu0 0.0
    %1858 = vmatpush1.msra.mxu0 0.0
    %1859 = vmatprep.subr.mxu0 0.0
    %1860 = vmatpush1.msra.mxu0 0.0
    %1861 = vmatprep.subr.mxu0 0.0
    %1862 = vmatpush1.msra.mxu0 0.0
    %1863 = vmatprep.subr.mxu0 0.0
    %1864 = vmatpush1.msra.mxu0 0.0
    %1865 = vmatprep.subr.mxu0 0.0
    %1866 = vmatpush1.msra.mxu0 0.0
    %1867 = vmatprep.subr.mxu0 0.0
    %1868 = vmatpush1.msra.mxu0 0.0
    %1869 = vmatprep.subr.mxu0 0.0
    %1870 = vmatpush1.msra.mxu0 0.0
    %1871 = vmatprep.subr.mxu0 0.0
    %1872 = vmatpush1.msra.mxu0 0.0
    %1873 = vmatprep.subr.mxu0 0.0
    %1874 = vmatpush1.msra.mxu0 0.0
    %1875 = vmatprep.subr.mxu0 0.0
    %1876 = vmatpush1.msra.mxu0 0.0
    %1877 = vmatprep.subr.mxu0 0.0
    %v1878 = vand.u32 %v1331, 4294901760
    %1879 = vmatpush1.msra.mxu0 %v1878
    %1880 = vmatprep.subr.mxu0 0.0
    %v1881 = vand.u32 %v1330, 4294901760
    %1882 = vmatpush1.msra.mxu0 %v1881
    %1883 = vmatprep.subr.mxu0 0.0
    %v1884 = vand.u32 %v1329, 4294901760
    %1885 = vmatpush1.msra.mxu0 %v1884
    %1886 = vmatprep.subr.mxu0 0.0
    %v1887 = vand.u32 %v1328, 4294901760
    %1888 = vmatpush1.msra.mxu0 %v1887
    %1889 = vmatprep.subr.mxu0 0.0
    %1890 = vmatpush2.msra.mxu0 0.0
    %1891 = vmatprep.subr.mxu0 0.0
    %1892 = vmatpush2.msra.mxu0 0.0
    %1893 = vmatprep.subr.mxu0 0.0
    %1894 = vmatpush2.msra.mxu0 0.0
    %1895 = vmatprep.subr.mxu0 0.0
    %1896 = vmatpush2.msra.mxu0 0.0
    %1897 = vmatprep.subr.mxu0 0.0
    %1898 = vmatpush2.msra.mxu0 0.0
    %1899 = vmatprep.subr.mxu0 0.0
    %1900 = vmatpush2.msra.mxu0 0.0
    %1901 = vmatprep.subr.mxu0 0.0
    %1902 = vmatpush2.msra.mxu0 0.0
    %1903 = vmatprep.subr.mxu0 0.0
    %1904 = vmatpush2.msra.mxu0 0.0
    %1905 = vmatprep.subr.mxu0 0.0
    %1906 = vmatpush2.msra.mxu0 0.0
    %1907 = vmatprep.subr.mxu0 0.0
    %1908 = vmatpush2.msra.mxu0 0.0
    %1909 = vmatprep.subr.mxu0 0.0
    %1910 = vmatpush2.msra.mxu0 0.0
    %1911 = vmatprep.subr.mxu0 0.0
    %1912 = vmatpush2.msra.mxu0 0.0
    %1913 = vmatprep.subr.mxu0 0.0
    %1914 = vmatpush2.msra.mxu0 0.0
    %1915 = vmatprep.subr.mxu0 0.0
    %1916 = vmatpush2.msra.mxu0 0.0
    %1917 = vmatprep.subr.mxu0 0.0
    %1918 = vmatpush2.msra.mxu0 0.0
    %1919 = vmatprep.subr.mxu0 0.0
    %1920 = vmatpush2.msra.mxu0 0.0
    %1921 = vmatprep.mubr.f32.mxu0 0.0
    %v1922 = vand.u32 %v41, 4294901760
    %1923 = vmatmul.mubr.f32.gmra.mxu0 %v1922
    %v1924 = vpop.f32.mrf.mxu0
    %v1925 = vadd.f32 %v1832, %v1924
    %v1926 = vpop.f32.mrf.mxu0
    %1927 = vmatprep.mubr.f32.mxu0 0.0
    %v1928 = vand.u32 %v44, 4294901760
    %1929 = vmatmul.mubr.f32.gmra.mxu0 %v1928
    %v1930 = vpop.f32.mrf.mxu0
    %v1931 = vadd.f32 %v1838, %v1930
    %v1932 = vpop.f32.mrf.mxu0
    %1933 = vmatprep.mubr.f32.mxu0 0.0
    %v1934 = vand.u32 %v47, 4294901760
    %1935 = vmatmul.mubr.f32.gmra.mxu0 %v1934
    %v1936 = vpop.f32.mrf.mxu0
    %v1937 = vadd.f32 %v1844, %v1936
    %v1938 = vpop.f32.mrf.mxu0
    %1939 = vmatprep.mubr.f32.mxu0 0.0
    %v1940 = vand.u32 %v50, 4294901760
    %1941 = vmatmul.mubr.f32.gmra.mxu0 %v1940
    %v1942 = vpop.f32.mrf.mxu0
    %v1943 = vadd.f32 %v1850, %v1942
    %v1944 = vpop.f32.mrf.mxu0
    %1945 = vdwg.mxu0
    %s1946 = scalar_lea.vmem %s3, 224
    %v1947 = vld [vmem:[%s1946] sm:$0xff]
    %v1948 = vld [vmem:[%s1946 + $0x8] sm:$0xff]
    %v1949 = vld [vmem:[%s1946 + $0x10] sm:$0xff]
    %v1950 = vld [vmem:[%s1946 + $0x18] sm:$0xff]
    %1951 = vmatprep.subr.mxu0 0.0
    %1952 = vmatpush1.msra.mxu0 0.0
    %1953 = vmatprep.subr.mxu0 0.0
    %1954 = vmatpush1.msra.mxu0 0.0
    %1955 = vmatprep.subr.mxu0 0.0
    %1956 = vmatpush1.msra.mxu0 0.0
    %1957 = vmatprep.subr.mxu0 0.0
    %1958 = vmatpush1.msra.mxu0 0.0
    %1959 = vmatprep.subr.mxu0 0.0
    %1960 = vmatpush1.msra.mxu0 0.0
    %1961 = vmatprep.subr.mxu0 0.0
    %1962 = vmatpush1.msra.mxu0 0.0
    %1963 = vmatprep.subr.mxu0 0.0
    %1964 = vmatpush1.msra.mxu0 0.0
    %1965 = vmatprep.subr.mxu0 0.0
    %1966 = vmatpush1.msra.mxu0 0.0
    %1967 = vmatprep.subr.mxu0 0.0
    %1968 = vmatpush1.msra.mxu0 0.0
    %1969 = vmatprep.subr.mxu0 0.0
    %1970 = vmatpush1.msra.mxu0 0.0
    %1971 = vmatprep.subr.mxu0 0.0
    %1972 = vmatpush1.msra.mxu0 0.0
    %1973 = vmatprep.subr.mxu0 0.0
    %1974 = vmatpush1.msra.mxu0 0.0
    %1975 = vmatprep.subr.mxu0 0.0
    %v1976 = vand.u32 %v1950, 4294901760
    %1977 = vmatpush1.msra.mxu0 %v1976
    %1978 = vmatprep.subr.mxu0 0.0
    %v1979 = vand.u32 %v1949, 4294901760
    %1980 = vmatpush1.msra.mxu0 %v1979
    %1981 = vmatprep.subr.mxu0 0.0
    %v1982 = vand.u32 %v1948, 4294901760
    %1983 = vmatpush1.msra.mxu0 %v1982
    %1984 = vmatprep.subr.mxu0 0.0
    %v1985 = vand.u32 %v1947, 4294901760
    %1986 = vmatpush1.msra.mxu0 %v1985
    %1987 = vmatprep.subr.mxu0 0.0
    %1988 = vmatpush2.msra.mxu0 0.0
    %1989 = vmatprep.subr.mxu0 0.0
    %1990 = vmatpush2.msra.mxu0 0.0
    %1991 = vmatprep.subr.mxu0 0.0
    %1992 = vmatpush2.msra.mxu0 0.0
    %1993 = vmatprep.subr.mxu0 0.0
    %1994 = vmatpush2.msra.mxu0 0.0
    %1995 = vmatprep.subr.mxu0 0.0
    %1996 = vmatpush2.msra.mxu0 0.0
    %1997 = vmatprep.subr.mxu0 0.0
    %1998 = vmatpush2.msra.mxu0 0.0
    %1999 = vmatprep.subr.mxu0 0.0
    %2000 = vmatpush2.msra.mxu0 0.0
    %2001 = vmatprep.subr.mxu0 0.0
    %2002 = vmatpush2.msra.mxu0 0.0
    %2003 = vmatprep.subr.mxu0 0.0
    %2004 = vmatpush2.msra.mxu0 0.0
    %2005 = vmatprep.subr.mxu0 0.0
    %2006 = vmatpush2.msra.mxu0 0.0
    %2007 = vmatprep.subr.mxu0 0.0
    %2008 = vmatpush2.msra.mxu0 0.0
    %2009 = vmatprep.subr.mxu0 0.0
    %2010 = vmatpush2.msra.mxu0 0.0
    %2011 = vmatprep.subr.mxu0 0.0
    %2012 = vmatpush2.msra.mxu0 0.0
    %2013 = vmatprep.subr.mxu0 0.0
    %2014 = vmatpush2.msra.mxu0 0.0
    %2015 = vmatprep.subr.mxu0 0.0
    %2016 = vmatpush2.msra.mxu0 0.0
    %2017 = vmatprep.subr.mxu0 0.0
    %2018 = vmatpush2.msra.mxu0 0.0
    %2019 = vmatprep.mubr.f32.mxu0 0.0
    %v2020 = vand.u32 %v41, 4294901760
    %v2021 = vsub.f32 %v41, %v2020
    %v2022 = vand.u32 %v2021, 4294901760
    %v2023 = vsub.f32 %v2021, %v2022
    %v2024 = vand.u32 %v2023, 4294901760
    %2025 = vmatmul.mubr.f32.gmra.mxu0 %v2024
    %v2026 = vpop.f32.mrf.mxu0
    %v2027 = vadd.f32 0.0, %v2026
    %v2028 = vpop.f32.mrf.mxu0
    %2029 = vmatprep.mubr.f32.mxu0 0.0
    %v2030 = vand.u32 %v44, 4294901760
    %v2031 = vsub.f32 %v44, %v2030
    %v2032 = vand.u32 %v2031, 4294901760
    %v2033 = vsub.f32 %v2031, %v2032
    %v2034 = vand.u32 %v2033, 4294901760
    %2035 = vmatmul.mubr.f32.gmra.mxu0 %v2034
    %v2036 = vpop.f32.mrf.mxu0
    %v2037 = vadd.f32 0.0, %v2036
    %v2038 = vpop.f32.mrf.mxu0
    %2039 = vmatprep.mubr.f32.mxu0 0.0
    %v2040 = vand.u32 %v47, 4294901760
    %v2041 = vsub.f32 %v47, %v2040
    %v2042 = vand.u32 %v2041, 4294901760
    %v2043 = vsub.f32 %v2041, %v2042
    %v2044 = vand.u32 %v2043, 4294901760
    %2045 = vmatmul.mubr.f32.gmra.mxu0 %v2044
    %v2046 = vpop.f32.mrf.mxu0
    %v2047 = vadd.f32 0.0, %v2046
    %v2048 = vpop.f32.mrf.mxu0
    %2049 = vmatprep.mubr.f32.mxu0 0.0
    %v2050 = vand.u32 %v50, 4294901760
    %v2051 = vsub.f32 %v50, %v2050
    %v2052 = vand.u32 %v2051, 4294901760
    %v2053 = vsub.f32 %v2051, %v2052
    %v2054 = vand.u32 %v2053, 4294901760
    %2055 = vmatmul.mubr.f32.gmra.mxu0 %v2054
    %v2056 = vpop.f32.mrf.mxu0
    %v2057 = vadd.f32 0.0, %v2056
    %v2058 = vpop.f32.mrf.mxu0
    %2059 = vdwg.mxu0
    %2060 = vmatprep.subr.mxu0 0.0
    %2061 = vmatpush1.msra.mxu0 0.0
    %2062 = vmatprep.subr.mxu0 0.0
    %2063 = vmatpush1.msra.mxu0 0.0
    %2064 = vmatprep.subr.mxu0 0.0
    %2065 = vmatpush1.msra.mxu0 0.0
    %2066 = vmatprep.subr.mxu0 0.0
    %2067 = vmatpush1.msra.mxu0 0.0
    %2068 = vmatprep.subr.mxu0 0.0
    %2069 = vmatpush1.msra.mxu0 0.0
    %2070 = vmatprep.subr.mxu0 0.0
    %2071 = vmatpush1.msra.mxu0 0.0
    %2072 = vmatprep.subr.mxu0 0.0
    %2073 = vmatpush1.msra.mxu0 0.0
    %2074 = vmatprep.subr.mxu0 0.0
    %2075 = vmatpush1.msra.mxu0 0.0
    %2076 = vmatprep.subr.mxu0 0.0
    %2077 = vmatpush1.msra.mxu0 0.0
    %2078 = vmatprep.subr.mxu0 0.0
    %2079 = vmatpush1.msra.mxu0 0.0
    %2080 = vmatprep.subr.mxu0 0.0
    %2081 = vmatpush1.msra.mxu0 0.0
    %2082 = vmatprep.subr.mxu0 0.0
    %2083 = vmatpush1.msra.mxu0 0.0
    %2084 = vmatprep.subr.mxu0 0.0
    %v2085 = vand.u32 %v1950, 4294901760
    %v2086 = vsub.f32 %v1950, %v2085
    %v2087 = vand.u32 %v2086, 4294901760
    %v2088 = vsub.f32 %v2086, %v2087
    %v2089 = vand.u32 %v2088, 4294901760
    %2090 = vmatpush1.msra.mxu0 %v2089
    %2091 = vmatprep.subr.mxu0 0.0
    %v2092 = vand.u32 %v1949, 4294901760
    %v2093 = vsub.f32 %v1949, %v2092
    %v2094 = vand.u32 %v2093, 4294901760
    %v2095 = vsub.f32 %v2093, %v2094
    %v2096 = vand.u32 %v2095, 4294901760
    %2097 = vmatpush1.msra.mxu0 %v2096
    %2098 = vmatprep.subr.mxu0 0.0
    %v2099 = vand.u32 %v1948, 4294901760
    %v2100 = vsub.f32 %v1948, %v2099
    %v2101 = vand.u32 %v2100, 4294901760
    %v2102 = vsub.f32 %v2100, %v2101
    %v2103 = vand.u32 %v2102, 4294901760
    %2104 = vmatpush1.msra.mxu0 %v2103
    %2105 = vmatprep.subr.mxu0 0.0
    %v2106 = vand.u32 %v1947, 4294901760
    %v2107 = vsub.f32 %v1947, %v2106
    %v2108 = vand.u32 %v2107, 4294901760
    %v2109 = vsub.f32 %v2107, %v2108
    %v2110 = vand.u32 %v2109, 4294901760
    %2111 = vmatpush1.msra.mxu0 %v2110
    %2112 = vmatprep.subr.mxu0 0.0
    %2113 = vmatpush2.msra.mxu0 0.0
    %2114 = vmatprep.subr.mxu0 0.0
    %2115 = vmatpush2.msra.mxu0 0.0
    %2116 = vmatprep.subr.mxu0 0.0
    %2117 = vmatpush2.msra.mxu0 0.0
    %2118 = vmatprep.subr.mxu0 0.0
    %2119 = vmatpush2.msra.mxu0 0.0
    %2120 = vmatprep.subr.mxu0 0.0
    %2121 = vmatpush2.msra.mxu0 0.0
    %2122 = vmatprep.subr.mxu0 0.0
    %2123 = vmatpush2.msra.mxu0 0.0
    %2124 = vmatprep.subr.mxu0 0.0
    %2125 = vmatpush2.msra.mxu0 0.0
    %2126 = vmatprep.subr.mxu0 0.0
    %2127 = vmatpush2.msra.mxu0 0.0
    %2128 = vmatprep.subr.mxu0 0.0
    %2129 = vmatpush2.msra.mxu0 0.0
    %2130 = vmatprep.subr.mxu0 0.0
    %2131 = vmatpush2.msra.mxu0 0.0
    %2132 = vmatprep.subr.mxu0 0.0
    %2133 = vmatpush2.msra.mxu0 0.0
    %2134 = vmatprep.subr.mxu0 0.0
    %2135 = vmatpush2.msra.mxu0 0.0
    %2136 = vmatprep.subr.mxu0 0.0
    %2137 = vmatpush2.msra.mxu0 0.0
    %2138 = vmatprep.subr.mxu0 0.0
    %2139 = vmatpush2.msra.mxu0 0.0
    %2140 = vmatprep.subr.mxu0 0.0
    %2141 = vmatpush2.msra.mxu0 0.0
    %2142 = vmatprep.subr.mxu0 0.0
    %2143 = vmatpush2.msra.mxu0 0.0
    %2144 = vmatprep.mubr.f32.mxu0 0.0
    %v2145 = vand.u32 %v41, 4294901760
    %2146 = vmatmul.mubr.f32.gmra.mxu0 %v2145
    %v2147 = vpop.f32.mrf.mxu0
    %v2148 = vadd.f32 %v2027, %v2147
    %v2149 = vpop.f32.mrf.mxu0
    %2150 = vmatprep.mubr.f32.mxu0 0.0
    %v2151 = vand.u32 %v44, 4294901760
    %2152 = vmatmul.mubr.f32.gmra.mxu0 %v2151
    %v2153 = vpop.f32.mrf.mxu0
    %v2154 = vadd.f32 %v2037, %v2153
    %v2155 = vpop.f32.mrf.mxu0
    %2156 = vmatprep.mubr.f32.mxu0 0.0
    %v2157 = vand.u32 %v47, 4294901760
    %2158 = vmatmul.mubr.f32.gmra.mxu0 %v2157
    %v2159 = vpop.f32.mrf.mxu0
    %v2160 = vadd.f32 %v2047, %v2159
    %v2161 = vpop.f32.mrf.mxu0
    %2162 = vmatprep.mubr.f32.mxu0 0.0
    %v2163 = vand.u32 %v50, 4294901760
    %2164 = vmatmul.mubr.f32.gmra.mxu0 %v2163
    %v2165 = vpop.f32.mrf.mxu0
    %v2166 = vadd.f32 %v2057, %v2165
    %v2167 = vpop.f32.mrf.mxu0
    %2168 = vdwg.mxu0
    %2169 = vmatprep.subr.mxu0 0.0
    %2170 = vmatpush1.msra.mxu0 0.0
    %2171 = vmatprep.subr.mxu0 0.0
    %2172 = vmatpush1.msra.mxu0 0.0
    %2173 = vmatprep.subr.mxu0 0.0
    %2174 = vmatpush1.msra.mxu0 0.0
    %2175 = vmatprep.subr.mxu0 0.0
    %2176 = vmatpush1.msra.mxu0 0.0
    %2177 = vmatprep.subr.mxu0 0.0
    %2178 = vmatpush1.msra.mxu0 0.0
    %2179 = vmatprep.subr.mxu0 0.0
    %2180 = vmatpush1.msra.mxu0 0.0
    %2181 = vmatprep.subr.mxu0 0.0
    %2182 = vmatpush1.msra.mxu0 0.0
    %2183 = vmatprep.subr.mxu0 0.0
    %2184 = vmatpush1.msra.mxu0 0.0
    %2185 = vmatprep.subr.mxu0 0.0
    %2186 = vmatpush1.msra.mxu0 0.0
    %2187 = vmatprep.subr.mxu0 0.0
    %2188 = vmatpush1.msra.mxu0 0.0
    %2189 = vmatprep.subr.mxu0 0.0
    %2190 = vmatpush1.msra.mxu0 0.0
    %2191 = vmatprep.subr.mxu0 0.0
    %2192 = vmatpush1.msra.mxu0 0.0
    %2193 = vmatprep.subr.mxu0 0.0
    %v2194 = vand.u32 %v1950, 4294901760
    %v2195 = vsub.f32 %v1950, %v2194
    %2196 = vmatpush1.msra.mxu0 %v2195
    %2197 = vmatprep.subr.mxu0 0.0
    %v2198 = vand.u32 %v1949, 4294901760
    %v2199 = vsub.f32 %v1949, %v2198
    %2200 = vmatpush1.msra.mxu0 %v2199
    %2201 = vmatprep.subr.mxu0 0.0
    %v2202 = vand.u32 %v1948, 4294901760
    %v2203 = vsub.f32 %v1948, %v2202
    %2204 = vmatpush1.msra.mxu0 %v2203
    %2205 = vmatprep.subr.mxu0 0.0
    %v2206 = vand.u32 %v1947, 4294901760
    %v2207 = vsub.f32 %v1947, %v2206
    %2208 = vmatpush1.msra.mxu0 %v2207
    %2209 = vmatprep.subr.mxu0 0.0
    %2210 = vmatpush2.msra.mxu0 0.0
    %2211 = vmatprep.subr.mxu0 0.0
    %2212 = vmatpush2.msra.mxu0 0.0
    %2213 = vmatprep.subr.mxu0 0.0
    %2214 = vmatpush2.msra.mxu0 0.0
    %2215 = vmatprep.subr.mxu0 0.0
    %2216 = vmatpush2.msra.mxu0 0.0
    %2217 = vmatprep.subr.mxu0 0.0
    %2218 = vmatpush2.msra.mxu0 0.0
    %2219 = vmatprep.subr.mxu0 0.0
    %2220 = vmatpush2.msra.mxu0 0.0
    %2221 = vmatprep.subr.mxu0 0.0
    %2222 = vmatpush2.msra.mxu0 0.0
    %2223 = vmatprep.subr.mxu0 0.0
    %2224 = vmatpush2.msra.mxu0 0.0
    %2225 = vmatprep.subr.mxu0 0.0
    %2226 = vmatpush2.msra.mxu0 0.0
    %2227 = vmatprep.subr.mxu0 0.0
    %2228 = vmatpush2.msra.mxu0 0.0
    %2229 = vmatprep.subr.mxu0 0.0
    %2230 = vmatpush2.msra.mxu0 0.0
    %2231 = vmatprep.subr.mxu0 0.0
    %2232 = vmatpush2.msra.mxu0 0.0
    %2233 = vmatprep.subr.mxu0 0.0
    %2234 = vmatpush2.msra.mxu0 0.0
    %2235 = vmatprep.subr.mxu0 0.0
    %2236 = vmatpush2.msra.mxu0 0.0
    %2237 = vmatprep.subr.mxu0 0.0
    %2238 = vmatpush2.msra.mxu0 0.0
    %2239 = vmatprep.subr.mxu0 0.0
    %2240 = vmatpush2.msra.mxu0 0.0
    %2241 = vmatprep.mubr.f32.mxu0 0.0
    %v2242 = vand.u32 %v41, 4294901760
    %v2243 = vsub.f32 %v41, %v2242
    %2244 = vmatmul.mubr.f32.gmra.mxu0 %v2243
    %v2245 = vpop.f32.mrf.mxu0
    %v2246 = vadd.f32 %v2148, %v2245
    %v2247 = vpop.f32.mrf.mxu0
    %2248 = vmatprep.mubr.f32.mxu0 0.0
    %v2249 = vand.u32 %v44, 4294901760
    %v2250 = vsub.f32 %v44, %v2249
    %2251 = vmatmul.mubr.f32.gmra.mxu0 %v2250
    %v2252 = vpop.f32.mrf.mxu0
    %v2253 = vadd.f32 %v2154, %v2252
    %v2254 = vpop.f32.mrf.mxu0
    %2255 = vmatprep.mubr.f32.mxu0 0.0
    %v2256 = vand.u32 %v47, 4294901760
    %v2257 = vsub.f32 %v47, %v2256
    %2258 = vmatmul.mubr.f32.gmra.mxu0 %v2257
    %v2259 = vpop.f32.mrf.mxu0
    %v2260 = vadd.f32 %v2160, %v2259
    %v2261 = vpop.f32.mrf.mxu0
    %2262 = vmatprep.mubr.f32.mxu0 0.0
    %v2263 = vand.u32 %v50, 4294901760
    %v2264 = vsub.f32 %v50, %v2263
    %2265 = vmatmul.mubr.f32.gmra.mxu0 %v2264
    %v2266 = vpop.f32.mrf.mxu0
    %v2267 = vadd.f32 %v2166, %v2266
    %v2268 = vpop.f32.mrf.mxu0
    %2269 = vdwg.mxu0
    %2270 = vmatprep.subr.mxu0 0.0
    %2271 = vmatpush1.msra.mxu0 0.0
    %2272 = vmatprep.subr.mxu0 0.0
    %2273 = vmatpush1.msra.mxu0 0.0
    %2274 = vmatprep.subr.mxu0 0.0
    %2275 = vmatpush1.msra.mxu0 0.0
    %2276 = vmatprep.subr.mxu0 0.0
    %2277 = vmatpush1.msra.mxu0 0.0
    %2278 = vmatprep.subr.mxu0 0.0
    %2279 = vmatpush1.msra.mxu0 0.0
    %2280 = vmatprep.subr.mxu0 0.0
    %2281 = vmatpush1.msra.mxu0 0.0
    %2282 = vmatprep.subr.mxu0 0.0
    %2283 = vmatpush1.msra.mxu0 0.0
    %2284 = vmatprep.subr.mxu0 0.0
    %2285 = vmatpush1.msra.mxu0 0.0
    %2286 = vmatprep.subr.mxu0 0.0
    %2287 = vmatpush1.msra.mxu0 0.0
    %2288 = vmatprep.subr.mxu0 0.0
    %2289 = vmatpush1.msra.mxu0 0.0
    %2290 = vmatprep.subr.mxu0 0.0
    %2291 = vmatpush1.msra.mxu0 0.0
    %2292 = vmatprep.subr.mxu0 0.0
    %2293 = vmatpush1.msra.mxu0 0.0
    %2294 = vmatprep.subr.mxu0 0.0
    %v2295 = vand.u32 %v1950, 4294901760
    %2296 = vmatpush1.msra.mxu0 %v2295
    %2297 = vmatprep.subr.mxu0 0.0
    %v2298 = vand.u32 %v1949, 4294901760
    %2299 = vmatpush1.msra.mxu0 %v2298
    %2300 = vmatprep.subr.mxu0 0.0
    %v2301 = vand.u32 %v1948, 4294901760
    %2302 = vmatpush1.msra.mxu0 %v2301
    %2303 = vmatprep.subr.mxu0 0.0
    %v2304 = vand.u32 %v1947, 4294901760
    %2305 = vmatpush1.msra.mxu0 %v2304
    %2306 = vmatprep.subr.mxu0 0.0
    %2307 = vmatpush2.msra.mxu0 0.0
    %2308 = vmatprep.subr.mxu0 0.0
    %2309 = vmatpush2.msra.mxu0 0.0
    %2310 = vmatprep.subr.mxu0 0.0
    %2311 = vmatpush2.msra.mxu0 0.0
    %2312 = vmatprep.subr.mxu0 0.0
    %2313 = vmatpush2.msra.mxu0 0.0
    %2314 = vmatprep.subr.mxu0 0.0
    %2315 = vmatpush2.msra.mxu0 0.0
    %2316 = vmatprep.subr.mxu0 0.0
    %2317 = vmatpush2.msra.mxu0 0.0
    %2318 = vmatprep.subr.mxu0 0.0
    %2319 = vmatpush2.msra.mxu0 0.0
    %2320 = vmatprep.subr.mxu0 0.0
    %2321 = vmatpush2.msra.mxu0 0.0
    %2322 = vmatprep.subr.mxu0 0.0
    %2323 = vmatpush2.msra.mxu0 0.0
    %2324 = vmatprep.subr.mxu0 0.0
    %2325 = vmatpush2.msra.mxu0 0.0
    %2326 = vmatprep.subr.mxu0 0.0
    %2327 = vmatpush2.msra.mxu0 0.0
    %2328 = vmatprep.subr.mxu0 0.0
    %2329 = vmatpush2.msra.mxu0 0.0
    %2330 = vmatprep.subr.mxu0 0.0
    %2331 = vmatpush2.msra.mxu0 0.0
    %2332 = vmatprep.subr.mxu0 0.0
    %2333 = vmatpush2.msra.mxu0 0.0
    %2334 = vmatprep.subr.mxu0 0.0
    %2335 = vmatpush2.msra.mxu0 0.0
    %2336 = vmatprep.subr.mxu0 0.0
    %2337 = vmatpush2.msra.mxu0 0.0
    %2338 = vmatprep.mubr.f32.mxu0 0.0
    %v2339 = vand.u32 %v41, 4294901760
    %v2340 = vsub.f32 %v41, %v2339
    %v2341 = vand.u32 %v2340, 4294901760
    %2342 = vmatmul.mubr.f32.gmra.mxu0 %v2341
    %v2343 = vpop.f32.mrf.mxu0
    %v2344 = vadd.f32 %v2246, %v2343
    %v2345 = vpop.f32.mrf.mxu0
    %2346 = vmatprep.mubr.f32.mxu0 0.0
    %v2347 = vand.u32 %v44, 4294901760
    %v2348 = vsub.f32 %v44, %v2347
    %v2349 = vand.u32 %v2348, 4294901760
    %2350 = vmatmul.mubr.f32.gmra.mxu0 %v2349
    %v2351 = vpop.f32.mrf.mxu0
    %v2352 = vadd.f32 %v2253, %v2351
    %v2353 = vpop.f32.mrf.mxu0
    %2354 = vmatprep.mubr.f32.mxu0 0.0
    %v2355 = vand.u32 %v47, 4294901760
    %v2356 = vsub.f32 %v47, %v2355
    %v2357 = vand.u32 %v2356, 4294901760
    %2358 = vmatmul.mubr.f32.gmra.mxu0 %v2357
    %v2359 = vpop.f32.mrf.mxu0
    %v2360 = vadd.f32 %v2260, %v2359
    %v2361 = vpop.f32.mrf.mxu0
    %2362 = vmatprep.mubr.f32.mxu0 0.0
    %v2363 = vand.u32 %v50, 4294901760
    %v2364 = vsub.f32 %v50, %v2363
    %v2365 = vand.u32 %v2364, 4294901760
    %2366 = vmatmul.mubr.f32.gmra.mxu0 %v2365
    %v2367 = vpop.f32.mrf.mxu0
    %v2368 = vadd.f32 %v2267, %v2367
    %v2369 = vpop.f32.mrf.mxu0
    %2370 = vdwg.mxu0
    %2371 = vmatprep.subr.mxu0 0.0
    %2372 = vmatpush1.msra.mxu0 0.0
    %2373 = vmatprep.subr.mxu0 0.0
    %2374 = vmatpush1.msra.mxu0 0.0
    %2375 = vmatprep.subr.mxu0 0.0
    %2376 = vmatpush1.msra.mxu0 0.0
    %2377 = vmatprep.subr.mxu0 0.0
    %2378 = vmatpush1.msra.mxu0 0.0
    %2379 = vmatprep.subr.mxu0 0.0
    %2380 = vmatpush1.msra.mxu0 0.0
    %2381 = vmatprep.subr.mxu0 0.0
    %2382 = vmatpush1.msra.mxu0 0.0
    %2383 = vmatprep.subr.mxu0 0.0
    %2384 = vmatpush1.msra.mxu0 0.0
    %2385 = vmatprep.subr.mxu0 0.0
    %2386 = vmatpush1.msra.mxu0 0.0
    %2387 = vmatprep.subr.mxu0 0.0
    %2388 = vmatpush1.msra.mxu0 0.0
    %2389 = vmatprep.subr.mxu0 0.0
    %2390 = vmatpush1.msra.mxu0 0.0
    %2391 = vmatprep.subr.mxu0 0.0
    %2392 = vmatpush1.msra.mxu0 0.0
    %2393 = vmatprep.subr.mxu0 0.0
    %2394 = vmatpush1.msra.mxu0 0.0
    %2395 = vmatprep.subr.mxu0 0.0
    %v2396 = vand.u32 %v1950, 4294901760
    %v2397 = vsub.f32 %v1950, %v2396
    %v2398 = vand.u32 %v2397, 4294901760
    %2399 = vmatpush1.msra.mxu0 %v2398
    %2400 = vmatprep.subr.mxu0 0.0
    %v2401 = vand.u32 %v1949, 4294901760
    %v2402 = vsub.f32 %v1949, %v2401
    %v2403 = vand.u32 %v2402, 4294901760
    %2404 = vmatpush1.msra.mxu0 %v2403
    %2405 = vmatprep.subr.mxu0 0.0
    %v2406 = vand.u32 %v1948, 4294901760
    %v2407 = vsub.f32 %v1948, %v2406
    %v2408 = vand.u32 %v2407, 4294901760
    %2409 = vmatpush1.msra.mxu0 %v2408
    %2410 = vmatprep.subr.mxu0 0.0
    %v2411 = vand.u32 %v1947, 4294901760
    %v2412 = vsub.f32 %v1947, %v2411
    %v2413 = vand.u32 %v2412, 4294901760
    %2414 = vmatpush1.msra.mxu0 %v2413
    %2415 = vmatprep.subr.mxu0 0.0
    %2416 = vmatpush2.msra.mxu0 0.0
    %2417 = vmatprep.subr.mxu0 0.0
    %2418 = vmatpush2.msra.mxu0 0.0
    %2419 = vmatprep.subr.mxu0 0.0
    %2420 = vmatpush2.msra.mxu0 0.0
    %2421 = vmatprep.subr.mxu0 0.0
    %2422 = vmatpush2.msra.mxu0 0.0
    %2423 = vmatprep.subr.mxu0 0.0
    %2424 = vmatpush2.msra.mxu0 0.0
    %2425 = vmatprep.subr.mxu0 0.0
    %2426 = vmatpush2.msra.mxu0 0.0
    %2427 = vmatprep.subr.mxu0 0.0
    %2428 = vmatpush2.msra.mxu0 0.0
    %2429 = vmatprep.subr.mxu0 0.0
    %2430 = vmatpush2.msra.mxu0 0.0
    %2431 = vmatprep.subr.mxu0 0.0
    %2432 = vmatpush2.msra.mxu0 0.0
    %2433 = vmatprep.subr.mxu0 0.0
    %2434 = vmatpush2.msra.mxu0 0.0
    %2435 = vmatprep.subr.mxu0 0.0
    %2436 = vmatpush2.msra.mxu0 0.0
    %2437 = vmatprep.subr.mxu0 0.0
    %2438 = vmatpush2.msra.mxu0 0.0
    %2439 = vmatprep.subr.mxu0 0.0
    %2440 = vmatpush2.msra.mxu0 0.0
    %2441 = vmatprep.subr.mxu0 0.0
    %2442 = vmatpush2.msra.mxu0 0.0
    %2443 = vmatprep.subr.mxu0 0.0
    %2444 = vmatpush2.msra.mxu0 0.0
    %2445 = vmatprep.subr.mxu0 0.0
    %2446 = vmatpush2.msra.mxu0 0.0
    %2447 = vmatprep.mubr.f32.mxu0 0.0
    %v2448 = vand.u32 %v41, 4294901760
    %2449 = vmatmul.mubr.f32.gmra.mxu0 %v2448
    %v2450 = vpop.f32.mrf.mxu0
    %v2451 = vadd.f32 %v2344, %v2450
    %v2452 = vpop.f32.mrf.mxu0
    %2453 = vmatprep.mubr.f32.mxu0 0.0
    %v2454 = vand.u32 %v44, 4294901760
    %2455 = vmatmul.mubr.f32.gmra.mxu0 %v2454
    %v2456 = vpop.f32.mrf.mxu0
    %v2457 = vadd.f32 %v2352, %v2456
    %v2458 = vpop.f32.mrf.mxu0
    %2459 = vmatprep.mubr.f32.mxu0 0.0
    %v2460 = vand.u32 %v47, 4294901760
    %2461 = vmatmul.mubr.f32.gmra.mxu0 %v2460
    %v2462 = vpop.f32.mrf.mxu0
    %v2463 = vadd.f32 %v2360, %v2462
    %v2464 = vpop.f32.mrf.mxu0
    %2465 = vmatprep.mubr.f32.mxu0 0.0
    %v2466 = vand.u32 %v50, 4294901760
    %2467 = vmatmul.mubr.f32.gmra.mxu0 %v2466
    %v2468 = vpop.f32.mrf.mxu0
    %v2469 = vadd.f32 %v2368, %v2468
    %v2470 = vpop.f32.mrf.mxu0
    %2471 = vdwg.mxu0
    %2472 = vmatprep.subr.mxu0 0.0
    %2473 = vmatpush1.msra.mxu0 0.0
    %2474 = vmatprep.subr.mxu0 0.0
    %2475 = vmatpush1.msra.mxu0 0.0
    %2476 = vmatprep.subr.mxu0 0.0
    %2477 = vmatpush1.msra.mxu0 0.0
    %2478 = vmatprep.subr.mxu0 0.0
    %2479 = vmatpush1.msra.mxu0 0.0
    %2480 = vmatprep.subr.mxu0 0.0
    %2481 = vmatpush1.msra.mxu0 0.0
    %2482 = vmatprep.subr.mxu0 0.0
    %2483 = vmatpush1.msra.mxu0 0.0
    %2484 = vmatprep.subr.mxu0 0.0
    %2485 = vmatpush1.msra.mxu0 0.0
    %2486 = vmatprep.subr.mxu0 0.0
    %2487 = vmatpush1.msra.mxu0 0.0
    %2488 = vmatprep.subr.mxu0 0.0
    %2489 = vmatpush1.msra.mxu0 0.0
    %2490 = vmatprep.subr.mxu0 0.0
    %2491 = vmatpush1.msra.mxu0 0.0
    %2492 = vmatprep.subr.mxu0 0.0
    %2493 = vmatpush1.msra.mxu0 0.0
    %2494 = vmatprep.subr.mxu0 0.0
    %2495 = vmatpush1.msra.mxu0 0.0
    %2496 = vmatprep.subr.mxu0 0.0
    %v2497 = vand.u32 %v1950, 4294901760
    %2498 = vmatpush1.msra.mxu0 %v2497
    %2499 = vmatprep.subr.mxu0 0.0
    %v2500 = vand.u32 %v1949, 4294901760
    %2501 = vmatpush1.msra.mxu0 %v2500
    %2502 = vmatprep.subr.mxu0 0.0
    %v2503 = vand.u32 %v1948, 4294901760
    %2504 = vmatpush1.msra.mxu0 %v2503
    %2505 = vmatprep.subr.mxu0 0.0
    %v2506 = vand.u32 %v1947, 4294901760
    %2507 = vmatpush1.msra.mxu0 %v2506
    %2508 = vmatprep.subr.mxu0 0.0
    %2509 = vmatpush2.msra.mxu0 0.0
    %2510 = vmatprep.subr.mxu0 0.0
    %2511 = vmatpush2.msra.mxu0 0.0
    %2512 = vmatprep.subr.mxu0 0.0
    %2513 = vmatpush2.msra.mxu0 0.0
    %2514 = vmatprep.subr.mxu0 0.0
    %2515 = vmatpush2.msra.mxu0 0.0
    %2516 = vmatprep.subr.mxu0 0.0
    %2517 = vmatpush2.msra.mxu0 0.0
    %2518 = vmatprep.subr.mxu0 0.0
    %2519 = vmatpush2.msra.mxu0 0.0
    %2520 = vmatprep.subr.mxu0 0.0
    %2521 = vmatpush2.msra.mxu0 0.0
    %2522 = vmatprep.subr.mxu0 0.0
    %2523 = vmatpush2.msra.mxu0 0.0
    %2524 = vmatprep.subr.mxu0 0.0
    %2525 = vmatpush2.msra.mxu0 0.0
    %2526 = vmatprep.subr.mxu0 0.0
    %2527 = vmatpush2.msra.mxu0 0.0
    %2528 = vmatprep.subr.mxu0 0.0
    %2529 = vmatpush2.msra.mxu0 0.0
    %2530 = vmatprep.subr.mxu0 0.0
    %2531 = vmatpush2.msra.mxu0 0.0
    %2532 = vmatprep.subr.mxu0 0.0
    %2533 = vmatpush2.msra.mxu0 0.0
    %2534 = vmatprep.subr.mxu0 0.0
    %2535 = vmatpush2.msra.mxu0 0.0
    %2536 = vmatprep.subr.mxu0 0.0
    %2537 = vmatpush2.msra.mxu0 0.0
    %2538 = vmatprep.subr.mxu0 0.0
    %2539 = vmatpush2.msra.mxu0 0.0
    %2540 = vmatprep.mubr.f32.mxu0 0.0
    %v2541 = vand.u32 %v41, 4294901760
    %2542 = vmatmul.mubr.f32.gmra.mxu0 %v2541
    %v2543 = vpop.f32.mrf.mxu0
    %v2544 = vadd.f32 %v2451, %v2543
    %v2545 = vpop.f32.mrf.mxu0
    %2546 = vmatprep.mubr.f32.mxu0 0.0
    %v2547 = vand.u32 %v44, 4294901760
    %2548 = vmatmul.mubr.f32.gmra.mxu0 %v2547
    %v2549 = vpop.f32.mrf.mxu0
    %v2550 = vadd.f32 %v2457, %v2549
    %v2551 = vpop.f32.mrf.mxu0
    %2552 = vmatprep.mubr.f32.mxu0 0.0
    %v2553 = vand.u32 %v47, 4294901760
    %2554 = vmatmul.mubr.f32.gmra.mxu0 %v2553
    %v2555 = vpop.f32.mrf.mxu0
    %v2556 = vadd.f32 %v2463, %v2555
    %v2557 = vpop.f32.mrf.mxu0
    %2558 = vmatprep.mubr.f32.mxu0 0.0
    %v2559 = vand.u32 %v50, 4294901760
    %2560 = vmatmul.mubr.f32.gmra.mxu0 %v2559
    %v2561 = vpop.f32.mrf.mxu0
    %v2562 = vadd.f32 %v2469, %v2561
    %v2563 = vpop.f32.mrf.mxu0
    %2564 = vdwg.mxu0
    %v2565 = vmul.f32 %v1925, %v1925
    %v2566 = vmul.f32 %v1931, %v1931
    %v2567 = vmul.f32 %v1937, %v1937
    %v2568 = vmul.f32 %v1943, %v1943
    %v2569 = vsel %vm1289, %v2565, 0.0
    %2570 = vadd.xlane.f32.xlu0 %v2569
    %v2571 = vpop.xlane.xlu0 %2570
    %v2572 = vsel %vm1289, %v2566, 0.0
    %2573 = vadd.xlane.f32.xlu0 %v2572
    %v2574 = vpop.xlane.xlu0 %2573
    %v2575 = vsel %vm1289, %v2567, 0.0
    %2576 = vadd.xlane.f32.xlu0 %v2575
    %v2577 = vpop.xlane.xlu0 %2576
    %v2578 = vsel %vm1289, %v2568, 0.0
    %2579 = vadd.xlane.f32.xlu0 %v2578
    %v2580 = vpop.xlane.xlu0 %2579
    %v2581 = vmul.f32 %v2571, %v1302
    %v2582 = vmul.f32 %v2574, %v1302
    %v2583 = vmul.f32 %v2577, %v1302
    %v2584 = vmul.f32 %v2580, %v1302
    %v2585 = vadd.f32 %v2581, 1e-05
    %v2586 = vadd.f32 %v2582, 1e-05
    %v2587 = vadd.f32 %v2583, 1e-05
    %v2588 = vadd.f32 %v2584, 1e-05
    %v2589 = vrsqrt.pop %v2585
    %v2590 = vrsqrt.pop %v2586
    %v2591 = vrsqrt.pop %v2587
    %v2592 = vrsqrt.pop %v2588
    %v2593 = vmul.f32 %v1925, %v2589
    %v2594 = vmul.f32 %v1931, %v2590
    %v2595 = vmul.f32 %v1937, %v2591
    %v2596 = vmul.f32 %v1943, %v2592
    %v2597 = vmul.f32 %v2593, %v1322
    %v2598 = vmul.f32 %v2594, %v1322
    %v2599 = vmul.f32 %v2595, %v1322
    %v2600 = vmul.f32 %v2596, %v1322
    %v2601 = vld [vmem:[%s3] sm:$0xff]
    %v2602 = vld [vmem:[%s3 + $0x8] sm:$0xff]
    %v2603 = vld [vmem:[%s3 + $0x10] sm:$0xff]
    %v2604 = vld [vmem:[%s3 + $0x18] sm:$0xff]
    %v2606 = vsel %vm39, %v24, 0
    %v2609 = vsel %vm39, %v25, 0
    %2611 = vmatprep.subr.mxu0 0.0
    %2612 = vmatpush1.msra.mxu0 0.0
    %2613 = vmatprep.subr.mxu0 0.0
    %2614 = vmatpush1.msra.mxu0 0.0
    %2615 = vmatprep.subr.mxu0 0.0
    %2616 = vmatpush1.msra.mxu0 0.0
    %2617 = vmatprep.subr.mxu0 0.0
    %2618 = vmatpush1.msra.mxu0 0.0
    %2619 = vmatprep.subr.mxu0 0.0
    %2620 = vmatpush1.msra.mxu0 0.0
    %2621 = vmatprep.subr.mxu0 0.0
    %2622 = vmatpush1.msra.mxu0 0.0
    %2623 = vmatprep.subr.mxu0 0.0
    %2624 = vmatpush1.msra.mxu0 0.0
    %2625 = vmatprep.subr.mxu0 0.0
    %2626 = vmatpush1.msra.mxu0 0.0
    %2627 = vmatprep.subr.mxu0 0.0
    %2628 = vmatpush1.msra.mxu0 0.0
    %2629 = vmatprep.subr.mxu0 0.0
    %2630 = vmatpush1.msra.mxu0 0.0
    %2631 = vmatprep.subr.mxu0 0.0
    %2632 = vmatpush1.msra.mxu0 0.0
    %2633 = vmatprep.subr.mxu0 0.0
    %2634 = vmatpush1.msra.mxu0 0.0
    %2635 = vmatprep.subr.mxu0 0.0
    %v2636 = vand.u32 %v2604, 4294901760
    %2637 = vmatpush1.msra.mxu0 %v2636
    %2638 = vmatprep.subr.mxu0 0.0
    %v2639 = vand.u32 %v2603, 4294901760
    %2640 = vmatpush1.msra.mxu0 %v2639
    %2641 = vmatprep.subr.mxu0 0.0
    %v2642 = vand.u32 %v2602, 4294901760
    %2643 = vmatpush1.msra.mxu0 %v2642
    %2644 = vmatprep.subr.mxu0 0.0
    %v2645 = vand.u32 %v2601, 4294901760
    %2646 = vmatpush1.msra.mxu0 %v2645
    %2647 = vmatprep.subr.mxu0 0.0
    %2648 = vmatpush2.msra.mxu0 0.0
    %2649 = vmatprep.subr.mxu0 0.0
    %2650 = vmatpush2.msra.mxu0 0.0
    %2651 = vmatprep.subr.mxu0 0.0
    %2652 = vmatpush2.msra.mxu0 0.0
    %2653 = vmatprep.subr.mxu0 0.0
    %2654 = vmatpush2.msra.mxu0 0.0
    %2655 = vmatprep.subr.mxu0 0.0
    %2656 = vmatpush2.msra.mxu0 0.0
    %2657 = vmatprep.subr.mxu0 0.0
    %2658 = vmatpush2.msra.mxu0 0.0
    %2659 = vmatprep.subr.mxu0 0.0
    %2660 = vmatpush2.msra.mxu0 0.0
    %2661 = vmatprep.subr.mxu0 0.0
    %2662 = vmatpush2.msra.mxu0 0.0
    %2663 = vmatprep.subr.mxu0 0.0
    %2664 = vmatpush2.msra.mxu0 0.0
    %2665 = vmatprep.subr.mxu0 0.0
    %2666 = vmatpush2.msra.mxu0 0.0
    %2667 = vmatprep.subr.mxu0 0.0
    %2668 = vmatpush2.msra.mxu0 0.0
    %2669 = vmatprep.subr.mxu0 0.0
    %2670 = vmatpush2.msra.mxu0 0.0
    %2671 = vmatprep.subr.mxu0 0.0
    %2672 = vmatpush2.msra.mxu0 0.0
    %2673 = vmatprep.subr.mxu0 0.0
    %2674 = vmatpush2.msra.mxu0 0.0
    %2675 = vmatprep.subr.mxu0 0.0
    %2676 = vmatpush2.msra.mxu0 0.0
    %2677 = vmatprep.subr.mxu0 0.0
    %2678 = vmatpush2.msra.mxu0 0.0
    %2679 = vmatprep.mubr.f32.mxu0 0.0
    %v2680 = vand.u32 %v2606, 4294901760
    %v2681 = vsub.f32 %v2606, %v2680
    %v2682 = vand.u32 %v2681, 4294901760
    %v2683 = vsub.f32 %v2681, %v2682
    %v2684 = vand.u32 %v2683, 4294901760
    %2685 = vmatmul.mubr.f32.gmra.mxu0 %v2684
    %v2686 = vpop.f32.mrf.mxu0
    %v2687 = vadd.f32 0.0, %v2686
    %v2688 = vpop.f32.mrf.mxu0
    %2689 = vmatprep.mubr.f32.mxu0 0.0
    %v2690 = vand.u32 %v2609, 4294901760
    %v2691 = vsub.f32 %v2609, %v2690
    %v2692 = vand.u32 %v2691, 4294901760
    %v2693 = vsub.f32 %v2691, %v2692
    %v2694 = vand.u32 %v2693, 4294901760
    %2695 = vmatmul.mubr.f32.gmra.mxu0 %v2694
    %v2696 = vpop.f32.mrf.mxu0
    %v2697 = vadd.f32 0.0, %v2696
    %v2698 = vpop.f32.mrf.mxu0
    %2699 = vdwg.mxu0
    %2700 = vmatprep.subr.mxu0 0.0
    %2701 = vmatpush1.msra.mxu0 0.0
    %2702 = vmatprep.subr.mxu0 0.0
    %2703 = vmatpush1.msra.mxu0 0.0
    %2704 = vmatprep.subr.mxu0 0.0
    %2705 = vmatpush1.msra.mxu0 0.0
    %2706 = vmatprep.subr.mxu0 0.0
    %2707 = vmatpush1.msra.mxu0 0.0
    %2708 = vmatprep.subr.mxu0 0.0
    %2709 = vmatpush1.msra.mxu0 0.0
    %2710 = vmatprep.subr.mxu0 0.0
    %2711 = vmatpush1.msra.mxu0 0.0
    %2712 = vmatprep.subr.mxu0 0.0
    %2713 = vmatpush1.msra.mxu0 0.0
    %2714 = vmatprep.subr.mxu0 0.0
    %2715 = vmatpush1.msra.mxu0 0.0
    %2716 = vmatprep.subr.mxu0 0.0
    %2717 = vmatpush1.msra.mxu0 0.0
    %2718 = vmatprep.subr.mxu0 0.0
    %2719 = vmatpush1.msra.mxu0 0.0
    %2720 = vmatprep.subr.mxu0 0.0
    %2721 = vmatpush1.msra.mxu0 0.0
    %2722 = vmatprep.subr.mxu0 0.0
    %2723 = vmatpush1.msra.mxu0 0.0
    %2724 = vmatprep.subr.mxu0 0.0
    %v2725 = vand.u32 %v2604, 4294901760
    %v2726 = vsub.f32 %v2604, %v2725
    %v2727 = vand.u32 %v2726, 4294901760
    %v2728 = vsub.f32 %v2726, %v2727
    %v2729 = vand.u32 %v2728, 4294901760
    %2730 = vmatpush1.msra.mxu0 %v2729
    %2731 = vmatprep.subr.mxu0 0.0
    %v2732 = vand.u32 %v2603, 4294901760
    %v2733 = vsub.f32 %v2603, %v2732
    %v2734 = vand.u32 %v2733, 4294901760
    %v2735 = vsub.f32 %v2733, %v2734
    %v2736 = vand.u32 %v2735, 4294901760
    %2737 = vmatpush1.msra.mxu0 %v2736
    %2738 = vmatprep.subr.mxu0 0.0
    %v2739 = vand.u32 %v2602, 4294901760
    %v2740 = vsub.f32 %v2602, %v2739
    %v2741 = vand.u32 %v2740, 4294901760
    %v2742 = vsub.f32 %v2740, %v2741
    %v2743 = vand.u32 %v2742, 4294901760
    %2744 = vmatpush1.msra.mxu0 %v2743
    %2745 = vmatprep.subr.mxu0 0.0
    %v2746 = vand.u32 %v2601, 4294901760
    %v2747 = vsub.f32 %v2601, %v2746
    %v2748 = vand.u32 %v2747, 4294901760
    %v2749 = vsub.f32 %v2747, %v2748
    %v2750 = vand.u32 %v2749, 4294901760
    %2751 = vmatpush1.msra.mxu0 %v2750
    %2752 = vmatprep.subr.mxu0 0.0
    %2753 = vmatpush2.msra.mxu0 0.0
    %2754 = vmatprep.subr.mxu0 0.0
    %2755 = vmatpush2.msra.mxu0 0.0
    %2756 = vmatprep.subr.mxu0 0.0
    %2757 = vmatpush2.msra.mxu0 0.0
    %2758 = vmatprep.subr.mxu0 0.0
    %2759 = vmatpush2.msra.mxu0 0.0
    %2760 = vmatprep.subr.mxu0 0.0
    %2761 = vmatpush2.msra.mxu0 0.0
    %2762 = vmatprep.subr.mxu0 0.0
    %2763 = vmatpush2.msra.mxu0 0.0
    %2764 = vmatprep.subr.mxu0 0.0
    %2765 = vmatpush2.msra.mxu0 0.0
    %2766 = vmatprep.subr.mxu0 0.0
    %2767 = vmatpush2.msra.mxu0 0.0
    %2768 = vmatprep.subr.mxu0 0.0
    %2769 = vmatpush2.msra.mxu0 0.0
    %2770 = vmatprep.subr.mxu0 0.0
    %2771 = vmatpush2.msra.mxu0 0.0
    %2772 = vmatprep.subr.mxu0 0.0
    %2773 = vmatpush2.msra.mxu0 0.0
    %2774 = vmatprep.subr.mxu0 0.0
    %2775 = vmatpush2.msra.mxu0 0.0
    %2776 = vmatprep.subr.mxu0 0.0
    %2777 = vmatpush2.msra.mxu0 0.0
    %2778 = vmatprep.subr.mxu0 0.0
    %2779 = vmatpush2.msra.mxu0 0.0
    %2780 = vmatprep.subr.mxu0 0.0
    %2781 = vmatpush2.msra.mxu0 0.0
    %2782 = vmatprep.subr.mxu0 0.0
    %2783 = vmatpush2.msra.mxu0 0.0
    %2784 = vmatprep.mubr.f32.mxu0 0.0
    %v2785 = vand.u32 %v2606, 4294901760
    %2786 = vmatmul.mubr.f32.gmra.mxu0 %v2785
    %v2787 = vpop.f32.mrf.mxu0
    %v2788 = vadd.f32 %v2687, %v2787
    %v2789 = vpop.f32.mrf.mxu0
    %2790 = vmatprep.mubr.f32.mxu0 0.0
    %v2791 = vand.u32 %v2609, 4294901760
    %2792 = vmatmul.mubr.f32.gmra.mxu0 %v2791
    %v2793 = vpop.f32.mrf.mxu0
    %v2794 = vadd.f32 %v2697, %v2793
    %v2795 = vpop.f32.mrf.mxu0
    %2796 = vdwg.mxu0
    %2797 = vmatprep.subr.mxu0 0.0
    %2798 = vmatpush1.msra.mxu0 0.0
    %2799 = vmatprep.subr.mxu0 0.0
    %2800 = vmatpush1.msra.mxu0 0.0
    %2801 = vmatprep.subr.mxu0 0.0
    %2802 = vmatpush1.msra.mxu0 0.0
    %2803 = vmatprep.subr.mxu0 0.0
    %2804 = vmatpush1.msra.mxu0 0.0
    %2805 = vmatprep.subr.mxu0 0.0
    %2806 = vmatpush1.msra.mxu0 0.0
    %2807 = vmatprep.subr.mxu0 0.0
    %2808 = vmatpush1.msra.mxu0 0.0
    %2809 = vmatprep.subr.mxu0 0.0
    %2810 = vmatpush1.msra.mxu0 0.0
    %2811 = vmatprep.subr.mxu0 0.0
    %2812 = vmatpush1.msra.mxu0 0.0
    %2813 = vmatprep.subr.mxu0 0.0
    %2814 = vmatpush1.msra.mxu0 0.0
    %2815 = vmatprep.subr.mxu0 0.0
    %2816 = vmatpush1.msra.mxu0 0.0
    %2817 = vmatprep.subr.mxu0 0.0
    %2818 = vmatpush1.msra.mxu0 0.0
    %2819 = vmatprep.subr.mxu0 0.0
    %2820 = vmatpush1.msra.mxu0 0.0
    %2821 = vmatprep.subr.mxu0 0.0
    %v2822 = vand.u32 %v2604, 4294901760
    %v2823 = vsub.f32 %v2604, %v2822
    %2824 = vmatpush1.msra.mxu0 %v2823
    %2825 = vmatprep.subr.mxu0 0.0
    %v2826 = vand.u32 %v2603, 4294901760
    %v2827 = vsub.f32 %v2603, %v2826
    %2828 = vmatpush1.msra.mxu0 %v2827
    %2829 = vmatprep.subr.mxu0 0.0
    %v2830 = vand.u32 %v2602, 4294901760
    %v2831 = vsub.f32 %v2602, %v2830
    %2832 = vmatpush1.msra.mxu0 %v2831
    %2833 = vmatprep.subr.mxu0 0.0
    %v2834 = vand.u32 %v2601, 4294901760
    %v2835 = vsub.f32 %v2601, %v2834
    %2836 = vmatpush1.msra.mxu0 %v2835
    %2837 = vmatprep.subr.mxu0 0.0
    %2838 = vmatpush2.msra.mxu0 0.0
    %2839 = vmatprep.subr.mxu0 0.0
    %2840 = vmatpush2.msra.mxu0 0.0
    %2841 = vmatprep.subr.mxu0 0.0
    %2842 = vmatpush2.msra.mxu0 0.0
    %2843 = vmatprep.subr.mxu0 0.0
    %2844 = vmatpush2.msra.mxu0 0.0
    %2845 = vmatprep.subr.mxu0 0.0
    %2846 = vmatpush2.msra.mxu0 0.0
    %2847 = vmatprep.subr.mxu0 0.0
    %2848 = vmatpush2.msra.mxu0 0.0
    %2849 = vmatprep.subr.mxu0 0.0
    %2850 = vmatpush2.msra.mxu0 0.0
    %2851 = vmatprep.subr.mxu0 0.0
    %2852 = vmatpush2.msra.mxu0 0.0
    %2853 = vmatprep.subr.mxu0 0.0
    %2854 = vmatpush2.msra.mxu0 0.0
    %2855 = vmatprep.subr.mxu0 0.0
    %2856 = vmatpush2.msra.mxu0 0.0
    %2857 = vmatprep.subr.mxu0 0.0
    %2858 = vmatpush2.msra.mxu0 0.0
    %2859 = vmatprep.subr.mxu0 0.0
    %2860 = vmatpush2.msra.mxu0 0.0
    %2861 = vmatprep.subr.mxu0 0.0
    %2862 = vmatpush2.msra.mxu0 0.0
    %2863 = vmatprep.subr.mxu0 0.0
    %2864 = vmatpush2.msra.mxu0 0.0
    %2865 = vmatprep.subr.mxu0 0.0
    %2866 = vmatpush2.msra.mxu0 0.0
    %2867 = vmatprep.subr.mxu0 0.0
    %2868 = vmatpush2.msra.mxu0 0.0
    %2869 = vmatprep.mubr.f32.mxu0 0.0
    %v2870 = vand.u32 %v2606, 4294901760
    %v2871 = vsub.f32 %v2606, %v2870
    %2872 = vmatmul.mubr.f32.gmra.mxu0 %v2871
    %v2873 = vpop.f32.mrf.mxu0
    %v2874 = vadd.f32 %v2788, %v2873
    %v2875 = vpop.f32.mrf.mxu0
    %2876 = vmatprep.mubr.f32.mxu0 0.0
    %v2877 = vand.u32 %v2609, 4294901760
    %v2878 = vsub.f32 %v2609, %v2877
    %2879 = vmatmul.mubr.f32.gmra.mxu0 %v2878
    %v2880 = vpop.f32.mrf.mxu0
    %v2881 = vadd.f32 %v2794, %v2880
    %v2882 = vpop.f32.mrf.mxu0
    %2883 = vdwg.mxu0
    %2884 = vmatprep.subr.mxu0 0.0
    %2885 = vmatpush1.msra.mxu0 0.0
    %2886 = vmatprep.subr.mxu0 0.0
    %2887 = vmatpush1.msra.mxu0 0.0
    %2888 = vmatprep.subr.mxu0 0.0
    %2889 = vmatpush1.msra.mxu0 0.0
    %2890 = vmatprep.subr.mxu0 0.0
    %2891 = vmatpush1.msra.mxu0 0.0
    %2892 = vmatprep.subr.mxu0 0.0
    %2893 = vmatpush1.msra.mxu0 0.0
    %2894 = vmatprep.subr.mxu0 0.0
    %2895 = vmatpush1.msra.mxu0 0.0
    %2896 = vmatprep.subr.mxu0 0.0
    %2897 = vmatpush1.msra.mxu0 0.0
    %2898 = vmatprep.subr.mxu0 0.0
    %2899 = vmatpush1.msra.mxu0 0.0
    %2900 = vmatprep.subr.mxu0 0.0
    %2901 = vmatpush1.msra.mxu0 0.0
    %2902 = vmatprep.subr.mxu0 0.0
    %2903 = vmatpush1.msra.mxu0 0.0
    %2904 = vmatprep.subr.mxu0 0.0
    %2905 = vmatpush1.msra.mxu0 0.0
    %2906 = vmatprep.subr.mxu0 0.0
    %2907 = vmatpush1.msra.mxu0 0.0
    %2908 = vmatprep.subr.mxu0 0.0
    %v2909 = vand.u32 %v2604, 4294901760
    %2910 = vmatpush1.msra.mxu0 %v2909
    %2911 = vmatprep.subr.mxu0 0.0
    %v2912 = vand.u32 %v2603, 4294901760
    %2913 = vmatpush1.msra.mxu0 %v2912
    %2914 = vmatprep.subr.mxu0 0.0
    %v2915 = vand.u32 %v2602, 4294901760
    %2916 = vmatpush1.msra.mxu0 %v2915
    %2917 = vmatprep.subr.mxu0 0.0
    %v2918 = vand.u32 %v2601, 4294901760
    %2919 = vmatpush1.msra.mxu0 %v2918
    %2920 = vmatprep.subr.mxu0 0.0
    %2921 = vmatpush2.msra.mxu0 0.0
    %2922 = vmatprep.subr.mxu0 0.0
    %2923 = vmatpush2.msra.mxu0 0.0
    %2924 = vmatprep.subr.mxu0 0.0
    %2925 = vmatpush2.msra.mxu0 0.0
    %2926 = vmatprep.subr.mxu0 0.0
    %2927 = vmatpush2.msra.mxu0 0.0
    %2928 = vmatprep.subr.mxu0 0.0
    %2929 = vmatpush2.msra.mxu0 0.0
    %2930 = vmatprep.subr.mxu0 0.0
    %2931 = vmatpush2.msra.mxu0 0.0
    %2932 = vmatprep.subr.mxu0 0.0
    %2933 = vmatpush2.msra.mxu0 0.0
    %2934 = vmatprep.subr.mxu0 0.0
    %2935 = vmatpush2.msra.mxu0 0.0
    %2936 = vmatprep.subr.mxu0 0.0
    %2937 = vmatpush2.msra.mxu0 0.0
    %2938 = vmatprep.subr.mxu0 0.0
    %2939 = vmatpush2.msra.mxu0 0.0
    %2940 = vmatprep.subr.mxu0 0.0
    %2941 = vmatpush2.msra.mxu0 0.0
    %2942 = vmatprep.subr.mxu0 0.0
    %2943 = vmatpush2.msra.mxu0 0.0
    %2944 = vmatprep.subr.mxu0 0.0
    %2945 = vmatpush2.msra.mxu0 0.0
    %2946 = vmatprep.subr.mxu0 0.0
    %2947 = vmatpush2.msra.mxu0 0.0
    %2948 = vmatprep.subr.mxu0 0.0
    %2949 = vmatpush2.msra.mxu0 0.0
    %2950 = vmatprep.subr.mxu0 0.0
    %2951 = vmatpush2.msra.mxu0 0.0
    %2952 = vmatprep.mubr.f32.mxu0 0.0
    %v2953 = vand.u32 %v2606, 4294901760
    %v2954 = vsub.f32 %v2606, %v2953
    %v2955 = vand.u32 %v2954, 4294901760
    %2956 = vmatmul.mubr.f32.gmra.mxu0 %v2955
    %v2957 = vpop.f32.mrf.mxu0
    %v2958 = vadd.f32 %v2874, %v2957
    %v2959 = vpop.f32.mrf.mxu0
    %2960 = vmatprep.mubr.f32.mxu0 0.0
    %v2961 = vand.u32 %v2609, 4294901760
    %v2962 = vsub.f32 %v2609, %v2961
    %v2963 = vand.u32 %v2962, 4294901760
    %2964 = vmatmul.mubr.f32.gmra.mxu0 %v2963
    %v2965 = vpop.f32.mrf.mxu0
    %v2966 = vadd.f32 %v2881, %v2965
    %v2967 = vpop.f32.mrf.mxu0
    %2968 = vdwg.mxu0
    %2969 = vmatprep.subr.mxu0 0.0
    %2970 = vmatpush1.msra.mxu0 0.0
    %2971 = vmatprep.subr.mxu0 0.0
    %2972 = vmatpush1.msra.mxu0 0.0
    %2973 = vmatprep.subr.mxu0 0.0
    %2974 = vmatpush1.msra.mxu0 0.0
    %2975 = vmatprep.subr.mxu0 0.0
    %2976 = vmatpush1.msra.mxu0 0.0
    %2977 = vmatprep.subr.mxu0 0.0
    %2978 = vmatpush1.msra.mxu0 0.0
    %2979 = vmatprep.subr.mxu0 0.0
    %2980 = vmatpush1.msra.mxu0 0.0
    %2981 = vmatprep.subr.mxu0 0.0
    %2982 = vmatpush1.msra.mxu0 0.0
    %2983 = vmatprep.subr.mxu0 0.0
    %2984 = vmatpush1.msra.mxu0 0.0
    %2985 = vmatprep.subr.mxu0 0.0
    %2986 = vmatpush1.msra.mxu0 0.0
    %2987 = vmatprep.subr.mxu0 0.0
    %2988 = vmatpush1.msra.mxu0 0.0
    %2989 = vmatprep.subr.mxu0 0.0
    %2990 = vmatpush1.msra.mxu0 0.0
    %2991 = vmatprep.subr.mxu0 0.0
    %2992 = vmatpush1.msra.mxu0 0.0
    %2993 = vmatprep.subr.mxu0 0.0
    %v2994 = vand.u32 %v2604, 4294901760
    %v2995 = vsub.f32 %v2604, %v2994
    %v2996 = vand.u32 %v2995, 4294901760
    %2997 = vmatpush1.msra.mxu0 %v2996
    %2998 = vmatprep.subr.mxu0 0.0
    %v2999 = vand.u32 %v2603, 4294901760
    %v3000 = vsub.f32 %v2603, %v2999
    %v3001 = vand.u32 %v3000, 4294901760
    %3002 = vmatpush1.msra.mxu0 %v3001
    %3003 = vmatprep.subr.mxu0 0.0
    %v3004 = vand.u32 %v2602, 4294901760
    %v3005 = vsub.f32 %v2602, %v3004
    %v3006 = vand.u32 %v3005, 4294901760
    %3007 = vmatpush1.msra.mxu0 %v3006
    %3008 = vmatprep.subr.mxu0 0.0
    %v3009 = vand.u32 %v2601, 4294901760
    %v3010 = vsub.f32 %v2601, %v3009
    %v3011 = vand.u32 %v3010, 4294901760
    %3012 = vmatpush1.msra.mxu0 %v3011
    %3013 = vmatprep.subr.mxu0 0.0
    %3014 = vmatpush2.msra.mxu0 0.0
    %3015 = vmatprep.subr.mxu0 0.0
    %3016 = vmatpush2.msra.mxu0 0.0
    %3017 = vmatprep.subr.mxu0 0.0
    %3018 = vmatpush2.msra.mxu0 0.0
    %3019 = vmatprep.subr.mxu0 0.0
    %3020 = vmatpush2.msra.mxu0 0.0
    %3021 = vmatprep.subr.mxu0 0.0
    %3022 = vmatpush2.msra.mxu0 0.0
    %3023 = vmatprep.subr.mxu0 0.0
    %3024 = vmatpush2.msra.mxu0 0.0
    %3025 = vmatprep.subr.mxu0 0.0
    %3026 = vmatpush2.msra.mxu0 0.0
    %3027 = vmatprep.subr.mxu0 0.0
    %3028 = vmatpush2.msra.mxu0 0.0
    %3029 = vmatprep.subr.mxu0 0.0
    %3030 = vmatpush2.msra.mxu0 0.0
    %3031 = vmatprep.subr.mxu0 0.0
    %3032 = vmatpush2.msra.mxu0 0.0
    %3033 = vmatprep.subr.mxu0 0.0
    %3034 = vmatpush2.msra.mxu0 0.0
    %3035 = vmatprep.subr.mxu0 0.0
    %3036 = vmatpush2.msra.mxu0 0.0
    %3037 = vmatprep.subr.mxu0 0.0
    %3038 = vmatpush2.msra.mxu0 0.0
    %3039 = vmatprep.subr.mxu0 0.0
    %3040 = vmatpush2.msra.mxu0 0.0
    %3041 = vmatprep.subr.mxu0 0.0
    %3042 = vmatpush2.msra.mxu0 0.0
    %3043 = vmatprep.subr.mxu0 0.0
    %3044 = vmatpush2.msra.mxu0 0.0
    %3045 = vmatprep.mubr.f32.mxu0 0.0
    %v3046 = vand.u32 %v2606, 4294901760
    %3047 = vmatmul.mubr.f32.gmra.mxu0 %v3046
    %v3048 = vpop.f32.mrf.mxu0
    %v3049 = vadd.f32 %v2958, %v3048
    %v3050 = vpop.f32.mrf.mxu0
    %3051 = vmatprep.mubr.f32.mxu0 0.0
    %v3052 = vand.u32 %v2609, 4294901760
    %3053 = vmatmul.mubr.f32.gmra.mxu0 %v3052
    %v3054 = vpop.f32.mrf.mxu0
    %v3055 = vadd.f32 %v2966, %v3054
    %v3056 = vpop.f32.mrf.mxu0
    %3057 = vdwg.mxu0
    %3058 = vmatprep.subr.mxu0 0.0
    %3059 = vmatpush1.msra.mxu0 0.0
    %3060 = vmatprep.subr.mxu0 0.0
    %3061 = vmatpush1.msra.mxu0 0.0
    %3062 = vmatprep.subr.mxu0 0.0
    %3063 = vmatpush1.msra.mxu0 0.0
    %3064 = vmatprep.subr.mxu0 0.0
    %3065 = vmatpush1.msra.mxu0 0.0
    %3066 = vmatprep.subr.mxu0 0.0
    %3067 = vmatpush1.msra.mxu0 0.0
    %3068 = vmatprep.subr.mxu0 0.0
    %3069 = vmatpush1.msra.mxu0 0.0
    %3070 = vmatprep.subr.mxu0 0.0
    %3071 = vmatpush1.msra.mxu0 0.0
    %3072 = vmatprep.subr.mxu0 0.0
    %3073 = vmatpush1.msra.mxu0 0.0
    %3074 = vmatprep.subr.mxu0 0.0
    %3075 = vmatpush1.msra.mxu0 0.0
    %3076 = vmatprep.subr.mxu0 0.0
    %3077 = vmatpush1.msra.mxu0 0.0
    %3078 = vmatprep.subr.mxu0 0.0
    %3079 = vmatpush1.msra.mxu0 0.0
    %3080 = vmatprep.subr.mxu0 0.0
    %3081 = vmatpush1.msra.mxu0 0.0
    %3082 = vmatprep.subr.mxu0 0.0
    %v3083 = vand.u32 %v2604, 4294901760
    %3084 = vmatpush1.msra.mxu0 %v3083
    %3085 = vmatprep.subr.mxu0 0.0
    %v3086 = vand.u32 %v2603, 4294901760
    %3087 = vmatpush1.msra.mxu0 %v3086
    %3088 = vmatprep.subr.mxu0 0.0
    %v3089 = vand.u32 %v2602, 4294901760
    %3090 = vmatpush1.msra.mxu0 %v3089
    %3091 = vmatprep.subr.mxu0 0.0
    %v3092 = vand.u32 %v2601, 4294901760
    %3093 = vmatpush1.msra.mxu0 %v3092
    %3094 = vmatprep.subr.mxu0 0.0
    %3095 = vmatpush2.msra.mxu0 0.0
    %3096 = vmatprep.subr.mxu0 0.0
    %3097 = vmatpush2.msra.mxu0 0.0
    %3098 = vmatprep.subr.mxu0 0.0
    %3099 = vmatpush2.msra.mxu0 0.0
    %3100 = vmatprep.subr.mxu0 0.0
    %3101 = vmatpush2.msra.mxu0 0.0
    %3102 = vmatprep.subr.mxu0 0.0
    %3103 = vmatpush2.msra.mxu0 0.0
    %3104 = vmatprep.subr.mxu0 0.0
    %3105 = vmatpush2.msra.mxu0 0.0
    %3106 = vmatprep.subr.mxu0 0.0
    %3107 = vmatpush2.msra.mxu0 0.0
    %3108 = vmatprep.subr.mxu0 0.0
    %3109 = vmatpush2.msra.mxu0 0.0
    %3110 = vmatprep.subr.mxu0 0.0
    %3111 = vmatpush2.msra.mxu0 0.0
    %3112 = vmatprep.subr.mxu0 0.0
    %3113 = vmatpush2.msra.mxu0 0.0
    %3114 = vmatprep.subr.mxu0 0.0
    %3115 = vmatpush2.msra.mxu0 0.0
    %3116 = vmatprep.subr.mxu0 0.0
    %3117 = vmatpush2.msra.mxu0 0.0
    %3118 = vmatprep.subr.mxu0 0.0
    %3119 = vmatpush2.msra.mxu0 0.0
    %3120 = vmatprep.subr.mxu0 0.0
    %3121 = vmatpush2.msra.mxu0 0.0
    %3122 = vmatprep.subr.mxu0 0.0
    %3123 = vmatpush2.msra.mxu0 0.0
    %3124 = vmatprep.subr.mxu0 0.0
    %3125 = vmatpush2.msra.mxu0 0.0
    %3126 = vmatprep.mubr.f32.mxu0 0.0
    %v3127 = vand.u32 %v2606, 4294901760
    %3128 = vmatmul.mubr.f32.gmra.mxu0 %v3127
    %v3129 = vpop.f32.mrf.mxu0
    %v3130 = vadd.f32 %v3049, %v3129
    %v3131 = vpop.f32.mrf.mxu0
    %3132 = vmatprep.mubr.f32.mxu0 0.0
    %v3133 = vand.u32 %v2609, 4294901760
    %3134 = vmatmul.mubr.f32.gmra.mxu0 %v3133
    %v3135 = vpop.f32.mrf.mxu0
    %v3136 = vadd.f32 %v3055, %v3135
    %v3137 = vpop.f32.mrf.mxu0
    %3138 = vdwg.mxu0
    %v3139 = vmul.f32 %v3130, %v3130
    %v3140 = vmul.f32 %v3136, %v3136
    %v3141 = vsel %vm1289, %v3139, 0.0
    %3142 = vadd.xlane.f32.xlu0 %v3141
    %v3143 = vpop.xlane.xlu0 %3142
    %v3144 = vsel %vm1289, %v3140, 0.0
    %3145 = vadd.xlane.f32.xlu0 %v3144
    %v3146 = vpop.xlane.xlu0 %3145
    %v3147 = vmul.f32 %v3143, %v1302
    %v3148 = vmul.f32 %v3146, %v1302
    %v3149 = vadd.f32 %v3147, 1e-05
    %v3150 = vadd.f32 %v3148, 1e-05
    %v3151 = vrsqrt.pop %v3149
    %v3152 = vrsqrt.pop %v3150
    %v3153 = vmul.f32 %v3130, %v3151
    %v3154 = vmul.f32 %v3136, %v3152
    %v3155 = vlaneseq
    %v3156 = vshrl.u32 %v3155, 7
    %v3157 = vsub.s32 0, %v3156
    %v3158 = vrot.slane %v32, %v3157
    %v3159 = vmul.f32 %v3153, %v3158
    %v3160 = vmul.f32 %v3154, %v3158
    %v3162 = vsel %vm1289, %v3159, 0
    %v3165 = vsel %vm1289, %v3160, 0
    %v3168 = vsel %vm1289, %v1323, 0
    %v3171 = vsel %vm1289, %v1324, 0
    %v3174 = vsel %vm1289, %v1325, 0
    %v3177 = vsel %vm1289, %v1326, 0
    %3179 = vmatprep.subr.mxu0 0.0
    %3180 = vmatpush1.xpose.msra.mxu0 0.0
    %3181 = vmatprep.subr.mxu0 0.0
    %3182 = vmatpush1.xpose.msra.mxu0 0.0
    %3183 = vmatprep.subr.mxu0 0.0
    %3184 = vmatpush1.xpose.msra.mxu0 0.0
    %3185 = vmatprep.subr.mxu0 0.0
    %3186 = vmatpush1.xpose.msra.mxu0 0.0
    %3187 = vmatprep.subr.mxu0 0.0
    %3188 = vmatpush1.xpose.msra.mxu0 0.0
    %3189 = vmatprep.subr.mxu0 0.0
    %3190 = vmatpush1.xpose.msra.mxu0 0.0
    %3191 = vmatprep.subr.mxu0 0.0
    %3192 = vmatpush1.xpose.msra.mxu0 0.0
    %3193 = vmatprep.subr.mxu0 0.0
    %3194 = vmatpush1.xpose.msra.mxu0 0.0
    %3195 = vmatprep.subr.mxu0 0.0
    %3196 = vmatpush1.xpose.msra.mxu0 0.0
    %3197 = vmatprep.subr.mxu0 0.0
    %3198 = vmatpush1.xpose.msra.mxu0 0.0
    %3199 = vmatprep.subr.mxu0 0.0
    %3200 = vmatpush1.xpose.msra.mxu0 0.0
    %3201 = vmatprep.subr.mxu0 0.0
    %3202 = vmatpush1.xpose.msra.mxu0 0.0
    %3203 = vmatprep.subr.mxu0 0.0
    %v3204 = vand.u32 %v3177, 4294901760
    %3205 = vmatpush1.xpose.msra.mxu0 %v3204
    %3206 = vmatprep.subr.mxu0 0.0
    %v3207 = vand.u32 %v3174, 4294901760
    %3208 = vmatpush1.xpose.msra.mxu0 %v3207
    %3209 = vmatprep.subr.mxu0 0.0
    %v3210 = vand.u32 %v3171, 4294901760
    %3211 = vmatpush1.xpose.msra.mxu0 %v3210
    %3212 = vmatprep.subr.mxu0 0.0
    %v3213 = vand.u32 %v3168, 4294901760
    %3214 = vmatpush1.xpose.msra.mxu0 %v3213
    %3215 = vmatprep.subr.mxu0 0.0
    %3216 = vmatpush2.xpose.msra.mxu0 0.0
    %3217 = vmatprep.subr.mxu0 0.0
    %3218 = vmatpush2.xpose.msra.mxu0 0.0
    %3219 = vmatprep.subr.mxu0 0.0
    %3220 = vmatpush2.xpose.msra.mxu0 0.0
    %3221 = vmatprep.subr.mxu0 0.0
    %3222 = vmatpush2.xpose.msra.mxu0 0.0
    %3223 = vmatprep.subr.mxu0 0.0
    %3224 = vmatpush2.xpose.msra.mxu0 0.0
    %3225 = vmatprep.subr.mxu0 0.0
    %3226 = vmatpush2.xpose.msra.mxu0 0.0
    %3227 = vmatprep.subr.mxu0 0.0
    %3228 = vmatpush2.xpose.msra.mxu0 0.0
    %3229 = vmatprep.subr.mxu0 0.0
    %3230 = vmatpush2.xpose.msra.mxu0 0.0
    %3231 = vmatprep.subr.mxu0 0.0
    %3232 = vmatpush2.xpose.msra.mxu0 0.0
    %3233 = vmatprep.subr.mxu0 0.0
    %3234 = vmatpush2.xpose.msra.mxu0 0.0
    %3235 = vmatprep.subr.mxu0 0.0
    %3236 = vmatpush2.xpose.msra.mxu0 0.0
    %3237 = vmatprep.subr.mxu0 0.0
    %3238 = vmatpush2.xpose.msra.mxu0 0.0
    %3239 = vmatprep.subr.mxu0 0.0
    %3240 = vmatpush2.xpose.msra.mxu0 0.0
    %3241 = vmatprep.subr.mxu0 0.0
    %3242 = vmatpush2.xpose.msra.mxu0 0.0
    %3243 = vmatprep.subr.mxu0 0.0
    %3244 = vmatpush2.xpose.msra.mxu0 0.0
    %3245 = vmatprep.subr.mxu0 0.0
    %3246 = vmatpush2.xpose.msra.mxu0 0.0
    %3247 = vmatprep.mubr.f32.mxu0 0.0
    %v3248 = vand.u32 %v3162, 4294901760
    %v3249 = vsub.f32 %v3162, %v3248
    %v3250 = vand.u32 %v3249, 4294901760
    %v3251 = vsub.f32 %v3249, %v3250
    %v3252 = vand.u32 %v3251, 4294901760
    %3253 = vmatmul.mubr.f32.gmra.mxu0 %v3252
    %v3254 = vpop.f32.mrf.mxu0
    %v3255 = vadd.f32 0.0, %v3254
    %v3256 = vpop.f32.mrf.mxu0
    %3257 = vmatprep.mubr.f32.mxu0 0.0
    %v3258 = vand.u32 %v3165, 4294901760
    %v3259 = vsub.f32 %v3165, %v3258
    %v3260 = vand.u32 %v3259, 4294901760
    %v3261 = vsub.f32 %v3259, %v3260
    %v3262 = vand.u32 %v3261, 4294901760
    %3263 = vmatmul.mubr.f32.gmra.mxu0 %v3262
    %v3264 = vpop.f32.mrf.mxu0
    %v3265 = vadd.f32 0.0, %v3264
    %v3266 = vpop.f32.mrf.mxu0
    %3267 = vdwg.mxu0
    %3268 = vmatprep.subr.mxu0 0.0
    %3269 = vmatpush1.xpose.msra.mxu0 0.0
    %3270 = vmatprep.subr.mxu0 0.0
    %3271 = vmatpush1.xpose.msra.mxu0 0.0
    %3272 = vmatprep.subr.mxu0 0.0
    %3273 = vmatpush1.xpose.msra.mxu0 0.0
    %3274 = vmatprep.subr.mxu0 0.0
    %3275 = vmatpush1.xpose.msra.mxu0 0.0
    %3276 = vmatprep.subr.mxu0 0.0
    %3277 = vmatpush1.xpose.msra.mxu0 0.0
    %3278 = vmatprep.subr.mxu0 0.0
    %3279 = vmatpush1.xpose.msra.mxu0 0.0
    %3280 = vmatprep.subr.mxu0 0.0
    %3281 = vmatpush1.xpose.msra.mxu0 0.0
    %3282 = vmatprep.subr.mxu0 0.0
    %3283 = vmatpush1.xpose.msra.mxu0 0.0
    %3284 = vmatprep.subr.mxu0 0.0
    %3285 = vmatpush1.xpose.msra.mxu0 0.0
    %3286 = vmatprep.subr.mxu0 0.0
    %3287 = vmatpush1.xpose.msra.mxu0 0.0
    %3288 = vmatprep.subr.mxu0 0.0
    %3289 = vmatpush1.xpose.msra.mxu0 0.0
    %3290 = vmatprep.subr.mxu0 0.0
    %3291 = vmatpush1.xpose.msra.mxu0 0.0
    %3292 = vmatprep.subr.mxu0 0.0
    %v3293 = vand.u32 %v3177, 4294901760
    %v3294 = vsub.f32 %v3177, %v3293
    %v3295 = vand.u32 %v3294, 4294901760
    %v3296 = vsub.f32 %v3294, %v3295
    %v3297 = vand.u32 %v3296, 4294901760
    %3298 = vmatpush1.xpose.msra.mxu0 %v3297
    %3299 = vmatprep.subr.mxu0 0.0
    %v3300 = vand.u32 %v3174, 4294901760
    %v3301 = vsub.f32 %v3174, %v3300
    %v3302 = vand.u32 %v3301, 4294901760
    %v3303 = vsub.f32 %v3301, %v3302
    %v3304 = vand.u32 %v3303, 4294901760
    %3305 = vmatpush1.xpose.msra.mxu0 %v3304
    %3306 = vmatprep.subr.mxu0 0.0
    %v3307 = vand.u32 %v3171, 4294901760
    %v3308 = vsub.f32 %v3171, %v3307
    %v3309 = vand.u32 %v3308, 4294901760
    %v3310 = vsub.f32 %v3308, %v3309
    %v3311 = vand.u32 %v3310, 4294901760
    %3312 = vmatpush1.xpose.msra.mxu0 %v3311
    %3313 = vmatprep.subr.mxu0 0.0
    %v3314 = vand.u32 %v3168, 4294901760
    %v3315 = vsub.f32 %v3168, %v3314
    %v3316 = vand.u32 %v3315, 4294901760
    %v3317 = vsub.f32 %v3315, %v3316
    %v3318 = vand.u32 %v3317, 4294901760
    %3319 = vmatpush1.xpose.msra.mxu0 %v3318
    %3320 = vmatprep.subr.mxu0 0.0
    %3321 = vmatpush2.xpose.msra.mxu0 0.0
    %3322 = vmatprep.subr.mxu0 0.0
    %3323 = vmatpush2.xpose.msra.mxu0 0.0
    %3324 = vmatprep.subr.mxu0 0.0
    %3325 = vmatpush2.xpose.msra.mxu0 0.0
    %3326 = vmatprep.subr.mxu0 0.0
    %3327 = vmatpush2.xpose.msra.mxu0 0.0
    %3328 = vmatprep.subr.mxu0 0.0
    %3329 = vmatpush2.xpose.msra.mxu0 0.0
    %3330 = vmatprep.subr.mxu0 0.0
    %3331 = vmatpush2.xpose.msra.mxu0 0.0
    %3332 = vmatprep.subr.mxu0 0.0
    %3333 = vmatpush2.xpose.msra.mxu0 0.0
    %3334 = vmatprep.subr.mxu0 0.0
    %3335 = vmatpush2.xpose.msra.mxu0 0.0
    %3336 = vmatprep.subr.mxu0 0.0
    %3337 = vmatpush2.xpose.msra.mxu0 0.0
    %3338 = vmatprep.subr.mxu0 0.0
    %3339 = vmatpush2.xpose.msra.mxu0 0.0
    %3340 = vmatprep.subr.mxu0 0.0
    %3341 = vmatpush2.xpose.msra.mxu0 0.0
    %3342 = vmatprep.subr.mxu0 0.0
    %3343 = vmatpush2.xpose.msra.mxu0 0.0
    %3344 = vmatprep.subr.mxu0 0.0
    %3345 = vmatpush2.xpose.msra.mxu0 0.0
    %3346 = vmatprep.subr.mxu0 0.0
    %3347 = vmatpush2.xpose.msra.mxu0 0.0
    %3348 = vmatprep.subr.mxu0 0.0
    %3349 = vmatpush2.xpose.msra.mxu0 0.0
    %3350 = vmatprep.subr.mxu0 0.0
    %3351 = vmatpush2.xpose.msra.mxu0 0.0
    %3352 = vmatprep.mubr.f32.mxu0 0.0
    %v3353 = vand.u32 %v3162, 4294901760
    %3354 = vmatmul.mubr.f32.gmra.mxu0 %v3353
    %v3355 = vpop.f32.mrf.mxu0
    %v3356 = vadd.f32 %v3255, %v3355
    %v3357 = vpop.f32.mrf.mxu0
    %3358 = vmatprep.mubr.f32.mxu0 0.0
    %v3359 = vand.u32 %v3165, 4294901760
    %3360 = vmatmul.mubr.f32.gmra.mxu0 %v3359
    %v3361 = vpop.f32.mrf.mxu0
    %v3362 = vadd.f32 %v3265, %v3361
    %v3363 = vpop.f32.mrf.mxu0
    %3364 = vdwg.mxu0
    %3365 = vmatprep.subr.mxu0 0.0
    %3366 = vmatpush1.xpose.msra.mxu0 0.0
    %3367 = vmatprep.subr.mxu0 0.0
    %3368 = vmatpush1.xpose.msra.mxu0 0.0
    %3369 = vmatprep.subr.mxu0 0.0
    %3370 = vmatpush1.xpose.msra.mxu0 0.0
    %3371 = vmatprep.subr.mxu0 0.0
    %3372 = vmatpush1.xpose.msra.mxu0 0.0
    %3373 = vmatprep.subr.mxu0 0.0
    %3374 = vmatpush1.xpose.msra.mxu0 0.0
    %3375 = vmatprep.subr.mxu0 0.0
    %3376 = vmatpush1.xpose.msra.mxu0 0.0
    %3377 = vmatprep.subr.mxu0 0.0
    %3378 = vmatpush1.xpose.msra.mxu0 0.0
    %3379 = vmatprep.subr.mxu0 0.0
    %3380 = vmatpush1.xpose.msra.mxu0 0.0
    %3381 = vmatprep.subr.mxu0 0.0
    %3382 = vmatpush1.xpose.msra.mxu0 0.0
    %3383 = vmatprep.subr.mxu0 0.0
    %3384 = vmatpush1.xpose.msra.mxu0 0.0
    %3385 = vmatprep.subr.mxu0 0.0
    %3386 = vmatpush1.xpose.msra.mxu0 0.0
    %3387 = vmatprep.subr.mxu0 0.0
    %3388 = vmatpush1.xpose.msra.mxu0 0.0
    %3389 = vmatprep.subr.mxu0 0.0
    %v3390 = vand.u32 %v3177, 4294901760
    %v3391 = vsub.f32 %v3177, %v3390
    %3392 = vmatpush1.xpose.msra.mxu0 %v3391
    %3393 = vmatprep.subr.mxu0 0.0
    %v3394 = vand.u32 %v3174, 4294901760
    %v3395 = vsub.f32 %v3174, %v3394
    %3396 = vmatpush1.xpose.msra.mxu0 %v3395
    %3397 = vmatprep.subr.mxu0 0.0
    %v3398 = vand.u32 %v3171, 4294901760
    %v3399 = vsub.f32 %v3171, %v3398
    %3400 = vmatpush1.xpose.msra.mxu0 %v3399
    %3401 = vmatprep.subr.mxu0 0.0
    %v3402 = vand.u32 %v3168, 4294901760
    %v3403 = vsub.f32 %v3168, %v3402
    %3404 = vmatpush1.xpose.msra.mxu0 %v3403
    %3405 = vmatprep.subr.mxu0 0.0
    %3406 = vmatpush2.xpose.msra.mxu0 0.0
    %3407 = vmatprep.subr.mxu0 0.0
    %3408 = vmatpush2.xpose.msra.mxu0 0.0
    %3409 = vmatprep.subr.mxu0 0.0
    %3410 = vmatpush2.xpose.msra.mxu0 0.0
    %3411 = vmatprep.subr.mxu0 0.0
    %3412 = vmatpush2.xpose.msra.mxu0 0.0
    %3413 = vmatprep.subr.mxu0 0.0
    %3414 = vmatpush2.xpose.msra.mxu0 0.0
    %3415 = vmatprep.subr.mxu0 0.0
    %3416 = vmatpush2.xpose.msra.mxu0 0.0
    %3417 = vmatprep.subr.mxu0 0.0
    %3418 = vmatpush2.xpose.msra.mxu0 0.0
    %3419 = vmatprep.subr.mxu0 0.0
    %3420 = vmatpush2.xpose.msra.mxu0 0.0
    %3421 = vmatprep.subr.mxu0 0.0
    %3422 = vmatpush2.xpose.msra.mxu0 0.0
    %3423 = vmatprep.subr.mxu0 0.0
    %3424 = vmatpush2.xpose.msra.mxu0 0.0
    %3425 = vmatprep.subr.mxu0 0.0
    %3426 = vmatpush2.xpose.msra.mxu0 0.0
    %3427 = vmatprep.subr.mxu0 0.0
    %3428 = vmatpush2.xpose.msra.mxu0 0.0
    %3429 = vmatprep.subr.mxu0 0.0
    %3430 = vmatpush2.xpose.msra.mxu0 0.0
    %3431 = vmatprep.subr.mxu0 0.0
    %3432 = vmatpush2.xpose.msra.mxu0 0.0
    %3433 = vmatprep.subr.mxu0 0.0
    %3434 = vmatpush2.xpose.msra.mxu0 0.0
    %3435 = vmatprep.subr.mxu0 0.0
    %3436 = vmatpush2.xpose.msra.mxu0 0.0
    %3437 = vmatprep.mubr.f32.mxu0 0.0
    %v3438 = vand.u32 %v3162, 4294901760
    %v3439 = vsub.f32 %v3162, %v3438
    %3440 = vmatmul.mubr.f32.gmra.mxu0 %v3439
    %v3441 = vpop.f32.mrf.mxu0
    %v3442 = vadd.f32 %v3356, %v3441
    %v3443 = vpop.f32.mrf.mxu0
    %3444 = vmatprep.mubr.f32.mxu0 0.0
    %v3445 = vand.u32 %v3165, 4294901760
    %v3446 = vsub.f32 %v3165, %v3445
    %3447 = vmatmul.mubr.f32.gmra.mxu0 %v3446
    %v3448 = vpop.f32.mrf.mxu0
    %v3449 = vadd.f32 %v3362, %v3448
    %v3450 = vpop.f32.mrf.mxu0
    %3451 = vdwg.mxu0
    %3452 = vmatprep.subr.mxu0 0.0
    %3453 = vmatpush1.xpose.msra.mxu0 0.0
    %3454 = vmatprep.subr.mxu0 0.0
    %3455 = vmatpush1.xpose.msra.mxu0 0.0
    %3456 = vmatprep.subr.mxu0 0.0
    %3457 = vmatpush1.xpose.msra.mxu0 0.0
    %3458 = vmatprep.subr.mxu0 0.0
    %3459 = vmatpush1.xpose.msra.mxu0 0.0
    %3460 = vmatprep.subr.mxu0 0.0
    %3461 = vmatpush1.xpose.msra.mxu0 0.0
    %3462 = vmatprep.subr.mxu0 0.0
    %3463 = vmatpush1.xpose.msra.mxu0 0.0
    %3464 = vmatprep.subr.mxu0 0.0
    %3465 = vmatpush1.xpose.msra.mxu0 0.0
    %3466 = vmatprep.subr.mxu0 0.0
    %3467 = vmatpush1.xpose.msra.mxu0 0.0
    %3468 = vmatprep.subr.mxu0 0.0
    %3469 = vmatpush1.xpose.msra.mxu0 0.0
    %3470 = vmatprep.subr.mxu0 0.0
    %3471 = vmatpush1.xpose.msra.mxu0 0.0
    %3472 = vmatprep.subr.mxu0 0.0
    %3473 = vmatpush1.xpose.msra.mxu0 0.0
    %3474 = vmatprep.subr.mxu0 0.0
    %3475 = vmatpush1.xpose.msra.mxu0 0.0
    %3476 = vmatprep.subr.mxu0 0.0
    %v3477 = vand.u32 %v3177, 4294901760
    %3478 = vmatpush1.xpose.msra.mxu0 %v3477
    %3479 = vmatprep.subr.mxu0 0.0
    %v3480 = vand.u32 %v3174, 4294901760
    %3481 = vmatpush1.xpose.msra.mxu0 %v3480
    %3482 = vmatprep.subr.mxu0 0.0
    %v3483 = vand.u32 %v3171, 4294901760
    %3484 = vmatpush1.xpose.msra.mxu0 %v3483
    %3485 = vmatprep.subr.mxu0 0.0
    %v3486 = vand.u32 %v3168, 4294901760
    %3487 = vmatpush1.xpose.msra.mxu0 %v3486
    %3488 = vmatprep.subr.mxu0 0.0
    %3489 = vmatpush2.xpose.msra.mxu0 0.0
    %3490 = vmatprep.subr.mxu0 0.0
    %3491 = vmatpush2.xpose.msra.mxu0 0.0
    %3492 = vmatprep.subr.mxu0 0.0
    %3493 = vmatpush2.xpose.msra.mxu0 0.0
    %3494 = vmatprep.subr.mxu0 0.0
    %3495 = vmatpush2.xpose.msra.mxu0 0.0
    %3496 = vmatprep.subr.mxu0 0.0
    %3497 = vmatpush2.xpose.msra.mxu0 0.0
    %3498 = vmatprep.subr.mxu0 0.0
    %3499 = vmatpush2.xpose.msra.mxu0 0.0
    %3500 = vmatprep.subr.mxu0 0.0
    %3501 = vmatpush2.xpose.msra.mxu0 0.0
    %3502 = vmatprep.subr.mxu0 0.0
    %3503 = vmatpush2.xpose.msra.mxu0 0.0
    %3504 = vmatprep.subr.mxu0 0.0
    %3505 = vmatpush2.xpose.msra.mxu0 0.0
    %3506 = vmatprep.subr.mxu0 0.0
    %3507 = vmatpush2.xpose.msra.mxu0 0.0
    %3508 = vmatprep.subr.mxu0 0.0
    %3509 = vmatpush2.xpose.msra.mxu0 0.0
    %3510 = vmatprep.subr.mxu0 0.0
    %3511 = vmatpush2.xpose.msra.mxu0 0.0
    %3512 = vmatprep.subr.mxu0 0.0
    %3513 = vmatpush2.xpose.msra.mxu0 0.0
    %3514 = vmatprep.subr.mxu0 0.0
    %3515 = vmatpush2.xpose.msra.mxu0 0.0
    %3516 = vmatprep.subr.mxu0 0.0
    %3517 = vmatpush2.xpose.msra.mxu0 0.0
    %3518 = vmatprep.subr.mxu0 0.0
    %3519 = vmatpush2.xpose.msra.mxu0 0.0
    %3520 = vmatprep.mubr.f32.mxu0 0.0
    %v3521 = vand.u32 %v3162, 4294901760
    %v3522 = vsub.f32 %v3162, %v3521
    %v3523 = vand.u32 %v3522, 4294901760
    %3524 = vmatmul.mubr.f32.gmra.mxu0 %v3523
    %v3525 = vpop.f32.mrf.mxu0
    %v3526 = vadd.f32 %v3442, %v3525
    %v3527 = vpop.f32.mrf.mxu0
    %3528 = vmatprep.mubr.f32.mxu0 0.0
    %v3529 = vand.u32 %v3165, 4294901760
    %v3530 = vsub.f32 %v3165, %v3529
    %v3531 = vand.u32 %v3530, 4294901760
    %3532 = vmatmul.mubr.f32.gmra.mxu0 %v3531
    %v3533 = vpop.f32.mrf.mxu0
    %v3534 = vadd.f32 %v3449, %v3533
    %v3535 = vpop.f32.mrf.mxu0
    %3536 = vdwg.mxu0
    %3537 = vmatprep.subr.mxu0 0.0
    %3538 = vmatpush1.xpose.msra.mxu0 0.0
    %3539 = vmatprep.subr.mxu0 0.0
    %3540 = vmatpush1.xpose.msra.mxu0 0.0
    %3541 = vmatprep.subr.mxu0 0.0
    %3542 = vmatpush1.xpose.msra.mxu0 0.0
    %3543 = vmatprep.subr.mxu0 0.0
    %3544 = vmatpush1.xpose.msra.mxu0 0.0
    %3545 = vmatprep.subr.mxu0 0.0
    %3546 = vmatpush1.xpose.msra.mxu0 0.0
    %3547 = vmatprep.subr.mxu0 0.0
    %3548 = vmatpush1.xpose.msra.mxu0 0.0
    %3549 = vmatprep.subr.mxu0 0.0
    %3550 = vmatpush1.xpose.msra.mxu0 0.0
    %3551 = vmatprep.subr.mxu0 0.0
    %3552 = vmatpush1.xpose.msra.mxu0 0.0
    %3553 = vmatprep.subr.mxu0 0.0
    %3554 = vmatpush1.xpose.msra.mxu0 0.0
    %3555 = vmatprep.subr.mxu0 0.0
    %3556 = vmatpush1.xpose.msra.mxu0 0.0
    %3557 = vmatprep.subr.mxu0 0.0
    %3558 = vmatpush1.xpose.msra.mxu0 0.0
    %3559 = vmatprep.subr.mxu0 0.0
    %3560 = vmatpush1.xpose.msra.mxu0 0.0
    %3561 = vmatprep.subr.mxu0 0.0
    %v3562 = vand.u32 %v3177, 4294901760
    %v3563 = vsub.f32 %v3177, %v3562
    %v3564 = vand.u32 %v3563, 4294901760
    %3565 = vmatpush1.xpose.msra.mxu0 %v3564
    %3566 = vmatprep.subr.mxu0 0.0
    %v3567 = vand.u32 %v3174, 4294901760
    %v3568 = vsub.f32 %v3174, %v3567
    %v3569 = vand.u32 %v3568, 4294901760
    %3570 = vmatpush1.xpose.msra.mxu0 %v3569
    %3571 = vmatprep.subr.mxu0 0.0
    %v3572 = vand.u32 %v3171, 4294901760
    %v3573 = vsub.f32 %v3171, %v3572
    %v3574 = vand.u32 %v3573, 4294901760
    %3575 = vmatpush1.xpose.msra.mxu0 %v3574
    %3576 = vmatprep.subr.mxu0 0.0
    %v3577 = vand.u32 %v3168, 4294901760
    %v3578 = vsub.f32 %v3168, %v3577
    %v3579 = vand.u32 %v3578, 4294901760
    %3580 = vmatpush1.xpose.msra.mxu0 %v3579
    %3581 = vmatprep.subr.mxu0 0.0
    %3582 = vmatpush2.xpose.msra.mxu0 0.0
    %3583 = vmatprep.subr.mxu0 0.0
    %3584 = vmatpush2.xpose.msra.mxu0 0.0
    %3585 = vmatprep.subr.mxu0 0.0
    %3586 = vmatpush2.xpose.msra.mxu0 0.0
    %3587 = vmatprep.subr.mxu0 0.0
    %3588 = vmatpush2.xpose.msra.mxu0 0.0
    %3589 = vmatprep.subr.mxu0 0.0
    %3590 = vmatpush2.xpose.msra.mxu0 0.0
    %3591 = vmatprep.subr.mxu0 0.0
    %3592 = vmatpush2.xpose.msra.mxu0 0.0
    %3593 = vmatprep.subr.mxu0 0.0
    %3594 = vmatpush2.xpose.msra.mxu0 0.0
    %3595 = vmatprep.subr.mxu0 0.0
    %3596 = vmatpush2.xpose.msra.mxu0 0.0
    %3597 = vmatprep.subr.mxu0 0.0
    %3598 = vmatpush2.xpose.msra.mxu0 0.0
    %3599 = vmatprep.subr.mxu0 0.0
    %3600 = vmatpush2.xpose.msra.mxu0 0.0
    %3601 = vmatprep.subr.mxu0 0.0
    %3602 = vmatpush2.xpose.msra.mxu0 0.0
    %3603 = vmatprep.subr.mxu0 0.0
    %3604 = vmatpush2.xpose.msra.mxu0 0.0
    %3605 = vmatprep.subr.mxu0 0.0
    %3606 = vmatpush2.xpose.msra.mxu0 0.0
    %3607 = vmatprep.subr.mxu0 0.0
    %3608 = vmatpush2.xpose.msra.mxu0 0.0
    %3609 = vmatprep.subr.mxu0 0.0
    %3610 = vmatpush2.xpose.msra.mxu0 0.0
    %3611 = vmatprep.subr.mxu0 0.0
    %3612 = vmatpush2.xpose.msra.mxu0 0.0
    %3613 = vmatprep.mubr.f32.mxu0 0.0
    %v3614 = vand.u32 %v3162, 4294901760
    %3615 = vmatmul.mubr.f32.gmra.mxu0 %v3614
    %v3616 = vpop.f32.mrf.mxu0
    %v3617 = vadd.f32 %v3526, %v3616
    %v3618 = vpop.f32.mrf.mxu0
    %3619 = vmatprep.mubr.f32.mxu0 0.0
    %v3620 = vand.u32 %v3165, 4294901760
    %3621 = vmatmul.mubr.f32.gmra.mxu0 %v3620
    %v3622 = vpop.f32.mrf.mxu0
    %v3623 = vadd.f32 %v3534, %v3622
    %v3624 = vpop.f32.mrf.mxu0
    %3625 = vdwg.mxu0
    %3626 = vmatprep.subr.mxu0 0.0
    %3627 = vmatpush1.xpose.msra.mxu0 0.0
    %3628 = vmatprep.subr.mxu0 0.0
    %3629 = vmatpush1.xpose.msra.mxu0 0.0
    %3630 = vmatprep.subr.mxu0 0.0
    %3631 = vmatpush1.xpose.msra.mxu0 0.0
    %3632 = vmatprep.subr.mxu0 0.0
    %3633 = vmatpush1.xpose.msra.mxu0 0.0
    %3634 = vmatprep.subr.mxu0 0.0
    %3635 = vmatpush1.xpose.msra.mxu0 0.0
    %3636 = vmatprep.subr.mxu0 0.0
    %3637 = vmatpush1.xpose.msra.mxu0 0.0
    %3638 = vmatprep.subr.mxu0 0.0
    %3639 = vmatpush1.xpose.msra.mxu0 0.0
    %3640 = vmatprep.subr.mxu0 0.0
    %3641 = vmatpush1.xpose.msra.mxu0 0.0
    %3642 = vmatprep.subr.mxu0 0.0
    %3643 = vmatpush1.xpose.msra.mxu0 0.0
    %3644 = vmatprep.subr.mxu0 0.0
    %3645 = vmatpush1.xpose.msra.mxu0 0.0
    %3646 = vmatprep.subr.mxu0 0.0
    %3647 = vmatpush1.xpose.msra.mxu0 0.0
    %3648 = vmatprep.subr.mxu0 0.0
    %3649 = vmatpush1.xpose.msra.mxu0 0.0
    %3650 = vmatprep.subr.mxu0 0.0
    %v3651 = vand.u32 %v3177, 4294901760
    %3652 = vmatpush1.xpose.msra.mxu0 %v3651
    %3653 = vmatprep.subr.mxu0 0.0
    %v3654 = vand.u32 %v3174, 4294901760
    %3655 = vmatpush1.xpose.msra.mxu0 %v3654
    %3656 = vmatprep.subr.mxu0 0.0
    %v3657 = vand.u32 %v3171, 4294901760
    %3658 = vmatpush1.xpose.msra.mxu0 %v3657
    %3659 = vmatprep.subr.mxu0 0.0
    %v3660 = vand.u32 %v3168, 4294901760
    %3661 = vmatpush1.xpose.msra.mxu0 %v3660
    %3662 = vmatprep.subr.mxu0 0.0
    %3663 = vmatpush2.xpose.msra.mxu0 0.0
    %3664 = vmatprep.subr.mxu0 0.0
    %3665 = vmatpush2.xpose.msra.mxu0 0.0
    %3666 = vmatprep.subr.mxu0 0.0
    %3667 = vmatpush2.xpose.msra.mxu0 0.0
    %3668 = vmatprep.subr.mxu0 0.0
    %3669 = vmatpush2.xpose.msra.mxu0 0.0
    %3670 = vmatprep.subr.mxu0 0.0
    %3671 = vmatpush2.xpose.msra.mxu0 0.0
    %3672 = vmatprep.subr.mxu0 0.0
    %3673 = vmatpush2.xpose.msra.mxu0 0.0
    %3674 = vmatprep.subr.mxu0 0.0
    %3675 = vmatpush2.xpose.msra.mxu0 0.0
    %3676 = vmatprep.subr.mxu0 0.0
    %3677 = vmatpush2.xpose.msra.mxu0 0.0
    %3678 = vmatprep.subr.mxu0 0.0
    %3679 = vmatpush2.xpose.msra.mxu0 0.0
    %3680 = vmatprep.subr.mxu0 0.0
    %3681 = vmatpush2.xpose.msra.mxu0 0.0
    %3682 = vmatprep.subr.mxu0 0.0
    %3683 = vmatpush2.xpose.msra.mxu0 0.0
    %3684 = vmatprep.subr.mxu0 0.0
    %3685 = vmatpush2.xpose.msra.mxu0 0.0
    %3686 = vmatprep.subr.mxu0 0.0
    %3687 = vmatpush2.xpose.msra.mxu0 0.0
    %3688 = vmatprep.subr.mxu0 0.0
    %3689 = vmatpush2.xpose.msra.mxu0 0.0
    %3690 = vmatprep.subr.mxu0 0.0
    %3691 = vmatpush2.xpose.msra.mxu0 0.0
    %3692 = vmatprep.subr.mxu0 0.0
    %3693 = vmatpush2.xpose.msra.mxu0 0.0
    %3694 = vmatprep.mubr.f32.mxu0 0.0
    %v3695 = vand.u32 %v3162, 4294901760
    %3696 = vmatmul.mubr.f32.gmra.mxu0 %v3695
    %v3697 = vpop.f32.mrf.mxu0
    %v3698 = vadd.f32 %v3617, %v3697
    %v3699 = vpop.f32.mrf.mxu0
    %3700 = vmatprep.mubr.f32.mxu0 0.0
    %v3701 = vand.u32 %v3165, 4294901760
    %3702 = vmatmul.mubr.f32.gmra.mxu0 %v3701
    %v3703 = vpop.f32.mrf.mxu0
    %v3704 = vadd.f32 %v3623, %v3703
    %v3705 = vpop.f32.mrf.mxu0
    %3706 = vdwg.mxu0
    %v3707 = vmul.f32 %v3698, 0.35355338
    %v3708 = vmul.f32 %v3704, 0.35355338
    %v3709 = vadd.f32 %v3707, %v30
    %v3710 = vadd.f32 %v3708, %v31
    %v3711 = vsel %vm39, %v3709, -inf
    %3712 = vmax.xlane.f32.xlu0 %v3711
    %v3713 = vpop.xlane.xlu0 %3712
    %v3714 = vsel %vm39, %v3710, -inf
    %3715 = vmax.xlane.f32.xlu0 %v3714
    %v3716 = vpop.xlane.xlu0 %3715
    %v3717 = vsub.f32 %v3709, %v3713
    %v3718 = vsub.f32 %v3710, %v3716
    %v3719 = vmul.f32 %v3717, 1.442695
    %v3720 = vpow.pop %v3719
    %v3721 = vmul.f32 %v3718, 1.442695
    %v3722 = vpow.pop %v3721
    %v3723 = vsel %vm39, %v3720, 0.0
    %3724 = vadd.xlane.f32.xlu0 %v3723
    %v3725 = vpop.xlane.xlu0 %3724
    %v3726 = vsel %vm39, %v3722, 0.0
    %3727 = vadd.xlane.f32.xlu0 %v3726
    %v3728 = vpop.xlane.xlu0 %3727
    %v3729 = vrcp.pop %v3725
    %v3730 = vmul.f32 %v3720, %v3729
    %v3731 = vrcp.pop %v3728
    %v3732 = vmul.f32 %v3722, %v3731
    %v3734 = vsel %vm39, %v3730, 0
    %v3737 = vsel %vm39, %v3732, 0
    %3739 = vmatprep.subr.mxu0 0.0
    %3740 = vmatpush1.msra.mxu0 0.0
    %3741 = vmatprep.subr.mxu0 0.0
    %3742 = vmatpush1.msra.mxu0 0.0
    %3743 = vmatprep.subr.mxu0 0.0
    %3744 = vmatpush1.msra.mxu0 0.0
    %3745 = vmatprep.subr.mxu0 0.0
    %3746 = vmatpush1.msra.mxu0 0.0
    %3747 = vmatprep.subr.mxu0 0.0
    %3748 = vmatpush1.msra.mxu0 0.0
    %3749 = vmatprep.subr.mxu0 0.0
    %3750 = vmatpush1.msra.mxu0 0.0
    %3751 = vmatprep.subr.mxu0 0.0
    %3752 = vmatpush1.msra.mxu0 0.0
    %3753 = vmatprep.subr.mxu0 0.0
    %3754 = vmatpush1.msra.mxu0 0.0
    %3755 = vmatprep.subr.mxu0 0.0
    %3756 = vmatpush1.msra.mxu0 0.0
    %3757 = vmatprep.subr.mxu0 0.0
    %3758 = vmatpush1.msra.mxu0 0.0
    %3759 = vmatprep.subr.mxu0 0.0
    %3760 = vmatpush1.msra.mxu0 0.0
    %3761 = vmatprep.subr.mxu0 0.0
    %3762 = vmatpush1.msra.mxu0 0.0
    %3763 = vmatprep.subr.mxu0 0.0
    %v3764 = vand.u32 %v1282, 4294901760
    %3765 = vmatpush1.msra.mxu0 %v3764
    %3766 = vmatprep.subr.mxu0 0.0
    %v3767 = vand.u32 %v1276, 4294901760
    %3768 = vmatpush1.msra.mxu0 %v3767
    %3769 = vmatprep.subr.mxu0 0.0
    %v3770 = vand.u32 %v1270, 4294901760
    %3771 = vmatpush1.msra.mxu0 %v3770
    %3772 = vmatprep.subr.mxu0 0.0
    %v3773 = vand.u32 %v1264, 4294901760
    %3774 = vmatpush1.msra.mxu0 %v3773
    %3775 = vmatprep.subr.mxu0 0.0
    %3776 = vmatpush2.msra.mxu0 0.0
    %3777 = vmatprep.subr.mxu0 0.0
    %3778 = vmatpush2.msra.mxu0 0.0
    %3779 = vmatprep.subr.mxu0 0.0
    %3780 = vmatpush2.msra.mxu0 0.0
    %3781 = vmatprep.subr.mxu0 0.0
    %3782 = vmatpush2.msra.mxu0 0.0
    %3783 = vmatprep.subr.mxu0 0.0
    %3784 = vmatpush2.msra.mxu0 0.0
    %3785 = vmatprep.subr.mxu0 0.0
    %3786 = vmatpush2.msra.mxu0 0.0
    %3787 = vmatprep.subr.mxu0 0.0
    %3788 = vmatpush2.msra.mxu0 0.0
    %3789 = vmatprep.subr.mxu0 0.0
    %3790 = vmatpush2.msra.mxu0 0.0
    %3791 = vmatprep.subr.mxu0 0.0
    %3792 = vmatpush2.msra.mxu0 0.0
    %3793 = vmatprep.subr.mxu0 0.0
    %3794 = vmatpush2.msra.mxu0 0.0
    %3795 = vmatprep.subr.mxu0 0.0
    %3796 = vmatpush2.msra.mxu0 0.0
    %3797 = vmatprep.subr.mxu0 0.0
    %3798 = vmatpush2.msra.mxu0 0.0
    %3799 = vmatprep.subr.mxu0 0.0
    %3800 = vmatpush2.msra.mxu0 0.0
    %3801 = vmatprep.subr.mxu0 0.0
    %3802 = vmatpush2.msra.mxu0 0.0
    %3803 = vmatprep.subr.mxu0 0.0
    %3804 = vmatpush2.msra.mxu0 0.0
    %3805 = vmatprep.subr.mxu0 0.0
    %3806 = vmatpush2.msra.mxu0 0.0
    %3807 = vmatprep.mubr.f32.mxu0 0.0
    %v3808 = vand.u32 %v3734, 4294901760
    %v3809 = vsub.f32 %v3734, %v3808
    %v3810 = vand.u32 %v3809, 4294901760
    %v3811 = vsub.f32 %v3809, %v3810
    %v3812 = vand.u32 %v3811, 4294901760
    %3813 = vmatmul.mubr.f32.gmra.mxu0 %v3812
    %v3814 = vpop.f32.mrf.mxu0
    %v3815 = vadd.f32 0.0, %v3814
    %v3816 = vpop.f32.mrf.mxu0
    %3817 = vmatprep.mubr.f32.mxu0 0.0
    %v3818 = vand.u32 %v3737, 4294901760
    %v3819 = vsub.f32 %v3737, %v3818
    %v3820 = vand.u32 %v3819, 4294901760
    %v3821 = vsub.f32 %v3819, %v3820
    %v3822 = vand.u32 %v3821, 4294901760
    %3823 = vmatmul.mubr.f32.gmra.mxu0 %v3822
    %v3824 = vpop.f32.mrf.mxu0
    %v3825 = vadd.f32 0.0, %v3824
    %v3826 = vpop.f32.mrf.mxu0
    %3827 = vdwg.mxu0
    %3828 = vmatprep.subr.mxu0 0.0
    %3829 = vmatpush1.msra.mxu0 0.0
    %3830 = vmatprep.subr.mxu0 0.0
    %3831 = vmatpush1.msra.mxu0 0.0
    %3832 = vmatprep.subr.mxu0 0.0
    %3833 = vmatpush1.msra.mxu0 0.0
    %3834 = vmatprep.subr.mxu0 0.0
    %3835 = vmatpush1.msra.mxu0 0.0
    %3836 = vmatprep.subr.mxu0 0.0
    %3837 = vmatpush1.msra.mxu0 0.0
    %3838 = vmatprep.subr.mxu0 0.0
    %3839 = vmatpush1.msra.mxu0 0.0
    %3840 = vmatprep.subr.mxu0 0.0
    %3841 = vmatpush1.msra.mxu0 0.0
    %3842 = vmatprep.subr.mxu0 0.0
    %3843 = vmatpush1.msra.mxu0 0.0
    %3844 = vmatprep.subr.mxu0 0.0
    %3845 = vmatpush1.msra.mxu0 0.0
    %3846 = vmatprep.subr.mxu0 0.0
    %3847 = vmatpush1.msra.mxu0 0.0
    %3848 = vmatprep.subr.mxu0 0.0
    %3849 = vmatpush1.msra.mxu0 0.0
    %3850 = vmatprep.subr.mxu0 0.0
    %3851 = vmatpush1.msra.mxu0 0.0
    %3852 = vmatprep.subr.mxu0 0.0
    %v3853 = vand.u32 %v1282, 4294901760
    %v3854 = vsub.f32 %v1282, %v3853
    %v3855 = vand.u32 %v3854, 4294901760
    %v3856 = vsub.f32 %v3854, %v3855
    %v3857 = vand.u32 %v3856, 4294901760
    %3858 = vmatpush1.msra.mxu0 %v3857
    %3859 = vmatprep.subr.mxu0 0.0
    %v3860 = vand.u32 %v1276, 4294901760
    %v3861 = vsub.f32 %v1276, %v3860
    %v3862 = vand.u32 %v3861, 4294901760
    %v3863 = vsub.f32 %v3861, %v3862
    %v3864 = vand.u32 %v3863, 4294901760
    %3865 = vmatpush1.msra.mxu0 %v3864
    %3866 = vmatprep.subr.mxu0 0.0
    %v3867 = vand.u32 %v1270, 4294901760
    %v3868 = vsub.f32 %v1270, %v3867
    %v3869 = vand.u32 %v3868, 4294901760
    %v3870 = vsub.f32 %v3868, %v3869
    %v3871 = vand.u32 %v3870, 4294901760
    %3872 = vmatpush1.msra.mxu0 %v3871
    %3873 = vmatprep.subr.mxu0 0.0
    %v3874 = vand.u32 %v1264, 4294901760
    %v3875 = vsub.f32 %v1264, %v3874
    %v3876 = vand.u32 %v3875, 4294901760
    %v3877 = vsub.f32 %v3875, %v3876
    %v3878 = vand.u32 %v3877, 4294901760
    %3879 = vmatpush1.msra.mxu0 %v3878
    %3880 = vmatprep.subr.mxu0 0.0
    %3881 = vmatpush2.msra.mxu0 0.0
    %3882 = vmatprep.subr.mxu0 0.0
    %3883 = vmatpush2.msra.mxu0 0.0
    %3884 = vmatprep.subr.mxu0 0.0
    %3885 = vmatpush2.msra.mxu0 0.0
    %3886 = vmatprep.subr.mxu0 0.0
    %3887 = vmatpush2.msra.mxu0 0.0
    %3888 = vmatprep.subr.mxu0 0.0
    %3889 = vmatpush2.msra.mxu0 0.0
    %3890 = vmatprep.subr.mxu0 0.0
    %3891 = vmatpush2.msra.mxu0 0.0
    %3892 = vmatprep.subr.mxu0 0.0
    %3893 = vmatpush2.msra.mxu0 0.0
    %3894 = vmatprep.subr.mxu0 0.0
    %3895 = vmatpush2.msra.mxu0 0.0
    %3896 = vmatprep.subr.mxu0 0.0
    %3897 = vmatpush2.msra.mxu0 0.0
    %3898 = vmatprep.subr.mxu0 0.0
    %3899 = vmatpush2.msra.mxu0 0.0
    %3900 = vmatprep.subr.mxu0 0.0
    %3901 = vmatpush2.msra.mxu0 0.0
    %3902 = vmatprep.subr.mxu0 0.0
    %3903 = vmatpush2.msra.mxu0 0.0
    %3904 = vmatprep.subr.mxu0 0.0
    %3905 = vmatpush2.msra.mxu0 0.0
    %3906 = vmatprep.subr.mxu0 0.0
    %3907 = vmatpush2.msra.mxu0 0.0
    %3908 = vmatprep.subr.mxu0 0.0
    %3909 = vmatpush2.msra.mxu0 0.0
    %3910 = vmatprep.subr.mxu0 0.0
    %3911 = vmatpush2.msra.mxu0 0.0
    %3912 = vmatprep.mubr.f32.mxu0 0.0
    %v3913 = vand.u32 %v3734, 4294901760
    %3914 = vmatmul.mubr.f32.gmra.mxu0 %v3913
    %v3915 = vpop.f32.mrf.mxu0
    %v3916 = vadd.f32 %v3815, %v3915
    %v3917 = vpop.f32.mrf.mxu0
    %3918 = vmatprep.mubr.f32.mxu0 0.0
    %v3919 = vand.u32 %v3737, 4294901760
    %3920 = vmatmul.mubr.f32.gmra.mxu0 %v3919
    %v3921 = vpop.f32.mrf.mxu0
    %v3922 = vadd.f32 %v3825, %v3921
    %v3923 = vpop.f32.mrf.mxu0
    %3924 = vdwg.mxu0
    %3925 = vmatprep.subr.mxu0 0.0
    %3926 = vmatpush1.msra.mxu0 0.0
    %3927 = vmatprep.subr.mxu0 0.0
    %3928 = vmatpush1.msra.mxu0 0.0
    %3929 = vmatprep.subr.mxu0 0.0
    %3930 = vmatpush1.msra.mxu0 0.0
    %3931 = vmatprep.subr.mxu0 0.0
    %3932 = vmatpush1.msra.mxu0 0.0
    %3933 = vmatprep.subr.mxu0 0.0
    %3934 = vmatpush1.msra.mxu0 0.0
    %3935 = vmatprep.subr.mxu0 0.0
    %3936 = vmatpush1.msra.mxu0 0.0
    %3937 = vmatprep.subr.mxu0 0.0
    %3938 = vmatpush1.msra.mxu0 0.0
    %3939 = vmatprep.subr.mxu0 0.0
    %3940 = vmatpush1.msra.mxu0 0.0
    %3941 = vmatprep.subr.mxu0 0.0
    %3942 = vmatpush1.msra.mxu0 0.0
    %3943 = vmatprep.subr.mxu0 0.0
    %3944 = vmatpush1.msra.mxu0 0.0
    %3945 = vmatprep.subr.mxu0 0.0
    %3946 = vmatpush1.msra.mxu0 0.0
    %3947 = vmatprep.subr.mxu0 0.0
    %3948 = vmatpush1.msra.mxu0 0.0
    %3949 = vmatprep.subr.mxu0 0.0
    %v3950 = vand.u32 %v1282, 4294901760
    %v3951 = vsub.f32 %v1282, %v3950
    %3952 = vmatpush1.msra.mxu0 %v3951
    %3953 = vmatprep.subr.mxu0 0.0
    %v3954 = vand.u32 %v1276, 4294901760
    %v3955 = vsub.f32 %v1276, %v3954
    %3956 = vmatpush1.msra.mxu0 %v3955
    %3957 = vmatprep.subr.mxu0 0.0
    %v3958 = vand.u32 %v1270, 4294901760
    %v3959 = vsub.f32 %v1270, %v3958
    %3960 = vmatpush1.msra.mxu0 %v3959
    %3961 = vmatprep.subr.mxu0 0.0
    %v3962 = vand.u32 %v1264, 4294901760
    %v3963 = vsub.f32 %v1264, %v3962
    %3964 = vmatpush1.msra.mxu0 %v3963
    %3965 = vmatprep.subr.mxu0 0.0
    %3966 = vmatpush2.msra.mxu0 0.0
    %3967 = vmatprep.subr.mxu0 0.0
    %3968 = vmatpush2.msra.mxu0 0.0
    %3969 = vmatprep.subr.mxu0 0.0
    %3970 = vmatpush2.msra.mxu0 0.0
    %3971 = vmatprep.subr.mxu0 0.0
    %3972 = vmatpush2.msra.mxu0 0.0
    %3973 = vmatprep.subr.mxu0 0.0
    %3974 = vmatpush2.msra.mxu0 0.0
    %3975 = vmatprep.subr.mxu0 0.0
    %3976 = vmatpush2.msra.mxu0 0.0
    %3977 = vmatprep.subr.mxu0 0.0
    %3978 = vmatpush2.msra.mxu0 0.0
    %3979 = vmatprep.subr.mxu0 0.0
    %3980 = vmatpush2.msra.mxu0 0.0
    %3981 = vmatprep.subr.mxu0 0.0
    %3982 = vmatpush2.msra.mxu0 0.0
    %3983 = vmatprep.subr.mxu0 0.0
    %3984 = vmatpush2.msra.mxu0 0.0
    %3985 = vmatprep.subr.mxu0 0.0
    %3986 = vmatpush2.msra.mxu0 0.0
    %3987 = vmatprep.subr.mxu0 0.0
    %3988 = vmatpush2.msra.mxu0 0.0
    %3989 = vmatprep.subr.mxu0 0.0
    %3990 = vmatpush2.msra.mxu0 0.0
    %3991 = vmatprep.subr.mxu0 0.0
    %3992 = vmatpush2.msra.mxu0 0.0
    %3993 = vmatprep.subr.mxu0 0.0
    %3994 = vmatpush2.msra.mxu0 0.0
    %3995 = vmatprep.subr.mxu0 0.0
    %3996 = vmatpush2.msra.mxu0 0.0
    %3997 = vmatprep.mubr.f32.mxu0 0.0
    %v3998 = vand.u32 %v3734, 4294901760
    %v3999 = vsub.f32 %v3734, %v3998
    %4000 = vmatmul.mubr.f32.gmra.mxu0 %v3999
    %v4001 = vpop.f32.mrf.mxu0
    %v4002 = vadd.f32 %v3916, %v4001
    %v4003 = vpop.f32.mrf.mxu0
    %4004 = vmatprep.mubr.f32.mxu0 0.0
    %v4005 = vand.u32 %v3737, 4294901760
    %v4006 = vsub.f32 %v3737, %v4005
    %4007 = vmatmul.mubr.f32.gmra.mxu0 %v4006
    %v4008 = vpop.f32.mrf.mxu0
    %v4009 = vadd.f32 %v3922, %v4008
    %v4010 = vpop.f32.mrf.mxu0
    %4011 = vdwg.mxu0
    %4012 = vmatprep.subr.mxu0 0.0
    %4013 = vmatpush1.msra.mxu0 0.0
    %4014 = vmatprep.subr.mxu0 0.0
    %4015 = vmatpush1.msra.mxu0 0.0
    %4016 = vmatprep.subr.mxu0 0.0
    %4017 = vmatpush1.msra.mxu0 0.0
    %4018 = vmatprep.subr.mxu0 0.0
    %4019 = vmatpush1.msra.mxu0 0.0
    %4020 = vmatprep.subr.mxu0 0.0
    %4021 = vmatpush1.msra.mxu0 0.0
    %4022 = vmatprep.subr.mxu0 0.0
    %4023 = vmatpush1.msra.mxu0 0.0
    %4024 = vmatprep.subr.mxu0 0.0
    %4025 = vmatpush1.msra.mxu0 0.0
    %4026 = vmatprep.subr.mxu0 0.0
    %4027 = vmatpush1.msra.mxu0 0.0
    %4028 = vmatprep.subr.mxu0 0.0
    %4029 = vmatpush1.msra.mxu0 0.0
    %4030 = vmatprep.subr.mxu0 0.0
    %4031 = vmatpush1.msra.mxu0 0.0
    %4032 = vmatprep.subr.mxu0 0.0
    %4033 = vmatpush1.msra.mxu0 0.0
    %4034 = vmatprep.subr.mxu0 0.0
    %4035 = vmatpush1.msra.mxu0 0.0
    %4036 = vmatprep.subr.mxu0 0.0
    %v4037 = vand.u32 %v1282, 4294901760
    %4038 = vmatpush1.msra.mxu0 %v4037
    %4039 = vmatprep.subr.mxu0 0.0
    %v4040 = vand.u32 %v1276, 4294901760
    %4041 = vmatpush1.msra.mxu0 %v4040
    %4042 = vmatprep.subr.mxu0 0.0
    %v4043 = vand.u32 %v1270, 4294901760
    %4044 = vmatpush1.msra.mxu0 %v4043
    %4045 = vmatprep.subr.mxu0 0.0
    %v4046 = vand.u32 %v1264, 4294901760
    %4047 = vmatpush1.msra.mxu0 %v4046
    %4048 = vmatprep.subr.mxu0 0.0
    %4049 = vmatpush2.msra.mxu0 0.0
    %4050 = vmatprep.subr.mxu0 0.0
    %4051 = vmatpush2.msra.mxu0 0.0
    %4052 = vmatprep.subr.mxu0 0.0
    %4053 = vmatpush2.msra.mxu0 0.0
    %4054 = vmatprep.subr.mxu0 0.0
    %4055 = vmatpush2.msra.mxu0 0.0
    %4056 = vmatprep.subr.mxu0 0.0
    %4057 = vmatpush2.msra.mxu0 0.0
    %4058 = vmatprep.subr.mxu0 0.0
    %4059 = vmatpush2.msra.mxu0 0.0
    %4060 = vmatprep.subr.mxu0 0.0
    %4061 = vmatpush2.msra.mxu0 0.0
    %4062 = vmatprep.subr.mxu0 0.0
    %4063 = vmatpush2.msra.mxu0 0.0
    %4064 = vmatprep.subr.mxu0 0.0
    %4065 = vmatpush2.msra.mxu0 0.0
    %4066 = vmatprep.subr.mxu0 0.0
    %4067 = vmatpush2.msra.mxu0 0.0
    %4068 = vmatprep.subr.mxu0 0.0
    %4069 = vmatpush2.msra.mxu0 0.0
    %4070 = vmatprep.subr.mxu0 0.0
    %4071 = vmatpush2.msra.mxu0 0.0
    %4072 = vmatprep.subr.mxu0 0.0
    %4073 = vmatpush2.msra.mxu0 0.0
    %4074 = vmatprep.subr.mxu0 0.0
    %4075 = vmatpush2.msra.mxu0 0.0
    %4076 = vmatprep.subr.mxu0 0.0
    %4077 = vmatpush2.msra.mxu0 0.0
    %4078 = vmatprep.subr.mxu0 0.0
    %4079 = vmatpush2.msra.mxu0 0.0
    %4080 = vmatprep.mubr.f32.mxu0 0.0
    %v4081 = vand.u32 %v3734, 4294901760
    %v4082 = vsub.f32 %v3734, %v4081
    %v4083 = vand.u32 %v4082, 4294901760
    %4084 = vmatmul.mubr.f32.gmra.mxu0 %v4083
    %v4085 = vpop.f32.mrf.mxu0
    %v4086 = vadd.f32 %v4002, %v4085
    %v4087 = vpop.f32.mrf.mxu0
    %4088 = vmatprep.mubr.f32.mxu0 0.0
    %v4089 = vand.u32 %v3737, 4294901760
    %v4090 = vsub.f32 %v3737, %v4089
    %v4091 = vand.u32 %v4090, 4294901760
    %4092 = vmatmul.mubr.f32.gmra.mxu0 %v4091
    %v4093 = vpop.f32.mrf.mxu0
    %v4094 = vadd.f32 %v4009, %v4093
    %v4095 = vpop.f32.mrf.mxu0
    %4096 = vdwg.mxu0
    %4097 = vmatprep.subr.mxu0 0.0
    %4098 = vmatpush1.msra.mxu0 0.0
    %4099 = vmatprep.subr.mxu0 0.0
    %4100 = vmatpush1.msra.mxu0 0.0
    %4101 = vmatprep.subr.mxu0 0.0
    %4102 = vmatpush1.msra.mxu0 0.0
    %4103 = vmatprep.subr.mxu0 0.0
    %4104 = vmatpush1.msra.mxu0 0.0
    %4105 = vmatprep.subr.mxu0 0.0
    %4106 = vmatpush1.msra.mxu0 0.0
    %4107 = vmatprep.subr.mxu0 0.0
    %4108 = vmatpush1.msra.mxu0 0.0
    %4109 = vmatprep.subr.mxu0 0.0
    %4110 = vmatpush1.msra.mxu0 0.0
    %4111 = vmatprep.subr.mxu0 0.0
    %4112 = vmatpush1.msra.mxu0 0.0
    %4113 = vmatprep.subr.mxu0 0.0
    %4114 = vmatpush1.msra.mxu0 0.0
    %4115 = vmatprep.subr.mxu0 0.0
    %4116 = vmatpush1.msra.mxu0 0.0
    %4117 = vmatprep.subr.mxu0 0.0
    %4118 = vmatpush1.msra.mxu0 0.0
    %4119 = vmatprep.subr.mxu0 0.0
    %4120 = vmatpush1.msra.mxu0 0.0
    %4121 = vmatprep.subr.mxu0 0.0
    %v4122 = vand.u32 %v1282, 4294901760
    %v4123 = vsub.f32 %v1282, %v4122
    %v4124 = vand.u32 %v4123, 4294901760
    %4125 = vmatpush1.msra.mxu0 %v4124
    %4126 = vmatprep.subr.mxu0 0.0
    %v4127 = vand.u32 %v1276, 4294901760
    %v4128 = vsub.f32 %v1276, %v4127
    %v4129 = vand.u32 %v4128, 4294901760
    %4130 = vmatpush1.msra.mxu0 %v4129
    %4131 = vmatprep.subr.mxu0 0.0
    %v4132 = vand.u32 %v1270, 4294901760
    %v4133 = vsub.f32 %v1270, %v4132
    %v4134 = vand.u32 %v4133, 4294901760
    %4135 = vmatpush1.msra.mxu0 %v4134
    %4136 = vmatprep.subr.mxu0 0.0
    %v4137 = vand.u32 %v1264, 4294901760
    %v4138 = vsub.f32 %v1264, %v4137
    %v4139 = vand.u32 %v4138, 4294901760
    %4140 = vmatpush1.msra.mxu0 %v4139
    %4141 = vmatprep.subr.mxu0 0.0
    %4142 = vmatpush2.msra.mxu0 0.0
    %4143 = vmatprep.subr.mxu0 0.0
    %4144 = vmatpush2.msra.mxu0 0.0
    %4145 = vmatprep.subr.mxu0 0.0
    %4146 = vmatpush2.msra.mxu0 0.0
    %4147 = vmatprep.subr.mxu0 0.0
    %4148 = vmatpush2.msra.mxu0 0.0
    %4149 = vmatprep.subr.mxu0 0.0
    %4150 = vmatpush2.msra.mxu0 0.0
    %4151 = vmatprep.subr.mxu0 0.0
    %4152 = vmatpush2.msra.mxu0 0.0
    %4153 = vmatprep.subr.mxu0 0.0
    %4154 = vmatpush2.msra.mxu0 0.0
    %4155 = vmatprep.subr.mxu0 0.0
    %4156 = vmatpush2.msra.mxu0 0.0
    %4157 = vmatprep.subr.mxu0 0.0
    %4158 = vmatpush2.msra.mxu0 0.0
    %4159 = vmatprep.subr.mxu0 0.0
    %4160 = vmatpush2.msra.mxu0 0.0
    %4161 = vmatprep.subr.mxu0 0.0
    %4162 = vmatpush2.msra.mxu0 0.0
    %4163 = vmatprep.subr.mxu0 0.0
    %4164 = vmatpush2.msra.mxu0 0.0
    %4165 = vmatprep.subr.mxu0 0.0
    %4166 = vmatpush2.msra.mxu0 0.0
    %4167 = vmatprep.subr.mxu0 0.0
    %4168 = vmatpush2.msra.mxu0 0.0
    %4169 = vmatprep.subr.mxu0 0.0
    %4170 = vmatpush2.msra.mxu0 0.0
    %4171 = vmatprep.subr.mxu0 0.0
    %4172 = vmatpush2.msra.mxu0 0.0
    %4173 = vmatprep.mubr.f32.mxu0 0.0
    %v4174 = vand.u32 %v3734, 4294901760
    %4175 = vmatmul.mubr.f32.gmra.mxu0 %v4174
    %v4176 = vpop.f32.mrf.mxu0
    %v4177 = vadd.f32 %v4086, %v4176
    %v4178 = vpop.f32.mrf.mxu0
    %4179 = vmatprep.mubr.f32.mxu0 0.0
    %v4180 = vand.u32 %v3737, 4294901760
    %4181 = vmatmul.mubr.f32.gmra.mxu0 %v4180
    %v4182 = vpop.f32.mrf.mxu0
    %v4183 = vadd.f32 %v4094, %v4182
    %v4184 = vpop.f32.mrf.mxu0
    %4185 = vdwg.mxu0
    %4186 = vmatprep.subr.mxu0 0.0
    %4187 = vmatpush1.msra.mxu0 0.0
    %4188 = vmatprep.subr.mxu0 0.0
    %4189 = vmatpush1.msra.mxu0 0.0
    %4190 = vmatprep.subr.mxu0 0.0
    %4191 = vmatpush1.msra.mxu0 0.0
    %4192 = vmatprep.subr.mxu0 0.0
    %4193 = vmatpush1.msra.mxu0 0.0
    %4194 = vmatprep.subr.mxu0 0.0
    %4195 = vmatpush1.msra.mxu0 0.0
    %4196 = vmatprep.subr.mxu0 0.0
    %4197 = vmatpush1.msra.mxu0 0.0
    %4198 = vmatprep.subr.mxu0 0.0
    %4199 = vmatpush1.msra.mxu0 0.0
    %4200 = vmatprep.subr.mxu0 0.0
    %4201 = vmatpush1.msra.mxu0 0.0
    %4202 = vmatprep.subr.mxu0 0.0
    %4203 = vmatpush1.msra.mxu0 0.0
    %4204 = vmatprep.subr.mxu0 0.0
    %4205 = vmatpush1.msra.mxu0 0.0
    %4206 = vmatprep.subr.mxu0 0.0
    %4207 = vmatpush1.msra.mxu0 0.0
    %4208 = vmatprep.subr.mxu0 0.0
    %4209 = vmatpush1.msra.mxu0 0.0
    %4210 = vmatprep.subr.mxu0 0.0
    %v4211 = vand.u32 %v1282, 4294901760
    %4212 = vmatpush1.msra.mxu0 %v4211
    %4213 = vmatprep.subr.mxu0 0.0
    %v4214 = vand.u32 %v1276, 4294901760
    %4215 = vmatpush1.msra.mxu0 %v4214
    %4216 = vmatprep.subr.mxu0 0.0
    %v4217 = vand.u32 %v1270, 4294901760
    %4218 = vmatpush1.msra.mxu0 %v4217
    %4219 = vmatprep.subr.mxu0 0.0
    %v4220 = vand.u32 %v1264, 4294901760
    %4221 = vmatpush1.msra.mxu0 %v4220
    %4222 = vmatprep.subr.mxu0 0.0
    %4223 = vmatpush2.msra.mxu0 0.0
    %4224 = vmatprep.subr.mxu0 0.0
    %4225 = vmatpush2.msra.mxu0 0.0
    %4226 = vmatprep.subr.mxu0 0.0
    %4227 = vmatpush2.msra.mxu0 0.0
    %4228 = vmatprep.subr.mxu0 0.0
    %4229 = vmatpush2.msra.mxu0 0.0
    %4230 = vmatprep.subr.mxu0 0.0
    %4231 = vmatpush2.msra.mxu0 0.0
    %4232 = vmatprep.subr.mxu0 0.0
    %4233 = vmatpush2.msra.mxu0 0.0
    %4234 = vmatprep.subr.mxu0 0.0
    %4235 = vmatpush2.msra.mxu0 0.0
    %4236 = vmatprep.subr.mxu0 0.0
    %4237 = vmatpush2.msra.mxu0 0.0
    %4238 = vmatprep.subr.mxu0 0.0
    %4239 = vmatpush2.msra.mxu0 0.0
    %4240 = vmatprep.subr.mxu0 0.0
    %4241 = vmatpush2.msra.mxu0 0.0
    %4242 = vmatprep.subr.mxu0 0.0
    %4243 = vmatpush2.msra.mxu0 0.0
    %4244 = vmatprep.subr.mxu0 0.0
    %4245 = vmatpush2.msra.mxu0 0.0
    %4246 = vmatprep.subr.mxu0 0.0
    %4247 = vmatpush2.msra.mxu0 0.0
    %4248 = vmatprep.subr.mxu0 0.0
    %4249 = vmatpush2.msra.mxu0 0.0
    %4250 = vmatprep.subr.mxu0 0.0
    %4251 = vmatpush2.msra.mxu0 0.0
    %4252 = vmatprep.subr.mxu0 0.0
    %4253 = vmatpush2.msra.mxu0 0.0
    %4254 = vmatprep.mubr.f32.mxu0 0.0
    %v4255 = vand.u32 %v3734, 4294901760
    %4256 = vmatmul.mubr.f32.gmra.mxu0 %v4255
    %v4257 = vpop.f32.mrf.mxu0
    %v4258 = vadd.f32 %v4177, %v4257
    %v4259 = vpop.f32.mrf.mxu0
    %4260 = vmatprep.mubr.f32.mxu0 0.0
    %v4261 = vand.u32 %v3737, 4294901760
    %4262 = vmatmul.mubr.f32.gmra.mxu0 %v4261
    %v4263 = vpop.f32.mrf.mxu0
    %v4264 = vadd.f32 %v4183, %v4263
    %v4265 = vpop.f32.mrf.mxu0
    %4266 = vdwg.mxu0
    %v4267 = vld [vmem:[%s4] sm:$0xff]
    %s4268 = scalar_lea.vmem %s3, 32
    %v4269 = vld [vmem:[%s4268] sm:$0xff]
    %v4270 = vld [vmem:[%s4268 + $0x8] sm:$0xff]
    %v4271 = vld [vmem:[%s4268 + $0x10] sm:$0xff]
    %v4272 = vld [vmem:[%s4268 + $0x18] sm:$0xff]
    %4273 = vmatprep.subr.mxu0 0.0
    %4274 = vmatpush1.msra.mxu0 0.0
    %4275 = vmatprep.subr.mxu0 0.0
    %4276 = vmatpush1.msra.mxu0 0.0
    %4277 = vmatprep.subr.mxu0 0.0
    %4278 = vmatpush1.msra.mxu0 0.0
    %4279 = vmatprep.subr.mxu0 0.0
    %4280 = vmatpush1.msra.mxu0 0.0
    %4281 = vmatprep.subr.mxu0 0.0
    %4282 = vmatpush1.msra.mxu0 0.0
    %4283 = vmatprep.subr.mxu0 0.0
    %4284 = vmatpush1.msra.mxu0 0.0
    %4285 = vmatprep.subr.mxu0 0.0
    %4286 = vmatpush1.msra.mxu0 0.0
    %4287 = vmatprep.subr.mxu0 0.0
    %4288 = vmatpush1.msra.mxu0 0.0
    %4289 = vmatprep.subr.mxu0 0.0
    %4290 = vmatpush1.msra.mxu0 0.0
    %4291 = vmatprep.subr.mxu0 0.0
    %4292 = vmatpush1.msra.mxu0 0.0
    %4293 = vmatprep.subr.mxu0 0.0
    %4294 = vmatpush1.msra.mxu0 0.0
    %4295 = vmatprep.subr.mxu0 0.0
    %4296 = vmatpush1.msra.mxu0 0.0
    %4297 = vmatprep.subr.mxu0 0.0
    %v4298 = vand.u32 %v4272, 4294901760
    %4299 = vmatpush1.msra.mxu0 %v4298
    %4300 = vmatprep.subr.mxu0 0.0
    %v4301 = vand.u32 %v4271, 4294901760
    %4302 = vmatpush1.msra.mxu0 %v4301
    %4303 = vmatprep.subr.mxu0 0.0
    %v4304 = vand.u32 %v4270, 4294901760
    %4305 = vmatpush1.msra.mxu0 %v4304
    %4306 = vmatprep.subr.mxu0 0.0
    %v4307 = vand.u32 %v4269, 4294901760
    %4308 = vmatpush1.msra.mxu0 %v4307
    %4309 = vmatprep.subr.mxu0 0.0
    %4310 = vmatpush2.msra.mxu0 0.0
    %4311 = vmatprep.subr.mxu0 0.0
    %4312 = vmatpush2.msra.mxu0 0.0
    %4313 = vmatprep.subr.mxu0 0.0
    %4314 = vmatpush2.msra.mxu0 0.0
    %4315 = vmatprep.subr.mxu0 0.0
    %4316 = vmatpush2.msra.mxu0 0.0
    %4317 = vmatprep.subr.mxu0 0.0
    %4318 = vmatpush2.msra.mxu0 0.0
    %4319 = vmatprep.subr.mxu0 0.0
    %4320 = vmatpush2.msra.mxu0 0.0
    %4321 = vmatprep.subr.mxu0 0.0
    %4322 = vmatpush2.msra.mxu0 0.0
    %4323 = vmatprep.subr.mxu0 0.0
    %4324 = vmatpush2.msra.mxu0 0.0
    %4325 = vmatprep.subr.mxu0 0.0
    %4326 = vmatpush2.msra.mxu0 0.0
    %4327 = vmatprep.subr.mxu0 0.0
    %4328 = vmatpush2.msra.mxu0 0.0
    %4329 = vmatprep.subr.mxu0 0.0
    %4330 = vmatpush2.msra.mxu0 0.0
    %4331 = vmatprep.subr.mxu0 0.0
    %4332 = vmatpush2.msra.mxu0 0.0
    %4333 = vmatprep.subr.mxu0 0.0
    %4334 = vmatpush2.msra.mxu0 0.0
    %4335 = vmatprep.subr.mxu0 0.0
    %4336 = vmatpush2.msra.mxu0 0.0
    %4337 = vmatprep.subr.mxu0 0.0
    %4338 = vmatpush2.msra.mxu0 0.0
    %4339 = vmatprep.subr.mxu0 0.0
    %4340 = vmatpush2.msra.mxu0 0.0
    %4341 = vmatprep.mubr.f32.mxu0 0.0
    %v4342 = vand.u32 %v2606, 4294901760
    %v4343 = vsub.f32 %v2606, %v4342
    %v4344 = vand.u32 %v4343, 4294901760
    %v4345 = vsub.f32 %v4343, %v4344
    %v4346 = vand.u32 %v4345, 4294901760
    %4347 = vmatmul.mubr.f32.gmra.mxu0 %v4346
    %v4348 = vpop.f32.mrf.mxu0
    %v4349 = vadd.f32 0.0, %v4348
    %v4350 = vpop.f32.mrf.mxu0
    %4351 = vmatprep.mubr.f32.mxu0 0.0
    %v4352 = vand.u32 %v2609, 4294901760
    %v4353 = vsub.f32 %v2609, %v4352
    %v4354 = vand.u32 %v4353, 4294901760
    %v4355 = vsub.f32 %v4353, %v4354
    %v4356 = vand.u32 %v4355, 4294901760
    %4357 = vmatmul.mubr.f32.gmra.mxu0 %v4356
    %v4358 = vpop.f32.mrf.mxu0
    %v4359 = vadd.f32 0.0, %v4358
    %v4360 = vpop.f32.mrf.mxu0
    %4361 = vdwg.mxu0
    %4362 = vmatprep.subr.mxu0 0.0
    %4363 = vmatpush1.msra.mxu0 0.0
    %4364 = vmatprep.subr.mxu0 0.0
    %4365 = vmatpush1.msra.mxu0 0.0
    %4366 = vmatprep.subr.mxu0 0.0
    %4367 = vmatpush1.msra.mxu0 0.0
    %4368 = vmatprep.subr.mxu0 0.0
    %4369 = vmatpush1.msra.mxu0 0.0
    %4370 = vmatprep.subr.mxu0 0.0
    %4371 = vmatpush1.msra.mxu0 0.0
    %4372 = vmatprep.subr.mxu0 0.0
    %4373 = vmatpush1.msra.mxu0 0.0
    %4374 = vmatprep.subr.mxu0 0.0
    %4375 = vmatpush1.msra.mxu0 0.0
    %4376 = vmatprep.subr.mxu0 0.0
    %4377 = vmatpush1.msra.mxu0 0.0
    %4378 = vmatprep.subr.mxu0 0.0
    %4379 = vmatpush1.msra.mxu0 0.0
    %4380 = vmatprep.subr.mxu0 0.0
    %4381 = vmatpush1.msra.mxu0 0.0
    %4382 = vmatprep.subr.mxu0 0.0
    %4383 = vmatpush1.msra.mxu0 0.0
    %4384 = vmatprep.subr.mxu0 0.0
    %4385 = vmatpush1.msra.mxu0 0.0
    %4386 = vmatprep.subr.mxu0 0.0
    %v4387 = vand.u32 %v4272, 4294901760
    %v4388 = vsub.f32 %v4272, %v4387
    %v4389 = vand.u32 %v4388, 4294901760
    %v4390 = vsub.f32 %v4388, %v4389
    %v4391 = vand.u32 %v4390, 4294901760
    %4392 = vmatpush1.msra.mxu0 %v4391
    %4393 = vmatprep.subr.mxu0 0.0
    %v4394 = vand.u32 %v4271, 4294901760
    %v4395 = vsub.f32 %v4271, %v4394
    %v4396 = vand.u32 %v4395, 4294901760
    %v4397 = vsub.f32 %v4395, %v4396
    %v4398 = vand.u32 %v4397, 4294901760
    %4399 = vmatpush1.msra.mxu0 %v4398
    %4400 = vmatprep.subr.mxu0 0.0
    %v4401 = vand.u32 %v4270, 4294901760
    %v4402 = vsub.f32 %v4270, %v4401
    %v4403 = vand.u32 %v4402, 4294901760
    %v4404 = vsub.f32 %v4402, %v4403
    %v4405 = vand.u32 %v4404, 4294901760
    %4406 = vmatpush1.msra.mxu0 %v4405
    %4407 = vmatprep.subr.mxu0 0.0
    %v4408 = vand.u32 %v4269, 4294901760
    %v4409 = vsub.f32 %v4269, %v4408
    %v4410 = vand.u32 %v4409, 4294901760
    %v4411 = vsub.f32 %v4409, %v4410
    %v4412 = vand.u32 %v4411, 4294901760
    %4413 = vmatpush1.msra.mxu0 %v4412
    %4414 = vmatprep.subr.mxu0 0.0
    %4415 = vmatpush2.msra.mxu0 0.0
    %4416 = vmatprep.subr.mxu0 0.0
    %4417 = vmatpush2.msra.mxu0 0.0
    %4418 = vmatprep.subr.mxu0 0.0
    %4419 = vmatpush2.msra.mxu0 0.0
    %4420 = vmatprep.subr.mxu0 0.0
    %4421 = vmatpush2.msra.mxu0 0.0
    %4422 = vmatprep.subr.mxu0 0.0
    %4423 = vmatpush2.msra.mxu0 0.0
    %4424 = vmatprep.subr.mxu0 0.0
    %4425 = vmatpush2.msra.mxu0 0.0
    %4426 = vmatprep.subr.mxu0 0.0
    %4427 = vmatpush2.msra.mxu0 0.0
    %4428 = vmatprep.subr.mxu0 0.0
    %4429 = vmatpush2.msra.mxu0 0.0
    %4430 = vmatprep.subr.mxu0 0.0
    %4431 = vmatpush2.msra.mxu0 0.0
    %4432 = vmatprep.subr.mxu0 0.0
    %4433 = vmatpush2.msra.mxu0 0.0
    %4434 = vmatprep.subr.mxu0 0.0
    %4435 = vmatpush2.msra.mxu0 0.0
    %4436 = vmatprep.subr.mxu0 0.0
    %4437 = vmatpush2.msra.mxu0 0.0
    %4438 = vmatprep.subr.mxu0 0.0
    %4439 = vmatpush2.msra.mxu0 0.0
    %4440 = vmatprep.subr.mxu0 0.0
    %4441 = vmatpush2.msra.mxu0 0.0
    %4442 = vmatprep.subr.mxu0 0.0
    %4443 = vmatpush2.msra.mxu0 0.0
    %4444 = vmatprep.subr.mxu0 0.0
    %4445 = vmatpush2.msra.mxu0 0.0
    %4446 = vmatprep.mubr.f32.mxu0 0.0
    %v4447 = vand.u32 %v2606, 4294901760
    %4448 = vmatmul.mubr.f32.gmra.mxu0 %v4447
    %v4449 = vpop.f32.mrf.mxu0
    %v4450 = vadd.f32 %v4349, %v4449
    %v4451 = vpop.f32.mrf.mxu0
    %4452 = vmatprep.mubr.f32.mxu0 0.0
    %v4453 = vand.u32 %v2609, 4294901760
    %4454 = vmatmul.mubr.f32.gmra.mxu0 %v4453
    %v4455 = vpop.f32.mrf.mxu0
    %v4456 = vadd.f32 %v4359, %v4455
    %v4457 = vpop.f32.mrf.mxu0
    %4458 = vdwg.mxu0
    %4459 = vmatprep.subr.mxu0 0.0
    %4460 = vmatpush1.msra.mxu0 0.0
    %4461 = vmatprep.subr.mxu0 0.0
    %4462 = vmatpush1.msra.mxu0 0.0
    %4463 = vmatprep.subr.mxu0 0.0
    %4464 = vmatpush1.msra.mxu0 0.0
    %4465 = vmatprep.subr.mxu0 0.0
    %4466 = vmatpush1.msra.mxu0 0.0
    %4467 = vmatprep.subr.mxu0 0.0
    %4468 = vmatpush1.msra.mxu0 0.0
    %4469 = vmatprep.subr.mxu0 0.0
    %4470 = vmatpush1.msra.mxu0 0.0
    %4471 = vmatprep.subr.mxu0 0.0
    %4472 = vmatpush1.msra.mxu0 0.0
    %4473 = vmatprep.subr.mxu0 0.0
    %4474 = vmatpush1.msra.mxu0 0.0
    %4475 = vmatprep.subr.mxu0 0.0
    %4476 = vmatpush1.msra.mxu0 0.0
    %4477 = vmatprep.subr.mxu0 0.0
    %4478 = vmatpush1.msra.mxu0 0.0
    %4479 = vmatprep.subr.mxu0 0.0
    %4480 = vmatpush1.msra.mxu0 0.0
    %4481 = vmatprep.subr.mxu0 0.0
    %4482 = vmatpush1.msra.mxu0 0.0
    %4483 = vmatprep.subr.mxu0 0.0
    %v4484 = vand.u32 %v4272, 4294901760
    %v4485 = vsub.f32 %v4272, %v4484
    %4486 = vmatpush1.msra.mxu0 %v4485
    %4487 = vmatprep.subr.mxu0 0.0
    %v4488 = vand.u32 %v4271, 4294901760
    %v4489 = vsub.f32 %v4271, %v4488
    %4490 = vmatpush1.msra.mxu0 %v4489
    %4491 = vmatprep.subr.mxu0 0.0
    %v4492 = vand.u32 %v4270, 4294901760
    %v4493 = vsub.f32 %v4270, %v4492
    %4494 = vmatpush1.msra.mxu0 %v4493
    %4495 = vmatprep.subr.mxu0 0.0
    %v4496 = vand.u32 %v4269, 4294901760
    %v4497 = vsub.f32 %v4269, %v4496
    %4498 = vmatpush1.msra.mxu0 %v4497
    %4499 = vmatprep.subr.mxu0 0.0
    %4500 = vmatpush2.msra.mxu0 0.0
    %4501 = vmatprep.subr.mxu0 0.0
    %4502 = vmatpush2.msra.mxu0 0.0
    %4503 = vmatprep.subr.mxu0 0.0
    %4504 = vmatpush2.msra.mxu0 0.0
    %4505 = vmatprep.subr.mxu0 0.0
    %4506 = vmatpush2.msra.mxu0 0.0
    %4507 = vmatprep.subr.mxu0 0.0
    %4508 = vmatpush2.msra.mxu0 0.0
    %4509 = vmatprep.subr.mxu0 0.0
    %4510 = vmatpush2.msra.mxu0 0.0
    %4511 = vmatprep.subr.mxu0 0.0
    %4512 = vmatpush2.msra.mxu0 0.0
    %4513 = vmatprep.subr.mxu0 0.0
    %4514 = vmatpush2.msra.mxu0 0.0
    %4515 = vmatprep.subr.mxu0 0.0
    %4516 = vmatpush2.msra.mxu0 0.0
    %4517 = vmatprep.subr.mxu0 0.0
    %4518 = vmatpush2.msra.mxu0 0.0
    %4519 = vmatprep.subr.mxu0 0.0
    %4520 = vmatpush2.msra.mxu0 0.0
    %4521 = vmatprep.subr.mxu0 0.0
    %4522 = vmatpush2.msra.mxu0 0.0
    %4523 = vmatprep.subr.mxu0 0.0
    %4524 = vmatpush2.msra.mxu0 0.0
    %4525 = vmatprep.subr.mxu0 0.0
    %4526 = vmatpush2.msra.mxu0 0.0
    %4527 = vmatprep.subr.mxu0 0.0
    %4528 = vmatpush2.msra.mxu0 0.0
    %4529 = vmatprep.subr.mxu0 0.0
    %4530 = vmatpush2.msra.mxu0 0.0
    %4531 = vmatprep.mubr.f32.mxu0 0.0
    %v4532 = vand.u32 %v2606, 4294901760
    %v4533 = vsub.f32 %v2606, %v4532
    %4534 = vmatmul.mubr.f32.gmra.mxu0 %v4533
    %v4535 = vpop.f32.mrf.mxu0
    %v4536 = vadd.f32 %v4450, %v4535
    %v4537 = vpop.f32.mrf.mxu0
    %4538 = vmatprep.mubr.f32.mxu0 0.0
    %v4539 = vand.u32 %v2609, 4294901760
    %v4540 = vsub.f32 %v2609, %v4539
    %4541 = vmatmul.mubr.f32.gmra.mxu0 %v4540
    %v4542 = vpop.f32.mrf.mxu0
    %v4543 = vadd.f32 %v4456, %v4542
    %v4544 = vpop.f32.mrf.mxu0
    %4545 = vdwg.mxu0
    %4546 = vmatprep.subr.mxu0 0.0
    %4547 = vmatpush1.msra.mxu0 0.0
    %4548 = vmatprep.subr.mxu0 0.0
    %4549 = vmatpush1.msra.mxu0 0.0
    %4550 = vmatprep.subr.mxu0 0.0
    %4551 = vmatpush1.msra.mxu0 0.0
    %4552 = vmatprep.subr.mxu0 0.0
    %4553 = vmatpush1.msra.mxu0 0.0
    %4554 = vmatprep.subr.mxu0 0.0
    %4555 = vmatpush1.msra.mxu0 0.0
    %4556 = vmatprep.subr.mxu0 0.0
    %4557 = vmatpush1.msra.mxu0 0.0
    %4558 = vmatprep.subr.mxu0 0.0
    %4559 = vmatpush1.msra.mxu0 0.0
    %4560 = vmatprep.subr.mxu0 0.0
    %4561 = vmatpush1.msra.mxu0 0.0
    %4562 = vmatprep.subr.mxu0 0.0
    %4563 = vmatpush1.msra.mxu0 0.0
    %4564 = vmatprep.subr.mxu0 0.0
    %4565 = vmatpush1.msra.mxu0 0.0
    %4566 = vmatprep.subr.mxu0 0.0
    %4567 = vmatpush1.msra.mxu0 0.0
    %4568 = vmatprep.subr.mxu0 0.0
    %4569 = vmatpush1.msra.mxu0 0.0
    %4570 = vmatprep.subr.mxu0 0.0
    %v4571 = vand.u32 %v4272, 4294901760
    %4572 = vmatpush1.msra.mxu0 %v4571
    %4573 = vmatprep.subr.mxu0 0.0
    %v4574 = vand.u32 %v4271, 4294901760
    %4575 = vmatpush1.msra.mxu0 %v4574
    %4576 = vmatprep.subr.mxu0 0.0
    %v4577 = vand.u32 %v4270, 4294901760
    %4578 = vmatpush1.msra.mxu0 %v4577
    %4579 = vmatprep.subr.mxu0 0.0
    %v4580 = vand.u32 %v4269, 4294901760
    %4581 = vmatpush1.msra.mxu0 %v4580
    %4582 = vmatprep.subr.mxu0 0.0
    %4583 = vmatpush2.msra.mxu0 0.0
    %4584 = vmatprep.subr.mxu0 0.0
    %4585 = vmatpush2.msra.mxu0 0.0
    %4586 = vmatprep.subr.mxu0 0.0
    %4587 = vmatpush2.msra.mxu0 0.0
    %4588 = vmatprep.subr.mxu0 0.0
    %4589 = vmatpush2.msra.mxu0 0.0
    %4590 = vmatprep.subr.mxu0 0.0
    %4591 = vmatpush2.msra.mxu0 0.0
    %4592 = vmatprep.subr.mxu0 0.0
    %4593 = vmatpush2.msra.mxu0 0.0
    %4594 = vmatprep.subr.mxu0 0.0
    %4595 = vmatpush2.msra.mxu0 0.0
    %4596 = vmatprep.subr.mxu0 0.0
    %4597 = vmatpush2.msra.mxu0 0.0
    %4598 = vmatprep.subr.mxu0 0.0
    %4599 = vmatpush2.msra.mxu0 0.0
    %4600 = vmatprep.subr.mxu0 0.0
    %4601 = vmatpush2.msra.mxu0 0.0
    %4602 = vmatprep.subr.mxu0 0.0
    %4603 = vmatpush2.msra.mxu0 0.0
    %4604 = vmatprep.subr.mxu0 0.0
    %4605 = vmatpush2.msra.mxu0 0.0
    %4606 = vmatprep.subr.mxu0 0.0
    %4607 = vmatpush2.msra.mxu0 0.0
    %4608 = vmatprep.subr.mxu0 0.0
    %4609 = vmatpush2.msra.mxu0 0.0
    %4610 = vmatprep.subr.mxu0 0.0
    %4611 = vmatpush2.msra.mxu0 0.0
    %4612 = vmatprep.subr.mxu0 0.0
    %4613 = vmatpush2.msra.mxu0 0.0
    %4614 = vmatprep.mubr.f32.mxu0 0.0
    %v4615 = vand.u32 %v2606, 4294901760
    %v4616 = vsub.f32 %v2606, %v4615
    %v4617 = vand.u32 %v4616, 4294901760
    %4618 = vmatmul.mubr.f32.gmra.mxu0 %v4617
    %v4619 = vpop.f32.mrf.mxu0
    %v4620 = vadd.f32 %v4536, %v4619
    %v4621 = vpop.f32.mrf.mxu0
    %4622 = vmatprep.mubr.f32.mxu0 0.0
    %v4623 = vand.u32 %v2609, 4294901760
    %v4624 = vsub.f32 %v2609, %v4623
    %v4625 = vand.u32 %v4624, 4294901760
    %4626 = vmatmul.mubr.f32.gmra.mxu0 %v4625
    %v4627 = vpop.f32.mrf.mxu0
    %v4628 = vadd.f32 %v4543, %v4627
    %v4629 = vpop.f32.mrf.mxu0
    %4630 = vdwg.mxu0
    %4631 = vmatprep.subr.mxu0 0.0
    %4632 = vmatpush1.msra.mxu0 0.0
    %4633 = vmatprep.subr.mxu0 0.0
    %4634 = vmatpush1.msra.mxu0 0.0
    %4635 = vmatprep.subr.mxu0 0.0
    %4636 = vmatpush1.msra.mxu0 0.0
    %4637 = vmatprep.subr.mxu0 0.0
    %4638 = vmatpush1.msra.mxu0 0.0
    %4639 = vmatprep.subr.mxu0 0.0
    %4640 = vmatpush1.msra.mxu0 0.0
    %4641 = vmatprep.subr.mxu0 0.0
    %4642 = vmatpush1.msra.mxu0 0.0
    %4643 = vmatprep.subr.mxu0 0.0
    %4644 = vmatpush1.msra.mxu0 0.0
    %4645 = vmatprep.subr.mxu0 0.0
    %4646 = vmatpush1.msra.mxu0 0.0
    %4647 = vmatprep.subr.mxu0 0.0
    %4648 = vmatpush1.msra.mxu0 0.0
    %4649 = vmatprep.subr.mxu0 0.0
    %4650 = vmatpush1.msra.mxu0 0.0
    %4651 = vmatprep.subr.mxu0 0.0
    %4652 = vmatpush1.msra.mxu0 0.0
    %4653 = vmatprep.subr.mxu0 0.0
    %4654 = vmatpush1.msra.mxu0 0.0
    %4655 = vmatprep.subr.mxu0 0.0
    %v4656 = vand.u32 %v4272, 4294901760
    %v4657 = vsub.f32 %v4272, %v4656
    %v4658 = vand.u32 %v4657, 4294901760
    %4659 = vmatpush1.msra.mxu0 %v4658
    %4660 = vmatprep.subr.mxu0 0.0
    %v4661 = vand.u32 %v4271, 4294901760
    %v4662 = vsub.f32 %v4271, %v4661
    %v4663 = vand.u32 %v4662, 4294901760
    %4664 = vmatpush1.msra.mxu0 %v4663
    %4665 = vmatprep.subr.mxu0 0.0
    %v4666 = vand.u32 %v4270, 4294901760
    %v4667 = vsub.f32 %v4270, %v4666
    %v4668 = vand.u32 %v4667, 4294901760
    %4669 = vmatpush1.msra.mxu0 %v4668
    %4670 = vmatprep.subr.mxu0 0.0
    %v4671 = vand.u32 %v4269, 4294901760
    %v4672 = vsub.f32 %v4269, %v4671
    %v4673 = vand.u32 %v4672, 4294901760
    %4674 = vmatpush1.msra.mxu0 %v4673
    %4675 = vmatprep.subr.mxu0 0.0
    %4676 = vmatpush2.msra.mxu0 0.0
    %4677 = vmatprep.subr.mxu0 0.0
    %4678 = vmatpush2.msra.mxu0 0.0
    %4679 = vmatprep.subr.mxu0 0.0
    %4680 = vmatpush2.msra.mxu0 0.0
    %4681 = vmatprep.subr.mxu0 0.0
    %4682 = vmatpush2.msra.mxu0 0.0
    %4683 = vmatprep.subr.mxu0 0.0
    %4684 = vmatpush2.msra.mxu0 0.0
    %4685 = vmatprep.subr.mxu0 0.0
    %4686 = vmatpush2.msra.mxu0 0.0
    %4687 = vmatprep.subr.mxu0 0.0
    %4688 = vmatpush2.msra.mxu0 0.0
    %4689 = vmatprep.subr.mxu0 0.0
    %4690 = vmatpush2.msra.mxu0 0.0
    %4691 = vmatprep.subr.mxu0 0.0
    %4692 = vmatpush2.msra.mxu0 0.0
    %4693 = vmatprep.subr.mxu0 0.0
    %4694 = vmatpush2.msra.mxu0 0.0
    %4695 = vmatprep.subr.mxu0 0.0
    %4696 = vmatpush2.msra.mxu0 0.0
    %4697 = vmatprep.subr.mxu0 0.0
    %4698 = vmatpush2.msra.mxu0 0.0
    %4699 = vmatprep.subr.mxu0 0.0
    %4700 = vmatpush2.msra.mxu0 0.0
    %4701 = vmatprep.subr.mxu0 0.0
    %4702 = vmatpush2.msra.mxu0 0.0
    %4703 = vmatprep.subr.mxu0 0.0
    %4704 = vmatpush2.msra.mxu0 0.0
    %4705 = vmatprep.subr.mxu0 0.0
    %4706 = vmatpush2.msra.mxu0 0.0
    %4707 = vmatprep.mubr.f32.mxu0 0.0
    %v4708 = vand.u32 %v2606, 4294901760
    %4709 = vmatmul.mubr.f32.gmra.mxu0 %v4708
    %v4710 = vpop.f32.mrf.mxu0
    %v4711 = vadd.f32 %v4620, %v4710
    %v4712 = vpop.f32.mrf.mxu0
    %4713 = vmatprep.mubr.f32.mxu0 0.0
    %v4714 = vand.u32 %v2609, 4294901760
    %4715 = vmatmul.mubr.f32.gmra.mxu0 %v4714
    %v4716 = vpop.f32.mrf.mxu0
    %v4717 = vadd.f32 %v4628, %v4716
    %v4718 = vpop.f32.mrf.mxu0
    %4719 = vdwg.mxu0
    %4720 = vmatprep.subr.mxu0 0.0
    %4721 = vmatpush1.msra.mxu0 0.0
    %4722 = vmatprep.subr.mxu0 0.0
    %4723 = vmatpush1.msra.mxu0 0.0
    %4724 = vmatprep.subr.mxu0 0.0
    %4725 = vmatpush1.msra.mxu0 0.0
    %4726 = vmatprep.subr.mxu0 0.0
    %4727 = vmatpush1.msra.mxu0 0.0
    %4728 = vmatprep.subr.mxu0 0.0
    %4729 = vmatpush1.msra.mxu0 0.0
    %4730 = vmatprep.subr.mxu0 0.0
    %4731 = vmatpush1.msra.mxu0 0.0
    %4732 = vmatprep.subr.mxu0 0.0
    %4733 = vmatpush1.msra.mxu0 0.0
    %4734 = vmatprep.subr.mxu0 0.0
    %4735 = vmatpush1.msra.mxu0 0.0
    %4736 = vmatprep.subr.mxu0 0.0
    %4737 = vmatpush1.msra.mxu0 0.0
    %4738 = vmatprep.subr.mxu0 0.0
    %4739 = vmatpush1.msra.mxu0 0.0
    %4740 = vmatprep.subr.mxu0 0.0
    %4741 = vmatpush1.msra.mxu0 0.0
    %4742 = vmatprep.subr.mxu0 0.0
    %4743 = vmatpush1.msra.mxu0 0.0
    %4744 = vmatprep.subr.mxu0 0.0
    %v4745 = vand.u32 %v4272, 4294901760
    %4746 = vmatpush1.msra.mxu0 %v4745
    %4747 = vmatprep.subr.mxu0 0.0
    %v4748 = vand.u32 %v4271, 4294901760
    %4749 = vmatpush1.msra.mxu0 %v4748
    %4750 = vmatprep.subr.mxu0 0.0
    %v4751 = vand.u32 %v4270, 4294901760
    %4752 = vmatpush1.msra.mxu0 %v4751
    %4753 = vmatprep.subr.mxu0 0.0
    %v4754 = vand.u32 %v4269, 4294901760
    %4755 = vmatpush1.msra.mxu0 %v4754
    %4756 = vmatprep.subr.mxu0 0.0
    %4757 = vmatpush2.msra.mxu0 0.0
    %4758 = vmatprep.subr.mxu0 0.0
    %4759 = vmatpush2.msra.mxu0 0.0
    %4760 = vmatprep.subr.mxu0 0.0
    %4761 = vmatpush2.msra.mxu0 0.0
    %4762 = vmatprep.subr.mxu0 0.0
    %4763 = vmatpush2.msra.mxu0 0.0
    %4764 = vmatprep.subr.mxu0 0.0
    %4765 = vmatpush2.msra.mxu0 0.0
    %4766 = vmatprep.subr.mxu0 0.0
    %4767 = vmatpush2.msra.mxu0 0.0
    %4768 = vmatprep.subr.mxu0 0.0
    %4769 = vmatpush2.msra.mxu0 0.0
    %4770 = vmatprep.subr.mxu0 0.0
    %4771 = vmatpush2.msra.mxu0 0.0
    %4772 = vmatprep.subr.mxu0 0.0
    %4773 = vmatpush2.msra.mxu0 0.0
    %4774 = vmatprep.subr.mxu0 0.0
    %4775 = vmatpush2.msra.mxu0 0.0
    %4776 = vmatprep.subr.mxu0 0.0
    %4777 = vmatpush2.msra.mxu0 0.0
    %4778 = vmatprep.subr.mxu0 0.0
    %4779 = vmatpush2.msra.mxu0 0.0
    %4780 = vmatprep.subr.mxu0 0.0
    %4781 = vmatpush2.msra.mxu0 0.0
    %4782 = vmatprep.subr.mxu0 0.0
    %4783 = vmatpush2.msra.mxu0 0.0
    %4784 = vmatprep.subr.mxu0 0.0
    %4785 = vmatpush2.msra.mxu0 0.0
    %4786 = vmatprep.subr.mxu0 0.0
    %4787 = vmatpush2.msra.mxu0 0.0
    %4788 = vmatprep.mubr.f32.mxu0 0.0
    %v4789 = vand.u32 %v2606, 4294901760
    %4790 = vmatmul.mubr.f32.gmra.mxu0 %v4789
    %v4791 = vpop.f32.mrf.mxu0
    %v4792 = vadd.f32 %v4711, %v4791
    %v4793 = vpop.f32.mrf.mxu0
    %4794 = vmatprep.mubr.f32.mxu0 0.0
    %v4795 = vand.u32 %v2609, 4294901760
    %4796 = vmatmul.mubr.f32.gmra.mxu0 %v4795
    %v4797 = vpop.f32.mrf.mxu0
    %v4798 = vadd.f32 %v4717, %v4797
    %v4799 = vpop.f32.mrf.mxu0
    %4800 = vdwg.mxu0
    %v4801 = vmul.f32 %v4792, %v4792
    %v4802 = vmul.f32 %v4798, %v4798
    %v4803 = vsel %vm1289, %v4801, 0.0
    %4804 = vadd.xlane.f32.xlu0 %v4803
    %v4805 = vpop.xlane.xlu0 %4804
    %v4806 = vsel %vm1289, %v4802, 0.0
    %4807 = vadd.xlane.f32.xlu0 %v4806
    %v4808 = vpop.xlane.xlu0 %4807
    %v4809 = vmul.f32 %v4805, %v1302
    %v4810 = vmul.f32 %v4808, %v1302
    %v4811 = vadd.f32 %v4809, 1e-05
    %v4812 = vadd.f32 %v4810, 1e-05
    %v4813 = vrsqrt.pop %v4811
    %v4814 = vrsqrt.pop %v4812
    %v4815 = vmul.f32 %v4792, %v4813
    %v4816 = vmul.f32 %v4798, %v4814
    %v4817 = vmul.f32 %v4815, %v3158
    %v4818 = vmul.f32 %v4816, %v3158
    %v4820 = vsel %vm1289, %v4817, 0
    %v4823 = vsel %vm1289, %v4818, 0
    %4825 = vmatprep.subr.mxu0 0.0
    %4826 = vmatpush1.xpose.msra.mxu0 0.0
    %4827 = vmatprep.subr.mxu0 0.0
    %4828 = vmatpush1.xpose.msra.mxu0 0.0
    %4829 = vmatprep.subr.mxu0 0.0
    %4830 = vmatpush1.xpose.msra.mxu0 0.0
    %4831 = vmatprep.subr.mxu0 0.0
    %4832 = vmatpush1.xpose.msra.mxu0 0.0
    %4833 = vmatprep.subr.mxu0 0.0
    %4834 = vmatpush1.xpose.msra.mxu0 0.0
    %4835 = vmatprep.subr.mxu0 0.0
    %4836 = vmatpush1.xpose.msra.mxu0 0.0
    %4837 = vmatprep.subr.mxu0 0.0
    %4838 = vmatpush1.xpose.msra.mxu0 0.0
    %4839 = vmatprep.subr.mxu0 0.0
    %4840 = vmatpush1.xpose.msra.mxu0 0.0
    %4841 = vmatprep.subr.mxu0 0.0
    %4842 = vmatpush1.xpose.msra.mxu0 0.0
    %4843 = vmatprep.subr.mxu0 0.0
    %4844 = vmatpush1.xpose.msra.mxu0 0.0
    %4845 = vmatprep.subr.mxu0 0.0
    %4846 = vmatpush1.xpose.msra.mxu0 0.0
    %4847 = vmatprep.subr.mxu0 0.0
    %4848 = vmatpush1.xpose.msra.mxu0 0.0
    %4849 = vmatprep.subr.mxu0 0.0
    %v4850 = vand.u32 %v3177, 4294901760
    %4851 = vmatpush1.xpose.msra.mxu0 %v4850
    %4852 = vmatprep.subr.mxu0 0.0
    %v4853 = vand.u32 %v3174, 4294901760
    %4854 = vmatpush1.xpose.msra.mxu0 %v4853
    %4855 = vmatprep.subr.mxu0 0.0
    %v4856 = vand.u32 %v3171, 4294901760
    %4857 = vmatpush1.xpose.msra.mxu0 %v4856
    %4858 = vmatprep.subr.mxu0 0.0
    %v4859 = vand.u32 %v3168, 4294901760
    %4860 = vmatpush1.xpose.msra.mxu0 %v4859
    %4861 = vmatprep.subr.mxu0 0.0
    %4862 = vmatpush2.xpose.msra.mxu0 0.0
    %4863 = vmatprep.subr.mxu0 0.0
    %4864 = vmatpush2.xpose.msra.mxu0 0.0
    %4865 = vmatprep.subr.mxu0 0.0
    %4866 = vmatpush2.xpose.msra.mxu0 0.0
    %4867 = vmatprep.subr.mxu0 0.0
    %4868 = vmatpush2.xpose.msra.mxu0 0.0
    %4869 = vmatprep.subr.mxu0 0.0
    %4870 = vmatpush2.xpose.msra.mxu0 0.0
    %4871 = vmatprep.subr.mxu0 0.0
    %4872 = vmatpush2.xpose.msra.mxu0 0.0
    %4873 = vmatprep.subr.mxu0 0.0
    %4874 = vmatpush2.xpose.msra.mxu0 0.0
    %4875 = vmatprep.subr.mxu0 0.0
    %4876 = vmatpush2.xpose.msra.mxu0 0.0
    %4877 = vmatprep.subr.mxu0 0.0
    %4878 = vmatpush2.xpose.msra.mxu0 0.0
    %4879 = vmatprep.subr.mxu0 0.0
    %4880 = vmatpush2.xpose.msra.mxu0 0.0
    %4881 = vmatprep.subr.mxu0 0.0
    %4882 = vmatpush2.xpose.msra.mxu0 0.0
    %4883 = vmatprep.subr.mxu0 0.0
    %4884 = vmatpush2.xpose.msra.mxu0 0.0
    %4885 = vmatprep.subr.mxu0 0.0
    %4886 = vmatpush2.xpose.msra.mxu0 0.0
    %4887 = vmatprep.subr.mxu0 0.0
    %4888 = vmatpush2.xpose.msra.mxu0 0.0
    %4889 = vmatprep.subr.mxu0 0.0
    %4890 = vmatpush2.xpose.msra.mxu0 0.0
    %4891 = vmatprep.subr.mxu0 0.0
    %4892 = vmatpush2.xpose.msra.mxu0 0.0
    %4893 = vmatprep.mubr.f32.mxu0 0.0
    %v4894 = vand.u32 %v4820, 4294901760
    %v4895 = vsub.f32 %v4820, %v4894
    %v4896 = vand.u32 %v4895, 4294901760
    %v4897 = vsub.f32 %v4895, %v4896
    %v4898 = vand.u32 %v4897, 4294901760
    %4899 = vmatmul.mubr.f32.gmra.mxu0 %v4898
    %v4900 = vpop.f32.mrf.mxu0
    %v4901 = vadd.f32 0.0, %v4900
    %v4902 = vpop.f32.mrf.mxu0
    %4903 = vmatprep.mubr.f32.mxu0 0.0
    %v4904 = vand.u32 %v4823, 4294901760
    %v4905 = vsub.f32 %v4823, %v4904
    %v4906 = vand.u32 %v4905, 4294901760
    %v4907 = vsub.f32 %v4905, %v4906
    %v4908 = vand.u32 %v4907, 4294901760
    %4909 = vmatmul.mubr.f32.gmra.mxu0 %v4908
    %v4910 = vpop.f32.mrf.mxu0
    %v4911 = vadd.f32 0.0, %v4910
    %v4912 = vpop.f32.mrf.mxu0
    %4913 = vdwg.mxu0
    %4914 = vmatprep.subr.mxu0 0.0
    %4915 = vmatpush1.xpose.msra.mxu0 0.0
    %4916 = vmatprep.subr.mxu0 0.0
    %4917 = vmatpush1.xpose.msra.mxu0 0.0
    %4918 = vmatprep.subr.mxu0 0.0
    %4919 = vmatpush1.xpose.msra.mxu0 0.0
    %4920 = vmatprep.subr.mxu0 0.0
    %4921 = vmatpush1.xpose.msra.mxu0 0.0
    %4922 = vmatprep.subr.mxu0 0.0
    %4923 = vmatpush1.xpose.msra.mxu0 0.0
    %4924 = vmatprep.subr.mxu0 0.0
    %4925 = vmatpush1.xpose.msra.mxu0 0.0
    %4926 = vmatprep.subr.mxu0 0.0
    %4927 = vmatpush1.xpose.msra.mxu0 0.0
    %4928 = vmatprep.subr.mxu0 0.0
    %4929 = vmatpush1.xpose.msra.mxu0 0.0
    %4930 = vmatprep.subr.mxu0 0.0
    %4931 = vmatpush1.xpose.msra.mxu0 0.0
    %4932 = vmatprep.subr.mxu0 0.0
    %4933 = vmatpush1.xpose.msra.mxu0 0.0
    %4934 = vmatprep.subr.mxu0 0.0
    %4935 = vmatpush1.xpose.msra.mxu0 0.0
    %4936 = vmatprep.subr.mxu0 0.0
    %4937 = vmatpush1.xpose.msra.mxu0 0.0
    %4938 = vmatprep.subr.mxu0 0.0
    %v4939 = vand.u32 %v3177, 4294901760
    %v4940 = vsub.f32 %v3177, %v4939
    %v4941 = vand.u32 %v4940, 4294901760
    %v4942 = vsub.f32 %v4940, %v4941
    %v4943 = vand.u32 %v4942, 4294901760
    %4944 = vmatpush1.xpose.msra.mxu0 %v4943
    %4945 = vmatprep.subr.mxu0 0.0
    %v4946 = vand.u32 %v3174, 4294901760
    %v4947 = vsub.f32 %v3174, %v4946
    %v4948 = vand.u32 %v4947, 4294901760
    %v4949 = vsub.f32 %v4947, %v4948
    %v4950 = vand.u32 %v4949, 4294901760
    %4951 = vmatpush1.xpose.msra.mxu0 %v4950
    %4952 = vmatprep.subr.mxu0 0.0
    %v4953 = vand.u32 %v3171, 4294901760
    %v4954 = vsub.f32 %v3171, %v4953
    %v4955 = vand.u32 %v4954, 4294901760
    %v4956 = vsub.f32 %v4954, %v4955
    %v4957 = vand.u32 %v4956, 4294901760
    %4958 = vmatpush1.xpose.msra.mxu0 %v4957
    %4959 = vmatprep.subr.mxu0 0.0
    %v4960 = vand.u32 %v3168, 4294901760
    %v4961 = vsub.f32 %v3168, %v4960
    %v4962 = vand.u32 %v4961, 4294901760
    %v4963 = vsub.f32 %v4961, %v4962
    %v4964 = vand.u32 %v4963, 4294901760
    %4965 = vmatpush1.xpose.msra.mxu0 %v4964
    %4966 = vmatprep.subr.mxu0 0.0
    %4967 = vmatpush2.xpose.msra.mxu0 0.0
    %4968 = vmatprep.subr.mxu0 0.0
    %4969 = vmatpush2.xpose.msra.mxu0 0.0
    %4970 = vmatprep.subr.mxu0 0.0
    %4971 = vmatpush2.xpose.msra.mxu0 0.0
    %4972 = vmatprep.subr.mxu0 0.0
    %4973 = vmatpush2.xpose.msra.mxu0 0.0
    %4974 = vmatprep.subr.mxu0 0.0
    %4975 = vmatpush2.xpose.msra.mxu0 0.0
    %4976 = vmatprep.subr.mxu0 0.0
    %4977 = vmatpush2.xpose.msra.mxu0 0.0
    %4978 = vmatprep.subr.mxu0 0.0
    %4979 = vmatpush2.xpose.msra.mxu0 0.0
    %4980 = vmatprep.subr.mxu0 0.0
    %4981 = vmatpush2.xpose.msra.mxu0 0.0
    %4982 = vmatprep.subr.mxu0 0.0
    %4983 = vmatpush2.xpose.msra.mxu0 0.0
    %4984 = vmatprep.subr.mxu0 0.0
    %4985 = vmatpush2.xpose.msra.mxu0 0.0
    %4986 = vmatprep.subr.mxu0 0.0
    %4987 = vmatpush2.xpose.msra.mxu0 0.0
    %4988 = vmatprep.subr.mxu0 0.0
    %4989 = vmatpush2.xpose.msra.mxu0 0.0
    %4990 = vmatprep.subr.mxu0 0.0
    %4991 = vmatpush2.xpose.msra.mxu0 0.0
    %4992 = vmatprep.subr.mxu0 0.0
    %4993 = vmatpush2.xpose.msra.mxu0 0.0
    %4994 = vmatprep.subr.mxu0 0.0
    %4995 = vmatpush2.xpose.msra.mxu0 0.0
    %4996 = vmatprep.subr.mxu0 0.0
    %4997 = vmatpush2.xpose.msra.mxu0 0.0
    %4998 = vmatprep.mubr.f32.mxu0 0.0
    %v4999 = vand.u32 %v4820, 4294901760
    %5000 = vmatmul.mubr.f32.gmra.mxu0 %v4999
    %v5001 = vpop.f32.mrf.mxu0
    %v5002 = vadd.f32 %v4901, %v5001
    %v5003 = vpop.f32.mrf.mxu0
    %5004 = vmatprep.mubr.f32.mxu0 0.0
    %v5005 = vand.u32 %v4823, 4294901760
    %5006 = vmatmul.mubr.f32.gmra.mxu0 %v5005
    %v5007 = vpop.f32.mrf.mxu0
    %v5008 = vadd.f32 %v4911, %v5007
    %v5009 = vpop.f32.mrf.mxu0
    %5010 = vdwg.mxu0
    %5011 = vmatprep.subr.mxu0 0.0
    %5012 = vmatpush1.xpose.msra.mxu0 0.0
    %5013 = vmatprep.subr.mxu0 0.0
    %5014 = vmatpush1.xpose.msra.mxu0 0.0
    %5015 = vmatprep.subr.mxu0 0.0
    %5016 = vmatpush1.xpose.msra.mxu0 0.0
    %5017 = vmatprep.subr.mxu0 0.0
    %5018 = vmatpush1.xpose.msra.mxu0 0.0
    %5019 = vmatprep.subr.mxu0 0.0
    %5020 = vmatpush1.xpose.msra.mxu0 0.0
    %5021 = vmatprep.subr.mxu0 0.0
    %5022 = vmatpush1.xpose.msra.mxu0 0.0
    %5023 = vmatprep.subr.mxu0 0.0
    %5024 = vmatpush1.xpose.msra.mxu0 0.0
    %5025 = vmatprep.subr.mxu0 0.0
    %5026 = vmatpush1.xpose.msra.mxu0 0.0
    %5027 = vmatprep.subr.mxu0 0.0
    %5028 = vmatpush1.xpose.msra.mxu0 0.0
    %5029 = vmatprep.subr.mxu0 0.0
    %5030 = vmatpush1.xpose.msra.mxu0 0.0
    %5031 = vmatprep.subr.mxu0 0.0
    %5032 = vmatpush1.xpose.msra.mxu0 0.0
    %5033 = vmatprep.subr.mxu0 0.0
    %5034 = vmatpush1.xpose.msra.mxu0 0.0
    %5035 = vmatprep.subr.mxu0 0.0
    %v5036 = vand.u32 %v3177, 4294901760
    %v5037 = vsub.f32 %v3177, %v5036
    %5038 = vmatpush1.xpose.msra.mxu0 %v5037
    %5039 = vmatprep.subr.mxu0 0.0
    %v5040 = vand.u32 %v3174, 4294901760
    %v5041 = vsub.f32 %v3174, %v5040
    %5042 = vmatpush1.xpose.msra.mxu0 %v5041
    %5043 = vmatprep.subr.mxu0 0.0
    %v5044 = vand.u32 %v3171, 4294901760
    %v5045 = vsub.f32 %v3171, %v5044
    %5046 = vmatpush1.xpose.msra.mxu0 %v5045
    %5047 = vmatprep.subr.mxu0 0.0
    %v5048 = vand.u32 %v3168, 4294901760
    %v5049 = vsub.f32 %v3168, %v5048
    %5050 = vmatpush1.xpose.msra.mxu0 %v5049
    %5051 = vmatprep.subr.mxu0 0.0
    %5052 = vmatpush2.xpose.msra.mxu0 0.0
    %5053 = vmatprep.subr.mxu0 0.0
    %5054 = vmatpush2.xpose.msra.mxu0 0.0
    %5055 = vmatprep.subr.mxu0 0.0
    %5056 = vmatpush2.xpose.msra.mxu0 0.0
    %5057 = vmatprep.subr.mxu0 0.0
    %5058 = vmatpush2.xpose.msra.mxu0 0.0
    %5059 = vmatprep.subr.mxu0 0.0
    %5060 = vmatpush2.xpose.msra.mxu0 0.0
    %5061 = vmatprep.subr.mxu0 0.0
    %5062 = vmatpush2.xpose.msra.mxu0 0.0
    %5063 = vmatprep.subr.mxu0 0.0
    %5064 = vmatpush2.xpose.msra.mxu0 0.0
    %5065 = vmatprep.subr.mxu0 0.0
    %5066 = vmatpush2.xpose.msra.mxu0 0.0
    %5067 = vmatprep.subr.mxu0 0.0
    %5068 = vmatpush2.xpose.msra.mxu0 0.0
    %5069 = vmatprep.subr.mxu0 0.0
    %5070 = vmatpush2.xpose.msra.mxu0 0.0
    %5071 = vmatprep.subr.mxu0 0.0
    %5072 = vmatpush2.xpose.msra.mxu0 0.0
    %5073 = vmatprep.subr.mxu0 0.0
    %5074 = vmatpush2.xpose.msra.mxu0 0.0
    %5075 = vmatprep.subr.mxu0 0.0
    %5076 = vmatpush2.xpose.msra.mxu0 0.0
    %5077 = vmatprep.subr.mxu0 0.0
    %5078 = vmatpush2.xpose.msra.mxu0 0.0
    %5079 = vmatprep.subr.mxu0 0.0
    %5080 = vmatpush2.xpose.msra.mxu0 0.0
    %5081 = vmatprep.subr.mxu0 0.0
    %5082 = vmatpush2.xpose.msra.mxu0 0.0
    %5083 = vmatprep.mubr.f32.mxu0 0.0
    %v5084 = vand.u32 %v4820, 4294901760
    %v5085 = vsub.f32 %v4820, %v5084
    %5086 = vmatmul.mubr.f32.gmra.mxu0 %v5085
    %v5087 = vpop.f32.mrf.mxu0
    %v5088 = vadd.f32 %v5002, %v5087
    %v5089 = vpop.f32.mrf.mxu0
    %5090 = vmatprep.mubr.f32.mxu0 0.0
    %v5091 = vand.u32 %v4823, 4294901760
    %v5092 = vsub.f32 %v4823, %v5091
    %5093 = vmatmul.mubr.f32.gmra.mxu0 %v5092
    %v5094 = vpop.f32.mrf.mxu0
    %v5095 = vadd.f32 %v5008, %v5094
    %v5096 = vpop.f32.mrf.mxu0
    %5097 = vdwg.mxu0
    %5098 = vmatprep.subr.mxu0 0.0
    %5099 = vmatpush1.xpose.msra.mxu0 0.0
    %5100 = vmatprep.subr.mxu0 0.0
    %5101 = vmatpush1.xpose.msra.mxu0 0.0
    %5102 = vmatprep.subr.mxu0 0.0
    %5103 = vmatpush1.xpose.msra.mxu0 0.0
    %5104 = vmatprep.subr.mxu0 0.0
    %5105 = vmatpush1.xpose.msra.mxu0 0.0
    %5106 = vmatprep.subr.mxu0 0.0
    %5107 = vmatpush1.xpose.msra.mxu0 0.0
    %5108 = vmatprep.subr.mxu0 0.0
    %5109 = vmatpush1.xpose.msra.mxu0 0.0
    %5110 = vmatprep.subr.mxu0 0.0
    %5111 = vmatpush1.xpose.msra.mxu0 0.0
    %5112 = vmatprep.subr.mxu0 0.0
    %5113 = vmatpush1.xpose.msra.mxu0 0.0
    %5114 = vmatprep.subr.mxu0 0.0
    %5115 = vmatpush1.xpose.msra.mxu0 0.0
    %5116 = vmatprep.subr.mxu0 0.0
    %5117 = vmatpush1.xpose.msra.mxu0 0.0
    %5118 = vmatprep.subr.mxu0 0.0
    %5119 = vmatpush1.xpose.msra.mxu0 0.0
    %5120 = vmatprep.subr.mxu0 0.0
    %5121 = vmatpush1.xpose.msra.mxu0 0.0
    %5122 = vmatprep.subr.mxu0 0.0
    %v5123 = vand.u32 %v3177, 4294901760
    %5124 = vmatpush1.xpose.msra.mxu0 %v5123
    %5125 = vmatprep.subr.mxu0 0.0
    %v5126 = vand.u32 %v3174, 4294901760
    %5127 = vmatpush1.xpose.msra.mxu0 %v5126
    %5128 = vmatprep.subr.mxu0 0.0
    %v5129 = vand.u32 %v3171, 4294901760
    %5130 = vmatpush1.xpose.msra.mxu0 %v5129
    %5131 = vmatprep.subr.mxu0 0.0
    %v5132 = vand.u32 %v3168, 4294901760
    %5133 = vmatpush1.xpose.msra.mxu0 %v5132
    %5134 = vmatprep.subr.mxu0 0.0
    %5135 = vmatpush2.xpose.msra.mxu0 0.0
    %5136 = vmatprep.subr.mxu0 0.0
    %5137 = vmatpush2.xpose.msra.mxu0 0.0
    %5138 = vmatprep.subr.mxu0 0.0
    %5139 = vmatpush2.xpose.msra.mxu0 0.0
    %5140 = vmatprep.subr.mxu0 0.0
    %5141 = vmatpush2.xpose.msra.mxu0 0.0
    %5142 = vmatprep.subr.mxu0 0.0
    %5143 = vmatpush2.xpose.msra.mxu0 0.0
    %5144 = vmatprep.subr.mxu0 0.0
    %5145 = vmatpush2.xpose.msra.mxu0 0.0
    %5146 = vmatprep.subr.mxu0 0.0
    %5147 = vmatpush2.xpose.msra.mxu0 0.0
    %5148 = vmatprep.subr.mxu0 0.0
    %5149 = vmatpush2.xpose.msra.mxu0 0.0
    %5150 = vmatprep.subr.mxu0 0.0
    %5151 = vmatpush2.xpose.msra.mxu0 0.0
    %5152 = vmatprep.subr.mxu0 0.0
    %5153 = vmatpush2.xpose.msra.mxu0 0.0
    %5154 = vmatprep.subr.mxu0 0.0
    %5155 = vmatpush2.xpose.msra.mxu0 0.0
    %5156 = vmatprep.subr.mxu0 0.0
    %5157 = vmatpush2.xpose.msra.mxu0 0.0
    %5158 = vmatprep.subr.mxu0 0.0
    %5159 = vmatpush2.xpose.msra.mxu0 0.0
    %5160 = vmatprep.subr.mxu0 0.0
    %5161 = vmatpush2.xpose.msra.mxu0 0.0
    %5162 = vmatprep.subr.mxu0 0.0
    %5163 = vmatpush2.xpose.msra.mxu0 0.0
    %5164 = vmatprep.subr.mxu0 0.0
    %5165 = vmatpush2.xpose.msra.mxu0 0.0
    %5166 = vmatprep.mubr.f32.mxu0 0.0
    %v5167 = vand.u32 %v4820, 4294901760
    %v5168 = vsub.f32 %v4820, %v5167
    %v5169 = vand.u32 %v5168, 4294901760
    %5170 = vmatmul.mubr.f32.gmra.mxu0 %v5169
    %v5171 = vpop.f32.mrf.mxu0
    %v5172 = vadd.f32 %v5088, %v5171
    %v5173 = vpop.f32.mrf.mxu0
    %5174 = vmatprep.mubr.f32.mxu0 0.0
    %v5175 = vand.u32 %v4823, 4294901760
    %v5176 = vsub.f32 %v4823, %v5175
    %v5177 = vand.u32 %v5176, 4294901760
    %5178 = vmatmul.mubr.f32.gmra.mxu0 %v5177
    %v5179 = vpop.f32.mrf.mxu0
    %v5180 = vadd.f32 %v5095, %v5179
    %v5181 = vpop.f32.mrf.mxu0
    %5182 = vdwg.mxu0
    %5183 = vmatprep.subr.mxu0 0.0
    %5184 = vmatpush1.xpose.msra.mxu0 0.0
    %5185 = vmatprep.subr.mxu0 0.0
    %5186 = vmatpush1.xpose.msra.mxu0 0.0
    %5187 = vmatprep.subr.mxu0 0.0
    %5188 = vmatpush1.xpose.msra.mxu0 0.0
    %5189 = vmatprep.subr.mxu0 0.0
    %5190 = vmatpush1.xpose.msra.mxu0 0.0
    %5191 = vmatprep.subr.mxu0 0.0
    %5192 = vmatpush1.xpose.msra.mxu0 0.0
    %5193 = vmatprep.subr.mxu0 0.0
    %5194 = vmatpush1.xpose.msra.mxu0 0.0
    %5195 = vmatprep.subr.mxu0 0.0
    %5196 = vmatpush1.xpose.msra.mxu0 0.0
    %5197 = vmatprep.subr.mxu0 0.0
    %5198 = vmatpush1.xpose.msra.mxu0 0.0
    %5199 = vmatprep.subr.mxu0 0.0
    %5200 = vmatpush1.xpose.msra.mxu0 0.0
    %5201 = vmatprep.subr.mxu0 0.0
    %5202 = vmatpush1.xpose.msra.mxu0 0.0
    %5203 = vmatprep.subr.mxu0 0.0
    %5204 = vmatpush1.xpose.msra.mxu0 0.0
    %5205 = vmatprep.subr.mxu0 0.0
    %5206 = vmatpush1.xpose.msra.mxu0 0.0
    %5207 = vmatprep.subr.mxu0 0.0
    %v5208 = vand.u32 %v3177, 4294901760
    %v5209 = vsub.f32 %v3177, %v5208
    %v5210 = vand.u32 %v5209, 4294901760
    %5211 = vmatpush1.xpose.msra.mxu0 %v5210
    %5212 = vmatprep.subr.mxu0 0.0
    %v5213 = vand.u32 %v3174, 4294901760
    %v5214 = vsub.f32 %v3174, %v5213
    %v5215 = vand.u32 %v5214, 4294901760
    %5216 = vmatpush1.xpose.msra.mxu0 %v5215
    %5217 = vmatprep.subr.mxu0 0.0
    %v5218 = vand.u32 %v3171, 4294901760
    %v5219 = vsub.f32 %v3171, %v5218
    %v5220 = vand.u32 %v5219, 4294901760
    %5221 = vmatpush1.xpose.msra.mxu0 %v5220
    %5222 = vmatprep.subr.mxu0 0.0
    %v5223 = vand.u32 %v3168, 4294901760
    %v5224 = vsub.f32 %v3168, %v5223
    %v5225 = vand.u32 %v5224, 4294901760
    %5226 = vmatpush1.xpose.msra.mxu0 %v5225
    %5227 = vmatprep.subr.mxu0 0.0
    %5228 = vmatpush2.xpose.msra.mxu0 0.0
    %5229 = vmatprep.subr.mxu0 0.0
    %5230 = vmatpush2.xpose.msra.mxu0 0.0
    %5231 = vmatprep.subr.mxu0 0.0
    %5232 = vmatpush2.xpose.msra.mxu0 0.0
    %5233 = vmatprep.subr.mxu0 0.0
    %5234 = vmatpush2.xpose.msra.mxu0 0.0
    %5235 = vmatprep.subr.mxu0 0.0
    %5236 = vmatpush2.xpose.msra.mxu0 0.0
    %5237 = vmatprep.subr.mxu0 0.0
    %5238 = vmatpush2.xpose.msra.mxu0 0.0
    %5239 = vmatprep.subr.mxu0 0.0
    %5240 = vmatpush2.xpose.msra.mxu0 0.0
    %5241 = vmatprep.subr.mxu0 0.0
    %5242 = vmatpush2.xpose.msra.mxu0 0.0
    %5243 = vmatprep.subr.mxu0 0.0
    %5244 = vmatpush2.xpose.msra.mxu0 0.0
    %5245 = vmatprep.subr.mxu0 0.0
    %5246 = vmatpush2.xpose.msra.mxu0 0.0
    %5247 = vmatprep.subr.mxu0 0.0
    %5248 = vmatpush2.xpose.msra.mxu0 0.0
    %5249 = vmatprep.subr.mxu0 0.0
    %5250 = vmatpush2.xpose.msra.mxu0 0.0
    %5251 = vmatprep.subr.mxu0 0.0
    %5252 = vmatpush2.xpose.msra.mxu0 0.0
    %5253 = vmatprep.subr.mxu0 0.0
    %5254 = vmatpush2.xpose.msra.mxu0 0.0
    %5255 = vmatprep.subr.mxu0 0.0
    %5256 = vmatpush2.xpose.msra.mxu0 0.0
    %5257 = vmatprep.subr.mxu0 0.0
    %5258 = vmatpush2.xpose.msra.mxu0 0.0
    %5259 = vmatprep.mubr.f32.mxu0 0.0
    %v5260 = vand.u32 %v4820, 4294901760
    %5261 = vmatmul.mubr.f32.gmra.mxu0 %v5260
    %v5262 = vpop.f32.mrf.mxu0
    %v5263 = vadd.f32 %v5172, %v5262
    %v5264 = vpop.f32.mrf.mxu0
    %5265 = vmatprep.mubr.f32.mxu0 0.0
    %v5266 = vand.u32 %v4823, 4294901760
    %5267 = vmatmul.mubr.f32.gmra.mxu0 %v5266
    %v5268 = vpop.f32.mrf.mxu0
    %v5269 = vadd.f32 %v5180, %v5268
    %v5270 = vpop.f32.mrf.mxu0
    %5271 = vdwg.mxu0
    %5272 = vmatprep.subr.mxu0 0.0
    %5273 = vmatpush1.xpose.msra.mxu0 0.0
    %5274 = vmatprep.subr.mxu0 0.0
    %5275 = vmatpush1.xpose.msra.mxu0 0.0
    %5276 = vmatprep.subr.mxu0 0.0
    %5277 = vmatpush1.xpose.msra.mxu0 0.0
    %5278 = vmatprep.subr.mxu0 0.0
    %5279 = vmatpush1.xpose.msra.mxu0 0.0
    %5280 = vmatprep.subr.mxu0 0.0
    %5281 = vmatpush1.xpose.msra.mxu0 0.0
    %5282 = vmatprep.subr.mxu0 0.0
    %5283 = vmatpush1.xpose.msra.mxu0 0.0
    %5284 = vmatprep.subr.mxu0 0.0
    %5285 = vmatpush1.xpose.msra.mxu0 0.0
    %5286 = vmatprep.subr.mxu0 0.0
    %5287 = vmatpush1.xpose.msra.mxu0 0.0
    %5288 = vmatprep.subr.mxu0 0.0
    %5289 = vmatpush1.xpose.msra.mxu0 0.0
    %5290 = vmatprep.subr.mxu0 0.0
    %5291 = vmatpush1.xpose.msra.mxu0 0.0
    %5292 = vmatprep.subr.mxu0 0.0
    %5293 = vmatpush1.xpose.msra.mxu0 0.0
    %5294 = vmatprep.subr.mxu0 0.0
    %5295 = vmatpush1.xpose.msra.mxu0 0.0
    %5296 = vmatprep.subr.mxu0 0.0
    %v5297 = vand.u32 %v3177, 4294901760
    %5298 = vmatpush1.xpose.msra.mxu0 %v5297
    %5299 = vmatprep.subr.mxu0 0.0
    %v5300 = vand.u32 %v3174, 4294901760
    %5301 = vmatpush1.xpose.msra.mxu0 %v5300
    %5302 = vmatprep.subr.mxu0 0.0
    %v5303 = vand.u32 %v3171, 4294901760
    %5304 = vmatpush1.xpose.msra.mxu0 %v5303
    %5305 = vmatprep.subr.mxu0 0.0
    %v5306 = vand.u32 %v3168, 4294901760
    %5307 = vmatpush1.xpose.msra.mxu0 %v5306
    %5308 = vmatprep.subr.mxu0 0.0
    %5309 = vmatpush2.xpose.msra.mxu0 0.0
    %5310 = vmatprep.subr.mxu0 0.0
    %5311 = vmatpush2.xpose.msra.mxu0 0.0
    %5312 = vmatprep.subr.mxu0 0.0
    %5313 = vmatpush2.xpose.msra.mxu0 0.0
    %5314 = vmatprep.subr.mxu0 0.0
    %5315 = vmatpush2.xpose.msra.mxu0 0.0
    %5316 = vmatprep.subr.mxu0 0.0
    %5317 = vmatpush2.xpose.msra.mxu0 0.0
    %5318 = vmatprep.subr.mxu0 0.0
    %5319 = vmatpush2.xpose.msra.mxu0 0.0
    %5320 = vmatprep.subr.mxu0 0.0
    %5321 = vmatpush2.xpose.msra.mxu0 0.0
    %5322 = vmatprep.subr.mxu0 0.0
    %5323 = vmatpush2.xpose.msra.mxu0 0.0
    %5324 = vmatprep.subr.mxu0 0.0
    %5325 = vmatpush2.xpose.msra.mxu0 0.0
    %5326 = vmatprep.subr.mxu0 0.0
    %5327 = vmatpush2.xpose.msra.mxu0 0.0
    %5328 = vmatprep.subr.mxu0 0.0
    %5329 = vmatpush2.xpose.msra.mxu0 0.0
    %5330 = vmatprep.subr.mxu0 0.0
    %5331 = vmatpush2.xpose.msra.mxu0 0.0
    %5332 = vmatprep.subr.mxu0 0.0
    %5333 = vmatpush2.xpose.msra.mxu0 0.0
    %5334 = vmatprep.subr.mxu0 0.0
    %5335 = vmatpush2.xpose.msra.mxu0 0.0
    %5336 = vmatprep.subr.mxu0 0.0
    %5337 = vmatpush2.xpose.msra.mxu0 0.0
    %5338 = vmatprep.subr.mxu0 0.0
    %5339 = vmatpush2.xpose.msra.mxu0 0.0
    %5340 = vmatprep.mubr.f32.mxu0 0.0
    %v5341 = vand.u32 %v4820, 4294901760
    %5342 = vmatmul.mubr.f32.gmra.mxu0 %v5341
    %v5343 = vpop.f32.mrf.mxu0
    %v5344 = vadd.f32 %v5263, %v5343
    %v5345 = vpop.f32.mrf.mxu0
    %5346 = vmatprep.mubr.f32.mxu0 0.0
    %v5347 = vand.u32 %v4823, 4294901760
    %5348 = vmatmul.mubr.f32.gmra.mxu0 %v5347
    %v5349 = vpop.f32.mrf.mxu0
    %v5350 = vadd.f32 %v5269, %v5349
    %v5351 = vpop.f32.mrf.mxu0
    %5352 = vdwg.mxu0
    %v5353 = vmul.f32 %v5344, 0.35355338
    %v5354 = vmul.f32 %v5350, 0.35355338
    %v5355 = vadd.f32 %v5353, %v30
    %v5356 = vadd.f32 %v5354, %v31
    %v5357 = vsel %vm39, %v5355, -inf
    %5358 = vmax.xlane.f32.xlu0 %v5357
    %v5359 = vpop.xlane.xlu0 %5358
    %v5360 = vsel %vm39, %v5356, -inf
    %5361 = vmax.xlane.f32.xlu0 %v5360
    %v5362 = vpop.xlane.xlu0 %5361
    %v5363 = vsub.f32 %v5355, %v5359
    %v5364 = vsub.f32 %v5356, %v5362
    %v5365 = vmul.f32 %v5363, 1.442695
    %v5366 = vpow.pop %v5365
    %v5367 = vmul.f32 %v5364, 1.442695
    %v5368 = vpow.pop %v5367
    %v5369 = vsel %vm39, %v5366, 0.0
    %5370 = vadd.xlane.f32.xlu0 %v5369
    %v5371 = vpop.xlane.xlu0 %5370
    %v5372 = vsel %vm39, %v5368, 0.0
    %5373 = vadd.xlane.f32.xlu0 %v5372
    %v5374 = vpop.xlane.xlu0 %5373
    %v5375 = vrcp.pop %v5371
    %v5376 = vmul.f32 %v5366, %v5375
    %v5377 = vrcp.pop %v5374
    %v5378 = vmul.f32 %v5368, %v5377
    %v5380 = vsel %vm39, %v5376, 0
    %v5383 = vsel %vm39, %v5378, 0
    %5385 = vmatprep.subr.mxu0 0.0
    %5386 = vmatpush1.msra.mxu0 0.0
    %5387 = vmatprep.subr.mxu0 0.0
    %5388 = vmatpush1.msra.mxu0 0.0
    %5389 = vmatprep.subr.mxu0 0.0
    %5390 = vmatpush1.msra.mxu0 0.0
    %5391 = vmatprep.subr.mxu0 0.0
    %5392 = vmatpush1.msra.mxu0 0.0
    %5393 = vmatprep.subr.mxu0 0.0
    %5394 = vmatpush1.msra.mxu0 0.0
    %5395 = vmatprep.subr.mxu0 0.0
    %5396 = vmatpush1.msra.mxu0 0.0
    %5397 = vmatprep.subr.mxu0 0.0
    %5398 = vmatpush1.msra.mxu0 0.0
    %5399 = vmatprep.subr.mxu0 0.0
    %5400 = vmatpush1.msra.mxu0 0.0
    %5401 = vmatprep.subr.mxu0 0.0
    %5402 = vmatpush1.msra.mxu0 0.0
    %5403 = vmatprep.subr.mxu0 0.0
    %5404 = vmatpush1.msra.mxu0 0.0
    %5405 = vmatprep.subr.mxu0 0.0
    %5406 = vmatpush1.msra.mxu0 0.0
    %5407 = vmatprep.subr.mxu0 0.0
    %5408 = vmatpush1.msra.mxu0 0.0
    %5409 = vmatprep.subr.mxu0 0.0
    %v5410 = vand.u32 %v1282, 4294901760
    %5411 = vmatpush1.msra.mxu0 %v5410
    %5412 = vmatprep.subr.mxu0 0.0
    %v5413 = vand.u32 %v1276, 4294901760
    %5414 = vmatpush1.msra.mxu0 %v5413
    %5415 = vmatprep.subr.mxu0 0.0
    %v5416 = vand.u32 %v1270, 4294901760
    %5417 = vmatpush1.msra.mxu0 %v5416
    %5418 = vmatprep.subr.mxu0 0.0
    %v5419 = vand.u32 %v1264, 4294901760
    %5420 = vmatpush1.msra.mxu0 %v5419
    %5421 = vmatprep.subr.mxu0 0.0
    %5422 = vmatpush2.msra.mxu0 0.0
    %5423 = vmatprep.subr.mxu0 0.0
    %5424 = vmatpush2.msra.mxu0 0.0
    %5425 = vmatprep.subr.mxu0 0.0
    %5426 = vmatpush2.msra.mxu0 0.0
    %5427 = vmatprep.subr.mxu0 0.0
    %5428 = vmatpush2.msra.mxu0 0.0
    %5429 = vmatprep.subr.mxu0 0.0
    %5430 = vmatpush2.msra.mxu0 0.0
    %5431 = vmatprep.subr.mxu0 0.0
    %5432 = vmatpush2.msra.mxu0 0.0
    %5433 = vmatprep.subr.mxu0 0.0
    %5434 = vmatpush2.msra.mxu0 0.0
    %5435 = vmatprep.subr.mxu0 0.0
    %5436 = vmatpush2.msra.mxu0 0.0
    %5437 = vmatprep.subr.mxu0 0.0
    %5438 = vmatpush2.msra.mxu0 0.0
    %5439 = vmatprep.subr.mxu0 0.0
    %5440 = vmatpush2.msra.mxu0 0.0
    %5441 = vmatprep.subr.mxu0 0.0
    %5442 = vmatpush2.msra.mxu0 0.0
    %5443 = vmatprep.subr.mxu0 0.0
    %5444 = vmatpush2.msra.mxu0 0.0
    %5445 = vmatprep.subr.mxu0 0.0
    %5446 = vmatpush2.msra.mxu0 0.0
    %5447 = vmatprep.subr.mxu0 0.0
    %5448 = vmatpush2.msra.mxu0 0.0
    %5449 = vmatprep.subr.mxu0 0.0
    %5450 = vmatpush2.msra.mxu0 0.0
    %5451 = vmatprep.subr.mxu0 0.0
    %5452 = vmatpush2.msra.mxu0 0.0
    %5453 = vmatprep.mubr.f32.mxu0 0.0
    %v5454 = vand.u32 %v5380, 4294901760
    %v5455 = vsub.f32 %v5380, %v5454
    %v5456 = vand.u32 %v5455, 4294901760
    %v5457 = vsub.f32 %v5455, %v5456
    %v5458 = vand.u32 %v5457, 4294901760
    %5459 = vmatmul.mubr.f32.gmra.mxu0 %v5458
    %v5460 = vpop.f32.mrf.mxu0
    %v5461 = vadd.f32 0.0, %v5460
    %v5462 = vpop.f32.mrf.mxu0
    %5463 = vmatprep.mubr.f32.mxu0 0.0
    %v5464 = vand.u32 %v5383, 4294901760
    %v5465 = vsub.f32 %v5383, %v5464
    %v5466 = vand.u32 %v5465, 4294901760
    %v5467 = vsub.f32 %v5465, %v5466
    %v5468 = vand.u32 %v5467, 4294901760
    %5469 = vmatmul.mubr.f32.gmra.mxu0 %v5468
    %v5470 = vpop.f32.mrf.mxu0
    %v5471 = vadd.f32 0.0, %v5470
    %v5472 = vpop.f32.mrf.mxu0
    %5473 = vdwg.mxu0
    %5474 = vmatprep.subr.mxu0 0.0
    %5475 = vmatpush1.msra.mxu0 0.0
    %5476 = vmatprep.subr.mxu0 0.0
    %5477 = vmatpush1.msra.mxu0 0.0
    %5478 = vmatprep.subr.mxu0 0.0
    %5479 = vmatpush1.msra.mxu0 0.0
    %5480 = vmatprep.subr.mxu0 0.0
    %5481 = vmatpush1.msra.mxu0 0.0
    %5482 = vmatprep.subr.mxu0 0.0
    %5483 = vmatpush1.msra.mxu0 0.0
    %5484 = vmatprep.subr.mxu0 0.0
    %5485 = vmatpush1.msra.mxu0 0.0
    %5486 = vmatprep.subr.mxu0 0.0
    %5487 = vmatpush1.msra.mxu0 0.0
    %5488 = vmatprep.subr.mxu0 0.0
    %5489 = vmatpush1.msra.mxu0 0.0
    %5490 = vmatprep.subr.mxu0 0.0
    %5491 = vmatpush1.msra.mxu0 0.0
    %5492 = vmatprep.subr.mxu0 0.0
    %5493 = vmatpush1.msra.mxu0 0.0
    %5494 = vmatprep.subr.mxu0 0.0
    %5495 = vmatpush1.msra.mxu0 0.0
    %5496 = vmatprep.subr.mxu0 0.0
    %5497 = vmatpush1.msra.mxu0 0.0
    %5498 = vmatprep.subr.mxu0 0.0
    %v5499 = vand.u32 %v1282, 4294901760
    %v5500 = vsub.f32 %v1282, %v5499
    %v5501 = vand.u32 %v5500, 4294901760
    %v5502 = vsub.f32 %v5500, %v5501
    %v5503 = vand.u32 %v5502, 4294901760
    %5504 = vmatpush1.msra.mxu0 %v5503
    %5505 = vmatprep.subr.mxu0 0.0
    %v5506 = vand.u32 %v1276, 4294901760
    %v5507 = vsub.f32 %v1276, %v5506
    %v5508 = vand.u32 %v5507, 4294901760
    %v5509 = vsub.f32 %v5507, %v5508
    %v5510 = vand.u32 %v5509, 4294901760
    %5511 = vmatpush1.msra.mxu0 %v5510
    %5512 = vmatprep.subr.mxu0 0.0
    %v5513 = vand.u32 %v1270, 4294901760
    %v5514 = vsub.f32 %v1270, %v5513
    %v5515 = vand.u32 %v5514, 4294901760
    %v5516 = vsub.f32 %v5514, %v5515
    %v5517 = vand.u32 %v5516, 4294901760
    %5518 = vmatpush1.msra.mxu0 %v5517
    %5519 = vmatprep.subr.mxu0 0.0
    %v5520 = vand.u32 %v1264, 4294901760
    %v5521 = vsub.f32 %v1264, %v5520
    %v5522 = vand.u32 %v5521, 4294901760
    %v5523 = vsub.f32 %v5521, %v5522
    %v5524 = vand.u32 %v5523, 4294901760
    %5525 = vmatpush1.msra.mxu0 %v5524
    %5526 = vmatprep.subr.mxu0 0.0
    %5527 = vmatpush2.msra.mxu0 0.0
    %5528 = vmatprep.subr.mxu0 0.0
    %5529 = vmatpush2.msra.mxu0 0.0
    %5530 = vmatprep.subr.mxu0 0.0
    %5531 = vmatpush2.msra.mxu0 0.0
    %5532 = vmatprep.subr.mxu0 0.0
    %5533 = vmatpush2.msra.mxu0 0.0
    %5534 = vmatprep.subr.mxu0 0.0
    %5535 = vmatpush2.msra.mxu0 0.0
    %5536 = vmatprep.subr.mxu0 0.0
    %5537 = vmatpush2.msra.mxu0 0.0
    %5538 = vmatprep.subr.mxu0 0.0
    %5539 = vmatpush2.msra.mxu0 0.0
    %5540 = vmatprep.subr.mxu0 0.0
    %5541 = vmatpush2.msra.mxu0 0.0
    %5542 = vmatprep.subr.mxu0 0.0
    %5543 = vmatpush2.msra.mxu0 0.0
    %5544 = vmatprep.subr.mxu0 0.0
    %5545 = vmatpush2.msra.mxu0 0.0
    %5546 = vmatprep.subr.mxu0 0.0
    %5547 = vmatpush2.msra.mxu0 0.0
    %5548 = vmatprep.subr.mxu0 0.0
    %5549 = vmatpush2.msra.mxu0 0.0
    %5550 = vmatprep.subr.mxu0 0.0
    %5551 = vmatpush2.msra.mxu0 0.0
    %5552 = vmatprep.subr.mxu0 0.0
    %5553 = vmatpush2.msra.mxu0 0.0
    %5554 = vmatprep.subr.mxu0 0.0
    %5555 = vmatpush2.msra.mxu0 0.0
    %5556 = vmatprep.subr.mxu0 0.0
    %5557 = vmatpush2.msra.mxu0 0.0
    %5558 = vmatprep.mubr.f32.mxu0 0.0
    %v5559 = vand.u32 %v5380, 4294901760
    %5560 = vmatmul.mubr.f32.gmra.mxu0 %v5559
    %v5561 = vpop.f32.mrf.mxu0
    %v5562 = vadd.f32 %v5461, %v5561
    %v5563 = vpop.f32.mrf.mxu0
    %5564 = vmatprep.mubr.f32.mxu0 0.0
    %v5565 = vand.u32 %v5383, 4294901760
    %5566 = vmatmul.mubr.f32.gmra.mxu0 %v5565
    %v5567 = vpop.f32.mrf.mxu0
    %v5568 = vadd.f32 %v5471, %v5567
    %v5569 = vpop.f32.mrf.mxu0
    %5570 = vdwg.mxu0
    %5571 = vmatprep.subr.mxu0 0.0
    %5572 = vmatpush1.msra.mxu0 0.0
    %5573 = vmatprep.subr.mxu0 0.0
    %5574 = vmatpush1.msra.mxu0 0.0
    %5575 = vmatprep.subr.mxu0 0.0
    %5576 = vmatpush1.msra.mxu0 0.0
    %5577 = vmatprep.subr.mxu0 0.0
    %5578 = vmatpush1.msra.mxu0 0.0
    %5579 = vmatprep.subr.mxu0 0.0
    %5580 = vmatpush1.msra.mxu0 0.0
    %5581 = vmatprep.subr.mxu0 0.0
    %5582 = vmatpush1.msra.mxu0 0.0
    %5583 = vmatprep.subr.mxu0 0.0
    %5584 = vmatpush1.msra.mxu0 0.0
    %5585 = vmatprep.subr.mxu0 0.0
    %5586 = vmatpush1.msra.mxu0 0.0
    %5587 = vmatprep.subr.mxu0 0.0
    %5588 = vmatpush1.msra.mxu0 0.0
    %5589 = vmatprep.subr.mxu0 0.0
    %5590 = vmatpush1.msra.mxu0 0.0
    %5591 = vmatprep.subr.mxu0 0.0
    %5592 = vmatpush1.msra.mxu0 0.0
    %5593 = vmatprep.subr.mxu0 0.0
    %5594 = vmatpush1.msra.mxu0 0.0
    %5595 = vmatprep.subr.mxu0 0.0
    %v5596 = vand.u32 %v1282, 4294901760
    %v5597 = vsub.f32 %v1282, %v5596
    %5598 = vmatpush1.msra.mxu0 %v5597
    %5599 = vmatprep.subr.mxu0 0.0
    %v5600 = vand.u32 %v1276, 4294901760
    %v5601 = vsub.f32 %v1276, %v5600
    %5602 = vmatpush1.msra.mxu0 %v5601
    %5603 = vmatprep.subr.mxu0 0.0
    %v5604 = vand.u32 %v1270, 4294901760
    %v5605 = vsub.f32 %v1270, %v5604
    %5606 = vmatpush1.msra.mxu0 %v5605
    %5607 = vmatprep.subr.mxu0 0.0
    %v5608 = vand.u32 %v1264, 4294901760
    %v5609 = vsub.f32 %v1264, %v5608
    %5610 = vmatpush1.msra.mxu0 %v5609
    %5611 = vmatprep.subr.mxu0 0.0
    %5612 = vmatpush2.msra.mxu0 0.0
    %5613 = vmatprep.subr.mxu0 0.0
    %5614 = vmatpush2.msra.mxu0 0.0
    %5615 = vmatprep.subr.mxu0 0.0
    %5616 = vmatpush2.msra.mxu0 0.0
    %5617 = vmatprep.subr.mxu0 0.0
    %5618 = vmatpush2.msra.mxu0 0.0
    %5619 = vmatprep.subr.mxu0 0.0
    %5620 = vmatpush2.msra.mxu0 0.0
    %5621 = vmatprep.subr.mxu0 0.0
    %5622 = vmatpush2.msra.mxu0 0.0
    %5623 = vmatprep.subr.mxu0 0.0
    %5624 = vmatpush2.msra.mxu0 0.0
    %5625 = vmatprep.subr.mxu0 0.0
    %5626 = vmatpush2.msra.mxu0 0.0
    %5627 = vmatprep.subr.mxu0 0.0
    %5628 = vmatpush2.msra.mxu0 0.0
    %5629 = vmatprep.subr.mxu0 0.0
    %5630 = vmatpush2.msra.mxu0 0.0
    %5631 = vmatprep.subr.mxu0 0.0
    %5632 = vmatpush2.msra.mxu0 0.0
    %5633 = vmatprep.subr.mxu0 0.0
    %5634 = vmatpush2.msra.mxu0 0.0
    %5635 = vmatprep.subr.mxu0 0.0
    %5636 = vmatpush2.msra.mxu0 0.0
    %5637 = vmatprep.subr.mxu0 0.0
    %5638 = vmatpush2.msra.mxu0 0.0
    %5639 = vmatprep.subr.mxu0 0.0
    %5640 = vmatpush2.msra.mxu0 0.0
    %5641 = vmatprep.subr.mxu0 0.0
    %5642 = vmatpush2.msra.mxu0 0.0
    %5643 = vmatprep.mubr.f32.mxu0 0.0
    %v5644 = vand.u32 %v5380, 4294901760
    %v5645 = vsub.f32 %v5380, %v5644
    %5646 = vmatmul.mubr.f32.gmra.mxu0 %v5645
    %v5647 = vpop.f32.mrf.mxu0
    %v5648 = vadd.f32 %v5562, %v5647
    %v5649 = vpop.f32.mrf.mxu0
    %5650 = vmatprep.mubr.f32.mxu0 0.0
    %v5651 = vand.u32 %v5383, 4294901760
    %v5652 = vsub.f32 %v5383, %v5651
    %5653 = vmatmul.mubr.f32.gmra.mxu0 %v5652
    %v5654 = vpop.f32.mrf.mxu0
    %v5655 = vadd.f32 %v5568, %v5654
    %v5656 = vpop.f32.mrf.mxu0
    %5657 = vdwg.mxu0
    %5658 = vmatprep.subr.mxu0 0.0
    %5659 = vmatpush1.msra.mxu0 0.0
    %5660 = vmatprep.subr.mxu0 0.0
    %5661 = vmatpush1.msra.mxu0 0.0
    %5662 = vmatprep.subr.mxu0 0.0
    %5663 = vmatpush1.msra.mxu0 0.0
    %5664 = vmatprep.subr.mxu0 0.0
    %5665 = vmatpush1.msra.mxu0 0.0
    %5666 = vmatprep.subr.mxu0 0.0
    %5667 = vmatpush1.msra.mxu0 0.0
    %5668 = vmatprep.subr.mxu0 0.0
    %5669 = vmatpush1.msra.mxu0 0.0
    %5670 = vmatprep.subr.mxu0 0.0
    %5671 = vmatpush1.msra.mxu0 0.0
    %5672 = vmatprep.subr.mxu0 0.0
    %5673 = vmatpush1.msra.mxu0 0.0
    %5674 = vmatprep.subr.mxu0 0.0
    %5675 = vmatpush1.msra.mxu0 0.0
    %5676 = vmatprep.subr.mxu0 0.0
    %5677 = vmatpush1.msra.mxu0 0.0
    %5678 = vmatprep.subr.mxu0 0.0
    %5679 = vmatpush1.msra.mxu0 0.0
    %5680 = vmatprep.subr.mxu0 0.0
    %5681 = vmatpush1.msra.mxu0 0.0
    %5682 = vmatprep.subr.mxu0 0.0
    %v5683 = vand.u32 %v1282, 4294901760
    %5684 = vmatpush1.msra.mxu0 %v5683
    %5685 = vmatprep.subr.mxu0 0.0
    %v5686 = vand.u32 %v1276, 4294901760
    %5687 = vmatpush1.msra.mxu0 %v5686
    %5688 = vmatprep.subr.mxu0 0.0
    %v5689 = vand.u32 %v1270, 4294901760
    %5690 = vmatpush1.msra.mxu0 %v5689
    %5691 = vmatprep.subr.mxu0 0.0
    %v5692 = vand.u32 %v1264, 4294901760
    %5693 = vmatpush1.msra.mxu0 %v5692
    %5694 = vmatprep.subr.mxu0 0.0
    %5695 = vmatpush2.msra.mxu0 0.0
    %5696 = vmatprep.subr.mxu0 0.0
    %5697 = vmatpush2.msra.mxu0 0.0
    %5698 = vmatprep.subr.mxu0 0.0
    %5699 = vmatpush2.msra.mxu0 0.0
    %5700 = vmatprep.subr.mxu0 0.0
    %5701 = vmatpush2.msra.mxu0 0.0
    %5702 = vmatprep.subr.mxu0 0.0
    %5703 = vmatpush2.msra.mxu0 0.0
    %5704 = vmatprep.subr.mxu0 0.0
    %5705 = vmatpush2.msra.mxu0 0.0
    %5706 = vmatprep.subr.mxu0 0.0
    %5707 = vmatpush2.msra.mxu0 0.0
    %5708 = vmatprep.subr.mxu0 0.0
    %5709 = vmatpush2.msra.mxu0 0.0
    %5710 = vmatprep.subr.mxu0 0.0
    %5711 = vmatpush2.msra.mxu0 0.0
    %5712 = vmatprep.subr.mxu0 0.0
    %5713 = vmatpush2.msra.mxu0 0.0
    %5714 = vmatprep.subr.mxu0 0.0
    %5715 = vmatpush2.msra.mxu0 0.0
    %5716 = vmatprep.subr.mxu0 0.0
    %5717 = vmatpush2.msra.mxu0 0.0
    %5718 = vmatprep.subr.mxu0 0.0
    %5719 = vmatpush2.msra.mxu0 0.0
    %5720 = vmatprep.subr.mxu0 0.0
    %5721 = vmatpush2.msra.mxu0 0.0
    %5722 = vmatprep.subr.mxu0 0.0
    %5723 = vmatpush2.msra.mxu0 0.0
    %5724 = vmatprep.subr.mxu0 0.0
    %5725 = vmatpush2.msra.mxu0 0.0
    %5726 = vmatprep.mubr.f32.mxu0 0.0
    %v5727 = vand.u32 %v5380, 4294901760
    %v5728 = vsub.f32 %v5380, %v5727
    %v5729 = vand.u32 %v5728, 4294901760
    %5730 = vmatmul.mubr.f32.gmra.mxu0 %v5729
    %v5731 = vpop.f32.mrf.mxu0
    %v5732 = vadd.f32 %v5648, %v5731
    %v5733 = vpop.f32.mrf.mxu0
    %5734 = vmatprep.mubr.f32.mxu0 0.0
    %v5735 = vand.u32 %v5383, 4294901760
    %v5736 = vsub.f32 %v5383, %v5735
    %v5737 = vand.u32 %v5736, 4294901760
    %5738 = vmatmul.mubr.f32.gmra.mxu0 %v5737
    %v5739 = vpop.f32.mrf.mxu0
    %v5740 = vadd.f32 %v5655, %v5739
    %v5741 = vpop.f32.mrf.mxu0
    %5742 = vdwg.mxu0
    %5743 = vmatprep.subr.mxu0 0.0
    %5744 = vmatpush1.msra.mxu0 0.0
    %5745 = vmatprep.subr.mxu0 0.0
    %5746 = vmatpush1.msra.mxu0 0.0
    %5747 = vmatprep.subr.mxu0 0.0
    %5748 = vmatpush1.msra.mxu0 0.0
    %5749 = vmatprep.subr.mxu0 0.0
    %5750 = vmatpush1.msra.mxu0 0.0
    %5751 = vmatprep.subr.mxu0 0.0
    %5752 = vmatpush1.msra.mxu0 0.0
    %5753 = vmatprep.subr.mxu0 0.0
    %5754 = vmatpush1.msra.mxu0 0.0
    %5755 = vmatprep.subr.mxu0 0.0
    %5756 = vmatpush1.msra.mxu0 0.0
    %5757 = vmatprep.subr.mxu0 0.0
    %5758 = vmatpush1.msra.mxu0 0.0
    %5759 = vmatprep.subr.mxu0 0.0
    %5760 = vmatpush1.msra.mxu0 0.0
    %5761 = vmatprep.subr.mxu0 0.0
    %5762 = vmatpush1.msra.mxu0 0.0
    %5763 = vmatprep.subr.mxu0 0.0
    %5764 = vmatpush1.msra.mxu0 0.0
    %5765 = vmatprep.subr.mxu0 0.0
    %5766 = vmatpush1.msra.mxu0 0.0
    %5767 = vmatprep.subr.mxu0 0.0
    %v5768 = vand.u32 %v1282, 4294901760
    %v5769 = vsub.f32 %v1282, %v5768
    %v5770 = vand.u32 %v5769, 4294901760
    %5771 = vmatpush1.msra.mxu0 %v5770
    %5772 = vmatprep.subr.mxu0 0.0
    %v5773 = vand.u32 %v1276, 4294901760
    %v5774 = vsub.f32 %v1276, %v5773
    %v5775 = vand.u32 %v5774, 4294901760
    %5776 = vmatpush1.msra.mxu0 %v5775
    %5777 = vmatprep.subr.mxu0 0.0
    %v5778 = vand.u32 %v1270, 4294901760
    %v5779 = vsub.f32 %v1270, %v5778
    %v5780 = vand.u32 %v5779, 4294901760
    %5781 = vmatpush1.msra.mxu0 %v5780
    %5782 = vmatprep.subr.mxu0 0.0
    %v5783 = vand.u32 %v1264, 4294901760
    %v5784 = vsub.f32 %v1264, %v5783
    %v5785 = vand.u32 %v5784, 4294901760
    %5786 = vmatpush1.msra.mxu0 %v5785
    %5787 = vmatprep.subr.mxu0 0.0
    %5788 = vmatpush2.msra.mxu0 0.0
    %5789 = vmatprep.subr.mxu0 0.0
    %5790 = vmatpush2.msra.mxu0 0.0
    %5791 = vmatprep.subr.mxu0 0.0
    %5792 = vmatpush2.msra.mxu0 0.0
    %5793 = vmatprep.subr.mxu0 0.0
    %5794 = vmatpush2.msra.mxu0 0.0
    %5795 = vmatprep.subr.mxu0 0.0
    %5796 = vmatpush2.msra.mxu0 0.0
    %5797 = vmatprep.subr.mxu0 0.0
    %5798 = vmatpush2.msra.mxu0 0.0
    %5799 = vmatprep.subr.mxu0 0.0
    %5800 = vmatpush2.msra.mxu0 0.0
    %5801 = vmatprep.subr.mxu0 0.0
    %5802 = vmatpush2.msra.mxu0 0.0
    %5803 = vmatprep.subr.mxu0 0.0
    %5804 = vmatpush2.msra.mxu0 0.0
    %5805 = vmatprep.subr.mxu0 0.0
    %5806 = vmatpush2.msra.mxu0 0.0
    %5807 = vmatprep.subr.mxu0 0.0
    %5808 = vmatpush2.msra.mxu0 0.0
    %5809 = vmatprep.subr.mxu0 0.0
    %5810 = vmatpush2.msra.mxu0 0.0
    %5811 = vmatprep.subr.mxu0 0.0
    %5812 = vmatpush2.msra.mxu0 0.0
    %5813 = vmatprep.subr.mxu0 0.0
    %5814 = vmatpush2.msra.mxu0 0.0
    %5815 = vmatprep.subr.mxu0 0.0
    %5816 = vmatpush2.msra.mxu0 0.0
    %5817 = vmatprep.subr.mxu0 0.0
    %5818 = vmatpush2.msra.mxu0 0.0
    %5819 = vmatprep.mubr.f32.mxu0 0.0
    %v5820 = vand.u32 %v5380, 4294901760
    %5821 = vmatmul.mubr.f32.gmra.mxu0 %v5820
    %v5822 = vpop.f32.mrf.mxu0
    %v5823 = vadd.f32 %v5732, %v5822
    %v5824 = vpop.f32.mrf.mxu0
    %5825 = vmatprep.mubr.f32.mxu0 0.0
    %v5826 = vand.u32 %v5383, 4294901760
    %5827 = vmatmul.mubr.f32.gmra.mxu0 %v5826
    %v5828 = vpop.f32.mrf.mxu0
    %v5829 = vadd.f32 %v5740, %v5828
    %v5830 = vpop.f32.mrf.mxu0
    %5831 = vdwg.mxu0
    %5832 = vmatprep.subr.mxu0 0.0
    %5833 = vmatpush1.msra.mxu0 0.0
    %5834 = vmatprep.subr.mxu0 0.0
    %5835 = vmatpush1.msra.mxu0 0.0
    %5836 = vmatprep.subr.mxu0 0.0
    %5837 = vmatpush1.msra.mxu0 0.0
    %5838 = vmatprep.subr.mxu0 0.0
    %5839 = vmatpush1.msra.mxu0 0.0
    %5840 = vmatprep.subr.mxu0 0.0
    %5841 = vmatpush1.msra.mxu0 0.0
    %5842 = vmatprep.subr.mxu0 0.0
    %5843 = vmatpush1.msra.mxu0 0.0
    %5844 = vmatprep.subr.mxu0 0.0
    %5845 = vmatpush1.msra.mxu0 0.0
    %5846 = vmatprep.subr.mxu0 0.0
    %5847 = vmatpush1.msra.mxu0 0.0
    %5848 = vmatprep.subr.mxu0 0.0
    %5849 = vmatpush1.msra.mxu0 0.0
    %5850 = vmatprep.subr.mxu0 0.0
    %5851 = vmatpush1.msra.mxu0 0.0
    %5852 = vmatprep.subr.mxu0 0.0
    %5853 = vmatpush1.msra.mxu0 0.0
    %5854 = vmatprep.subr.mxu0 0.0
    %5855 = vmatpush1.msra.mxu0 0.0
    %5856 = vmatprep.subr.mxu0 0.0
    %v5857 = vand.u32 %v1282, 4294901760
    %5858 = vmatpush1.msra.mxu0 %v5857
    %5859 = vmatprep.subr.mxu0 0.0
    %v5860 = vand.u32 %v1276, 4294901760
    %5861 = vmatpush1.msra.mxu0 %v5860
    %5862 = vmatprep.subr.mxu0 0.0
    %v5863 = vand.u32 %v1270, 4294901760
    %5864 = vmatpush1.msra.mxu0 %v5863
    %5865 = vmatprep.subr.mxu0 0.0
    %v5866 = vand.u32 %v1264, 4294901760
    %5867 = vmatpush1.msra.mxu0 %v5866
    %5868 = vmatprep.subr.mxu0 0.0
    %5869 = vmatpush2.msra.mxu0 0.0
    %5870 = vmatprep.subr.mxu0 0.0
    %5871 = vmatpush2.msra.mxu0 0.0
    %5872 = vmatprep.subr.mxu0 0.0
    %5873 = vmatpush2.msra.mxu0 0.0
    %5874 = vmatprep.subr.mxu0 0.0
    %5875 = vmatpush2.msra.mxu0 0.0
    %5876 = vmatprep.subr.mxu0 0.0
    %5877 = vmatpush2.msra.mxu0 0.0
    %5878 = vmatprep.subr.mxu0 0.0
    %5879 = vmatpush2.msra.mxu0 0.0
    %5880 = vmatprep.subr.mxu0 0.0
    %5881 = vmatpush2.msra.mxu0 0.0
    %5882 = vmatprep.subr.mxu0 0.0
    %5883 = vmatpush2.msra.mxu0 0.0
    %5884 = vmatprep.subr.mxu0 0.0
    %5885 = vmatpush2.msra.mxu0 0.0
    %5886 = vmatprep.subr.mxu0 0.0
    %5887 = vmatpush2.msra.mxu0 0.0
    %5888 = vmatprep.subr.mxu0 0.0
    %5889 = vmatpush2.msra.mxu0 0.0
    %5890 = vmatprep.subr.mxu0 0.0
    %5891 = vmatpush2.msra.mxu0 0.0
    %5892 = vmatprep.subr.mxu0 0.0
    %5893 = vmatpush2.msra.mxu0 0.0
    %5894 = vmatprep.subr.mxu0 0.0
    %5895 = vmatpush2.msra.mxu0 0.0
    %5896 = vmatprep.subr.mxu0 0.0
    %5897 = vmatpush2.msra.mxu0 0.0
    %5898 = vmatprep.subr.mxu0 0.0
    %5899 = vmatpush2.msra.mxu0 0.0
    %5900 = vmatprep.mubr.f32.mxu0 0.0
    %v5901 = vand.u32 %v5380, 4294901760
    %5902 = vmatmul.mubr.f32.gmra.mxu0 %v5901
    %v5903 = vpop.f32.mrf.mxu0
    %v5904 = vadd.f32 %v5823, %v5903
    %v5905 = vpop.f32.mrf.mxu0
    %5906 = vmatprep.mubr.f32.mxu0 0.0
    %v5907 = vand.u32 %v5383, 4294901760
    %5908 = vmatmul.mubr.f32.gmra.mxu0 %v5907
    %v5909 = vpop.f32.mrf.mxu0
    %v5910 = vadd.f32 %v5829, %v5909
    %v5911 = vpop.f32.mrf.mxu0
    %5912 = vdwg.mxu0
    %s5913 = scalar_lea.vmem %s4, 8
    %v5914 = vld [vmem:[%s5913] sm:$0xff]
    %v5916 = vsel %vm1289, %v5904, 0
    %v5919 = vsel %vm1289, %v5910, 0
    %5921 = vmatprep.subr.mxu0 0.0
    %5922 = vmatpush1.msra.mxu0 0.0
    %5923 = vmatprep.subr.mxu0 0.0
    %5924 = vmatpush1.msra.mxu0 0.0
    %5925 = vmatprep.subr.mxu0 0.0
    %5926 = vmatpush1.msra.mxu0 0.0
    %5927 = vmatprep.subr.mxu0 0.0
    %5928 = vmatpush1.msra.mxu0 0.0
    %5929 = vmatprep.subr.mxu0 0.0
    %5930 = vmatpush1.msra.mxu0 0.0
    %5931 = vmatprep.subr.mxu0 0.0
    %5932 = vmatpush1.msra.mxu0 0.0
    %5933 = vmatprep.subr.mxu0 0.0
    %5934 = vmatpush1.msra.mxu0 0.0
    %5935 = vmatprep.subr.mxu0 0.0
    %5936 = vmatpush1.msra.mxu0 0.0
    %5937 = vmatprep.subr.mxu0 0.0
    %5938 = vmatpush1.msra.mxu0 0.0
    %5939 = vmatprep.subr.mxu0 0.0
    %5940 = vmatpush1.msra.mxu0 0.0
    %5941 = vmatprep.subr.mxu0 0.0
    %5942 = vmatpush1.msra.mxu0 0.0
    %5943 = vmatprep.subr.mxu0 0.0
    %5944 = vmatpush1.msra.mxu0 0.0
    %5945 = vmatprep.subr.mxu0 0.0
    %5946 = vmatpush1.msra.mxu0 0.0
    %5947 = vmatprep.subr.mxu0 0.0
    %5948 = vmatpush1.msra.mxu0 0.0
    %5949 = vmatprep.subr.mxu0 0.0
    %5950 = vmatpush1.msra.mxu0 0.0
    %5951 = vmatprep.subr.mxu0 0.0
    %v5952 = vand.u32 %v5914, 4294901760
    %5953 = vmatpush1.msra.mxu0 %v5952
    %5954 = vmatprep.subr.mxu0 0.0
    %5955 = vmatpush2.msra.mxu0 0.0
    %5956 = vmatprep.subr.mxu0 0.0
    %5957 = vmatpush2.msra.mxu0 0.0
    %5958 = vmatprep.subr.mxu0 0.0
    %5959 = vmatpush2.msra.mxu0 0.0
    %5960 = vmatprep.subr.mxu0 0.0
    %5961 = vmatpush2.msra.mxu0 0.0
    %5962 = vmatprep.subr.mxu0 0.0
    %5963 = vmatpush2.msra.mxu0 0.0
    %5964 = vmatprep.subr.mxu0 0.0
    %5965 = vmatpush2.msra.mxu0 0.0
    %5966 = vmatprep.subr.mxu0 0.0
    %5967 = vmatpush2.msra.mxu0 0.0
    %5968 = vmatprep.subr.mxu0 0.0
    %5969 = vmatpush2.msra.mxu0 0.0
    %5970 = vmatprep.subr.mxu0 0.0
    %5971 = vmatpush2.msra.mxu0 0.0
    %5972 = vmatprep.subr.mxu0 0.0
    %5973 = vmatpush2.msra.mxu0 0.0
    %5974 = vmatprep.subr.mxu0 0.0
    %5975 = vmatpush2.msra.mxu0 0.0
    %5976 = vmatprep.subr.mxu0 0.0
    %5977 = vmatpush2.msra.mxu0 0.0
    %5978 = vmatprep.subr.mxu0 0.0
    %5979 = vmatpush2.msra.mxu0 0.0
    %5980 = vmatprep.subr.mxu0 0.0
    %5981 = vmatpush2.msra.mxu0 0.0
    %5982 = vmatprep.subr.mxu0 0.0
    %5983 = vmatpush2.msra.mxu0 0.0
    %5984 = vmatprep.subr.mxu0 0.0
    %5985 = vmatpush2.msra.mxu0 0.0
    %5986 = vmatprep.mubr.f32.mxu0 0.0
    %v5987 = vand.u32 %v5916, 4294901760
    %v5988 = vsub.f32 %v5916, %v5987
    %v5989 = vand.u32 %v5988, 4294901760
    %v5990 = vsub.f32 %v5988, %v5989
    %v5991 = vand.u32 %v5990, 4294901760
    %5992 = vmatmul.mubr.f32.gmra.mxu0 %v5991
    %v5993 = vpop.f32.mrf.mxu0
    %v5994 = vadd.f32 0.0, %v5993
    %v5995 = vpop.f32.mrf.mxu0
    %5996 = vmatprep.mubr.f32.mxu0 0.0
    %v5997 = vand.u32 %v5919, 4294901760
    %v5998 = vsub.f32 %v5919, %v5997
    %v5999 = vand.u32 %v5998, 4294901760
    %v6000 = vsub.f32 %v5998, %v5999
    %v6001 = vand.u32 %v6000, 4294901760
    %6002 = vmatmul.mubr.f32.gmra.mxu0 %v6001
    %v6003 = vpop.f32.mrf.mxu0
    %v6004 = vadd.f32 0.0, %v6003
    %v6005 = vpop.f32.mrf.mxu0
    %6006 = vdwg.mxu0
    %6007 = vmatprep.subr.mxu0 0.0
    %6008 = vmatpush1.msra.mxu0 0.0
    %6009 = vmatprep.subr.mxu0 0.0
    %6010 = vmatpush1.msra.mxu0 0.0
    %6011 = vmatprep.subr.mxu0 0.0
    %6012 = vmatpush1.msra.mxu0 0.0
    %6013 = vmatprep.subr.mxu0 0.0
    %6014 = vmatpush1.msra.mxu0 0.0
    %6015 = vmatprep.subr.mxu0 0.0
    %6016 = vmatpush1.msra.mxu0 0.0
    %6017 = vmatprep.subr.mxu0 0.0
    %6018 = vmatpush1.msra.mxu0 0.0
    %6019 = vmatprep.subr.mxu0 0.0
    %6020 = vmatpush1.msra.mxu0 0.0
    %6021 = vmatprep.subr.mxu0 0.0
    %6022 = vmatpush1.msra.mxu0 0.0
    %6023 = vmatprep.subr.mxu0 0.0
    %6024 = vmatpush1.msra.mxu0 0.0
    %6025 = vmatprep.subr.mxu0 0.0
    %6026 = vmatpush1.msra.mxu0 0.0
    %6027 = vmatprep.subr.mxu0 0.0
    %6028 = vmatpush1.msra.mxu0 0.0
    %6029 = vmatprep.subr.mxu0 0.0
    %6030 = vmatpush1.msra.mxu0 0.0
    %6031 = vmatprep.subr.mxu0 0.0
    %6032 = vmatpush1.msra.mxu0 0.0
    %6033 = vmatprep.subr.mxu0 0.0
    %6034 = vmatpush1.msra.mxu0 0.0
    %6035 = vmatprep.subr.mxu0 0.0
    %6036 = vmatpush1.msra.mxu0 0.0
    %6037 = vmatprep.subr.mxu0 0.0
    %v6038 = vand.u32 %v5914, 4294901760
    %v6039 = vsub.f32 %v5914, %v6038
    %v6040 = vand.u32 %v6039, 4294901760
    %v6041 = vsub.f32 %v6039, %v6040
    %v6042 = vand.u32 %v6041, 4294901760
    %6043 = vmatpush1.msra.mxu0 %v6042
    %6044 = vmatprep.subr.mxu0 0.0
    %6045 = vmatpush2.msra.mxu0 0.0
    %6046 = vmatprep.subr.mxu0 0.0
    %6047 = vmatpush2.msra.mxu0 0.0
    %6048 = vmatprep.subr.mxu0 0.0
    %6049 = vmatpush2.msra.mxu0 0.0
    %6050 = vmatprep.subr.mxu0 0.0
    %6051 = vmatpush2.msra.mxu0 0.0
    %6052 = vmatprep.subr.mxu0 0.0
    %6053 = vmatpush2.msra.mxu0 0.0
    %6054 = vmatprep.subr.mxu0 0.0
    %6055 = vmatpush2.msra.mxu0 0.0
    %6056 = vmatprep.subr.mxu0 0.0
    %6057 = vmatpush2.msra.mxu0 0.0
    %6058 = vmatprep.subr.mxu0 0.0
    %6059 = vmatpush2.msra.mxu0 0.0
    %6060 = vmatprep.subr.mxu0 0.0
    %6061 = vmatpush2.msra.mxu0 0.0
    %6062 = vmatprep.subr.mxu0 0.0
    %6063 = vmatpush2.msra.mxu0 0.0
    %6064 = vmatprep.subr.mxu0 0.0
    %6065 = vmatpush2.msra.mxu0 0.0
    %6066 = vmatprep.subr.mxu0 0.0
    %6067 = vmatpush2.msra.mxu0 0.0
    %6068 = vmatprep.subr.mxu0 0.0
    %6069 = vmatpush2.msra.mxu0 0.0
    %6070 = vmatprep.subr.mxu0 0.0
    %6071 = vmatpush2.msra.mxu0 0.0
    %6072 = vmatprep.subr.mxu0 0.0
    %6073 = vmatpush2.msra.mxu0 0.0
    %6074 = vmatprep.subr.mxu0 0.0
    %6075 = vmatpush2.msra.mxu0 0.0
    %6076 = vmatprep.mubr.f32.mxu0 0.0
    %v6077 = vand.u32 %v5916, 4294901760
    %6078 = vmatmul.mubr.f32.gmra.mxu0 %v6077
    %v6079 = vpop.f32.mrf.mxu0
    %v6080 = vadd.f32 %v5994, %v6079
    %v6081 = vpop.f32.mrf.mxu0
    %6082 = vmatprep.mubr.f32.mxu0 0.0
    %v6083 = vand.u32 %v5919, 4294901760
    %6084 = vmatmul.mubr.f32.gmra.mxu0 %v6083
    %v6085 = vpop.f32.mrf.mxu0
    %v6086 = vadd.f32 %v6004, %v6085
    %v6087 = vpop.f32.mrf.mxu0
    %6088 = vdwg.mxu0
    %6089 = vmatprep.subr.mxu0 0.0
    %6090 = vmatpush1.msra.mxu0 0.0
    %6091 = vmatprep.subr.mxu0 0.0
    %6092 = vmatpush1.msra.mxu0 0.0
    %6093 = vmatprep.subr.mxu0 0.0
    %6094 = vmatpush1.msra.mxu0 0.0
    %6095 = vmatprep.subr.mxu0 0.0
    %6096 = vmatpush1.msra.mxu0 0.0
    %6097 = vmatprep.subr.mxu0 0.0
    %6098 = vmatpush1.msra.mxu0 0.0
    %6099 = vmatprep.subr.mxu0 0.0
    %6100 = vmatpush1.msra.mxu0 0.0
    %6101 = vmatprep.subr.mxu0 0.0
    %6102 = vmatpush1.msra.mxu0 0.0
    %6103 = vmatprep.subr.mxu0 0.0
    %6104 = vmatpush1.msra.mxu0 0.0
    %6105 = vmatprep.subr.mxu0 0.0
    %6106 = vmatpush1.msra.mxu0 0.0
    %6107 = vmatprep.subr.mxu0 0.0
    %6108 = vmatpush1.msra.mxu0 0.0
    %6109 = vmatprep.subr.mxu0 0.0
    %6110 = vmatpush1.msra.mxu0 0.0
    %6111 = vmatprep.subr.mxu0 0.0
    %6112 = vmatpush1.msra.mxu0 0.0
    %6113 = vmatprep.subr.mxu0 0.0
    %6114 = vmatpush1.msra.mxu0 0.0
    %6115 = vmatprep.subr.mxu0 0.0
    %6116 = vmatpush1.msra.mxu0 0.0
    %6117 = vmatprep.subr.mxu0 0.0
    %6118 = vmatpush1.msra.mxu0 0.0
    %6119 = vmatprep.subr.mxu0 0.0
    %v6120 = vand.u32 %v5914, 4294901760
    %v6121 = vsub.f32 %v5914, %v6120
    %6122 = vmatpush1.msra.mxu0 %v6121
    %6123 = vmatprep.subr.mxu0 0.0
    %6124 = vmatpush2.msra.mxu0 0.0
    %6125 = vmatprep.subr.mxu0 0.0
    %6126 = vmatpush2.msra.mxu0 0.0
    %6127 = vmatprep.subr.mxu0 0.0
    %6128 = vmatpush2.msra.mxu0 0.0
    %6129 = vmatprep.subr.mxu0 0.0
    %6130 = vmatpush2.msra.mxu0 0.0
    %6131 = vmatprep.subr.mxu0 0.0
    %6132 = vmatpush2.msra.mxu0 0.0
    %6133 = vmatprep.subr.mxu0 0.0
    %6134 = vmatpush2.msra.mxu0 0.0
    %6135 = vmatprep.subr.mxu0 0.0
    %6136 = vmatpush2.msra.mxu0 0.0
    %6137 = vmatprep.subr.mxu0 0.0
    %6138 = vmatpush2.msra.mxu0 0.0
    %6139 = vmatprep.subr.mxu0 0.0
    %6140 = vmatpush2.msra.mxu0 0.0
    %6141 = vmatprep.subr.mxu0 0.0
    %6142 = vmatpush2.msra.mxu0 0.0
    %6143 = vmatprep.subr.mxu0 0.0
    %6144 = vmatpush2.msra.mxu0 0.0
    %6145 = vmatprep.subr.mxu0 0.0
    %6146 = vmatpush2.msra.mxu0 0.0
    %6147 = vmatprep.subr.mxu0 0.0
    %6148 = vmatpush2.msra.mxu0 0.0
    %6149 = vmatprep.subr.mxu0 0.0
    %6150 = vmatpush2.msra.mxu0 0.0
    %6151 = vmatprep.subr.mxu0 0.0
    %6152 = vmatpush2.msra.mxu0 0.0
    %6153 = vmatprep.subr.mxu0 0.0
    %6154 = vmatpush2.msra.mxu0 0.0
    %6155 = vmatprep.mubr.f32.mxu0 0.0
    %v6156 = vand.u32 %v5916, 4294901760
    %v6157 = vsub.f32 %v5916, %v6156
    %6158 = vmatmul.mubr.f32.gmra.mxu0 %v6157
    %v6159 = vpop.f32.mrf.mxu0
    %v6160 = vadd.f32 %v6080, %v6159
    %v6161 = vpop.f32.mrf.mxu0
    %6162 = vmatprep.mubr.f32.mxu0 0.0
    %v6163 = vand.u32 %v5919, 4294901760
    %v6164 = vsub.f32 %v5919, %v6163
    %6165 = vmatmul.mubr.f32.gmra.mxu0 %v6164
    %v6166 = vpop.f32.mrf.mxu0
    %v6167 = vadd.f32 %v6086, %v6166
    %v6168 = vpop.f32.mrf.mxu0
    %6169 = vdwg.mxu0
    %6170 = vmatprep.subr.mxu0 0.0
    %6171 = vmatpush1.msra.mxu0 0.0
    %6172 = vmatprep.subr.mxu0 0.0
    %6173 = vmatpush1.msra.mxu0 0.0
    %6174 = vmatprep.subr.mxu0 0.0
    %6175 = vmatpush1.msra.mxu0 0.0
    %6176 = vmatprep.subr.mxu0 0.0
    %6177 = vmatpush1.msra.mxu0 0.0
    %6178 = vmatprep.subr.mxu0 0.0
    %6179 = vmatpush1.msra.mxu0 0.0
    %6180 = vmatprep.subr.mxu0 0.0
    %6181 = vmatpush1.msra.mxu0 0.0
    %6182 = vmatprep.subr.mxu0 0.0
    %6183 = vmatpush1.msra.mxu0 0.0
    %6184 = vmatprep.subr.mxu0 0.0
    %6185 = vmatpush1.msra.mxu0 0.0
    %6186 = vmatprep.subr.mxu0 0.0
    %6187 = vmatpush1.msra.mxu0 0.0
    %6188 = vmatprep.subr.mxu0 0.0
    %6189 = vmatpush1.msra.mxu0 0.0
    %6190 = vmatprep.subr.mxu0 0.0
    %6191 = vmatpush1.msra.mxu0 0.0
    %6192 = vmatprep.subr.mxu0 0.0
    %6193 = vmatpush1.msra.mxu0 0.0
    %6194 = vmatprep.subr.mxu0 0.0
    %6195 = vmatpush1.msra.mxu0 0.0
    %6196 = vmatprep.subr.mxu0 0.0
    %6197 = vmatpush1.msra.mxu0 0.0
    %6198 = vmatprep.subr.mxu0 0.0
    %6199 = vmatpush1.msra.mxu0 0.0
    %6200 = vmatprep.subr.mxu0 0.0
    %v6201 = vand.u32 %v5914, 4294901760
    %6202 = vmatpush1.msra.mxu0 %v6201
    %6203 = vmatprep.subr.mxu0 0.0
    %6204 = vmatpush2.msra.mxu0 0.0
    %6205 = vmatprep.subr.mxu0 0.0
    %6206 = vmatpush2.msra.mxu0 0.0
    %6207 = vmatprep.subr.mxu0 0.0
    %6208 = vmatpush2.msra.mxu0 0.0
    %6209 = vmatprep.subr.mxu0 0.0
    %6210 = vmatpush2.msra.mxu0 0.0
    %6211 = vmatprep.subr.mxu0 0.0
    %6212 = vmatpush2.msra.mxu0 0.0
    %6213 = vmatprep.subr.mxu0 0.0
    %6214 = vmatpush2.msra.mxu0 0.0
    %6215 = vmatprep.subr.mxu0 0.0
    %6216 = vmatpush2.msra.mxu0 0.0
    %6217 = vmatprep.subr.mxu0 0.0
    %6218 = vmatpush2.msra.mxu0 0.0
    %6219 = vmatprep.subr.mxu0 0.0
    %6220 = vmatpush2.msra.mxu0 0.0
    %6221 = vmatprep.subr.mxu0 0.0
    %6222 = vmatpush2.msra.mxu0 0.0
    %6223 = vmatprep.subr.mxu0 0.0
    %6224 = vmatpush2.msra.mxu0 0.0
    %6225 = vmatprep.subr.mxu0 0.0
    %6226 = vmatpush2.msra.mxu0 0.0
    %6227 = vmatprep.subr.mxu0 0.0
    %6228 = vmatpush2.msra.mxu0 0.0
    %6229 = vmatprep.subr.mxu0 0.0
    %6230 = vmatpush2.msra.mxu0 0.0
    %6231 = vmatprep.subr.mxu0 0.0
    %6232 = vmatpush2.msra.mxu0 0.0
    %6233 = vmatprep.subr.mxu0 0.0
    %6234 = vmatpush2.msra.mxu0 0.0
    %6235 = vmatprep.mubr.f32.mxu0 0.0
    %v6236 = vand.u32 %v5916, 4294901760
    %v6237 = vsub.f32 %v5916, %v6236
    %v6238 = vand.u32 %v6237, 4294901760
    %6239 = vmatmul.mubr.f32.gmra.mxu0 %v6238
    %v6240 = vpop.f32.mrf.mxu0
    %v6241 = vadd.f32 %v6160, %v6240
    %v6242 = vpop.f32.mrf.mxu0
    %6243 = vmatprep.mubr.f32.mxu0 0.0
    %v6244 = vand.u32 %v5919, 4294901760
    %v6245 = vsub.f32 %v5919, %v6244
    %v6246 = vand.u32 %v6245, 4294901760
    %6247 = vmatmul.mubr.f32.gmra.mxu0 %v6246
    %v6248 = vpop.f32.mrf.mxu0
    %v6249 = vadd.f32 %v6167, %v6248
    %v6250 = vpop.f32.mrf.mxu0
    %6251 = vdwg.mxu0
    %6252 = vmatprep.subr.mxu0 0.0
    %6253 = vmatpush1.msra.mxu0 0.0
    %6254 = vmatprep.subr.mxu0 0.0
    %6255 = vmatpush1.msra.mxu0 0.0
    %6256 = vmatprep.subr.mxu0 0.0
    %6257 = vmatpush1.msra.mxu0 0.0
    %6258 = vmatprep.subr.mxu0 0.0
    %6259 = vmatpush1.msra.mxu0 0.0
    %6260 = vmatprep.subr.mxu0 0.0
    %6261 = vmatpush1.msra.mxu0 0.0
    %6262 = vmatprep.subr.mxu0 0.0
    %6263 = vmatpush1.msra.mxu0 0.0
    %6264 = vmatprep.subr.mxu0 0.0
    %6265 = vmatpush1.msra.mxu0 0.0
    %6266 = vmatprep.subr.mxu0 0.0
    %6267 = vmatpush1.msra.mxu0 0.0
    %6268 = vmatprep.subr.mxu0 0.0
    %6269 = vmatpush1.msra.mxu0 0.0
    %6270 = vmatprep.subr.mxu0 0.0
    %6271 = vmatpush1.msra.mxu0 0.0
    %6272 = vmatprep.subr.mxu0 0.0
    %6273 = vmatpush1.msra.mxu0 0.0
    %6274 = vmatprep.subr.mxu0 0.0
    %6275 = vmatpush1.msra.mxu0 0.0
    %6276 = vmatprep.subr.mxu0 0.0
    %6277 = vmatpush1.msra.mxu0 0.0
    %6278 = vmatprep.subr.mxu0 0.0
    %6279 = vmatpush1.msra.mxu0 0.0
    %6280 = vmatprep.subr.mxu0 0.0
    %6281 = vmatpush1.msra.mxu0 0.0
    %6282 = vmatprep.subr.mxu0 0.0
    %v6283 = vand.u32 %v5914, 4294901760
    %v6284 = vsub.f32 %v5914, %v6283
    %v6285 = vand.u32 %v6284, 4294901760
    %6286 = vmatpush1.msra.mxu0 %v6285
    %6287 = vmatprep.subr.mxu0 0.0
    %6288 = vmatpush2.msra.mxu0 0.0
    %6289 = vmatprep.subr.mxu0 0.0
    %6290 = vmatpush2.msra.mxu0 0.0
    %6291 = vmatprep.subr.mxu0 0.0
    %6292 = vmatpush2.msra.mxu0 0.0
    %6293 = vmatprep.subr.mxu0 0.0
    %6294 = vmatpush2.msra.mxu0 0.0
    %6295 = vmatprep.subr.mxu0 0.0
    %6296 = vmatpush2.msra.mxu0 0.0
    %6297 = vmatprep.subr.mxu0 0.0
    %6298 = vmatpush2.msra.mxu0 0.0
    %6299 = vmatprep.subr.mxu0 0.0
    %6300 = vmatpush2.msra.mxu0 0.0
    %6301 = vmatprep.subr.mxu0 0.0
    %6302 = vmatpush2.msra.mxu0 0.0
    %6303 = vmatprep.subr.mxu0 0.0
    %6304 = vmatpush2.msra.mxu0 0.0
    %6305 = vmatprep.subr.mxu0 0.0
    %6306 = vmatpush2.msra.mxu0 0.0
    %6307 = vmatprep.subr.mxu0 0.0
    %6308 = vmatpush2.msra.mxu0 0.0
    %6309 = vmatprep.subr.mxu0 0.0
    %6310 = vmatpush2.msra.mxu0 0.0
    %6311 = vmatprep.subr.mxu0 0.0
    %6312 = vmatpush2.msra.mxu0 0.0
    %6313 = vmatprep.subr.mxu0 0.0
    %6314 = vmatpush2.msra.mxu0 0.0
    %6315 = vmatprep.subr.mxu0 0.0
    %6316 = vmatpush2.msra.mxu0 0.0
    %6317 = vmatprep.subr.mxu0 0.0
    %6318 = vmatpush2.msra.mxu0 0.0
    %6319 = vmatprep.mubr.f32.mxu0 0.0
    %v6320 = vand.u32 %v5916, 4294901760
    %6321 = vmatmul.mubr.f32.gmra.mxu0 %v6320
    %v6322 = vpop.f32.mrf.mxu0
    %v6323 = vadd.f32 %v6241, %v6322
    %v6324 = vpop.f32.mrf.mxu0
    %6325 = vmatprep.mubr.f32.mxu0 0.0
    %v6326 = vand.u32 %v5919, 4294901760
    %6327 = vmatmul.mubr.f32.gmra.mxu0 %v6326
    %v6328 = vpop.f32.mrf.mxu0
    %v6329 = vadd.f32 %v6249, %v6328
    %v6330 = vpop.f32.mrf.mxu0
    %6331 = vdwg.mxu0
    %6332 = vmatprep.subr.mxu0 0.0
    %6333 = vmatpush1.msra.mxu0 0.0
    %6334 = vmatprep.subr.mxu0 0.0
    %6335 = vmatpush1.msra.mxu0 0.0
    %6336 = vmatprep.subr.mxu0 0.0
    %6337 = vmatpush1.msra.mxu0 0.0
    %6338 = vmatprep.subr.mxu0 0.0
    %6339 = vmatpush1.msra.mxu0 0.0
    %6340 = vmatprep.subr.mxu0 0.0
    %6341 = vmatpush1.msra.mxu0 0.0
    %6342 = vmatprep.subr.mxu0 0.0
    %6343 = vmatpush1.msra.mxu0 0.0
    %6344 = vmatprep.subr.mxu0 0.0
    %6345 = vmatpush1.msra.mxu0 0.0
    %6346 = vmatprep.subr.mxu0 0.0
    %6347 = vmatpush1.msra.mxu0 0.0
    %6348 = vmatprep.subr.mxu0 0.0
    %6349 = vmatpush1.msra.mxu0 0.0
    %6350 = vmatprep.subr.mxu0 0.0
    %6351 = vmatpush1.msra.mxu0 0.0
    %6352 = vmatprep.subr.mxu0 0.0
    %6353 = vmatpush1.msra.mxu0 0.0
    %6354 = vmatprep.subr.mxu0 0.0
    %6355 = vmatpush1.msra.mxu0 0.0
    %6356 = vmatprep.subr.mxu0 0.0
    %6357 = vmatpush1.msra.mxu0 0.0
    %6358 = vmatprep.subr.mxu0 0.0
    %6359 = vmatpush1.msra.mxu0 0.0
    %6360 = vmatprep.subr.mxu0 0.0
    %6361 = vmatpush1.msra.mxu0 0.0
    %6362 = vmatprep.subr.mxu0 0.0
    %v6363 = vand.u32 %v5914, 4294901760
    %6364 = vmatpush1.msra.mxu0 %v6363
    %6365 = vmatprep.subr.mxu0 0.0
    %6366 = vmatpush2.msra.mxu0 0.0
    %6367 = vmatprep.subr.mxu0 0.0
    %6368 = vmatpush2.msra.mxu0 0.0
    %6369 = vmatprep.subr.mxu0 0.0
    %6370 = vmatpush2.msra.mxu0 0.0
    %6371 = vmatprep.subr.mxu0 0.0
    %6372 = vmatpush2.msra.mxu0 0.0
    %6373 = vmatprep.subr.mxu0 0.0
    %6374 = vmatpush2.msra.mxu0 0.0
    %6375 = vmatprep.subr.mxu0 0.0
    %6376 = vmatpush2.msra.mxu0 0.0
    %6377 = vmatprep.subr.mxu0 0.0
    %6378 = vmatpush2.msra.mxu0 0.0
    %6379 = vmatprep.subr.mxu0 0.0
    %6380 = vmatpush2.msra.mxu0 0.0
    %6381 = vmatprep.subr.mxu0 0.0
    %6382 = vmatpush2.msra.mxu0 0.0
    %6383 = vmatprep.subr.mxu0 0.0
    %6384 = vmatpush2.msra.mxu0 0.0
    %6385 = vmatprep.subr.mxu0 0.0
    %6386 = vmatpush2.msra.mxu0 0.0
    %6387 = vmatprep.subr.mxu0 0.0
    %6388 = vmatpush2.msra.mxu0 0.0
    %6389 = vmatprep.subr.mxu0 0.0
    %6390 = vmatpush2.msra.mxu0 0.0
    %6391 = vmatprep.subr.mxu0 0.0
    %6392 = vmatpush2.msra.mxu0 0.0
    %6393 = vmatprep.subr.mxu0 0.0
    %6394 = vmatpush2.msra.mxu0 0.0
    %6395 = vmatprep.subr.mxu0 0.0
    %6396 = vmatpush2.msra.mxu0 0.0
    %6397 = vmatprep.mubr.f32.mxu0 0.0
    %v6398 = vand.u32 %v5916, 4294901760
    %6399 = vmatmul.mubr.f32.gmra.mxu0 %v6398
    %v6400 = vpop.f32.mrf.mxu0
    %v6401 = vadd.f32 %v6323, %v6400
    %v6402 = vpop.f32.mrf.mxu0
    %6403 = vmatprep.mubr.f32.mxu0 0.0
    %v6404 = vand.u32 %v5919, 4294901760
    %6405 = vmatmul.mubr.f32.gmra.mxu0 %v6404
    %v6406 = vpop.f32.mrf.mxu0
    %v6407 = vadd.f32 %v6329, %v6406
    %v6408 = vpop.f32.mrf.mxu0
    %6409 = vdwg.mxu0
    %v6411 = vsel %vm1289, %v4258, 0
    %v6414 = vsel %vm1289, %v4264, 0
    %6416 = vmatprep.subr.mxu0 0.0
    %6417 = vmatpush1.msra.mxu0 0.0
    %6418 = vmatprep.subr.mxu0 0.0
    %6419 = vmatpush1.msra.mxu0 0.0
    %6420 = vmatprep.subr.mxu0 0.0
    %6421 = vmatpush1.msra.mxu0 0.0
    %6422 = vmatprep.subr.mxu0 0.0
    %6423 = vmatpush1.msra.mxu0 0.0
    %6424 = vmatprep.subr.mxu0 0.0
    %6425 = vmatpush1.msra.mxu0 0.0
    %6426 = vmatprep.subr.mxu0 0.0
    %6427 = vmatpush1.msra.mxu0 0.0
    %6428 = vmatprep.subr.mxu0 0.0
    %6429 = vmatpush1.msra.mxu0 0.0
    %6430 = vmatprep.subr.mxu0 0.0
    %6431 = vmatpush1.msra.mxu0 0.0
    %6432 = vmatprep.subr.mxu0 0.0
    %6433 = vmatpush1.msra.mxu0 0.0
    %6434 = vmatprep.subr.mxu0 0.0
    %6435 = vmatpush1.msra.mxu0 0.0
    %6436 = vmatprep.subr.mxu0 0.0
    %6437 = vmatpush1.msra.mxu0 0.0
    %6438 = vmatprep.subr.mxu0 0.0
    %6439 = vmatpush1.msra.mxu0 0.0
    %6440 = vmatprep.subr.mxu0 0.0
    %6441 = vmatpush1.msra.mxu0 0.0
    %6442 = vmatprep.subr.mxu0 0.0
    %6443 = vmatpush1.msra.mxu0 0.0
    %6444 = vmatprep.subr.mxu0 0.0
    %6445 = vmatpush1.msra.mxu0 0.0
    %6446 = vmatprep.subr.mxu0 0.0
    %v6447 = vand.u32 %v4267, 4294901760
    %6448 = vmatpush1.msra.mxu0 %v6447
    %6449 = vmatprep.subr.mxu0 0.0
    %6450 = vmatpush2.msra.mxu0 0.0
    %6451 = vmatprep.subr.mxu0 0.0
    %6452 = vmatpush2.msra.mxu0 0.0
    %6453 = vmatprep.subr.mxu0 0.0
    %6454 = vmatpush2.msra.mxu0 0.0
    %6455 = vmatprep.subr.mxu0 0.0
    %6456 = vmatpush2.msra.mxu0 0.0
    %6457 = vmatprep.subr.mxu0 0.0
    %6458 = vmatpush2.msra.mxu0 0.0
    %6459 = vmatprep.subr.mxu0 0.0
    %6460 = vmatpush2.msra.mxu0 0.0
    %6461 = vmatprep.subr.mxu0 0.0
    %6462 = vmatpush2.msra.mxu0 0.0
    %6463 = vmatprep.subr.mxu0 0.0
    %6464 = vmatpush2.msra.mxu0 0.0
    %6465 = vmatprep.subr.mxu0 0.0
    %6466 = vmatpush2.msra.mxu0 0.0
    %6467 = vmatprep.subr.mxu0 0.0
    %6468 = vmatpush2.msra.mxu0 0.0
    %6469 = vmatprep.subr.mxu0 0.0
    %6470 = vmatpush2.msra.mxu0 0.0
    %6471 = vmatprep.subr.mxu0 0.0
    %6472 = vmatpush2.msra.mxu0 0.0
    %6473 = vmatprep.subr.mxu0 0.0
    %6474 = vmatpush2.msra.mxu0 0.0
    %6475 = vmatprep.subr.mxu0 0.0
    %6476 = vmatpush2.msra.mxu0 0.0
    %6477 = vmatprep.subr.mxu0 0.0
    %6478 = vmatpush2.msra.mxu0 0.0
    %6479 = vmatprep.subr.mxu0 0.0
    %6480 = vmatpush2.msra.mxu0 0.0
    %6481 = vmatprep.mubr.f32.mxu0 0.0
    %v6482 = vand.u32 %v6411, 4294901760
    %v6483 = vsub.f32 %v6411, %v6482
    %v6484 = vand.u32 %v6483, 4294901760
    %v6485 = vsub.f32 %v6483, %v6484
    %v6486 = vand.u32 %v6485, 4294901760
    %6487 = vmatmul.mubr.f32.gmra.mxu0 %v6486
    %v6488 = vpop.f32.mrf.mxu0
    %v6489 = vadd.f32 %v6401, %v6488
    %v6490 = vpop.f32.mrf.mxu0
    %6491 = vmatprep.mubr.f32.mxu0 0.0
    %v6492 = vand.u32 %v6414, 4294901760
    %v6493 = vsub.f32 %v6414, %v6492
    %v6494 = vand.u32 %v6493, 4294901760
    %v6495 = vsub.f32 %v6493, %v6494
    %v6496 = vand.u32 %v6495, 4294901760
    %6497 = vmatmul.mubr.f32.gmra.mxu0 %v6496
    %v6498 = vpop.f32.mrf.mxu0
    %v6499 = vadd.f32 %v6407, %v6498
    %v6500 = vpop.f32.mrf.mxu0
    %6501 = vdwg.mxu0
    %6502 = vmatprep.subr.mxu0 0.0
    %6503 = vmatpush1.msra.mxu0 0.0
    %6504 = vmatprep.subr.mxu0 0.0
    %6505 = vmatpush1.msra.mxu0 0.0
    %6506 = vmatprep.subr.mxu0 0.0
    %6507 = vmatpush1.msra.mxu0 0.0
    %6508 = vmatprep.subr.mxu0 0.0
    %6509 = vmatpush1.msra.mxu0 0.0
    %6510 = vmatprep.subr.mxu0 0.0
    %6511 = vmatpush1.msra.mxu0 0.0
    %6512 = vmatprep.subr.mxu0 0.0
    %6513 = vmatpush1.msra.mxu0 0.0
    %6514 = vmatprep.subr.mxu0 0.0
    %6515 = vmatpush1.msra.mxu0 0.0
    %6516 = vmatprep.subr.mxu0 0.0
    %6517 = vmatpush1.msra.mxu0 0.0
    %6518 = vmatprep.subr.mxu0 0.0
    %6519 = vmatpush1.msra.mxu0 0.0
    %6520 = vmatprep.subr.mxu0 0.0
    %6521 = vmatpush1.msra.mxu0 0.0
    %6522 = vmatprep.subr.mxu0 0.0
    %6523 = vmatpush1.msra.mxu0 0.0
    %6524 = vmatprep.subr.mxu0 0.0
    %6525 = vmatpush1.msra.mxu0 0.0
    %6526 = vmatprep.subr.mxu0 0.0
    %6527 = vmatpush1.msra.mxu0 0.0
    %6528 = vmatprep.subr.mxu0 0.0
    %6529 = vmatpush1.msra.mxu0 0.0
    %6530 = vmatprep.subr.mxu0 0.0
    %6531 = vmatpush1.msra.mxu0 0.0
    %6532 = vmatprep.subr.mxu0 0.0
    %v6533 = vand.u32 %v4267, 4294901760
    %v6534 = vsub.f32 %v4267, %v6533
    %v6535 = vand.u32 %v6534, 4294901760
    %v6536 = vsub.f32 %v6534, %v6535
    %v6537 = vand.u32 %v6536, 4294901760
    %6538 = vmatpush1.msra.mxu0 %v6537
    %6539 = vmatprep.subr.mxu0 0.0
    %6540 = vmatpush2.msra.mxu0 0.0
    %6541 = vmatprep.subr.mxu0 0.0
    %6542 = vmatpush2.msra.mxu0 0.0
    %6543 = vmatprep.subr.mxu0 0.0
    %6544 = vmatpush2.msra.mxu0 0.0
    %6545 = vmatprep.subr.mxu0 0.0
    %6546 = vmatpush2.msra.mxu0 0.0
    %6547 = vmatprep.subr.mxu0 0.0
    %6548 = vmatpush2.msra.mxu0 0.0
    %6549 = vmatprep.subr.mxu0 0.0
    %6550 = vmatpush2.msra.mxu0 0.0
    %6551 = vmatprep.subr.mxu0 0.0
    %6552 = vmatpush2.msra.mxu0 0.0
    %6553 = vmatprep.subr.mxu0 0.0
    %6554 = vmatpush2.msra.mxu0 0.0
    %6555 = vmatprep.subr.mxu0 0.0
    %6556 = vmatpush2.msra.mxu0 0.0
    %6557 = vmatprep.subr.mxu0 0.0
    %6558 = vmatpush2.msra.mxu0 0.0
    %6559 = vmatprep.subr.mxu0 0.0
    %6560 = vmatpush2.msra.mxu0 0.0
    %6561 = vmatprep.subr.mxu0 0.0
    %6562 = vmatpush2.msra.mxu0 0.0
    %6563 = vmatprep.subr.mxu0 0.0
    %6564 = vmatpush2.msra.mxu0 0.0
    %6565 = vmatprep.subr.mxu0 0.0
    %6566 = vmatpush2.msra.mxu0 0.0
    %6567 = vmatprep.subr.mxu0 0.0
    %6568 = vmatpush2.msra.mxu0 0.0
    %6569 = vmatprep.subr.mxu0 0.0
    %6570 = vmatpush2.msra.mxu0 0.0
    %6571 = vmatprep.mubr.f32.mxu0 0.0
    %v6572 = vand.u32 %v6411, 4294901760
    %6573 = vmatmul.mubr.f32.gmra.mxu0 %v6572
    %v6574 = vpop.f32.mrf.mxu0
    %v6575 = vadd.f32 %v6489, %v6574
    %v6576 = vpop.f32.mrf.mxu0
    %6577 = vmatprep.mubr.f32.mxu0 0.0
    %v6578 = vand.u32 %v6414, 4294901760
    %6579 = vmatmul.mubr.f32.gmra.mxu0 %v6578
    %v6580 = vpop.f32.mrf.mxu0
    %v6581 = vadd.f32 %v6499, %v6580
    %v6582 = vpop.f32.mrf.mxu0
    %6583 = vdwg.mxu0
    %6584 = vmatprep.subr.mxu0 0.0
    %6585 = vmatpush1.msra.mxu0 0.0
    %6586 = vmatprep.subr.mxu0 0.0
    %6587 = vmatpush1.msra.mxu0 0.0
    %6588 = vmatprep.subr.mxu0 0.0
    %6589 = vmatpush1.msra.mxu0 0.0
    %6590 = vmatprep.subr.mxu0 0.0
    %6591 = vmatpush1.msra.mxu0 0.0
    %6592 = vmatprep.subr.mxu0 0.0
    %6593 = vmatpush1.msra.mxu0 0.0
    %6594 = vmatprep.subr.mxu0 0.0
    %6595 = vmatpush1.msra.mxu0 0.0
    %6596 = vmatprep.subr.mxu0 0.0
    %6597 = vmatpush1.msra.mxu0 0.0
    %6598 = vmatprep.subr.mxu0 0.0
    %6599 = vmatpush1.msra.mxu0 0.0
    %6600 = vmatprep.subr.mxu0 0.0
    %6601 = vmatpush1.msra.mxu0 0.0
    %6602 = vmatprep.subr.mxu0 0.0
    %6603 = vmatpush1.msra.mxu0 0.0
    %6604 = vmatprep.subr.mxu0 0.0
    %6605 = vmatpush1.msra.mxu0 0.0
    %6606 = vmatprep.subr.mxu0 0.0
    %6607 = vmatpush1.msra.mxu0 0.0
    %6608 = vmatprep.subr.mxu0 0.0
    %6609 = vmatpush1.msra.mxu0 0.0
    %6610 = vmatprep.subr.mxu0 0.0
    %6611 = vmatpush1.msra.mxu0 0.0
    %6612 = vmatprep.subr.mxu0 0.0
    %6613 = vmatpush1.msra.mxu0 0.0
    %6614 = vmatprep.subr.mxu0 0.0
    %v6615 = vand.u32 %v4267, 4294901760
    %v6616 = vsub.f32 %v4267, %v6615
    %6617 = vmatpush1.msra.mxu0 %v6616
    %6618 = vmatprep.subr.mxu0 0.0
    %6619 = vmatpush2.msra.mxu0 0.0
    %6620 = vmatprep.subr.mxu0 0.0
    %6621 = vmatpush2.msra.mxu0 0.0
    %6622 = vmatprep.subr.mxu0 0.0
    %6623 = vmatpush2.msra.mxu0 0.0
    %6624 = vmatprep.subr.mxu0 0.0
    %6625 = vmatpush2.msra.mxu0 0.0
    %6626 = vmatprep.subr.mxu0 0.0
    %6627 = vmatpush2.msra.mxu0 0.0
    %6628 = vmatprep.subr.mxu0 0.0
    %6629 = vmatpush2.msra.mxu0 0.0
    %6630 = vmatprep.subr.mxu0 0.0
    %6631 = vmatpush2.msra.mxu0 0.0
    %6632 = vmatprep.subr.mxu0 0.0
    %6633 = vmatpush2.msra.mxu0 0.0
    %6634 = vmatprep.subr.mxu0 0.0
    %6635 = vmatpush2.msra.mxu0 0.0
    %6636 = vmatprep.subr.mxu0 0.0
    %6637 = vmatpush2.msra.mxu0 0.0
    %6638 = vmatprep.subr.mxu0 0.0
    %6639 = vmatpush2.msra.mxu0 0.0
    %6640 = vmatprep.subr.mxu0 0.0
    %6641 = vmatpush2.msra.mxu0 0.0
    %6642 = vmatprep.subr.mxu0 0.0
    %6643 = vmatpush2.msra.mxu0 0.0
    %6644 = vmatprep.subr.mxu0 0.0
    %6645 = vmatpush2.msra.mxu0 0.0
    %6646 = vmatprep.subr.mxu0 0.0
    %6647 = vmatpush2.msra.mxu0 0.0
    %6648 = vmatprep.subr.mxu0 0.0
    %6649 = vmatpush2.msra.mxu0 0.0
    %6650 = vmatprep.mubr.f32.mxu0 0.0
    %v6651 = vand.u32 %v6411, 4294901760
    %v6652 = vsub.f32 %v6411, %v6651
    %6653 = vmatmul.mubr.f32.gmra.mxu0 %v6652
    %v6654 = vpop.f32.mrf.mxu0
    %v6655 = vadd.f32 %v6575, %v6654
    %v6656 = vpop.f32.mrf.mxu0
    %6657 = vmatprep.mubr.f32.mxu0 0.0
    %v6658 = vand.u32 %v6414, 4294901760
    %v6659 = vsub.f32 %v6414, %v6658
    %6660 = vmatmul.mubr.f32.gmra.mxu0 %v6659
    %v6661 = vpop.f32.mrf.mxu0
    %v6662 = vadd.f32 %v6581, %v6661
    %v6663 = vpop.f32.mrf.mxu0
    %6664 = vdwg.mxu0
    %6665 = vmatprep.subr.mxu0 0.0
    %6666 = vmatpush1.msra.mxu0 0.0
    %6667 = vmatprep.subr.mxu0 0.0
    %6668 = vmatpush1.msra.mxu0 0.0
    %6669 = vmatprep.subr.mxu0 0.0
    %6670 = vmatpush1.msra.mxu0 0.0
    %6671 = vmatprep.subr.mxu0 0.0
    %6672 = vmatpush1.msra.mxu0 0.0
    %6673 = vmatprep.subr.mxu0 0.0
    %6674 = vmatpush1.msra.mxu0 0.0
    %6675 = vmatprep.subr.mxu0 0.0
    %6676 = vmatpush1.msra.mxu0 0.0
    %6677 = vmatprep.subr.mxu0 0.0
    %6678 = vmatpush1.msra.mxu0 0.0
    %6679 = vmatprep.subr.mxu0 0.0
    %6680 = vmatpush1.msra.mxu0 0.0
    %6681 = vmatprep.subr.mxu0 0.0
    %6682 = vmatpush1.msra.mxu0 0.0
    %6683 = vmatprep.subr.mxu0 0.0
    %6684 = vmatpush1.msra.mxu0 0.0
    %6685 = vmatprep.subr.mxu0 0.0
    %6686 = vmatpush1.msra.mxu0 0.0
    %6687 = vmatprep.subr.mxu0 0.0
    %6688 = vmatpush1.msra.mxu0 0.0
    %6689 = vmatprep.subr.mxu0 0.0
    %6690 = vmatpush1.msra.mxu0 0.0
    %6691 = vmatprep.subr.mxu0 0.0
    %6692 = vmatpush1.msra.mxu0 0.0
    %6693 = vmatprep.subr.mxu0 0.0
    %6694 = vmatpush1.msra.mxu0 0.0
    %6695 = vmatprep.subr.mxu0 0.0
    %v6696 = vand.u32 %v4267, 4294901760
    %6697 = vmatpush1.msra.mxu0 %v6696
    %6698 = vmatprep.subr.mxu0 0.0
    %6699 = vmatpush2.msra.mxu0 0.0
    %6700 = vmatprep.subr.mxu0 0.0
    %6701 = vmatpush2.msra.mxu0 0.0
    %6702 = vmatprep.subr.mxu0 0.0
    %6703 = vmatpush2.msra.mxu0 0.0
    %6704 = vmatprep.subr.mxu0 0.0
    %6705 = vmatpush2.msra.mxu0 0.0
    %6706 = vmatprep.subr.mxu0 0.0
    %6707 = vmatpush2.msra.mxu0 0.0
    %6708 = vmatprep.subr.mxu0 0.0
    %6709 = vmatpush2.msra.mxu0 0.0
    %6710 = vmatprep.subr.mxu0 0.0
    %6711 = vmatpush2.msra.mxu0 0.0
    %6712 = vmatprep.subr.mxu0 0.0
    %6713 = vmatpush2.msra.mxu0 0.0
    %6714 = vmatprep.subr.mxu0 0.0
    %6715 = vmatpush2.msra.mxu0 0.0
    %6716 = vmatprep.subr.mxu0 0.0
    %6717 = vmatpush2.msra.mxu0 0.0
    %6718 = vmatprep.subr.mxu0 0.0
    %6719 = vmatpush2.msra.mxu0 0.0
    %6720 = vmatprep.subr.mxu0 0.0
    %6721 = vmatpush2.msra.mxu0 0.0
    %6722 = vmatprep.subr.mxu0 0.0
    %6723 = vmatpush2.msra.mxu0 0.0
    %6724 = vmatprep.subr.mxu0 0.0
    %6725 = vmatpush2.msra.mxu0 0.0
    %6726 = vmatprep.subr.mxu0 0.0
    %6727 = vmatpush2.msra.mxu0 0.0
    %6728 = vmatprep.subr.mxu0 0.0
    %6729 = vmatpush2.msra.mxu0 0.0
    %6730 = vmatprep.mubr.f32.mxu0 0.0
    %v6731 = vand.u32 %v6411, 4294901760
    %v6732 = vsub.f32 %v6411, %v6731
    %v6733 = vand.u32 %v6732, 4294901760
    %6734 = vmatmul.mubr.f32.gmra.mxu0 %v6733
    %v6735 = vpop.f32.mrf.mxu0
    %v6736 = vadd.f32 %v6655, %v6735
    %v6737 = vpop.f32.mrf.mxu0
    %6738 = vmatprep.mubr.f32.mxu0 0.0
    %v6739 = vand.u32 %v6414, 4294901760
    %v6740 = vsub.f32 %v6414, %v6739
    %v6741 = vand.u32 %v6740, 4294901760
    %6742 = vmatmul.mubr.f32.gmra.mxu0 %v6741
    %v6743 = vpop.f32.mrf.mxu0
    %v6744 = vadd.f32 %v6662, %v6743
    %v6745 = vpop.f32.mrf.mxu0
    %6746 = vdwg.mxu0
    %6747 = vmatprep.subr.mxu0 0.0
    %6748 = vmatpush1.msra.mxu0 0.0
    %6749 = vmatprep.subr.mxu0 0.0
    %6750 = vmatpush1.msra.mxu0 0.0
    %6751 = vmatprep.subr.mxu0 0.0
    %6752 = vmatpush1.msra.mxu0 0.0
    %6753 = vmatprep.subr.mxu0 0.0
    %6754 = vmatpush1.msra.mxu0 0.0
    %6755 = vmatprep.subr.mxu0 0.0
    %6756 = vmatpush1.msra.mxu0 0.0
    %6757 = vmatprep.subr.mxu0 0.0
    %6758 = vmatpush1.msra.mxu0 0.0
    %6759 = vmatprep.subr.mxu0 0.0
    %6760 = vmatpush1.msra.mxu0 0.0
    %6761 = vmatprep.subr.mxu0 0.0
    %6762 = vmatpush1.msra.mxu0 0.0
    %6763 = vmatprep.subr.mxu0 0.0
    %6764 = vmatpush1.msra.mxu0 0.0
    %6765 = vmatprep.subr.mxu0 0.0
    %6766 = vmatpush1.msra.mxu0 0.0
    %6767 = vmatprep.subr.mxu0 0.0
    %6768 = vmatpush1.msra.mxu0 0.0
    %6769 = vmatprep.subr.mxu0 0.0
    %6770 = vmatpush1.msra.mxu0 0.0
    %6771 = vmatprep.subr.mxu0 0.0
    %6772 = vmatpush1.msra.mxu0 0.0
    %6773 = vmatprep.subr.mxu0 0.0
    %6774 = vmatpush1.msra.mxu0 0.0
    %6775 = vmatprep.subr.mxu0 0.0
    %6776 = vmatpush1.msra.mxu0 0.0
    %6777 = vmatprep.subr.mxu0 0.0
    %v6778 = vand.u32 %v4267, 4294901760
    %v6779 = vsub.f32 %v4267, %v6778
    %v6780 = vand.u32 %v6779, 4294901760
    %6781 = vmatpush1.msra.mxu0 %v6780
    %6782 = vmatprep.subr.mxu0 0.0
    %6783 = vmatpush2.msra.mxu0 0.0
    %6784 = vmatprep.subr.mxu0 0.0
    %6785 = vmatpush2.msra.mxu0 0.0
    %6786 = vmatprep.subr.mxu0 0.0
    %6787 = vmatpush2.msra.mxu0 0.0
    %6788 = vmatprep.subr.mxu0 0.0
    %6789 = vmatpush2.msra.mxu0 0.0
    %6790 = vmatprep.subr.mxu0 0.0
    %6791 = vmatpush2.msra.mxu0 0.0
    %6792 = vmatprep.subr.mxu0 0.0
    %6793 = vmatpush2.msra.mxu0 0.0
    %6794 = vmatprep.subr.mxu0 0.0
    %6795 = vmatpush2.msra.mxu0 0.0
    %6796 = vmatprep.subr.mxu0 0.0
    %6797 = vmatpush2.msra.mxu0 0.0
    %6798 = vmatprep.subr.mxu0 0.0
    %6799 = vmatpush2.msra.mxu0 0.0
    %6800 = vmatprep.subr.mxu0 0.0
    %6801 = vmatpush2.msra.mxu0 0.0
    %6802 = vmatprep.subr.mxu0 0.0
    %6803 = vmatpush2.msra.mxu0 0.0
    %6804 = vmatprep.subr.mxu0 0.0
    %6805 = vmatpush2.msra.mxu0 0.0
    %6806 = vmatprep.subr.mxu0 0.0
    %6807 = vmatpush2.msra.mxu0 0.0
    %6808 = vmatprep.subr.mxu0 0.0
    %6809 = vmatpush2.msra.mxu0 0.0
    %6810 = vmatprep.subr.mxu0 0.0
    %6811 = vmatpush2.msra.mxu0 0.0
    %6812 = vmatprep.subr.mxu0 0.0
    %6813 = vmatpush2.msra.mxu0 0.0
    %6814 = vmatprep.mubr.f32.mxu0 0.0
    %v6815 = vand.u32 %v6411, 4294901760
    %6816 = vmatmul.mubr.f32.gmra.mxu0 %v6815
    %v6817 = vpop.f32.mrf.mxu0
    %v6818 = vadd.f32 %v6736, %v6817
    %v6819 = vpop.f32.mrf.mxu0
    %6820 = vmatprep.mubr.f32.mxu0 0.0
    %v6821 = vand.u32 %v6414, 4294901760
    %6822 = vmatmul.mubr.f32.gmra.mxu0 %v6821
    %v6823 = vpop.f32.mrf.mxu0
    %v6824 = vadd.f32 %v6744, %v6823
    %v6825 = vpop.f32.mrf.mxu0
    %6826 = vdwg.mxu0
    %6827 = vmatprep.subr.mxu0 0.0
    %6828 = vmatpush1.msra.mxu0 0.0
    %6829 = vmatprep.subr.mxu0 0.0
    %6830 = vmatpush1.msra.mxu0 0.0
    %6831 = vmatprep.subr.mxu0 0.0
    %6832 = vmatpush1.msra.mxu0 0.0
    %6833 = vmatprep.subr.mxu0 0.0
    %6834 = vmatpush1.msra.mxu0 0.0
    %6835 = vmatprep.subr.mxu0 0.0
    %6836 = vmatpush1.msra.mxu0 0.0
    %6837 = vmatprep.subr.mxu0 0.0
    %6838 = vmatpush1.msra.mxu0 0.0
    %6839 = vmatprep.subr.mxu0 0.0
    %6840 = vmatpush1.msra.mxu0 0.0
    %6841 = vmatprep.subr.mxu0 0.0
    %6842 = vmatpush1.msra.mxu0 0.0
    %6843 = vmatprep.subr.mxu0 0.0
    %6844 = vmatpush1.msra.mxu0 0.0
    %6845 = vmatprep.subr.mxu0 0.0
    %6846 = vmatpush1.msra.mxu0 0.0
    %6847 = vmatprep.subr.mxu0 0.0
    %6848 = vmatpush1.msra.mxu0 0.0
    %6849 = vmatprep.subr.mxu0 0.0
    %6850 = vmatpush1.msra.mxu0 0.0
    %6851 = vmatprep.subr.mxu0 0.0
    %6852 = vmatpush1.msra.mxu0 0.0
    %6853 = vmatprep.subr.mxu0 0.0
    %6854 = vmatpush1.msra.mxu0 0.0
    %6855 = vmatprep.subr.mxu0 0.0
    %6856 = vmatpush1.msra.mxu0 0.0
    %6857 = vmatprep.subr.mxu0 0.0
    %v6858 = vand.u32 %v4267, 4294901760
    %6859 = vmatpush1.msra.mxu0 %v6858
    %6860 = vmatprep.subr.mxu0 0.0
    %6861 = vmatpush2.msra.mxu0 0.0
    %6862 = vmatprep.subr.mxu0 0.0
    %6863 = vmatpush2.msra.mxu0 0.0
    %6864 = vmatprep.subr.mxu0 0.0
    %6865 = vmatpush2.msra.mxu0 0.0
    %6866 = vmatprep.subr.mxu0 0.0
    %6867 = vmatpush2.msra.mxu0 0.0
    %6868 = vmatprep.subr.mxu0 0.0
    %6869 = vmatpush2.msra.mxu0 0.0
    %6870 = vmatprep.subr.mxu0 0.0
    %6871 = vmatpush2.msra.mxu0 0.0
    %6872 = vmatprep.subr.mxu0 0.0
    %6873 = vmatpush2.msra.mxu0 0.0
    %6874 = vmatprep.subr.mxu0 0.0
    %6875 = vmatpush2.msra.mxu0 0.0
    %6876 = vmatprep.subr.mxu0 0.0
    %6877 = vmatpush2.msra.mxu0 0.0
    %6878 = vmatprep.subr.mxu0 0.0
    %6879 = vmatpush2.msra.mxu0 0.0
    %6880 = vmatprep.subr.mxu0 0.0
    %6881 = vmatpush2.msra.mxu0 0.0
    %6882 = vmatprep.subr.mxu0 0.0
    %6883 = vmatpush2.msra.mxu0 0.0
    %6884 = vmatprep.subr.mxu0 0.0
    %6885 = vmatpush2.msra.mxu0 0.0
    %6886 = vmatprep.subr.mxu0 0.0
    %6887 = vmatpush2.msra.mxu0 0.0
    %6888 = vmatprep.subr.mxu0 0.0
    %6889 = vmatpush2.msra.mxu0 0.0
    %6890 = vmatprep.subr.mxu0 0.0
    %6891 = vmatpush2.msra.mxu0 0.0
    %6892 = vmatprep.mubr.f32.mxu0 0.0
    %v6893 = vand.u32 %v6411, 4294901760
    %6894 = vmatmul.mubr.f32.gmra.mxu0 %v6893
    %v6895 = vpop.f32.mrf.mxu0
    %v6896 = vadd.f32 %v6818, %v6895
    %v6897 = vpop.f32.mrf.mxu0
    %6898 = vmatprep.mubr.f32.mxu0 0.0
    %v6899 = vand.u32 %v6414, 4294901760
    %6900 = vmatmul.mubr.f32.gmra.mxu0 %v6899
    %v6901 = vpop.f32.mrf.mxu0
    %v6902 = vadd.f32 %v6824, %v6901
    %v6903 = vpop.f32.mrf.mxu0
    %6904 = vdwg.mxu0
    %s6905 = scalar_lea.vmem %s3, 64
    %v6906 = vld [vmem:[%s6905] sm:$0xff]
    %v6907 = vld [vmem:[%s6905 + $0x8] sm:$0xff]
    %v6908 = vld [vmem:[%s6905 + $0x10] sm:$0xff]
    %v6909 = vld [vmem:[%s6905 + $0x18] sm:$0xff]
    %6910 = vmatprep.subr.mxu0 0.0
    %6911 = vmatpush1.msra.mxu0 0.0
    %6912 = vmatprep.subr.mxu0 0.0
    %6913 = vmatpush1.msra.mxu0 0.0
    %6914 = vmatprep.subr.mxu0 0.0
    %6915 = vmatpush1.msra.mxu0 0.0
    %6916 = vmatprep.subr.mxu0 0.0
    %6917 = vmatpush1.msra.mxu0 0.0
    %6918 = vmatprep.subr.mxu0 0.0
    %6919 = vmatpush1.msra.mxu0 0.0
    %6920 = vmatprep.subr.mxu0 0.0
    %6921 = vmatpush1.msra.mxu0 0.0
    %6922 = vmatprep.subr.mxu0 0.0
    %6923 = vmatpush1.msra.mxu0 0.0
    %6924 = vmatprep.subr.mxu0 0.0
    %6925 = vmatpush1.msra.mxu0 0.0
    %6926 = vmatprep.subr.mxu0 0.0
    %6927 = vmatpush1.msra.mxu0 0.0
    %6928 = vmatprep.subr.mxu0 0.0
    %6929 = vmatpush1.msra.mxu0 0.0
    %6930 = vmatprep.subr.mxu0 0.0
    %6931 = vmatpush1.msra.mxu0 0.0
    %6932 = vmatprep.subr.mxu0 0.0
    %6933 = vmatpush1.msra.mxu0 0.0
    %6934 = vmatprep.subr.mxu0 0.0
    %v6935 = vand.u32 %v6909, 4294901760
    %6936 = vmatpush1.msra.mxu0 %v6935
    %6937 = vmatprep.subr.mxu0 0.0
    %v6938 = vand.u32 %v6908, 4294901760
    %6939 = vmatpush1.msra.mxu0 %v6938
    %6940 = vmatprep.subr.mxu0 0.0
    %v6941 = vand.u32 %v6907, 4294901760
    %6942 = vmatpush1.msra.mxu0 %v6941
    %6943 = vmatprep.subr.mxu0 0.0
    %v6944 = vand.u32 %v6906, 4294901760
    %6945 = vmatpush1.msra.mxu0 %v6944
    %6946 = vmatprep.subr.mxu0 0.0
    %6947 = vmatpush2.msra.mxu0 0.0
    %6948 = vmatprep.subr.mxu0 0.0
    %6949 = vmatpush2.msra.mxu0 0.0
    %6950 = vmatprep.subr.mxu0 0.0
    %6951 = vmatpush2.msra.mxu0 0.0
    %6952 = vmatprep.subr.mxu0 0.0
    %6953 = vmatpush2.msra.mxu0 0.0
    %6954 = vmatprep.subr.mxu0 0.0
    %6955 = vmatpush2.msra.mxu0 0.0
    %6956 = vmatprep.subr.mxu0 0.0
    %6957 = vmatpush2.msra.mxu0 0.0
    %6958 = vmatprep.subr.mxu0 0.0
    %6959 = vmatpush2.msra.mxu0 0.0
    %6960 = vmatprep.subr.mxu0 0.0
    %6961 = vmatpush2.msra.mxu0 0.0
    %6962 = vmatprep.subr.mxu0 0.0
    %6963 = vmatpush2.msra.mxu0 0.0
    %6964 = vmatprep.subr.mxu0 0.0
    %6965 = vmatpush2.msra.mxu0 0.0
    %6966 = vmatprep.subr.mxu0 0.0
    %6967 = vmatpush2.msra.mxu0 0.0
    %6968 = vmatprep.subr.mxu0 0.0
    %6969 = vmatpush2.msra.mxu0 0.0
    %6970 = vmatprep.subr.mxu0 0.0
    %6971 = vmatpush2.msra.mxu0 0.0
    %6972 = vmatprep.subr.mxu0 0.0
    %6973 = vmatpush2.msra.mxu0 0.0
    %6974 = vmatprep.subr.mxu0 0.0
    %6975 = vmatpush2.msra.mxu0 0.0
    %6976 = vmatprep.subr.mxu0 0.0
    %6977 = vmatpush2.msra.mxu0 0.0
    %6978 = vmatprep.mubr.f32.mxu0 0.0
    %v6979 = vand.u32 %v2606, 4294901760
    %v6980 = vsub.f32 %v2606, %v6979
    %v6981 = vand.u32 %v6980, 4294901760
    %v6982 = vsub.f32 %v6980, %v6981
    %v6983 = vand.u32 %v6982, 4294901760
    %6984 = vmatmul.mubr.f32.gmra.mxu0 %v6983
    %v6985 = vpop.f32.mrf.mxu0
    %v6986 = vadd.f32 0.0, %v6985
    %v6987 = vpop.f32.mrf.mxu0
    %6988 = vmatprep.mubr.f32.mxu0 0.0
    %v6989 = vand.u32 %v2609, 4294901760
    %v6990 = vsub.f32 %v2609, %v6989
    %v6991 = vand.u32 %v6990, 4294901760
    %v6992 = vsub.f32 %v6990, %v6991
    %v6993 = vand.u32 %v6992, 4294901760
    %6994 = vmatmul.mubr.f32.gmra.mxu0 %v6993
    %v6995 = vpop.f32.mrf.mxu0
    %v6996 = vadd.f32 0.0, %v6995
    %v6997 = vpop.f32.mrf.mxu0
    %6998 = vdwg.mxu0
    %6999 = vmatprep.subr.mxu0 0.0
    %7000 = vmatpush1.msra.mxu0 0.0
    %7001 = vmatprep.subr.mxu0 0.0
    %7002 = vmatpush1.msra.mxu0 0.0
    %7003 = vmatprep.subr.mxu0 0.0
    %7004 = vmatpush1.msra.mxu0 0.0
    %7005 = vmatprep.subr.mxu0 0.0
    %7006 = vmatpush1.msra.mxu0 0.0
    %7007 = vmatprep.subr.mxu0 0.0
    %7008 = vmatpush1.msra.mxu0 0.0
    %7009 = vmatprep.subr.mxu0 0.0
    %7010 = vmatpush1.msra.mxu0 0.0
    %7011 = vmatprep.subr.mxu0 0.0
    %7012 = vmatpush1.msra.mxu0 0.0
    %7013 = vmatprep.subr.mxu0 0.0
    %7014 = vmatpush1.msra.mxu0 0.0
    %7015 = vmatprep.subr.mxu0 0.0
    %7016 = vmatpush1.msra.mxu0 0.0
    %7017 = vmatprep.subr.mxu0 0.0
    %7018 = vmatpush1.msra.mxu0 0.0
    %7019 = vmatprep.subr.mxu0 0.0
    %7020 = vmatpush1.msra.mxu0 0.0
    %7021 = vmatprep.subr.mxu0 0.0
    %7022 = vmatpush1.msra.mxu0 0.0
    %7023 = vmatprep.subr.mxu0 0.0
    %v7024 = vand.u32 %v6909, 4294901760
    %v7025 = vsub.f32 %v6909, %v7024
    %v7026 = vand.u32 %v7025, 4294901760
    %v7027 = vsub.f32 %v7025, %v7026
    %v7028 = vand.u32 %v7027, 4294901760
    %7029 = vmatpush1.msra.mxu0 %v7028
    %7030 = vmatprep.subr.mxu0 0.0
    %v7031 = vand.u32 %v6908, 4294901760
    %v7032 = vsub.f32 %v6908, %v7031
    %v7033 = vand.u32 %v7032, 4294901760
    %v7034 = vsub.f32 %v7032, %v7033
    %v7035 = vand.u32 %v7034, 4294901760
    %7036 = vmatpush1.msra.mxu0 %v7035
    %7037 = vmatprep.subr.mxu0 0.0
    %v7038 = vand.u32 %v6907, 4294901760
    %v7039 = vsub.f32 %v6907, %v7038
    %v7040 = vand.u32 %v7039, 4294901760
    %v7041 = vsub.f32 %v7039, %v7040
    %v7042 = vand.u32 %v7041, 4294901760
    %7043 = vmatpush1.msra.mxu0 %v7042
    %7044 = vmatprep.subr.mxu0 0.0
    %v7045 = vand.u32 %v6906, 4294901760
    %v7046 = vsub.f32 %v6906, %v7045
    %v7047 = vand.u32 %v7046, 4294901760
    %v7048 = vsub.f32 %v7046, %v7047
    %v7049 = vand.u32 %v7048, 4294901760
    %7050 = vmatpush1.msra.mxu0 %v7049
    %7051 = vmatprep.subr.mxu0 0.0
    %7052 = vmatpush2.msra.mxu0 0.0
    %7053 = vmatprep.subr.mxu0 0.0
    %7054 = vmatpush2.msra.mxu0 0.0
    %7055 = vmatprep.subr.mxu0 0.0
    %7056 = vmatpush2.msra.mxu0 0.0
    %7057 = vmatprep.subr.mxu0 0.0
    %7058 = vmatpush2.msra.mxu0 0.0
    %7059 = vmatprep.subr.mxu0 0.0
    %7060 = vmatpush2.msra.mxu0 0.0
    %7061 = vmatprep.subr.mxu0 0.0
    %7062 = vmatpush2.msra.mxu0 0.0
    %7063 = vmatprep.subr.mxu0 0.0
    %7064 = vmatpush2.msra.mxu0 0.0
    %7065 = vmatprep.subr.mxu0 0.0
    %7066 = vmatpush2.msra.mxu0 0.0
    %7067 = vmatprep.subr.mxu0 0.0
    %7068 = vmatpush2.msra.mxu0 0.0
    %7069 = vmatprep.subr.mxu0 0.0
    %7070 = vmatpush2.msra.mxu0 0.0
    %7071 = vmatprep.subr.mxu0 0.0
    %7072 = vmatpush2.msra.mxu0 0.0
    %7073 = vmatprep.subr.mxu0 0.0
    %7074 = vmatpush2.msra.mxu0 0.0
    %7075 = vmatprep.subr.mxu0 0.0
    %7076 = vmatpush2.msra.mxu0 0.0
    %7077 = vmatprep.subr.mxu0 0.0
    %7078 = vmatpush2.msra.mxu0 0.0
    %7079 = vmatprep.subr.mxu0 0.0
    %7080 = vmatpush2.msra.mxu0 0.0
    %7081 = vmatprep.subr.mxu0 0.0
    %7082 = vmatpush2.msra.mxu0 0.0
    %7083 = vmatprep.mubr.f32.mxu0 0.0
    %v7084 = vand.u32 %v2606, 4294901760
    %7085 = vmatmul.mubr.f32.gmra.mxu0 %v7084
    %v7086 = vpop.f32.mrf.mxu0
    %v7087 = vadd.f32 %v6986, %v7086
    %v7088 = vpop.f32.mrf.mxu0
    %7089 = vmatprep.mubr.f32.mxu0 0.0
    %v7090 = vand.u32 %v2609, 4294901760
    %7091 = vmatmul.mubr.f32.gmra.mxu0 %v7090
    %v7092 = vpop.f32.mrf.mxu0
    %v7093 = vadd.f32 %v6996, %v7092
    %v7094 = vpop.f32.mrf.mxu0
    %7095 = vdwg.mxu0
    %7096 = vmatprep.subr.mxu0 0.0
    %7097 = vmatpush1.msra.mxu0 0.0
    %7098 = vmatprep.subr.mxu0 0.0
    %7099 = vmatpush1.msra.mxu0 0.0
    %7100 = vmatprep.subr.mxu0 0.0
    %7101 = vmatpush1.msra.mxu0 0.0
    %7102 = vmatprep.subr.mxu0 0.0
    %7103 = vmatpush1.msra.mxu0 0.0
    %7104 = vmatprep.subr.mxu0 0.0
    %7105 = vmatpush1.msra.mxu0 0.0
    %7106 = vmatprep.subr.mxu0 0.0
    %7107 = vmatpush1.msra.mxu0 0.0
    %7108 = vmatprep.subr.mxu0 0.0
    %7109 = vmatpush1.msra.mxu0 0.0
    %7110 = vmatprep.subr.mxu0 0.0
    %7111 = vmatpush1.msra.mxu0 0.0
    %7112 = vmatprep.subr.mxu0 0.0
    %7113 = vmatpush1.msra.mxu0 0.0
    %7114 = vmatprep.subr.mxu0 0.0
    %7115 = vmatpush1.msra.mxu0 0.0
    %7116 = vmatprep.subr.mxu0 0.0
    %7117 = vmatpush1.msra.mxu0 0.0
    %7118 = vmatprep.subr.mxu0 0.0
    %7119 = vmatpush1.msra.mxu0 0.0
    %7120 = vmatprep.subr.mxu0 0.0
    %v7121 = vand.u32 %v6909, 4294901760
    %v7122 = vsub.f32 %v6909, %v7121
    %7123 = vmatpush1.msra.mxu0 %v7122
    %7124 = vmatprep.subr.mxu0 0.0
    %v7125 = vand.u32 %v6908, 4294901760
    %v7126 = vsub.f32 %v6908, %v7125
    %7127 = vmatpush1.msra.mxu0 %v7126
    %7128 = vmatprep.subr.mxu0 0.0
    %v7129 = vand.u32 %v6907, 4294901760
    %v7130 = vsub.f32 %v6907, %v7129
    %7131 = vmatpush1.msra.mxu0 %v7130
    %7132 = vmatprep.subr.mxu0 0.0
    %v7133 = vand.u32 %v6906, 4294901760
    %v7134 = vsub.f32 %v6906, %v7133
    %7135 = vmatpush1.msra.mxu0 %v7134
    %7136 = vmatprep.subr.mxu0 0.0
    %7137 = vmatpush2.msra.mxu0 0.0
    %7138 = vmatprep.subr.mxu0 0.0
    %7139 = vmatpush2.msra.mxu0 0.0
    %7140 = vmatprep.subr.mxu0 0.0
    %7141 = vmatpush2.msra.mxu0 0.0
    %7142 = vmatprep.subr.mxu0 0.0
    %7143 = vmatpush2.msra.mxu0 0.0
    %7144 = vmatprep.subr.mxu0 0.0
    %7145 = vmatpush2.msra.mxu0 0.0
    %7146 = vmatprep.subr.mxu0 0.0
    %7147 = vmatpush2.msra.mxu0 0.0
    %7148 = vmatprep.subr.mxu0 0.0
    %7149 = vmatpush2.msra.mxu0 0.0
    %7150 = vmatprep.subr.mxu0 0.0
    %7151 = vmatpush2.msra.mxu0 0.0
    %7152 = vmatprep.subr.mxu0 0.0
    %7153 = vmatpush2.msra.mxu0 0.0
    %7154 = vmatprep.subr.mxu0 0.0
    %7155 = vmatpush2.msra.mxu0 0.0
    %7156 = vmatprep.subr.mxu0 0.0
    %7157 = vmatpush2.msra.mxu0 0.0
    %7158 = vmatprep.subr.mxu0 0.0
    %7159 = vmatpush2.msra.mxu0 0.0
    %7160 = vmatprep.subr.mxu0 0.0
    %7161 = vmatpush2.msra.mxu0 0.0
    %7162 = vmatprep.subr.mxu0 0.0
    %7163 = vmatpush2.msra.mxu0 0.0
    %7164 = vmatprep.subr.mxu0 0.0
    %7165 = vmatpush2.msra.mxu0 0.0
    %7166 = vmatprep.subr.mxu0 0.0
    %7167 = vmatpush2.msra.mxu0 0.0
    %7168 = vmatprep.mubr.f32.mxu0 0.0
    %v7169 = vand.u32 %v2606, 4294901760
    %v7170 = vsub.f32 %v2606, %v7169
    %7171 = vmatmul.mubr.f32.gmra.mxu0 %v7170
    %v7172 = vpop.f32.mrf.mxu0
    %v7173 = vadd.f32 %v7087, %v7172
    %v7174 = vpop.f32.mrf.mxu0
    %7175 = vmatprep.mubr.f32.mxu0 0.0
    %v7176 = vand.u32 %v2609, 4294901760
    %v7177 = vsub.f32 %v2609, %v7176
    %7178 = vmatmul.mubr.f32.gmra.mxu0 %v7177
    %v7179 = vpop.f32.mrf.mxu0
    %v7180 = vadd.f32 %v7093, %v7179
    %v7181 = vpop.f32.mrf.mxu0
    %7182 = vdwg.mxu0
    %7183 = vmatprep.subr.mxu0 0.0
    %7184 = vmatpush1.msra.mxu0 0.0
    %7185 = vmatprep.subr.mxu0 0.0
    %7186 = vmatpush1.msra.mxu0 0.0
    %7187 = vmatprep.subr.mxu0 0.0
    %7188 = vmatpush1.msra.mxu0 0.0
    %7189 = vmatprep.subr.mxu0 0.0
    %7190 = vmatpush1.msra.mxu0 0.0
    %7191 = vmatprep.subr.mxu0 0.0
    %7192 = vmatpush1.msra.mxu0 0.0
    %7193 = vmatprep.subr.mxu0 0.0
    %7194 = vmatpush1.msra.mxu0 0.0
    %7195 = vmatprep.subr.mxu0 0.0
    %7196 = vmatpush1.msra.mxu0 0.0
    %7197 = vmatprep.subr.mxu0 0.0
    %7198 = vmatpush1.msra.mxu0 0.0
    %7199 = vmatprep.subr.mxu0 0.0
    %7200 = vmatpush1.msra.mxu0 0.0
    %7201 = vmatprep.subr.mxu0 0.0
    %7202 = vmatpush1.msra.mxu0 0.0
    %7203 = vmatprep.subr.mxu0 0.0
    %7204 = vmatpush1.msra.mxu0 0.0
    %7205 = vmatprep.subr.mxu0 0.0
    %7206 = vmatpush1.msra.mxu0 0.0
    %7207 = vmatprep.subr.mxu0 0.0
    %v7208 = vand.u32 %v6909, 4294901760
    %7209 = vmatpush1.msra.mxu0 %v7208
    %7210 = vmatprep.subr.mxu0 0.0
    %v7211 = vand.u32 %v6908, 4294901760
    %7212 = vmatpush1.msra.mxu0 %v7211
    %7213 = vmatprep.subr.mxu0 0.0
    %v7214 = vand.u32 %v6907, 4294901760
    %7215 = vmatpush1.msra.mxu0 %v7214
    %7216 = vmatprep.subr.mxu0 0.0
    %v7217 = vand.u32 %v6906, 4294901760
    %7218 = vmatpush1.msra.mxu0 %v7217
    %7219 = vmatprep.subr.mxu0 0.0
    %7220 = vmatpush2.msra.mxu0 0.0
    %7221 = vmatprep.subr.mxu0 0.0
    %7222 = vmatpush2.msra.mxu0 0.0
    %7223 = vmatprep.subr.mxu0 0.0
    %7224 = vmatpush2.msra.mxu0 0.0
    %7225 = vmatprep.subr.mxu0 0.0
    %7226 = vmatpush2.msra.mxu0 0.0
    %7227 = vmatprep.subr.mxu0 0.0
    %7228 = vmatpush2.msra.mxu0 0.0
    %7229 = vmatprep.subr.mxu0 0.0
    %7230 = vmatpush2.msra.mxu0 0.0
    %7231 = vmatprep.subr.mxu0 0.0
    %7232 = vmatpush2.msra.mxu0 0.0
    %7233 = vmatprep.subr.mxu0 0.0
    %7234 = vmatpush2.msra.mxu0 0.0
    %7235 = vmatprep.subr.mxu0 0.0
    %7236 = vmatpush2.msra.mxu0 0.0
    %7237 = vmatprep.subr.mxu0 0.0
    %7238 = vmatpush2.msra.mxu0 0.0
    %7239 = vmatprep.subr.mxu0 0.0
    %7240 = vmatpush2.msra.mxu0 0.0
    %7241 = vmatprep.subr.mxu0 0.0
    %7242 = vmatpush2.msra.mxu0 0.0
    %7243 = vmatprep.subr.mxu0 0.0
    %7244 = vmatpush2.msra.mxu0 0.0
    %7245 = vmatprep.subr.mxu0 0.0
    %7246 = vmatpush2.msra.mxu0 0.0
    %7247 = vmatprep.subr.mxu0 0.0
    %7248 = vmatpush2.msra.mxu0 0.0
    %7249 = vmatprep.subr.mxu0 0.0
    %7250 = vmatpush2.msra.mxu0 0.0
    %7251 = vmatprep.mubr.f32.mxu0 0.0
    %v7252 = vand.u32 %v2606, 4294901760
    %v7253 = vsub.f32 %v2606, %v7252
    %v7254 = vand.u32 %v7253, 4294901760
    %7255 = vmatmul.mubr.f32.gmra.mxu0 %v7254
    %v7256 = vpop.f32.mrf.mxu0
    %v7257 = vadd.f32 %v7173, %v7256
    %v7258 = vpop.f32.mrf.mxu0
    %7259 = vmatprep.mubr.f32.mxu0 0.0
    %v7260 = vand.u32 %v2609, 4294901760
    %v7261 = vsub.f32 %v2609, %v7260
    %v7262 = vand.u32 %v7261, 4294901760
    %7263 = vmatmul.mubr.f32.gmra.mxu0 %v7262
    %v7264 = vpop.f32.mrf.mxu0
    %v7265 = vadd.f32 %v7180, %v7264
    %v7266 = vpop.f32.mrf.mxu0
    %7267 = vdwg.mxu0
    %7268 = vmatprep.subr.mxu0 0.0
    %7269 = vmatpush1.msra.mxu0 0.0
    %7270 = vmatprep.subr.mxu0 0.0
    %7271 = vmatpush1.msra.mxu0 0.0
    %7272 = vmatprep.subr.mxu0 0.0
    %7273 = vmatpush1.msra.mxu0 0.0
    %7274 = vmatprep.subr.mxu0 0.0
    %7275 = vmatpush1.msra.mxu0 0.0
    %7276 = vmatprep.subr.mxu0 0.0
    %7277 = vmatpush1.msra.mxu0 0.0
    %7278 = vmatprep.subr.mxu0 0.0
    %7279 = vmatpush1.msra.mxu0 0.0
    %7280 = vmatprep.subr.mxu0 0.0
    %7281 = vmatpush1.msra.mxu0 0.0
    %7282 = vmatprep.subr.mxu0 0.0
    %7283 = vmatpush1.msra.mxu0 0.0
    %7284 = vmatprep.subr.mxu0 0.0
    %7285 = vmatpush1.msra.mxu0 0.0
    %7286 = vmatprep.subr.mxu0 0.0
    %7287 = vmatpush1.msra.mxu0 0.0
    %7288 = vmatprep.subr.mxu0 0.0
    %7289 = vmatpush1.msra.mxu0 0.0
    %7290 = vmatprep.subr.mxu0 0.0
    %7291 = vmatpush1.msra.mxu0 0.0
    %7292 = vmatprep.subr.mxu0 0.0
    %v7293 = vand.u32 %v6909, 4294901760
    %v7294 = vsub.f32 %v6909, %v7293
    %v7295 = vand.u32 %v7294, 4294901760
    %7296 = vmatpush1.msra.mxu0 %v7295
    %7297 = vmatprep.subr.mxu0 0.0
    %v7298 = vand.u32 %v6908, 4294901760
    %v7299 = vsub.f32 %v6908, %v7298
    %v7300 = vand.u32 %v7299, 4294901760
    %7301 = vmatpush1.msra.mxu0 %v7300
    %7302 = vmatprep.subr.mxu0 0.0
    %v7303 = vand.u32 %v6907, 4294901760
    %v7304 = vsub.f32 %v6907, %v7303
    %v7305 = vand.u32 %v7304, 4294901760
    %7306 = vmatpush1.msra.mxu0 %v7305
    %7307 = vmatprep.subr.mxu0 0.0
    %v7308 = vand.u32 %v6906, 4294901760
    %v7309 = vsub.f32 %v6906, %v7308
    %v7310 = vand.u32 %v7309, 4294901760
    %7311 = vmatpush1.msra.mxu0 %v7310
    %7312 = vmatprep.subr.mxu0 0.0
    %7313 = vmatpush2.msra.mxu0 0.0
    %7314 = vmatprep.subr.mxu0 0.0
    %7315 = vmatpush2.msra.mxu0 0.0
    %7316 = vmatprep.subr.mxu0 0.0
    %7317 = vmatpush2.msra.mxu0 0.0
    %7318 = vmatprep.subr.mxu0 0.0
    %7319 = vmatpush2.msra.mxu0 0.0
    %7320 = vmatprep.subr.mxu0 0.0
    %7321 = vmatpush2.msra.mxu0 0.0
    %7322 = vmatprep.subr.mxu0 0.0
    %7323 = vmatpush2.msra.mxu0 0.0
    %7324 = vmatprep.subr.mxu0 0.0
    %7325 = vmatpush2.msra.mxu0 0.0
    %7326 = vmatprep.subr.mxu0 0.0
    %7327 = vmatpush2.msra.mxu0 0.0
    %7328 = vmatprep.subr.mxu0 0.0
    %7329 = vmatpush2.msra.mxu0 0.0
    %7330 = vmatprep.subr.mxu0 0.0
    %7331 = vmatpush2.msra.mxu0 0.0
    %7332 = vmatprep.subr.mxu0 0.0
    %7333 = vmatpush2.msra.mxu0 0.0
    %7334 = vmatprep.subr.mxu0 0.0
    %7335 = vmatpush2.msra.mxu0 0.0
    %7336 = vmatprep.subr.mxu0 0.0
    %7337 = vmatpush2.msra.mxu0 0.0
    %7338 = vmatprep.subr.mxu0 0.0
    %7339 = vmatpush2.msra.mxu0 0.0
    %7340 = vmatprep.subr.mxu0 0.0
    %7341 = vmatpush2.msra.mxu0 0.0
    %7342 = vmatprep.subr.mxu0 0.0
    %7343 = vmatpush2.msra.mxu0 0.0
    %7344 = vmatprep.mubr.f32.mxu0 0.0
    %v7345 = vand.u32 %v2606, 4294901760
    %7346 = vmatmul.mubr.f32.gmra.mxu0 %v7345
    %v7347 = vpop.f32.mrf.mxu0
    %v7348 = vadd.f32 %v7257, %v7347
    %v7349 = vpop.f32.mrf.mxu0
    %7350 = vmatprep.mubr.f32.mxu0 0.0
    %v7351 = vand.u32 %v2609, 4294901760
    %7352 = vmatmul.mubr.f32.gmra.mxu0 %v7351
    %v7353 = vpop.f32.mrf.mxu0
    %v7354 = vadd.f32 %v7265, %v7353
    %v7355 = vpop.f32.mrf.mxu0
    %7356 = vdwg.mxu0
    %7357 = vmatprep.subr.mxu0 0.0
    %7358 = vmatpush1.msra.mxu0 0.0
    %7359 = vmatprep.subr.mxu0 0.0
    %7360 = vmatpush1.msra.mxu0 0.0
    %7361 = vmatprep.subr.mxu0 0.0
    %7362 = vmatpush1.msra.mxu0 0.0
    %7363 = vmatprep.subr.mxu0 0.0
    %7364 = vmatpush1.msra.mxu0 0.0
    %7365 = vmatprep.subr.mxu0 0.0
    %7366 = vmatpush1.msra.mxu0 0.0
    %7367 = vmatprep.subr.mxu0 0.0
    %7368 = vmatpush1.msra.mxu0 0.0
    %7369 = vmatprep.subr.mxu0 0.0
    %7370 = vmatpush1.msra.mxu0 0.0
    %7371 = vmatprep.subr.mxu0 0.0
    %7372 = vmatpush1.msra.mxu0 0.0
    %7373 = vmatprep.subr.mxu0 0.0
    %7374 = vmatpush1.msra.mxu0 0.0
    %7375 = vmatprep.subr.mxu0 0.0
    %7376 = vmatpush1.msra.mxu0 0.0
    %7377 = vmatprep.subr.mxu0 0.0
    %7378 = vmatpush1.msra.mxu0 0.0
    %7379 = vmatprep.subr.mxu0 0.0
    %7380 = vmatpush1.msra.mxu0 0.0
    %7381 = vmatprep.subr.mxu0 0.0
    %v7382 = vand.u32 %v6909, 4294901760
    %7383 = vmatpush1.msra.mxu0 %v7382
    %7384 = vmatprep.subr.mxu0 0.0
    %v7385 = vand.u32 %v6908, 4294901760
    %7386 = vmatpush1.msra.mxu0 %v7385
    %7387 = vmatprep.subr.mxu0 0.0
    %v7388 = vand.u32 %v6907, 4294901760
    %7389 = vmatpush1.msra.mxu0 %v7388
    %7390 = vmatprep.subr.mxu0 0.0
    %v7391 = vand.u32 %v6906, 4294901760
    %7392 = vmatpush1.msra.mxu0 %v7391
    %7393 = vmatprep.subr.mxu0 0.0
    %7394 = vmatpush2.msra.mxu0 0.0
    %7395 = vmatprep.subr.mxu0 0.0
    %7396 = vmatpush2.msra.mxu0 0.0
    %7397 = vmatprep.subr.mxu0 0.0
    %7398 = vmatpush2.msra.mxu0 0.0
    %7399 = vmatprep.subr.mxu0 0.0
    %7400 = vmatpush2.msra.mxu0 0.0
    %7401 = vmatprep.subr.mxu0 0.0
    %7402 = vmatpush2.msra.mxu0 0.0
    %7403 = vmatprep.subr.mxu0 0.0
    %7404 = vmatpush2.msra.mxu0 0.0
    %7405 = vmatprep.subr.mxu0 0.0
    %7406 = vmatpush2.msra.mxu0 0.0
    %7407 = vmatprep.subr.mxu0 0.0
    %7408 = vmatpush2.msra.mxu0 0.0
    %7409 = vmatprep.subr.mxu0 0.0
    %7410 = vmatpush2.msra.mxu0 0.0
    %7411 = vmatprep.subr.mxu0 0.0
    %7412 = vmatpush2.msra.mxu0 0.0
    %7413 = vmatprep.subr.mxu0 0.0
    %7414 = vmatpush2.msra.mxu0 0.0
    %7415 = vmatprep.subr.mxu0 0.0
    %7416 = vmatpush2.msra.mxu0 0.0
    %7417 = vmatprep.subr.mxu0 0.0
    %7418 = vmatpush2.msra.mxu0 0.0
    %7419 = vmatprep.subr.mxu0 0.0
    %7420 = vmatpush2.msra.mxu0 0.0
    %7421 = vmatprep.subr.mxu0 0.0
    %7422 = vmatpush2.msra.mxu0 0.0
    %7423 = vmatprep.subr.mxu0 0.0
    %7424 = vmatpush2.msra.mxu0 0.0
    %7425 = vmatprep.mubr.f32.mxu0 0.0
    %v7426 = vand.u32 %v2606, 4294901760
    %7427 = vmatmul.mubr.f32.gmra.mxu0 %v7426
    %v7428 = vpop.f32.mrf.mxu0
    %v7429 = vadd.f32 %v7348, %v7428
    %v7430 = vpop.f32.mrf.mxu0
    %7431 = vmatprep.mubr.f32.mxu0 0.0
    %v7432 = vand.u32 %v2609, 4294901760
    %7433 = vmatmul.mubr.f32.gmra.mxu0 %v7432
    %v7434 = vpop.f32.mrf.mxu0
    %v7435 = vadd.f32 %v7354, %v7434
    %v7436 = vpop.f32.mrf.mxu0
    %7437 = vdwg.mxu0
    %v7438 = vmul.f32 %v7429, %v7429
    %v7439 = vmul.f32 %v7435, %v7435
    %v7440 = vsel %vm1289, %v7438, 0.0
    %7441 = vadd.xlane.f32.xlu0 %v7440
    %v7442 = vpop.xlane.xlu0 %7441
    %v7443 = vsel %vm1289, %v7439, 0.0
    %7444 = vadd.xlane.f32.xlu0 %v7443
    %v7445 = vpop.xlane.xlu0 %7444
    %v7446 = vmul.f32 %v7442, %v1302
    %v7447 = vmul.f32 %v7445, %v1302
    %v7448 = vadd.f32 %v7446, 1e-05
    %v7449 = vadd.f32 %v7447, 1e-05
    %v7450 = vrsqrt.pop %v7448
    %v7451 = vrsqrt.pop %v7449
    %v7452 = vmul.f32 %v7429, %v7450
    %v7453 = vmul.f32 %v7435, %v7451
    %v7454 = vmul.f32 %v7452, %v3158
    %v7455 = vmul.f32 %v7453, %v3158
    %v7457 = vsel %vm1289, %v7454, 0
    %v7460 = vsel %vm1289, %v7455, 0
    %v7463 = vsel %vm1289, %v2597, 0
    %v7466 = vsel %vm1289, %v2598, 0
    %v7469 = vsel %vm1289, %v2599, 0
    %v7472 = vsel %vm1289, %v2600, 0
    %7474 = vmatprep.subr.mxu0 0.0
    %7475 = vmatpush1.xpose.msra.mxu0 0.0
    %7476 = vmatprep.subr.mxu0 0.0
    %7477 = vmatpush1.xpose.msra.mxu0 0.0
    %7478 = vmatprep.subr.mxu0 0.0
    %7479 = vmatpush1.xpose.msra.mxu0 0.0
    %7480 = vmatprep.subr.mxu0 0.0
    %7481 = vmatpush1.xpose.msra.mxu0 0.0
    %7482 = vmatprep.subr.mxu0 0.0
    %7483 = vmatpush1.xpose.msra.mxu0 0.0
    %7484 = vmatprep.subr.mxu0 0.0
    %7485 = vmatpush1.xpose.msra.mxu0 0.0
    %7486 = vmatprep.subr.mxu0 0.0
    %7487 = vmatpush1.xpose.msra.mxu0 0.0
    %7488 = vmatprep.subr.mxu0 0.0
    %7489 = vmatpush1.xpose.msra.mxu0 0.0
    %7490 = vmatprep.subr.mxu0 0.0
    %7491 = vmatpush1.xpose.msra.mxu0 0.0
    %7492 = vmatprep.subr.mxu0 0.0
    %7493 = vmatpush1.xpose.msra.mxu0 0.0
    %7494 = vmatprep.subr.mxu0 0.0
    %7495 = vmatpush1.xpose.msra.mxu0 0.0
    %7496 = vmatprep.subr.mxu0 0.0
    %7497 = vmatpush1.xpose.msra.mxu0 0.0
    %7498 = vmatprep.subr.mxu0 0.0
    %v7499 = vand.u32 %v7472, 4294901760
    %7500 = vmatpush1.xpose.msra.mxu0 %v7499
    %7501 = vmatprep.subr.mxu0 0.0
    %v7502 = vand.u32 %v7469, 4294901760
    %7503 = vmatpush1.xpose.msra.mxu0 %v7502
    %7504 = vmatprep.subr.mxu0 0.0
    %v7505 = vand.u32 %v7466, 4294901760
    %7506 = vmatpush1.xpose.msra.mxu0 %v7505
    %7507 = vmatprep.subr.mxu0 0.0
    %v7508 = vand.u32 %v7463, 4294901760
    %7509 = vmatpush1.xpose.msra.mxu0 %v7508
    %7510 = vmatprep.subr.mxu0 0.0
    %7511 = vmatpush2.xpose.msra.mxu0 0.0
    %7512 = vmatprep.subr.mxu0 0.0
    %7513 = vmatpush2.xpose.msra.mxu0 0.0
    %7514 = vmatprep.subr.mxu0 0.0
    %7515 = vmatpush2.xpose.msra.mxu0 0.0
    %7516 = vmatprep.subr.mxu0 0.0
    %7517 = vmatpush2.xpose.msra.mxu0 0.0
    %7518 = vmatprep.subr.mxu0 0.0
    %7519 = vmatpush2.xpose.msra.mxu0 0.0
    %7520 = vmatprep.subr.mxu0 0.0
    %7521 = vmatpush2.xpose.msra.mxu0 0.0
    %7522 = vmatprep.subr.mxu0 0.0
    %7523 = vmatpush2.xpose.msra.mxu0 0.0
    %7524 = vmatprep.subr.mxu0 0.0
    %7525 = vmatpush2.xpose.msra.mxu0 0.0
    %7526 = vmatprep.subr.mxu0 0.0
    %7527 = vmatpush2.xpose.msra.mxu0 0.0
    %7528 = vmatprep.subr.mxu0 0.0
    %7529 = vmatpush2.xpose.msra.mxu0 0.0
    %7530 = vmatprep.subr.mxu0 0.0
    %7531 = vmatpush2.xpose.msra.mxu0 0.0
    %7532 = vmatprep.subr.mxu0 0.0
    %7533 = vmatpush2.xpose.msra.mxu0 0.0
    %7534 = vmatprep.subr.mxu0 0.0
    %7535 = vmatpush2.xpose.msra.mxu0 0.0
    %7536 = vmatprep.subr.mxu0 0.0
    %7537 = vmatpush2.xpose.msra.mxu0 0.0
    %7538 = vmatprep.subr.mxu0 0.0
    %7539 = vmatpush2.xpose.msra.mxu0 0.0
    %7540 = vmatprep.subr.mxu0 0.0
    %7541 = vmatpush2.xpose.msra.mxu0 0.0
    %7542 = vmatprep.mubr.f32.mxu0 0.0
    %v7543 = vand.u32 %v7457, 4294901760
    %v7544 = vsub.f32 %v7457, %v7543
    %v7545 = vand.u32 %v7544, 4294901760
    %v7546 = vsub.f32 %v7544, %v7545
    %v7547 = vand.u32 %v7546, 4294901760
    %7548 = vmatmul.mubr.f32.gmra.mxu0 %v7547
    %v7549 = vpop.f32.mrf.mxu0
    %v7550 = vadd.f32 0.0, %v7549
    %v7551 = vpop.f32.mrf.mxu0
    %7552 = vmatprep.mubr.f32.mxu0 0.0
    %v7553 = vand.u32 %v7460, 4294901760
    %v7554 = vsub.f32 %v7460, %v7553
    %v7555 = vand.u32 %v7554, 4294901760
    %v7556 = vsub.f32 %v7554, %v7555
    %v7557 = vand.u32 %v7556, 4294901760
    %7558 = vmatmul.mubr.f32.gmra.mxu0 %v7557
    %v7559 = vpop.f32.mrf.mxu0
    %v7560 = vadd.f32 0.0, %v7559
    %v7561 = vpop.f32.mrf.mxu0
    %7562 = vdwg.mxu0
    %7563 = vmatprep.subr.mxu0 0.0
    %7564 = vmatpush1.xpose.msra.mxu0 0.0
    %7565 = vmatprep.subr.mxu0 0.0
    %7566 = vmatpush1.xpose.msra.mxu0 0.0
    %7567 = vmatprep.subr.mxu0 0.0
    %7568 = vmatpush1.xpose.msra.mxu0 0.0
    %7569 = vmatprep.subr.mxu0 0.0
    %7570 = vmatpush1.xpose.msra.mxu0 0.0
    %7571 = vmatprep.subr.mxu0 0.0
    %7572 = vmatpush1.xpose.msra.mxu0 0.0
    %7573 = vmatprep.subr.mxu0 0.0
    %7574 = vmatpush1.xpose.msra.mxu0 0.0
    %7575 = vmatprep.subr.mxu0 0.0
    %7576 = vmatpush1.xpose.msra.mxu0 0.0
    %7577 = vmatprep.subr.mxu0 0.0
    %7578 = vmatpush1.xpose.msra.mxu0 0.0
    %7579 = vmatprep.subr.mxu0 0.0
    %7580 = vmatpush1.xpose.msra.mxu0 0.0
    %7581 = vmatprep.subr.mxu0 0.0
    %7582 = vmatpush1.xpose.msra.mxu0 0.0
    %7583 = vmatprep.subr.mxu0 0.0
    %7584 = vmatpush1.xpose.msra.mxu0 0.0
    %7585 = vmatprep.subr.mxu0 0.0
    %7586 = vmatpush1.xpose.msra.mxu0 0.0
    %7587 = vmatprep.subr.mxu0 0.0
    %v7588 = vand.u32 %v7472, 4294901760
    %v7589 = vsub.f32 %v7472, %v7588
    %v7590 = vand.u32 %v7589, 4294901760
    %v7591 = vsub.f32 %v7589, %v7590
    %v7592 = vand.u32 %v7591, 4294901760
    %7593 = vmatpush1.xpose.msra.mxu0 %v7592
    %7594 = vmatprep.subr.mxu0 0.0
    %v7595 = vand.u32 %v7469, 4294901760
    %v7596 = vsub.f32 %v7469, %v7595
    %v7597 = vand.u32 %v7596, 4294901760
    %v7598 = vsub.f32 %v7596, %v7597
    %v7599 = vand.u32 %v7598, 4294901760
    %7600 = vmatpush1.xpose.msra.mxu0 %v7599
    %7601 = vmatprep.subr.mxu0 0.0
    %v7602 = vand.u32 %v7466, 4294901760
    %v7603 = vsub.f32 %v7466, %v7602
    %v7604 = vand.u32 %v7603, 4294901760
    %v7605 = vsub.f32 %v7603, %v7604
    %v7606 = vand.u32 %v7605, 4294901760
    %7607 = vmatpush1.xpose.msra.mxu0 %v7606
    %7608 = vmatprep.subr.mxu0 0.0
    %v7609 = vand.u32 %v7463, 4294901760
    %v7610 = vsub.f32 %v7463, %v7609
    %v7611 = vand.u32 %v7610, 4294901760
    %v7612 = vsub.f32 %v7610, %v7611
    %v7613 = vand.u32 %v7612, 4294901760
    %7614 = vmatpush1.xpose.msra.mxu0 %v7613
    %7615 = vmatprep.subr.mxu0 0.0
    %7616 = vmatpush2.xpose.msra.mxu0 0.0
    %7617 = vmatprep.subr.mxu0 0.0
    %7618 = vmatpush2.xpose.msra.mxu0 0.0
    %7619 = vmatprep.subr.mxu0 0.0
    %7620 = vmatpush2.xpose.msra.mxu0 0.0
    %7621 = vmatprep.subr.mxu0 0.0
    %7622 = vmatpush2.xpose.msra.mxu0 0.0
    %7623 = vmatprep.subr.mxu0 0.0
    %7624 = vmatpush2.xpose.msra.mxu0 0.0
    %7625 = vmatprep.subr.mxu0 0.0
    %7626 = vmatpush2.xpose.msra.mxu0 0.0
    %7627 = vmatprep.subr.mxu0 0.0
    %7628 = vmatpush2.xpose.msra.mxu0 0.0
    %7629 = vmatprep.subr.mxu0 0.0
    %7630 = vmatpush2.xpose.msra.mxu0 0.0
    %7631 = vmatprep.subr.mxu0 0.0
    %7632 = vmatpush2.xpose.msra.mxu0 0.0
    %7633 = vmatprep.subr.mxu0 0.0
    %7634 = vmatpush2.xpose.msra.mxu0 0.0
    %7635 = vmatprep.subr.mxu0 0.0
    %7636 = vmatpush2.xpose.msra.mxu0 0.0
    %7637 = vmatprep.subr.mxu0 0.0
    %7638 = vmatpush2.xpose.msra.mxu0 0.0
    %7639 = vmatprep.subr.mxu0 0.0
    %7640 = vmatpush2.xpose.msra.mxu0 0.0
    %7641 = vmatprep.subr.mxu0 0.0
    %7642 = vmatpush2.xpose.msra.mxu0 0.0
    %7643 = vmatprep.subr.mxu0 0.0
    %7644 = vmatpush2.xpose.msra.mxu0 0.0
    %7645 = vmatprep.subr.mxu0 0.0
    %7646 = vmatpush2.xpose.msra.mxu0 0.0
    %7647 = vmatprep.mubr.f32.mxu0 0.0
    %v7648 = vand.u32 %v7457, 4294901760
    %7649 = vmatmul.mubr.f32.gmra.mxu0 %v7648
    %v7650 = vpop.f32.mrf.mxu0
    %v7651 = vadd.f32 %v7550, %v7650
    %v7652 = vpop.f32.mrf.mxu0
    %7653 = vmatprep.mubr.f32.mxu0 0.0
    %v7654 = vand.u32 %v7460, 4294901760
    %7655 = vmatmul.mubr.f32.gmra.mxu0 %v7654
    %v7656 = vpop.f32.mrf.mxu0
    %v7657 = vadd.f32 %v7560, %v7656
    %v7658 = vpop.f32.mrf.mxu0
    %7659 = vdwg.mxu0
    %7660 = vmatprep.subr.mxu0 0.0
    %7661 = vmatpush1.xpose.msra.mxu0 0.0
    %7662 = vmatprep.subr.mxu0 0.0
    %7663 = vmatpush1.xpose.msra.mxu0 0.0
    %7664 = vmatprep.subr.mxu0 0.0
    %7665 = vmatpush1.xpose.msra.mxu0 0.0
    %7666 = vmatprep.subr.mxu0 0.0
    %7667 = vmatpush1.xpose.msra.mxu0 0.0
    %7668 = vmatprep.subr.mxu0 0.0
    %7669 = vmatpush1.xpose.msra.mxu0 0.0
    %7670 = vmatprep.subr.mxu0 0.0
    %7671 = vmatpush1.xpose.msra.mxu0 0.0
    %7672 = vmatprep.subr.mxu0 0.0
    %7673 = vmatpush1.xpose.msra.mxu0 0.0
    %7674 = vmatprep.subr.mxu0 0.0
    %7675 = vmatpush1.xpose.msra.mxu0 0.0
    %7676 = vmatprep.subr.mxu0 0.0
    %7677 = vmatpush1.xpose.msra.mxu0 0.0
    %7678 = vmatprep.subr.mxu0 0.0
    %7679 = vmatpush1.xpose.msra.mxu0 0.0
    %7680 = vmatprep.subr.mxu0 0.0
    %7681 = vmatpush1.xpose.msra.mxu0 0.0
    %7682 = vmatprep.subr.mxu0 0.0
    %7683 = vmatpush1.xpose.msra.mxu0 0.0
    %7684 = vmatprep.subr.mxu0 0.0
    %v7685 = vand.u32 %v7472, 4294901760
    %v7686 = vsub.f32 %v7472, %v7685
    %7687 = vmatpush1.xpose.msra.mxu0 %v7686
    %7688 = vmatprep.subr.mxu0 0.0
    %v7689 = vand.u32 %v7469, 4294901760
    %v7690 = vsub.f32 %v7469, %v7689
    %7691 = vmatpush1.xpose.msra.mxu0 %v7690
    %7692 = vmatprep.subr.mxu0 0.0
    %v7693 = vand.u32 %v7466, 4294901760
    %v7694 = vsub.f32 %v7466, %v7693
    %7695 = vmatpush1.xpose.msra.mxu0 %v7694
    %7696 = vmatprep.subr.mxu0 0.0
    %v7697 = vand.u32 %v7463, 4294901760
    %v7698 = vsub.f32 %v7463, %v7697
    %7699 = vmatpush1.xpose.msra.mxu0 %v7698
    %7700 = vmatprep.subr.mxu0 0.0
    %7701 = vmatpush2.xpose.msra.mxu0 0.0
    %7702 = vmatprep.subr.mxu0 0.0
    %7703 = vmatpush2.xpose.msra.mxu0 0.0
    %7704 = vmatprep.subr.mxu0 0.0
    %7705 = vmatpush2.xpose.msra.mxu0 0.0
    %7706 = vmatprep.subr.mxu0 0.0
    %7707 = vmatpush2.xpose.msra.mxu0 0.0
    %7708 = vmatprep.subr.mxu0 0.0
    %7709 = vmatpush2.xpose.msra.mxu0 0.0
    %7710 = vmatprep.subr.mxu0 0.0
    %7711 = vmatpush2.xpose.msra.mxu0 0.0
    %7712 = vmatprep.subr.mxu0 0.0
    %7713 = vmatpush2.xpose.msra.mxu0 0.0
    %7714 = vmatprep.subr.mxu0 0.0
    %7715 = vmatpush2.xpose.msra.mxu0 0.0
    %7716 = vmatprep.subr.mxu0 0.0
    %7717 = vmatpush2.xpose.msra.mxu0 0.0
    %7718 = vmatprep.subr.mxu0 0.0
    %7719 = vmatpush2.xpose.msra.mxu0 0.0
    %7720 = vmatprep.subr.mxu0 0.0
    %7721 = vmatpush2.xpose.msra.mxu0 0.0
    %7722 = vmatprep.subr.mxu0 0.0
    %7723 = vmatpush2.xpose.msra.mxu0 0.0
    %7724 = vmatprep.subr.mxu0 0.0
    %7725 = vmatpush2.xpose.msra.mxu0 0.0
    %7726 = vmatprep.subr.mxu0 0.0
    %7727 = vmatpush2.xpose.msra.mxu0 0.0
    %7728 = vmatprep.subr.mxu0 0.0
    %7729 = vmatpush2.xpose.msra.mxu0 0.0
    %7730 = vmatprep.subr.mxu0 0.0
    %7731 = vmatpush2.xpose.msra.mxu0 0.0
    %7732 = vmatprep.mubr.f32.mxu0 0.0
    %v7733 = vand.u32 %v7457, 4294901760
    %v7734 = vsub.f32 %v7457, %v7733
    %7735 = vmatmul.mubr.f32.gmra.mxu0 %v7734
    %v7736 = vpop.f32.mrf.mxu0
    %v7737 = vadd.f32 %v7651, %v7736
    %v7738 = vpop.f32.mrf.mxu0
    %7739 = vmatprep.mubr.f32.mxu0 0.0
    %v7740 = vand.u32 %v7460, 4294901760
    %v7741 = vsub.f32 %v7460, %v7740
    %7742 = vmatmul.mubr.f32.gmra.mxu0 %v7741
    %v7743 = vpop.f32.mrf.mxu0
    %v7744 = vadd.f32 %v7657, %v7743
    %v7745 = vpop.f32.mrf.mxu0
    %7746 = vdwg.mxu0
    %7747 = vmatprep.subr.mxu0 0.0
    %7748 = vmatpush1.xpose.msra.mxu0 0.0
    %7749 = vmatprep.subr.mxu0 0.0
    %7750 = vmatpush1.xpose.msra.mxu0 0.0
    %7751 = vmatprep.subr.mxu0 0.0
    %7752 = vmatpush1.xpose.msra.mxu0 0.0
    %7753 = vmatprep.subr.mxu0 0.0
    %7754 = vmatpush1.xpose.msra.mxu0 0.0
    %7755 = vmatprep.subr.mxu0 0.0
    %7756 = vmatpush1.xpose.msra.mxu0 0.0
    %7757 = vmatprep.subr.mxu0 0.0
    %7758 = vmatpush1.xpose.msra.mxu0 0.0
    %7759 = vmatprep.subr.mxu0 0.0
    %7760 = vmatpush1.xpose.msra.mxu0 0.0
    %7761 = vmatprep.subr.mxu0 0.0
    %7762 = vmatpush1.xpose.msra.mxu0 0.0
    %7763 = vmatprep.subr.mxu0 0.0
    %7764 = vmatpush1.xpose.msra.mxu0 0.0
    %7765 = vmatprep.subr.mxu0 0.0
    %7766 = vmatpush1.xpose.msra.mxu0 0.0
    %7767 = vmatprep.subr.mxu0 0.0
    %7768 = vmatpush1.xpose.msra.mxu0 0.0
    %7769 = vmatprep.subr.mxu0 0.0
    %7770 = vmatpush1.xpose.msra.mxu0 0.0
    %7771 = vmatprep.subr.mxu0 0.0
    %v7772 = vand.u32 %v7472, 4294901760
    %7773 = vmatpush1.xpose.msra.mxu0 %v7772
    %7774 = vmatprep.subr.mxu0 0.0
    %v7775 = vand.u32 %v7469, 4294901760
    %7776 = vmatpush1.xpose.msra.mxu0 %v7775
    %7777 = vmatprep.subr.mxu0 0.0
    %v7778 = vand.u32 %v7466, 4294901760
    %7779 = vmatpush1.xpose.msra.mxu0 %v7778
    %7780 = vmatprep.subr.mxu0 0.0
    %v7781 = vand.u32 %v7463, 4294901760
    %7782 = vmatpush1.xpose.msra.mxu0 %v7781
    %7783 = vmatprep.subr.mxu0 0.0
    %7784 = vmatpush2.xpose.msra.mxu0 0.0
    %7785 = vmatprep.subr.mxu0 0.0
    %7786 = vmatpush2.xpose.msra.mxu0 0.0
    %7787 = vmatprep.subr.mxu0 0.0
    %7788 = vmatpush2.xpose.msra.mxu0 0.0
    %7789 = vmatprep.subr.mxu0 0.0
    %7790 = vmatpush2.xpose.msra.mxu0 0.0
    %7791 = vmatprep.subr.mxu0 0.0
    %7792 = vmatpush2.xpose.msra.mxu0 0.0
    %7793 = vmatprep.subr.mxu0 0.0
    %7794 = vmatpush2.xpose.msra.mxu0 0.0
    %7795 = vmatprep.subr.mxu0 0.0
    %7796 = vmatpush2.xpose.msra.mxu0 0.0
    %7797 = vmatprep.subr.mxu0 0.0
    %7798 = vmatpush2.xpose.msra.mxu0 0.0
    %7799 = vmatprep.subr.mxu0 0.0
    %7800 = vmatpush2.xpose.msra.mxu0 0.0
    %7801 = vmatprep.subr.mxu0 0.0
    %7802 = vmatpush2.xpose.msra.mxu0 0.0
    %7803 = vmatprep.subr.mxu0 0.0
    %7804 = vmatpush2.xpose.msra.mxu0 0.0
    %7805 = vmatprep.subr.mxu0 0.0
    %7806 = vmatpush2.xpose.msra.mxu0 0.0
    %7807 = vmatprep.subr.mxu0 0.0
    %7808 = vmatpush2.xpose.msra.mxu0 0.0
    %7809 = vmatprep.subr.mxu0 0.0
    %7810 = vmatpush2.xpose.msra.mxu0 0.0
    %7811 = vmatprep.subr.mxu0 0.0
    %7812 = vmatpush2.xpose.msra.mxu0 0.0
    %7813 = vmatprep.subr.mxu0 0.0
    %7814 = vmatpush2.xpose.msra.mxu0 0.0
    %7815 = vmatprep.mubr.f32.mxu0 0.0
    %v7816 = vand.u32 %v7457, 4294901760
    %v7817 = vsub.f32 %v7457, %v7816
    %v7818 = vand.u32 %v7817, 4294901760
    %7819 = vmatmul.mubr.f32.gmra.mxu0 %v7818
    %v7820 = vpop.f32.mrf.mxu0
    %v7821 = vadd.f32 %v7737, %v7820
    %v7822 = vpop.f32.mrf.mxu0
    %7823 = vmatprep.mubr.f32.mxu0 0.0
    %v7824 = vand.u32 %v7460, 4294901760
    %v7825 = vsub.f32 %v7460, %v7824
    %v7826 = vand.u32 %v7825, 4294901760
    %7827 = vmatmul.mubr.f32.gmra.mxu0 %v7826
    %v7828 = vpop.f32.mrf.mxu0
    %v7829 = vadd.f32 %v7744, %v7828
    %v7830 = vpop.f32.mrf.mxu0
    %7831 = vdwg.mxu0
    %7832 = vmatprep.subr.mxu0 0.0
    %7833 = vmatpush1.xpose.msra.mxu0 0.0
    %7834 = vmatprep.subr.mxu0 0.0
    %7835 = vmatpush1.xpose.msra.mxu0 0.0
    %7836 = vmatprep.subr.mxu0 0.0
    %7837 = vmatpush1.xpose.msra.mxu0 0.0
    %7838 = vmatprep.subr.mxu0 0.0
    %7839 = vmatpush1.xpose.msra.mxu0 0.0
    %7840 = vmatprep.subr.mxu0 0.0
    %7841 = vmatpush1.xpose.msra.mxu0 0.0
    %7842 = vmatprep.subr.mxu0 0.0
    %7843 = vmatpush1.xpose.msra.mxu0 0.0
    %7844 = vmatprep.subr.mxu0 0.0
    %7845 = vmatpush1.xpose.msra.mxu0 0.0
    %7846 = vmatprep.subr.mxu0 0.0
    %7847 = vmatpush1.xpose.msra.mxu0 0.0
    %7848 = vmatprep.subr.mxu0 0.0
    %7849 = vmatpush1.xpose.msra.mxu0 0.0
    %7850 = vmatprep.subr.mxu0 0.0
    %7851 = vmatpush1.xpose.msra.mxu0 0.0
    %7852 = vmatprep.subr.mxu0 0.0
    %7853 = vmatpush1.xpose.msra.mxu0 0.0
    %7854 = vmatprep.subr.mxu0 0.0
    %7855 = vmatpush1.xpose.msra.mxu0 0.0
    %7856 = vmatprep.subr.mxu0 0.0
    %v7857 = vand.u32 %v7472, 4294901760
    %v7858 = vsub.f32 %v7472, %v7857
    %v7859 = vand.u32 %v7858, 4294901760
    %7860 = vmatpush1.xpose.msra.mxu0 %v7859
    %7861 = vmatprep.subr.mxu0 0.0
    %v7862 = vand.u32 %v7469, 4294901760
    %v7863 = vsub.f32 %v7469, %v7862
    %v7864 = vand.u32 %v7863, 4294901760
    %7865 = vmatpush1.xpose.msra.mxu0 %v7864
    %7866 = vmatprep.subr.mxu0 0.0
    %v7867 = vand.u32 %v7466, 4294901760
    %v7868 = vsub.f32 %v7466, %v7867
    %v7869 = vand.u32 %v7868, 4294901760
    %7870 = vmatpush1.xpose.msra.mxu0 %v7869
    %7871 = vmatprep.subr.mxu0 0.0
    %v7872 = vand.u32 %v7463, 4294901760
    %v7873 = vsub.f32 %v7463, %v7872
    %v7874 = vand.u32 %v7873, 4294901760
    %7875 = vmatpush1.xpose.msra.mxu0 %v7874
    %7876 = vmatprep.subr.mxu0 0.0
    %7877 = vmatpush2.xpose.msra.mxu0 0.0
    %7878 = vmatprep.subr.mxu0 0.0
    %7879 = vmatpush2.xpose.msra.mxu0 0.0
    %7880 = vmatprep.subr.mxu0 0.0
    %7881 = vmatpush2.xpose.msra.mxu0 0.0
    %7882 = vmatprep.subr.mxu0 0.0
    %7883 = vmatpush2.xpose.msra.mxu0 0.0
    %7884 = vmatprep.subr.mxu0 0.0
    %7885 = vmatpush2.xpose.msra.mxu0 0.0
    %7886 = vmatprep.subr.mxu0 0.0
    %7887 = vmatpush2.xpose.msra.mxu0 0.0
    %7888 = vmatprep.subr.mxu0 0.0
    %7889 = vmatpush2.xpose.msra.mxu0 0.0
    %7890 = vmatprep.subr.mxu0 0.0
    %7891 = vmatpush2.xpose.msra.mxu0 0.0
    %7892 = vmatprep.subr.mxu0 0.0
    %7893 = vmatpush2.xpose.msra.mxu0 0.0
    %7894 = vmatprep.subr.mxu0 0.0
    %7895 = vmatpush2.xpose.msra.mxu0 0.0
    %7896 = vmatprep.subr.mxu0 0.0
    %7897 = vmatpush2.xpose.msra.mxu0 0.0
    %7898 = vmatprep.subr.mxu0 0.0
    %7899 = vmatpush2.xpose.msra.mxu0 0.0
    %7900 = vmatprep.subr.mxu0 0.0
    %7901 = vmatpush2.xpose.msra.mxu0 0.0
    %7902 = vmatprep.subr.mxu0 0.0
    %7903 = vmatpush2.xpose.msra.mxu0 0.0
    %7904 = vmatprep.subr.mxu0 0.0
    %7905 = vmatpush2.xpose.msra.mxu0 0.0
    %7906 = vmatprep.subr.mxu0 0.0
    %7907 = vmatpush2.xpose.msra.mxu0 0.0
    %7908 = vmatprep.mubr.f32.mxu0 0.0
    %v7909 = vand.u32 %v7457, 4294901760
    %7910 = vmatmul.mubr.f32.gmra.mxu0 %v7909
    %v7911 = vpop.f32.mrf.mxu0
    %v7912 = vadd.f32 %v7821, %v7911
    %v7913 = vpop.f32.mrf.mxu0
    %7914 = vmatprep.mubr.f32.mxu0 0.0
    %v7915 = vand.u32 %v7460, 4294901760
    %7916 = vmatmul.mubr.f32.gmra.mxu0 %v7915
    %v7917 = vpop.f32.mrf.mxu0
    %v7918 = vadd.f32 %v7829, %v7917
    %v7919 = vpop.f32.mrf.mxu0
    %7920 = vdwg.mxu0
    %7921 = vmatprep.subr.mxu0 0.0
    %7922 = vmatpush1.xpose.msra.mxu0 0.0
    %7923 = vmatprep.subr.mxu0 0.0
    %7924 = vmatpush1.xpose.msra.mxu0 0.0
    %7925 = vmatprep.subr.mxu0 0.0
    %7926 = vmatpush1.xpose.msra.mxu0 0.0
    %7927 = vmatprep.subr.mxu0 0.0
    %7928 = vmatpush1.xpose.msra.mxu0 0.0
    %7929 = vmatprep.subr.mxu0 0.0
    %7930 = vmatpush1.xpose.msra.mxu0 0.0
    %7931 = vmatprep.subr.mxu0 0.0
    %7932 = vmatpush1.xpose.msra.mxu0 0.0
    %7933 = vmatprep.subr.mxu0 0.0
    %7934 = vmatpush1.xpose.msra.mxu0 0.0
    %7935 = vmatprep.subr.mxu0 0.0
    %7936 = vmatpush1.xpose.msra.mxu0 0.0
    %7937 = vmatprep.subr.mxu0 0.0
    %7938 = vmatpush1.xpose.msra.mxu0 0.0
    %7939 = vmatprep.subr.mxu0 0.0
    %7940 = vmatpush1.xpose.msra.mxu0 0.0
    %7941 = vmatprep.subr.mxu0 0.0
    %7942 = vmatpush1.xpose.msra.mxu0 0.0
    %7943 = vmatprep.subr.mxu0 0.0
    %7944 = vmatpush1.xpose.msra.mxu0 0.0
    %7945 = vmatprep.subr.mxu0 0.0
    %v7946 = vand.u32 %v7472, 4294901760
    %7947 = vmatpush1.xpose.msra.mxu0 %v7946
    %7948 = vmatprep.subr.mxu0 0.0
    %v7949 = vand.u32 %v7469, 4294901760
    %7950 = vmatpush1.xpose.msra.mxu0 %v7949
    %7951 = vmatprep.subr.mxu0 0.0
    %v7952 = vand.u32 %v7466, 4294901760
    %7953 = vmatpush1.xpose.msra.mxu0 %v7952
    %7954 = vmatprep.subr.mxu0 0.0
    %v7955 = vand.u32 %v7463, 4294901760
    %7956 = vmatpush1.xpose.msra.mxu0 %v7955
    %7957 = vmatprep.subr.mxu0 0.0
    %7958 = vmatpush2.xpose.msra.mxu0 0.0
    %7959 = vmatprep.subr.mxu0 0.0
    %7960 = vmatpush2.xpose.msra.mxu0 0.0
    %7961 = vmatprep.subr.mxu0 0.0
    %7962 = vmatpush2.xpose.msra.mxu0 0.0
    %7963 = vmatprep.subr.mxu0 0.0
    %7964 = vmatpush2.xpose.msra.mxu0 0.0
    %7965 = vmatprep.subr.mxu0 0.0
    %7966 = vmatpush2.xpose.msra.mxu0 0.0
    %7967 = vmatprep.subr.mxu0 0.0
    %7968 = vmatpush2.xpose.msra.mxu0 0.0
    %7969 = vmatprep.subr.mxu0 0.0
    %7970 = vmatpush2.xpose.msra.mxu0 0.0
    %7971 = vmatprep.subr.mxu0 0.0
    %7972 = vmatpush2.xpose.msra.mxu0 0.0
    %7973 = vmatprep.subr.mxu0 0.0
    %7974 = vmatpush2.xpose.msra.mxu0 0.0
    %7975 = vmatprep.subr.mxu0 0.0
    %7976 = vmatpush2.xpose.msra.mxu0 0.0
    %7977 = vmatprep.subr.mxu0 0.0
    %7978 = vmatpush2.xpose.msra.mxu0 0.0
    %7979 = vmatprep.subr.mxu0 0.0
    %7980 = vmatpush2.xpose.msra.mxu0 0.0
    %7981 = vmatprep.subr.mxu0 0.0
    %7982 = vmatpush2.xpose.msra.mxu0 0.0
    %7983 = vmatprep.subr.mxu0 0.0
    %7984 = vmatpush2.xpose.msra.mxu0 0.0
    %7985 = vmatprep.subr.mxu0 0.0
    %7986 = vmatpush2.xpose.msra.mxu0 0.0
    %7987 = vmatprep.subr.mxu0 0.0
    %7988 = vmatpush2.xpose.msra.mxu0 0.0
    %7989 = vmatprep.mubr.f32.mxu0 0.0
    %v7990 = vand.u32 %v7457, 4294901760
    %7991 = vmatmul.mubr.f32.gmra.mxu0 %v7990
    %v7992 = vpop.f32.mrf.mxu0
    %v7993 = vadd.f32 %v7912, %v7992
    %v7994 = vpop.f32.mrf.mxu0
    %7995 = vmatprep.mubr.f32.mxu0 0.0
    %v7996 = vand.u32 %v7460, 4294901760
    %7997 = vmatmul.mubr.f32.gmra.mxu0 %v7996
    %v7998 = vpop.f32.mrf.mxu0
    %v7999 = vadd.f32 %v7918, %v7998
    %v8000 = vpop.f32.mrf.mxu0
    %8001 = vdwg.mxu0
    %v8002 = vmul.f32 %v7993, 0.35355338
    %v8003 = vmul.f32 %v7999, 0.35355338
    %v8004 = vadd.f32 %v8002, %v30
    %v8005 = vadd.f32 %v8003, %v31
    %v8006 = vsel %vm39, %v8004, -inf
    %8007 = vmax.xlane.f32.xlu0 %v8006
    %v8008 = vpop.xlane.xlu0 %8007
    %v8009 = vsel %vm39, %v8005, -inf
    %8010 = vmax.xlane.f32.xlu0 %v8009
    %v8011 = vpop.xlane.xlu0 %8010
    %v8012 = vsub.f32 %v8004, %v8008
    %v8013 = vsub.f32 %v8005, %v8011
    %v8014 = vmul.f32 %v8012, 1.442695
    %v8015 = vpow.pop %v8014
    %v8016 = vmul.f32 %v8013, 1.442695
    %v8017 = vpow.pop %v8016
    %v8018 = vsel %vm39, %v8015, 0.0
    %8019 = vadd.xlane.f32.xlu0 %v8018
    %v8020 = vpop.xlane.xlu0 %8019
    %v8021 = vsel %vm39, %v8017, 0.0
    %8022 = vadd.xlane.f32.xlu0 %v8021
    %v8023 = vpop.xlane.xlu0 %8022
    %v8024 = vrcp.pop %v8020
    %v8025 = vmul.f32 %v8015, %v8024
    %v8026 = vrcp.pop %v8023
    %v8027 = vmul.f32 %v8017, %v8026
    %v8029 = vsel %vm39, %v8025, 0
    %v8032 = vsel %vm39, %v8027, 0
    %8034 = vmatprep.subr.mxu0 0.0
    %8035 = vmatpush1.msra.mxu0 0.0
    %8036 = vmatprep.subr.mxu0 0.0
    %8037 = vmatpush1.msra.mxu0 0.0
    %8038 = vmatprep.subr.mxu0 0.0
    %8039 = vmatpush1.msra.mxu0 0.0
    %8040 = vmatprep.subr.mxu0 0.0
    %8041 = vmatpush1.msra.mxu0 0.0
    %8042 = vmatprep.subr.mxu0 0.0
    %8043 = vmatpush1.msra.mxu0 0.0
    %8044 = vmatprep.subr.mxu0 0.0
    %8045 = vmatpush1.msra.mxu0 0.0
    %8046 = vmatprep.subr.mxu0 0.0
    %8047 = vmatpush1.msra.mxu0 0.0
    %8048 = vmatprep.subr.mxu0 0.0
    %8049 = vmatpush1.msra.mxu0 0.0
    %8050 = vmatprep.subr.mxu0 0.0
    %8051 = vmatpush1.msra.mxu0 0.0
    %8052 = vmatprep.subr.mxu0 0.0
    %8053 = vmatpush1.msra.mxu0 0.0
    %8054 = vmatprep.subr.mxu0 0.0
    %8055 = vmatpush1.msra.mxu0 0.0
    %8056 = vmatprep.subr.mxu0 0.0
    %8057 = vmatpush1.msra.mxu0 0.0
    %8058 = vmatprep.subr.mxu0 0.0
    %v8059 = vand.u32 %v2562, 4294901760
    %8060 = vmatpush1.msra.mxu0 %v8059
    %8061 = vmatprep.subr.mxu0 0.0
    %v8062 = vand.u32 %v2556, 4294901760
    %8063 = vmatpush1.msra.mxu0 %v8062
    %8064 = vmatprep.subr.mxu0 0.0
    %v8065 = vand.u32 %v2550, 4294901760
    %8066 = vmatpush1.msra.mxu0 %v8065
    %8067 = vmatprep.subr.mxu0 0.0
    %v8068 = vand.u32 %v2544, 4294901760
    %8069 = vmatpush1.msra.mxu0 %v8068
    %8070 = vmatprep.subr.mxu0 0.0
    %8071 = vmatpush2.msra.mxu0 0.0
    %8072 = vmatprep.subr.mxu0 0.0
    %8073 = vmatpush2.msra.mxu0 0.0
    %8074 = vmatprep.subr.mxu0 0.0
    %8075 = vmatpush2.msra.mxu0 0.0
    %8076 = vmatprep.subr.mxu0 0.0
    %8077 = vmatpush2.msra.mxu0 0.0
    %8078 = vmatprep.subr.mxu0 0.0
    %8079 = vmatpush2.msra.mxu0 0.0
    %8080 = vmatprep.subr.mxu0 0.0
    %8081 = vmatpush2.msra.mxu0 0.0
    %8082 = vmatprep.subr.mxu0 0.0
    %8083 = vmatpush2.msra.mxu0 0.0
    %8084 = vmatprep.subr.mxu0 0.0
    %8085 = vmatpush2.msra.mxu0 0.0
    %8086 = vmatprep.subr.mxu0 0.0
    %8087 = vmatpush2.msra.mxu0 0.0
    %8088 = vmatprep.subr.mxu0 0.0
    %8089 = vmatpush2.msra.mxu0 0.0
    %8090 = vmatprep.subr.mxu0 0.0
    %8091 = vmatpush2.msra.mxu0 0.0
    %8092 = vmatprep.subr.mxu0 0.0
    %8093 = vmatpush2.msra.mxu0 0.0
    %8094 = vmatprep.subr.mxu0 0.0
    %8095 = vmatpush2.msra.mxu0 0.0
    %8096 = vmatprep.subr.mxu0 0.0
    %8097 = vmatpush2.msra.mxu0 0.0
    %8098 = vmatprep.subr.mxu0 0.0
    %8099 = vmatpush2.msra.mxu0 0.0
    %8100 = vmatprep.subr.mxu0 0.0
    %8101 = vmatpush2.msra.mxu0 0.0
    %8102 = vmatprep.mubr.f32.mxu0 0.0
    %v8103 = vand.u32 %v8029, 4294901760
    %v8104 = vsub.f32 %v8029, %v8103
    %v8105 = vand.u32 %v8104, 4294901760
    %v8106 = vsub.f32 %v8104, %v8105
    %v8107 = vand.u32 %v8106, 4294901760
    %8108 = vmatmul.mubr.f32.gmra.mxu0 %v8107
    %v8109 = vpop.f32.mrf.mxu0
    %v8110 = vadd.f32 0.0, %v8109
    %v8111 = vpop.f32.mrf.mxu0
    %8112 = vmatprep.mubr.f32.mxu0 0.0
    %v8113 = vand.u32 %v8032, 4294901760
    %v8114 = vsub.f32 %v8032, %v8113
    %v8115 = vand.u32 %v8114, 4294901760
    %v8116 = vsub.f32 %v8114, %v8115
    %v8117 = vand.u32 %v8116, 4294901760
    %8118 = vmatmul.mubr.f32.gmra.mxu0 %v8117
    %v8119 = vpop.f32.mrf.mxu0
    %v8120 = vadd.f32 0.0, %v8119
    %v8121 = vpop.f32.mrf.mxu0
    %8122 = vdwg.mxu0
    %8123 = vmatprep.subr.mxu0 0.0
    %8124 = vmatpush1.msra.mxu0 0.0
    %8125 = vmatprep.subr.mxu0 0.0
    %8126 = vmatpush1.msra.mxu0 0.0
    %8127 = vmatprep.subr.mxu0 0.0
    %8128 = vmatpush1.msra.mxu0 0.0
    %8129 = vmatprep.subr.mxu0 0.0
    %8130 = vmatpush1.msra.mxu0 0.0
    %8131 = vmatprep.subr.mxu0 0.0
    %8132 = vmatpush1.msra.mxu0 0.0
    %8133 = vmatprep.subr.mxu0 0.0
    %8134 = vmatpush1.msra.mxu0 0.0
    %8135 = vmatprep.subr.mxu0 0.0
    %8136 = vmatpush1.msra.mxu0 0.0
    %8137 = vmatprep.subr.mxu0 0.0
    %8138 = vmatpush1.msra.mxu0 0.0
    %8139 = vmatprep.subr.mxu0 0.0
    %8140 = vmatpush1.msra.mxu0 0.0
    %8141 = vmatprep.subr.mxu0 0.0
    %8142 = vmatpush1.msra.mxu0 0.0
    %8143 = vmatprep.subr.mxu0 0.0
    %8144 = vmatpush1.msra.mxu0 0.0
    %8145 = vmatprep.subr.mxu0 0.0
    %8146 = vmatpush1.msra.mxu0 0.0
    %8147 = vmatprep.subr.mxu0 0.0
    %v8148 = vand.u32 %v2562, 4294901760
    %v8149 = vsub.f32 %v2562, %v8148
    %v8150 = vand.u32 %v8149, 4294901760
    %v8151 = vsub.f32 %v8149, %v8150
    %v8152 = vand.u32 %v8151, 4294901760
    %8153 = vmatpush1.msra.mxu0 %v8152
    %8154 = vmatprep.subr.mxu0 0.0
    %v8155 = vand.u32 %v2556, 4294901760
    %v8156 = vsub.f32 %v2556, %v8155
    %v8157 = vand.u32 %v8156, 4294901760
    %v8158 = vsub.f32 %v8156, %v8157
    %v8159 = vand.u32 %v8158, 4294901760
    %8160 = vmatpush1.msra.mxu0 %v8159
    %8161 = vmatprep.subr.mxu0 0.0
    %v8162 = vand.u32 %v2550, 4294901760
    %v8163 = vsub.f32 %v2550, %v8162
    %v8164 = vand.u32 %v8163, 4294901760
    %v8165 = vsub.f32 %v8163, %v8164
    %v8166 = vand.u32 %v8165, 4294901760
    %8167 = vmatpush1.msra.mxu0 %v8166
    %8168 = vmatprep.subr.mxu0 0.0
    %v8169 = vand.u32 %v2544, 4294901760
    %v8170 = vsub.f32 %v2544, %v8169
    %v8171 = vand.u32 %v8170, 4294901760
    %v8172 = vsub.f32 %v8170, %v8171
    %v8173 = vand.u32 %v8172, 4294901760
    %8174 = vmatpush1.msra.mxu0 %v8173
    %8175 = vmatprep.subr.mxu0 0.0
    %8176 = vmatpush2.msra.mxu0 0.0
    %8177 = vmatprep.subr.mxu0 0.0
    %8178 = vmatpush2.msra.mxu0 0.0
    %8179 = vmatprep.subr.mxu0 0.0
    %8180 = vmatpush2.msra.mxu0 0.0
    %8181 = vmatprep.subr.mxu0 0.0
    %8182 = vmatpush2.msra.mxu0 0.0
    %8183 = vmatprep.subr.mxu0 0.0
    %8184 = vmatpush2.msra.mxu0 0.0
    %8185 = vmatprep.subr.mxu0 0.0
    %8186 = vmatpush2.msra.mxu0 0.0
    %8187 = vmatprep.subr.mxu0 0.0
    %8188 = vmatpush2.msra.mxu0 0.0
    %8189 = vmatprep.subr.mxu0 0.0
    %8190 = vmatpush2.msra.mxu0 0.0
    %8191 = vmatprep.subr.mxu0 0.0
    %8192 = vmatpush2.msra.mxu0 0.0
    %8193 = vmatprep.subr.mxu0 0.0
    %8194 = vmatpush2.msra.mxu0 0.0
    %8195 = vmatprep.subr.mxu0 0.0
    %8196 = vmatpush2.msra.mxu0 0.0
    %8197 = vmatprep.subr.mxu0 0.0
    %8198 = vmatpush2.msra.mxu0 0.0
    %8199 = vmatprep.subr.mxu0 0.0
    %8200 = vmatpush2.msra.mxu0 0.0
    %8201 = vmatprep.subr.mxu0 0.0
    %8202 = vmatpush2.msra.mxu0 0.0
    %8203 = vmatprep.subr.mxu0 0.0
    %8204 = vmatpush2.msra.mxu0 0.0
    %8205 = vmatprep.subr.mxu0 0.0
    %8206 = vmatpush2.msra.mxu0 0.0
    %8207 = vmatprep.mubr.f32.mxu0 0.0
    %v8208 = vand.u32 %v8029, 4294901760
    %8209 = vmatmul.mubr.f32.gmra.mxu0 %v8208
    %v8210 = vpop.f32.mrf.mxu0
    %v8211 = vadd.f32 %v8110, %v8210
    %v8212 = vpop.f32.mrf.mxu0
    %8213 = vmatprep.mubr.f32.mxu0 0.0
    %v8214 = vand.u32 %v8032, 4294901760
    %8215 = vmatmul.mubr.f32.gmra.mxu0 %v8214
    %v8216 = vpop.f32.mrf.mxu0
    %v8217 = vadd.f32 %v8120, %v8216
    %v8218 = vpop.f32.mrf.mxu0
    %8219 = vdwg.mxu0
    %8220 = vmatprep.subr.mxu0 0.0
    %8221 = vmatpush1.msra.mxu0 0.0
    %8222 = vmatprep.subr.mxu0 0.0
    %8223 = vmatpush1.msra.mxu0 0.0
    %8224 = vmatprep.subr.mxu0 0.0
    %8225 = vmatpush1.msra.mxu0 0.0
    %8226 = vmatprep.subr.mxu0 0.0
    %8227 = vmatpush1.msra.mxu0 0.0
    %8228 = vmatprep.subr.mxu0 0.0
    %8229 = vmatpush1.msra.mxu0 0.0
    %8230 = vmatprep.subr.mxu0 0.0
    %8231 = vmatpush1.msra.mxu0 0.0
    %8232 = vmatprep.subr.mxu0 0.0
    %8233 = vmatpush1.msra.mxu0 0.0
    %8234 = vmatprep.subr.mxu0 0.0
    %8235 = vmatpush1.msra.mxu0 0.0
    %8236 = vmatprep.subr.mxu0 0.0
    %8237 = vmatpush1.msra.mxu0 0.0
    %8238 = vmatprep.subr.mxu0 0.0
    %8239 = vmatpush1.msra.mxu0 0.0
    %8240 = vmatprep.subr.mxu0 0.0
    %8241 = vmatpush1.msra.mxu0 0.0
    %8242 = vmatprep.subr.mxu0 0.0
    %8243 = vmatpush1.msra.mxu0 0.0
    %8244 = vmatprep.subr.mxu0 0.0
    %v8245 = vand.u32 %v2562, 4294901760
    %v8246 = vsub.f32 %v2562, %v8245
    %8247 = vmatpush1.msra.mxu0 %v8246
    %8248 = vmatprep.subr.mxu0 0.0
    %v8249 = vand.u32 %v2556, 4294901760
    %v8250 = vsub.f32 %v2556, %v8249
    %8251 = vmatpush1.msra.mxu0 %v8250
    %8252 = vmatprep.subr.mxu0 0.0
    %v8253 = vand.u32 %v2550, 4294901760
    %v8254 = vsub.f32 %v2550, %v8253
    %8255 = vmatpush1.msra.mxu0 %v8254
    %8256 = vmatprep.subr.mxu0 0.0
    %v8257 = vand.u32 %v2544, 4294901760
    %v8258 = vsub.f32 %v2544, %v8257
    %8259 = vmatpush1.msra.mxu0 %v8258
    %8260 = vmatprep.subr.mxu0 0.0
    %8261 = vmatpush2.msra.mxu0 0.0
    %8262 = vmatprep.subr.mxu0 0.0
    %8263 = vmatpush2.msra.mxu0 0.0
    %8264 = vmatprep.subr.mxu0 0.0
    %8265 = vmatpush2.msra.mxu0 0.0
    %8266 = vmatprep.subr.mxu0 0.0
    %8267 = vmatpush2.msra.mxu0 0.0
    %8268 = vmatprep.subr.mxu0 0.0
    %8269 = vmatpush2.msra.mxu0 0.0
    %8270 = vmatprep.subr.mxu0 0.0
    %8271 = vmatpush2.msra.mxu0 0.0
    %8272 = vmatprep.subr.mxu0 0.0
    %8273 = vmatpush2.msra.mxu0 0.0
    %8274 = vmatprep.subr.mxu0 0.0
    %8275 = vmatpush2.msra.mxu0 0.0
    %8276 = vmatprep.subr.mxu0 0.0
    %8277 = vmatpush2.msra.mxu0 0.0
    %8278 = vmatprep.subr.mxu0 0.0
    %8279 = vmatpush2.msra.mxu0 0.0
    %8280 = vmatprep.subr.mxu0 0.0
    %8281 = vmatpush2.msra.mxu0 0.0
    %8282 = vmatprep.subr.mxu0 0.0
    %8283 = vmatpush2.msra.mxu0 0.0
    %8284 = vmatprep.subr.mxu0 0.0
    %8285 = vmatpush2.msra.mxu0 0.0
    %8286 = vmatprep.subr.mxu0 0.0
    %8287 = vmatpush2.msra.mxu0 0.0
    %8288 = vmatprep.subr.mxu0 0.0
    %8289 = vmatpush2.msra.mxu0 0.0
    %8290 = vmatprep.subr.mxu0 0.0
    %8291 = vmatpush2.msra.mxu0 0.0
    %8292 = vmatprep.mubr.f32.mxu0 0.0
    %v8293 = vand.u32 %v8029, 4294901760
    %v8294 = vsub.f32 %v8029, %v8293
    %8295 = vmatmul.mubr.f32.gmra.mxu0 %v8294
    %v8296 = vpop.f32.mrf.mxu0
    %v8297 = vadd.f32 %v8211, %v8296
    %v8298 = vpop.f32.mrf.mxu0
    %8299 = vmatprep.mubr.f32.mxu0 0.0
    %v8300 = vand.u32 %v8032, 4294901760
    %v8301 = vsub.f32 %v8032, %v8300
    %8302 = vmatmul.mubr.f32.gmra.mxu0 %v8301
    %v8303 = vpop.f32.mrf.mxu0
    %v8304 = vadd.f32 %v8217, %v8303
    %v8305 = vpop.f32.mrf.mxu0
    %8306 = vdwg.mxu0
    %8307 = vmatprep.subr.mxu0 0.0
    %8308 = vmatpush1.msra.mxu0 0.0
    %8309 = vmatprep.subr.mxu0 0.0
    %8310 = vmatpush1.msra.mxu0 0.0
    %8311 = vmatprep.subr.mxu0 0.0
    %8312 = vmatpush1.msra.mxu0 0.0
    %8313 = vmatprep.subr.mxu0 0.0
    %8314 = vmatpush1.msra.mxu0 0.0
    %8315 = vmatprep.subr.mxu0 0.0
    %8316 = vmatpush1.msra.mxu0 0.0
    %8317 = vmatprep.subr.mxu0 0.0
    %8318 = vmatpush1.msra.mxu0 0.0
    %8319 = vmatprep.subr.mxu0 0.0
    %8320 = vmatpush1.msra.mxu0 0.0
    %8321 = vmatprep.subr.mxu0 0.0
    %8322 = vmatpush1.msra.mxu0 0.0
    %8323 = vmatprep.subr.mxu0 0.0
    %8324 = vmatpush1.msra.mxu0 0.0
    %8325 = vmatprep.subr.mxu0 0.0
    %8326 = vmatpush1.msra.mxu0 0.0
    %8327 = vmatprep.subr.mxu0 0.0
    %8328 = vmatpush1.msra.mxu0 0.0
    %8329 = vmatprep.subr.mxu0 0.0
    %8330 = vmatpush1.msra.mxu0 0.0
    %8331 = vmatprep.subr.mxu0 0.0
    %v8332 = vand.u32 %v2562, 4294901760
    %8333 = vmatpush1.msra.mxu0 %v8332
    %8334 = vmatprep.subr.mxu0 0.0
    %v8335 = vand.u32 %v2556, 4294901760
    %8336 = vmatpush1.msra.mxu0 %v8335
    %8337 = vmatprep.subr.mxu0 0.0
    %v8338 = vand.u32 %v2550, 4294901760
    %8339 = vmatpush1.msra.mxu0 %v8338
    %8340 = vmatprep.subr.mxu0 0.0
    %v8341 = vand.u32 %v2544, 4294901760
    %8342 = vmatpush1.msra.mxu0 %v8341
    %8343 = vmatprep.subr.mxu0 0.0
    %8344 = vmatpush2.msra.mxu0 0.0
    %8345 = vmatprep.subr.mxu0 0.0
    %8346 = vmatpush2.msra.mxu0 0.0
    %8347 = vmatprep.subr.mxu0 0.0
    %8348 = vmatpush2.msra.mxu0 0.0
    %8349 = vmatprep.subr.mxu0 0.0
    %8350 = vmatpush2.msra.mxu0 0.0
    %8351 = vmatprep.subr.mxu0 0.0
    %8352 = vmatpush2.msra.mxu0 0.0
    %8353 = vmatprep.subr.mxu0 0.0
    %8354 = vmatpush2.msra.mxu0 0.0
    %8355 = vmatprep.subr.mxu0 0.0
    %8356 = vmatpush2.msra.mxu0 0.0
    %8357 = vmatprep.subr.mxu0 0.0
    %8358 = vmatpush2.msra.mxu0 0.0
    %8359 = vmatprep.subr.mxu0 0.0
    %8360 = vmatpush2.msra.mxu0 0.0
    %8361 = vmatprep.subr.mxu0 0.0
    %8362 = vmatpush2.msra.mxu0 0.0
    %8363 = vmatprep.subr.mxu0 0.0
    %8364 = vmatpush2.msra.mxu0 0.0
    %8365 = vmatprep.subr.mxu0 0.0
    %8366 = vmatpush2.msra.mxu0 0.0
    %8367 = vmatprep.subr.mxu0 0.0
    %8368 = vmatpush2.msra.mxu0 0.0
    %8369 = vmatprep.subr.mxu0 0.0
    %8370 = vmatpush2.msra.mxu0 0.0
    %8371 = vmatprep.subr.mxu0 0.0
    %8372 = vmatpush2.msra.mxu0 0.0
    %8373 = vmatprep.subr.mxu0 0.0
    %8374 = vmatpush2.msra.mxu0 0.0
    %8375 = vmatprep.mubr.f32.mxu0 0.0
    %v8376 = vand.u32 %v8029, 4294901760
    %v8377 = vsub.f32 %v8029, %v8376
    %v8378 = vand.u32 %v8377, 4294901760
    %8379 = vmatmul.mubr.f32.gmra.mxu0 %v8378
    %v8380 = vpop.f32.mrf.mxu0
    %v8381 = vadd.f32 %v8297, %v8380
    %v8382 = vpop.f32.mrf.mxu0
    %8383 = vmatprep.mubr.f32.mxu0 0.0
    %v8384 = vand.u32 %v8032, 4294901760
    %v8385 = vsub.f32 %v8032, %v8384
    %v8386 = vand.u32 %v8385, 4294901760
    %8387 = vmatmul.mubr.f32.gmra.mxu0 %v8386
    %v8388 = vpop.f32.mrf.mxu0
    %v8389 = vadd.f32 %v8304, %v8388
    %v8390 = vpop.f32.mrf.mxu0
    %8391 = vdwg.mxu0
    %8392 = vmatprep.subr.mxu0 0.0
    %8393 = vmatpush1.msra.mxu0 0.0
    %8394 = vmatprep.subr.mxu0 0.0
    %8395 = vmatpush1.msra.mxu0 0.0
    %8396 = vmatprep.subr.mxu0 0.0
    %8397 = vmatpush1.msra.mxu0 0.0
    %8398 = vmatprep.subr.mxu0 0.0
    %8399 = vmatpush1.msra.mxu0 0.0
    %8400 = vmatprep.subr.mxu0 0.0
    %8401 = vmatpush1.msra.mxu0 0.0
    %8402 = vmatprep.subr.mxu0 0.0
    %8403 = vmatpush1.msra.mxu0 0.0
    %8404 = vmatprep.subr.mxu0 0.0
    %8405 = vmatpush1.msra.mxu0 0.0
    %8406 = vmatprep.subr.mxu0 0.0
    %8407 = vmatpush1.msra.mxu0 0.0
    %8408 = vmatprep.subr.mxu0 0.0
    %8409 = vmatpush1.msra.mxu0 0.0
    %8410 = vmatprep.subr.mxu0 0.0
    %8411 = vmatpush1.msra.mxu0 0.0
    %8412 = vmatprep.subr.mxu0 0.0
    %8413 = vmatpush1.msra.mxu0 0.0
    %8414 = vmatprep.subr.mxu0 0.0
    %8415 = vmatpush1.msra.mxu0 0.0
    %8416 = vmatprep.subr.mxu0 0.0
    %v8417 = vand.u32 %v2562, 4294901760
    %v8418 = vsub.f32 %v2562, %v8417
    %v8419 = vand.u32 %v8418, 4294901760
    %8420 = vmatpush1.msra.mxu0 %v8419
    %8421 = vmatprep.subr.mxu0 0.0
    %v8422 = vand.u32 %v2556, 4294901760
    %v8423 = vsub.f32 %v2556, %v8422
    %v8424 = vand.u32 %v8423, 4294901760
    %8425 = vmatpush1.msra.mxu0 %v8424
    %8426 = vmatprep.subr.mxu0 0.0
    %v8427 = vand.u32 %v2550, 4294901760
    %v8428 = vsub.f32 %v2550, %v8427
    %v8429 = vand.u32 %v8428, 4294901760
    %8430 = vmatpush1.msra.mxu0 %v8429
    %8431 = vmatprep.subr.mxu0 0.0
    %v8432 = vand.u32 %v2544, 4294901760
    %v8433 = vsub.f32 %v2544, %v8432
    %v8434 = vand.u32 %v8433, 4294901760
    %8435 = vmatpush1.msra.mxu0 %v8434
    %8436 = vmatprep.subr.mxu0 0.0
    %8437 = vmatpush2.msra.mxu0 0.0
    %8438 = vmatprep.subr.mxu0 0.0
    %8439 = vmatpush2.msra.mxu0 0.0
    %8440 = vmatprep.subr.mxu0 0.0
    %8441 = vmatpush2.msra.mxu0 0.0
    %8442 = vmatprep.subr.mxu0 0.0
    %8443 = vmatpush2.msra.mxu0 0.0
    %8444 = vmatprep.subr.mxu0 0.0
    %8445 = vmatpush2.msra.mxu0 0.0
    %8446 = vmatprep.subr.mxu0 0.0
    %8447 = vmatpush2.msra.mxu0 0.0
    %8448 = vmatprep.subr.mxu0 0.0
    %8449 = vmatpush2.msra.mxu0 0.0
    %8450 = vmatprep.subr.mxu0 0.0
    %8451 = vmatpush2.msra.mxu0 0.0
    %8452 = vmatprep.subr.mxu0 0.0
    %8453 = vmatpush2.msra.mxu0 0.0
    %8454 = vmatprep.subr.mxu0 0.0
    %8455 = vmatpush2.msra.mxu0 0.0
    %8456 = vmatprep.subr.mxu0 0.0
    %8457 = vmatpush2.msra.mxu0 0.0
    %8458 = vmatprep.subr.mxu0 0.0
    %8459 = vmatpush2.msra.mxu0 0.0
    %8460 = vmatprep.subr.mxu0 0.0
    %8461 = vmatpush2.msra.mxu0 0.0
    %8462 = vmatprep.subr.mxu0 0.0
    %8463 = vmatpush2.msra.mxu0 0.0
    %8464 = vmatprep.subr.mxu0 0.0
    %8465 = vmatpush2.msra.mxu0 0.0
    %8466 = vmatprep.subr.mxu0 0.0
    %8467 = vmatpush2.msra.mxu0 0.0
    %8468 = vmatprep.mubr.f32.mxu0 0.0
    %v8469 = vand.u32 %v8029, 4294901760
    %8470 = vmatmul.mubr.f32.gmra.mxu0 %v8469
    %v8471 = vpop.f32.mrf.mxu0
    %v8472 = vadd.f32 %v8381, %v8471
    %v8473 = vpop.f32.mrf.mxu0
    %8474 = vmatprep.mubr.f32.mxu0 0.0
    %v8475 = vand.u32 %v8032, 4294901760
    %8476 = vmatmul.mubr.f32.gmra.mxu0 %v8475
    %v8477 = vpop.f32.mrf.mxu0
    %v8478 = vadd.f32 %v8389, %v8477
    %v8479 = vpop.f32.mrf.mxu0
    %8480 = vdwg.mxu0
    %8481 = vmatprep.subr.mxu0 0.0
    %8482 = vmatpush1.msra.mxu0 0.0
    %8483 = vmatprep.subr.mxu0 0.0
    %8484 = vmatpush1.msra.mxu0 0.0
    %8485 = vmatprep.subr.mxu0 0.0
    %8486 = vmatpush1.msra.mxu0 0.0
    %8487 = vmatprep.subr.mxu0 0.0
    %8488 = vmatpush1.msra.mxu0 0.0
    %8489 = vmatprep.subr.mxu0 0.0
    %8490 = vmatpush1.msra.mxu0 0.0
    %8491 = vmatprep.subr.mxu0 0.0
    %8492 = vmatpush1.msra.mxu0 0.0
    %8493 = vmatprep.subr.mxu0 0.0
    %8494 = vmatpush1.msra.mxu0 0.0
    %8495 = vmatprep.subr.mxu0 0.0
    %8496 = vmatpush1.msra.mxu0 0.0
    %8497 = vmatprep.subr.mxu0 0.0
    %8498 = vmatpush1.msra.mxu0 0.0
    %8499 = vmatprep.subr.mxu0 0.0
    %8500 = vmatpush1.msra.mxu0 0.0
    %8501 = vmatprep.subr.mxu0 0.0
    %8502 = vmatpush1.msra.mxu0 0.0
    %8503 = vmatprep.subr.mxu0 0.0
    %8504 = vmatpush1.msra.mxu0 0.0
    %8505 = vmatprep.subr.mxu0 0.0
    %v8506 = vand.u32 %v2562, 4294901760
    %8507 = vmatpush1.msra.mxu0 %v8506
    %8508 = vmatprep.subr.mxu0 0.0
    %v8509 = vand.u32 %v2556, 4294901760
    %8510 = vmatpush1.msra.mxu0 %v8509
    %8511 = vmatprep.subr.mxu0 0.0
    %v8512 = vand.u32 %v2550, 4294901760
    %8513 = vmatpush1.msra.mxu0 %v8512
    %8514 = vmatprep.subr.mxu0 0.0
    %v8515 = vand.u32 %v2544, 4294901760
    %8516 = vmatpush1.msra.mxu0 %v8515
    %8517 = vmatprep.subr.mxu0 0.0
    %8518 = vmatpush2.msra.mxu0 0.0
    %8519 = vmatprep.subr.mxu0 0.0
    %8520 = vmatpush2.msra.mxu0 0.0
    %8521 = vmatprep.subr.mxu0 0.0
    %8522 = vmatpush2.msra.mxu0 0.0
    %8523 = vmatprep.subr.mxu0 0.0
    %8524 = vmatpush2.msra.mxu0 0.0
    %8525 = vmatprep.subr.mxu0 0.0
    %8526 = vmatpush2.msra.mxu0 0.0
    %8527 = vmatprep.subr.mxu0 0.0
    %8528 = vmatpush2.msra.mxu0 0.0
    %8529 = vmatprep.subr.mxu0 0.0
    %8530 = vmatpush2.msra.mxu0 0.0
    %8531 = vmatprep.subr.mxu0 0.0
    %8532 = vmatpush2.msra.mxu0 0.0
    %8533 = vmatprep.subr.mxu0 0.0
    %8534 = vmatpush2.msra.mxu0 0.0
    %8535 = vmatprep.subr.mxu0 0.0
    %8536 = vmatpush2.msra.mxu0 0.0
    %8537 = vmatprep.subr.mxu0 0.0
    %8538 = vmatpush2.msra.mxu0 0.0
    %8539 = vmatprep.subr.mxu0 0.0
    %8540 = vmatpush2.msra.mxu0 0.0
    %8541 = vmatprep.subr.mxu0 0.0
    %8542 = vmatpush2.msra.mxu0 0.0
    %8543 = vmatprep.subr.mxu0 0.0
    %8544 = vmatpush2.msra.mxu0 0.0
    %8545 = vmatprep.subr.mxu0 0.0
    %8546 = vmatpush2.msra.mxu0 0.0
    %8547 = vmatprep.subr.mxu0 0.0
    %8548 = vmatpush2.msra.mxu0 0.0
    %8549 = vmatprep.mubr.f32.mxu0 0.0
    %v8550 = vand.u32 %v8029, 4294901760
    %8551 = vmatmul.mubr.f32.gmra.mxu0 %v8550
    %v8552 = vpop.f32.mrf.mxu0
    %v8553 = vadd.f32 %v8472, %v8552
    %v8554 = vpop.f32.mrf.mxu0
    %8555 = vmatprep.mubr.f32.mxu0 0.0
    %v8556 = vand.u32 %v8032, 4294901760
    %8557 = vmatmul.mubr.f32.gmra.mxu0 %v8556
    %v8558 = vpop.f32.mrf.mxu0
    %v8559 = vadd.f32 %v8478, %v8558
    %v8560 = vpop.f32.mrf.mxu0
    %8561 = vdwg.mxu0
    %s8562 = scalar_lea.vmem %s4, 16
    %v8563 = vld [vmem:[%s8562] sm:$0xff]
    %v8565 = vsel %vm1289, %v8553, 0
    %v8568 = vsel %vm1289, %v8559, 0
    %8570 = vmatprep.subr.mxu0 0.0
    %8571 = vmatpush1.msra.mxu0 0.0
    %8572 = vmatprep.subr.mxu0 0.0
    %8573 = vmatpush1.msra.mxu0 0.0
    %8574 = vmatprep.subr.mxu0 0.0
    %8575 = vmatpush1.msra.mxu0 0.0
    %8576 = vmatprep.subr.mxu0 0.0
    %8577 = vmatpush1.msra.mxu0 0.0
    %8578 = vmatprep.subr.mxu0 0.0
    %8579 = vmatpush1.msra.mxu0 0.0
    %8580 = vmatprep.subr.mxu0 0.0
    %8581 = vmatpush1.msra.mxu0 0.0
    %8582 = vmatprep.subr.mxu0 0.0
    %8583 = vmatpush1.msra.mxu0 0.0
    %8584 = vmatprep.subr.mxu0 0.0
    %8585 = vmatpush1.msra.mxu0 0.0
    %8586 = vmatprep.subr.mxu0 0.0
    %8587 = vmatpush1.msra.mxu0 0.0
    %8588 = vmatprep.subr.mxu0 0.0
    %8589 = vmatpush1.msra.mxu0 0.0
    %8590 = vmatprep.subr.mxu0 0.0
    %8591 = vmatpush1.msra.mxu0 0.0
    %8592 = vmatprep.subr.mxu0 0.0
    %8593 = vmatpush1.msra.mxu0 0.0
    %8594 = vmatprep.subr.mxu0 0.0
    %8595 = vmatpush1.msra.mxu0 0.0
    %8596 = vmatprep.subr.mxu0 0.0
    %8597 = vmatpush1.msra.mxu0 0.0
    %8598 = vmatprep.subr.mxu0 0.0
    %8599 = vmatpush1.msra.mxu0 0.0
    %8600 = vmatprep.subr.mxu0 0.0
    %v8601 = vand.u32 %v8563, 4294901760
    %8602 = vmatpush1.msra.mxu0 %v8601
    %8603 = vmatprep.subr.mxu0 0.0
    %8604 = vmatpush2.msra.mxu0 0.0
    %8605 = vmatprep.subr.mxu0 0.0
    %8606 = vmatpush2.msra.mxu0 0.0
    %8607 = vmatprep.subr.mxu0 0.0
    %8608 = vmatpush2.msra.mxu0 0.0
    %8609 = vmatprep.subr.mxu0 0.0
    %8610 = vmatpush2.msra.mxu0 0.0
    %8611 = vmatprep.subr.mxu0 0.0
    %8612 = vmatpush2.msra.mxu0 0.0
    %8613 = vmatprep.subr.mxu0 0.0
    %8614 = vmatpush2.msra.mxu0 0.0
    %8615 = vmatprep.subr.mxu0 0.0
    %8616 = vmatpush2.msra.mxu0 0.0
    %8617 = vmatprep.subr.mxu0 0.0
    %8618 = vmatpush2.msra.mxu0 0.0
    %8619 = vmatprep.subr.mxu0 0.0
    %8620 = vmatpush2.msra.mxu0 0.0
    %8621 = vmatprep.subr.mxu0 0.0
    %8622 = vmatpush2.msra.mxu0 0.0
    %8623 = vmatprep.subr.mxu0 0.0
    %8624 = vmatpush2.msra.mxu0 0.0
    %8625 = vmatprep.subr.mxu0 0.0
    %8626 = vmatpush2.msra.mxu0 0.0
    %8627 = vmatprep.subr.mxu0 0.0
    %8628 = vmatpush2.msra.mxu0 0.0
    %8629 = vmatprep.subr.mxu0 0.0
    %8630 = vmatpush2.msra.mxu0 0.0
    %8631 = vmatprep.subr.mxu0 0.0
    %8632 = vmatpush2.msra.mxu0 0.0
    %8633 = vmatprep.subr.mxu0 0.0
    %8634 = vmatpush2.msra.mxu0 0.0
    %8635 = vmatprep.mubr.f32.mxu0 0.0
    %v8636 = vand.u32 %v8565, 4294901760
    %v8637 = vsub.f32 %v8565, %v8636
    %v8638 = vand.u32 %v8637, 4294901760
    %v8639 = vsub.f32 %v8637, %v8638
    %v8640 = vand.u32 %v8639, 4294901760
    %8641 = vmatmul.mubr.f32.gmra.mxu0 %v8640
    %v8642 = vpop.f32.mrf.mxu0
    %v8643 = vadd.f32 0.0, %v8642
    %v8644 = vpop.f32.mrf.mxu0
    %8645 = vmatprep.mubr.f32.mxu0 0.0
    %v8646 = vand.u32 %v8568, 4294901760
    %v8647 = vsub.f32 %v8568, %v8646
    %v8648 = vand.u32 %v8647, 4294901760
    %v8649 = vsub.f32 %v8647, %v8648
    %v8650 = vand.u32 %v8649, 4294901760
    %8651 = vmatmul.mubr.f32.gmra.mxu0 %v8650
    %v8652 = vpop.f32.mrf.mxu0
    %v8653 = vadd.f32 0.0, %v8652
    %v8654 = vpop.f32.mrf.mxu0
    %8655 = vdwg.mxu0
    %8656 = vmatprep.subr.mxu0 0.0
    %8657 = vmatpush1.msra.mxu0 0.0
    %8658 = vmatprep.subr.mxu0 0.0
    %8659 = vmatpush1.msra.mxu0 0.0
    %8660 = vmatprep.subr.mxu0 0.0
    %8661 = vmatpush1.msra.mxu0 0.0
    %8662 = vmatprep.subr.mxu0 0.0
    %8663 = vmatpush1.msra.mxu0 0.0
    %8664 = vmatprep.subr.mxu0 0.0
    %8665 = vmatpush1.msra.mxu0 0.0
    %8666 = vmatprep.subr.mxu0 0.0
    %8667 = vmatpush1.msra.mxu0 0.0
    %8668 = vmatprep.subr.mxu0 0.0
    %8669 = vmatpush1.msra.mxu0 0.0
    %8670 = vmatprep.subr.mxu0 0.0
    %8671 = vmatpush1.msra.mxu0 0.0
    %8672 = vmatprep.subr.mxu0 0.0
    %8673 = vmatpush1.msra.mxu0 0.0
    %8674 = vmatprep.subr.mxu0 0.0
    %8675 = vmatpush1.msra.mxu0 0.0
    %8676 = vmatprep.subr.mxu0 0.0
    %8677 = vmatpush1.msra.mxu0 0.0
    %8678 = vmatprep.subr.mxu0 0.0
    %8679 = vmatpush1.msra.mxu0 0.0
    %8680 = vmatprep.subr.mxu0 0.0
    %8681 = vmatpush1.msra.mxu0 0.0
    %8682 = vmatprep.subr.mxu0 0.0
    %8683 = vmatpush1.msra.mxu0 0.0
    %8684 = vmatprep.subr.mxu0 0.0
    %8685 = vmatpush1.msra.mxu0 0.0
    %8686 = vmatprep.subr.mxu0 0.0
    %v8687 = vand.u32 %v8563, 4294901760
    %v8688 = vsub.f32 %v8563, %v8687
    %v8689 = vand.u32 %v8688, 4294901760
    %v8690 = vsub.f32 %v8688, %v8689
    %v8691 = vand.u32 %v8690, 4294901760
    %8692 = vmatpush1.msra.mxu0 %v8691
    %8693 = vmatprep.subr.mxu0 0.0
    %8694 = vmatpush2.msra.mxu0 0.0
    %8695 = vmatprep.subr.mxu0 0.0
    %8696 = vmatpush2.msra.mxu0 0.0
    %8697 = vmatprep.subr.mxu0 0.0
    %8698 = vmatpush2.msra.mxu0 0.0
    %8699 = vmatprep.subr.mxu0 0.0
    %8700 = vmatpush2.msra.mxu0 0.0
    %8701 = vmatprep.subr.mxu0 0.0
    %8702 = vmatpush2.msra.mxu0 0.0
    %8703 = vmatprep.subr.mxu0 0.0
    %8704 = vmatpush2.msra.mxu0 0.0
    %8705 = vmatprep.subr.mxu0 0.0
    %8706 = vmatpush2.msra.mxu0 0.0
    %8707 = vmatprep.subr.mxu0 0.0
    %8708 = vmatpush2.msra.mxu0 0.0
    %8709 = vmatprep.subr.mxu0 0.0
    %8710 = vmatpush2.msra.mxu0 0.0
    %8711 = vmatprep.subr.mxu0 0.0
    %8712 = vmatpush2.msra.mxu0 0.0
    %8713 = vmatprep.subr.mxu0 0.0
    %8714 = vmatpush2.msra.mxu0 0.0
    %8715 = vmatprep.subr.mxu0 0.0
    %8716 = vmatpush2.msra.mxu0 0.0
    %8717 = vmatprep.subr.mxu0 0.0
    %8718 = vmatpush2.msra.mxu0 0.0
    %8719 = vmatprep.subr.mxu0 0.0
    %8720 = vmatpush2.msra.mxu0 0.0
    %8721 = vmatprep.subr.mxu0 0.0
    %8722 = vmatpush2.msra.mxu0 0.0
    %8723 = vmatprep.subr.mxu0 0.0
    %8724 = vmatpush2.msra.mxu0 0.0
    %8725 = vmatprep.mubr.f32.mxu0 0.0
    %v8726 = vand.u32 %v8565, 4294901760
    %8727 = vmatmul.mubr.f32.gmra.mxu0 %v8726
    %v8728 = vpop.f32.mrf.mxu0
    %v8729 = vadd.f32 %v8643, %v8728
    %v8730 = vpop.f32.mrf.mxu0
    %8731 = vmatprep.mubr.f32.mxu0 0.0
    %v8732 = vand.u32 %v8568, 4294901760
    %8733 = vmatmul.mubr.f32.gmra.mxu0 %v8732
    %v8734 = vpop.f32.mrf.mxu0
    %v8735 = vadd.f32 %v8653, %v8734
    %v8736 = vpop.f32.mrf.mxu0
    %8737 = vdwg.mxu0
    %8738 = vmatprep.subr.mxu0 0.0
    %8739 = vmatpush1.msra.mxu0 0.0
    %8740 = vmatprep.subr.mxu0 0.0
    %8741 = vmatpush1.msra.mxu0 0.0
    %8742 = vmatprep.subr.mxu0 0.0
    %8743 = vmatpush1.msra.mxu0 0.0
    %8744 = vmatprep.subr.mxu0 0.0
    %8745 = vmatpush1.msra.mxu0 0.0
    %8746 = vmatprep.subr.mxu0 0.0
    %8747 = vmatpush1.msra.mxu0 0.0
    %8748 = vmatprep.subr.mxu0 0.0
    %8749 = vmatpush1.msra.mxu0 0.0
    %8750 = vmatprep.subr.mxu0 0.0
    %8751 = vmatpush1.msra.mxu0 0.0
    %8752 = vmatprep.subr.mxu0 0.0
    %8753 = vmatpush1.msra.mxu0 0.0
    %8754 = vmatprep.subr.mxu0 0.0
    %8755 = vmatpush1.msra.mxu0 0.0
    %8756 = vmatprep.subr.mxu0 0.0
    %8757 = vmatpush1.msra.mxu0 0.0
    %8758 = vmatprep.subr.mxu0 0.0
    %8759 = vmatpush1.msra.mxu0 0.0
    %8760 = vmatprep.subr.mxu0 0.0
    %8761 = vmatpush1.msra.mxu0 0.0
    %8762 = vmatprep.subr.mxu0 0.0
    %8763 = vmatpush1.msra.mxu0 0.0
    %8764 = vmatprep.subr.mxu0 0.0
    %8765 = vmatpush1.msra.mxu0 0.0
    %8766 = vmatprep.subr.mxu0 0.0
    %8767 = vmatpush1.msra.mxu0 0.0
    %8768 = vmatprep.subr.mxu0 0.0
    %v8769 = vand.u32 %v8563, 4294901760
    %v8770 = vsub.f32 %v8563, %v8769
    %8771 = vmatpush1.msra.mxu0 %v8770
    %8772 = vmatprep.subr.mxu0 0.0
    %8773 = vmatpush2.msra.mxu0 0.0
    %8774 = vmatprep.subr.mxu0 0.0
    %8775 = vmatpush2.msra.mxu0 0.0
    %8776 = vmatprep.subr.mxu0 0.0
    %8777 = vmatpush2.msra.mxu0 0.0
    %8778 = vmatprep.subr.mxu0 0.0
    %8779 = vmatpush2.msra.mxu0 0.0
    %8780 = vmatprep.subr.mxu0 0.0
    %8781 = vmatpush2.msra.mxu0 0.0
    %8782 = vmatprep.subr.mxu0 0.0
    %8783 = vmatpush2.msra.mxu0 0.0
    %8784 = vmatprep.subr.mxu0 0.0
    %8785 = vmatpush2.msra.mxu0 0.0
    %8786 = vmatprep.subr.mxu0 0.0
    %8787 = vmatpush2.msra.mxu0 0.0
    %8788 = vmatprep.subr.mxu0 0.0
    %8789 = vmatpush2.msra.mxu0 0.0
    %8790 = vmatprep.subr.mxu0 0.0
    %8791 = vmatpush2.msra.mxu0 0.0
    %8792 = vmatprep.subr.mxu0 0.0
    %8793 = vmatpush2.msra.mxu0 0.0
    %8794 = vmatprep.subr.mxu0 0.0
    %8795 = vmatpush2.msra.mxu0 0.0
    %8796 = vmatprep.subr.mxu0 0.0
    %8797 = vmatpush2.msra.mxu0 0.0
    %8798 = vmatprep.subr.mxu0 0.0
    %8799 = vmatpush2.msra.mxu0 0.0
    %8800 = vmatprep.subr.mxu0 0.0
    %8801 = vmatpush2.msra.mxu0 0.0
    %8802 = vmatprep.subr.mxu0 0.0
    %8803 = vmatpush2.msra.mxu0 0.0
    %8804 = vmatprep.mubr.f32.mxu0 0.0
    %v8805 = vand.u32 %v8565, 4294901760
    %v8806 = vsub.f32 %v8565, %v8805
    %8807 = vmatmul.mubr.f32.gmra.mxu0 %v8806
    %v8808 = vpop.f32.mrf.mxu0
    %v8809 = vadd.f32 %v8729, %v8808
    %v8810 = vpop.f32.mrf.mxu0
    %8811 = vmatprep.mubr.f32.mxu0 0.0
    %v8812 = vand.u32 %v8568, 4294901760
    %v8813 = vsub.f32 %v8568, %v8812
    %8814 = vmatmul.mubr.f32.gmra.mxu0 %v8813
    %v8815 = vpop.f32.mrf.mxu0
    %v8816 = vadd.f32 %v8735, %v8815
    %v8817 = vpop.f32.mrf.mxu0
    %8818 = vdwg.mxu0
    %8819 = vmatprep.subr.mxu0 0.0
    %8820 = vmatpush1.msra.mxu0 0.0
    %8821 = vmatprep.subr.mxu0 0.0
    %8822 = vmatpush1.msra.mxu0 0.0
    %8823 = vmatprep.subr.mxu0 0.0
    %8824 = vmatpush1.msra.mxu0 0.0
    %8825 = vmatprep.subr.mxu0 0.0
    %8826 = vmatpush1.msra.mxu0 0.0
    %8827 = vmatprep.subr.mxu0 0.0
    %8828 = vmatpush1.msra.mxu0 0.0
    %8829 = vmatprep.subr.mxu0 0.0
    %8830 = vmatpush1.msra.mxu0 0.0
    %8831 = vmatprep.subr.mxu0 0.0
    %8832 = vmatpush1.msra.mxu0 0.0
    %8833 = vmatprep.subr.mxu0 0.0
    %8834 = vmatpush1.msra.mxu0 0.0
    %8835 = vmatprep.subr.mxu0 0.0
    %8836 = vmatpush1.msra.mxu0 0.0
    %8837 = vmatprep.subr.mxu0 0.0
    %8838 = vmatpush1.msra.mxu0 0.0
    %8839 = vmatprep.subr.mxu0 0.0
    %8840 = vmatpush1.msra.mxu0 0.0
    %8841 = vmatprep.subr.mxu0 0.0
    %8842 = vmatpush1.msra.mxu0 0.0
    %8843 = vmatprep.subr.mxu0 0.0
    %8844 = vmatpush1.msra.mxu0 0.0
    %8845 = vmatprep.subr.mxu0 0.0
    %8846 = vmatpush1.msra.mxu0 0.0
    %8847 = vmatprep.subr.mxu0 0.0
    %8848 = vmatpush1.msra.mxu0 0.0
    %8849 = vmatprep.subr.mxu0 0.0
    %v8850 = vand.u32 %v8563, 4294901760
    %8851 = vmatpush1.msra.mxu0 %v8850
    %8852 = vmatprep.subr.mxu0 0.0
    %8853 = vmatpush2.msra.mxu0 0.0
    %8854 = vmatprep.subr.mxu0 0.0
    %8855 = vmatpush2.msra.mxu0 0.0
    %8856 = vmatprep.subr.mxu0 0.0
    %8857 = vmatpush2.msra.mxu0 0.0
    %8858 = vmatprep.subr.mxu0 0.0
    %8859 = vmatpush2.msra.mxu0 0.0
    %8860 = vmatprep.subr.mxu0 0.0
    %8861 = vmatpush2.msra.mxu0 0.0
    %8862 = vmatprep.subr.mxu0 0.0
    %8863 = vmatpush2.msra.mxu0 0.0
    %8864 = vmatprep.subr.mxu0 0.0
    %8865 = vmatpush2.msra.mxu0 0.0
    %8866 = vmatprep.subr.mxu0 0.0
    %8867 = vmatpush2.msra.mxu0 0.0
    %8868 = vmatprep.subr.mxu0 0.0
    %8869 = vmatpush2.msra.mxu0 0.0
    %8870 = vmatprep.subr.mxu0 0.0
    %8871 = vmatpush2.msra.mxu0 0.0
    %8872 = vmatprep.subr.mxu0 0.0
    %8873 = vmatpush2.msra.mxu0 0.0
    %8874 = vmatprep.subr.mxu0 0.0
    %8875 = vmatpush2.msra.mxu0 0.0
    %8876 = vmatprep.subr.mxu0 0.0
    %8877 = vmatpush2.msra.mxu0 0.0
    %8878 = vmatprep.subr.mxu0 0.0
    %8879 = vmatpush2.msra.mxu0 0.0
    %8880 = vmatprep.subr.mxu0 0.0
    %8881 = vmatpush2.msra.mxu0 0.0
    %8882 = vmatprep.subr.mxu0 0.0
    %8883 = vmatpush2.msra.mxu0 0.0
    %8884 = vmatprep.mubr.f32.mxu0 0.0
    %v8885 = vand.u32 %v8565, 4294901760
    %v8886 = vsub.f32 %v8565, %v8885
    %v8887 = vand.u32 %v8886, 4294901760
    %8888 = vmatmul.mubr.f32.gmra.mxu0 %v8887
    %v8889 = vpop.f32.mrf.mxu0
    %v8890 = vadd.f32 %v8809, %v8889
    %v8891 = vpop.f32.mrf.mxu0
    %8892 = vmatprep.mubr.f32.mxu0 0.0
    %v8893 = vand.u32 %v8568, 4294901760
    %v8894 = vsub.f32 %v8568, %v8893
    %v8895 = vand.u32 %v8894, 4294901760
    %8896 = vmatmul.mubr.f32.gmra.mxu0 %v8895
    %v8897 = vpop.f32.mrf.mxu0
    %v8898 = vadd.f32 %v8816, %v8897
    %v8899 = vpop.f32.mrf.mxu0
    %8900 = vdwg.mxu0
    %8901 = vmatprep.subr.mxu0 0.0
    %8902 = vmatpush1.msra.mxu0 0.0
    %8903 = vmatprep.subr.mxu0 0.0
    %8904 = vmatpush1.msra.mxu0 0.0
    %8905 = vmatprep.subr.mxu0 0.0
    %8906 = vmatpush1.msra.mxu0 0.0
    %8907 = vmatprep.subr.mxu0 0.0
    %8908 = vmatpush1.msra.mxu0 0.0
    %8909 = vmatprep.subr.mxu0 0.0
    %8910 = vmatpush1.msra.mxu0 0.0
    %8911 = vmatprep.subr.mxu0 0.0
    %8912 = vmatpush1.msra.mxu0 0.0
    %8913 = vmatprep.subr.mxu0 0.0
    %8914 = vmatpush1.msra.mxu0 0.0
    %8915 = vmatprep.subr.mxu0 0.0
    %8916 = vmatpush1.msra.mxu0 0.0
    %8917 = vmatprep.subr.mxu0 0.0
    %8918 = vmatpush1.msra.mxu0 0.0
    %8919 = vmatprep.subr.mxu0 0.0
    %8920 = vmatpush1.msra.mxu0 0.0
    %8921 = vmatprep.subr.mxu0 0.0
    %8922 = vmatpush1.msra.mxu0 0.0
    %8923 = vmatprep.subr.mxu0 0.0
    %8924 = vmatpush1.msra.mxu0 0.0
    %8925 = vmatprep.subr.mxu0 0.0
    %8926 = vmatpush1.msra.mxu0 0.0
    %8927 = vmatprep.subr.mxu0 0.0
    %8928 = vmatpush1.msra.mxu0 0.0
    %8929 = vmatprep.subr.mxu0 0.0
    %8930 = vmatpush1.msra.mxu0 0.0
    %8931 = vmatprep.subr.mxu0 0.0
    %v8932 = vand.u32 %v8563, 4294901760
    %v8933 = vsub.f32 %v8563, %v8932
    %v8934 = vand.u32 %v8933, 4294901760
    %8935 = vmatpush1.msra.mxu0 %v8934
    %8936 = vmatprep.subr.mxu0 0.0
    %8937 = vmatpush2.msra.mxu0 0.0
    %8938 = vmatprep.subr.mxu0 0.0
    %8939 = vmatpush2.msra.mxu0 0.0
    %8940 = vmatprep.subr.mxu0 0.0
    %8941 = vmatpush2.msra.mxu0 0.0
    %8942 = vmatprep.subr.mxu0 0.0
    %8943 = vmatpush2.msra.mxu0 0.0
    %8944 = vmatprep.subr.mxu0 0.0
    %8945 = vmatpush2.msra.mxu0 0.0
    %8946 = vmatprep.subr.mxu0 0.0
    %8947 = vmatpush2.msra.mxu0 0.0
    %8948 = vmatprep.subr.mxu0 0.0
    %8949 = vmatpush2.msra.mxu0 0.0
    %8950 = vmatprep.subr.mxu0 0.0
    %8951 = vmatpush2.msra.mxu0 0.0
    %8952 = vmatprep.subr.mxu0 0.0
    %8953 = vmatpush2.msra.mxu0 0.0
    %8954 = vmatprep.subr.mxu0 0.0
    %8955 = vmatpush2.msra.mxu0 0.0
    %8956 = vmatprep.subr.mxu0 0.0
    %8957 = vmatpush2.msra.mxu0 0.0
    %8958 = vmatprep.subr.mxu0 0.0
    %8959 = vmatpush2.msra.mxu0 0.0
    %8960 = vmatprep.subr.mxu0 0.0
    %8961 = vmatpush2.msra.mxu0 0.0
    %8962 = vmatprep.subr.mxu0 0.0
    %8963 = vmatpush2.msra.mxu0 0.0
    %8964 = vmatprep.subr.mxu0 0.0
    %8965 = vmatpush2.msra.mxu0 0.0
    %8966 = vmatprep.subr.mxu0 0.0
    %8967 = vmatpush2.msra.mxu0 0.0
    %8968 = vmatprep.mubr.f32.mxu0 0.0
    %v8969 = vand.u32 %v8565, 4294901760
    %8970 = vmatmul.mubr.f32.gmra.mxu0 %v8969
    %v8971 = vpop.f32.mrf.mxu0
    %v8972 = vadd.f32 %v8890, %v8971
    %v8973 = vpop.f32.mrf.mxu0
    %8974 = vmatprep.mubr.f32.mxu0 0.0
    %v8975 = vand.u32 %v8568, 4294901760
    %8976 = vmatmul.mubr.f32.gmra.mxu0 %v8975
    %v8977 = vpop.f32.mrf.mxu0
    %v8978 = vadd.f32 %v8898, %v8977
    %v8979 = vpop.f32.mrf.mxu0
    %8980 = vdwg.mxu0
    %8981 = vmatprep.subr.mxu0 0.0
    %8982 = vmatpush1.msra.mxu0 0.0
    %8983 = vmatprep.subr.mxu0 0.0
    %8984 = vmatpush1.msra.mxu0 0.0
    %8985 = vmatprep.subr.mxu0 0.0
    %8986 = vmatpush1.msra.mxu0 0.0
    %8987 = vmatprep.subr.mxu0 0.0
    %8988 = vmatpush1.msra.mxu0 0.0
    %8989 = vmatprep.subr.mxu0 0.0
    %8990 = vmatpush1.msra.mxu0 0.0
    %8991 = vmatprep.subr.mxu0 0.0
    %8992 = vmatpush1.msra.mxu0 0.0
    %8993 = vmatprep.subr.mxu0 0.0
    %8994 = vmatpush1.msra.mxu0 0.0
    %8995 = vmatprep.subr.mxu0 0.0
    %8996 = vmatpush1.msra.mxu0 0.0
    %8997 = vmatprep.subr.mxu0 0.0
    %8998 = vmatpush1.msra.mxu0 0.0
    %8999 = vmatprep.subr.mxu0 0.0
    %9000 = vmatpush1.msra.mxu0 0.0
    %9001 = vmatprep.subr.mxu0 0.0
    %9002 = vmatpush1.msra.mxu0 0.0
    %9003 = vmatprep.subr.mxu0 0.0
    %9004 = vmatpush1.msra.mxu0 0.0
    %9005 = vmatprep.subr.mxu0 0.0
    %9006 = vmatpush1.msra.mxu0 0.0
    %9007 = vmatprep.subr.mxu0 0.0
    %9008 = vmatpush1.msra.mxu0 0.0
    %9009 = vmatprep.subr.mxu0 0.0
    %9010 = vmatpush1.msra.mxu0 0.0
    %9011 = vmatprep.subr.mxu0 0.0
    %v9012 = vand.u32 %v8563, 4294901760
    %9013 = vmatpush1.msra.mxu0 %v9012
    %9014 = vmatprep.subr.mxu0 0.0
    %9015 = vmatpush2.msra.mxu0 0.0
    %9016 = vmatprep.subr.mxu0 0.0
    %9017 = vmatpush2.msra.mxu0 0.0
    %9018 = vmatprep.subr.mxu0 0.0
    %9019 = vmatpush2.msra.mxu0 0.0
    %9020 = vmatprep.subr.mxu0 0.0
    %9021 = vmatpush2.msra.mxu0 0.0
    %9022 = vmatprep.subr.mxu0 0.0
    %9023 = vmatpush2.msra.mxu0 0.0
    %9024 = vmatprep.subr.mxu0 0.0
    %9025 = vmatpush2.msra.mxu0 0.0
    %9026 = vmatprep.subr.mxu0 0.0
    %9027 = vmatpush2.msra.mxu0 0.0
    %9028 = vmatprep.subr.mxu0 0.0
    %9029 = vmatpush2.msra.mxu0 0.0
    %9030 = vmatprep.subr.mxu0 0.0
    %9031 = vmatpush2.msra.mxu0 0.0
    %9032 = vmatprep.subr.mxu0 0.0
    %9033 = vmatpush2.msra.mxu0 0.0
    %9034 = vmatprep.subr.mxu0 0.0
    %9035 = vmatpush2.msra.mxu0 0.0
    %9036 = vmatprep.subr.mxu0 0.0
    %9037 = vmatpush2.msra.mxu0 0.0
    %9038 = vmatprep.subr.mxu0 0.0
    %9039 = vmatpush2.msra.mxu0 0.0
    %9040 = vmatprep.subr.mxu0 0.0
    %9041 = vmatpush2.msra.mxu0 0.0
    %9042 = vmatprep.subr.mxu0 0.0
    %9043 = vmatpush2.msra.mxu0 0.0
    %9044 = vmatprep.subr.mxu0 0.0
    %9045 = vmatpush2.msra.mxu0 0.0
    %9046 = vmatprep.mubr.f32.mxu0 0.0
    %v9047 = vand.u32 %v8565, 4294901760
    %9048 = vmatmul.mubr.f32.gmra.mxu0 %v9047
    %v9049 = vpop.f32.mrf.mxu0
    %v9050 = vadd.f32 %v8972, %v9049
    %v9051 = vpop.f32.mrf.mxu0
    %9052 = vmatprep.mubr.f32.mxu0 0.0
    %v9053 = vand.u32 %v8568, 4294901760
    %9054 = vmatmul.mubr.f32.gmra.mxu0 %v9053
    %v9055 = vpop.f32.mrf.mxu0
    %v9056 = vadd.f32 %v8978, %v9055
    %v9057 = vpop.f32.mrf.mxu0
    %9058 = vdwg.mxu0
    %v9059 = vadd.f32 %v6896, %v9050
    %v9060 = vadd.f32 %v6902, %v9056
    %s9061 = scalar_lea.vmem %s3, 96
    %v9062 = vld [vmem:[%s9061] sm:$0xff]
    %v9063 = vld [vmem:[%s9061 + $0x8] sm:$0xff]
    %v9064 = vld [vmem:[%s9061 + $0x10] sm:$0xff]
    %v9065 = vld [vmem:[%s9061 + $0x18] sm:$0xff]
    %9066 = vmatprep.subr.mxu0 0.0
    %9067 = vmatpush1.msra.mxu0 0.0
    %9068 = vmatprep.subr.mxu0 0.0
    %9069 = vmatpush1.msra.mxu0 0.0
    %9070 = vmatprep.subr.mxu0 0.0
    %9071 = vmatpush1.msra.mxu0 0.0
    %9072 = vmatprep.subr.mxu0 0.0
    %9073 = vmatpush1.msra.mxu0 0.0
    %9074 = vmatprep.subr.mxu0 0.0
    %9075 = vmatpush1.msra.mxu0 0.0
    %9076 = vmatprep.subr.mxu0 0.0
    %9077 = vmatpush1.msra.mxu0 0.0
    %9078 = vmatprep.subr.mxu0 0.0
    %9079 = vmatpush1.msra.mxu0 0.0
    %9080 = vmatprep.subr.mxu0 0.0
    %9081 = vmatpush1.msra.mxu0 0.0
    %9082 = vmatprep.subr.mxu0 0.0
    %9083 = vmatpush1.msra.mxu0 0.0
    %9084 = vmatprep.subr.mxu0 0.0
    %9085 = vmatpush1.msra.mxu0 0.0
    %9086 = vmatprep.subr.mxu0 0.0
    %9087 = vmatpush1.msra.mxu0 0.0
    %9088 = vmatprep.subr.mxu0 0.0
    %9089 = vmatpush1.msra.mxu0 0.0
    %9090 = vmatprep.subr.mxu0 0.0
    %v9091 = vand.u32 %v9065, 4294901760
    %9092 = vmatpush1.msra.mxu0 %v9091
    %9093 = vmatprep.subr.mxu0 0.0
    %v9094 = vand.u32 %v9064, 4294901760
    %9095 = vmatpush1.msra.mxu0 %v9094
    %9096 = vmatprep.subr.mxu0 0.0
    %v9097 = vand.u32 %v9063, 4294901760
    %9098 = vmatpush1.msra.mxu0 %v9097
    %9099 = vmatprep.subr.mxu0 0.0
    %v9100 = vand.u32 %v9062, 4294901760
    %9101 = vmatpush1.msra.mxu0 %v9100
    %9102 = vmatprep.subr.mxu0 0.0
    %9103 = vmatpush2.msra.mxu0 0.0
    %9104 = vmatprep.subr.mxu0 0.0
    %9105 = vmatpush2.msra.mxu0 0.0
    %9106 = vmatprep.subr.mxu0 0.0
    %9107 = vmatpush2.msra.mxu0 0.0
    %9108 = vmatprep.subr.mxu0 0.0
    %9109 = vmatpush2.msra.mxu0 0.0
    %9110 = vmatprep.subr.mxu0 0.0
    %9111 = vmatpush2.msra.mxu0 0.0
    %9112 = vmatprep.subr.mxu0 0.0
    %9113 = vmatpush2.msra.mxu0 0.0
    %9114 = vmatprep.subr.mxu0 0.0
    %9115 = vmatpush2.msra.mxu0 0.0
    %9116 = vmatprep.subr.mxu0 0.0
    %9117 = vmatpush2.msra.mxu0 0.0
    %9118 = vmatprep.subr.mxu0 0.0
    %9119 = vmatpush2.msra.mxu0 0.0
    %9120 = vmatprep.subr.mxu0 0.0
    %9121 = vmatpush2.msra.mxu0 0.0
    %9122 = vmatprep.subr.mxu0 0.0
    %9123 = vmatpush2.msra.mxu0 0.0
    %9124 = vmatprep.subr.mxu0 0.0
    %9125 = vmatpush2.msra.mxu0 0.0
    %9126 = vmatprep.subr.mxu0 0.0
    %9127 = vmatpush2.msra.mxu0 0.0
    %9128 = vmatprep.subr.mxu0 0.0
    %9129 = vmatpush2.msra.mxu0 0.0
    %9130 = vmatprep.subr.mxu0 0.0
    %9131 = vmatpush2.msra.mxu0 0.0
    %9132 = vmatprep.subr.mxu0 0.0
    %9133 = vmatpush2.msra.mxu0 0.0
    %9134 = vmatprep.mubr.f32.mxu0 0.0
    %v9135 = vand.u32 %v2606, 4294901760
    %v9136 = vsub.f32 %v2606, %v9135
    %v9137 = vand.u32 %v9136, 4294901760
    %v9138 = vsub.f32 %v9136, %v9137
    %v9139 = vand.u32 %v9138, 4294901760
    %9140 = vmatmul.mubr.f32.gmra.mxu0 %v9139
    %v9141 = vpop.f32.mrf.mxu0
    %v9142 = vadd.f32 0.0, %v9141
    %v9143 = vpop.f32.mrf.mxu0
    %9144 = vmatprep.mubr.f32.mxu0 0.0
    %v9145 = vand.u32 %v2609, 4294901760
    %v9146 = vsub.f32 %v2609, %v9145
    %v9147 = vand.u32 %v9146, 4294901760
    %v9148 = vsub.f32 %v9146, %v9147
    %v9149 = vand.u32 %v9148, 4294901760
    %9150 = vmatmul.mubr.f32.gmra.mxu0 %v9149
    %v9151 = vpop.f32.mrf.mxu0
    %v9152 = vadd.f32 0.0, %v9151
    %v9153 = vpop.f32.mrf.mxu0
    %9154 = vdwg.mxu0
    %9155 = vmatprep.subr.mxu0 0.0
    %9156 = vmatpush1.msra.mxu0 0.0
    %9157 = vmatprep.subr.mxu0 0.0
    %9158 = vmatpush1.msra.mxu0 0.0
    %9159 = vmatprep.subr.mxu0 0.0
    %9160 = vmatpush1.msra.mxu0 0.0
    %9161 = vmatprep.subr.mxu0 0.0
    %9162 = vmatpush1.msra.mxu0 0.0
    %9163 = vmatprep.subr.mxu0 0.0
    %9164 = vmatpush1.msra.mxu0 0.0
    %9165 = vmatprep.subr.mxu0 0.0
    %9166 = vmatpush1.msra.mxu0 0.0
    %9167 = vmatprep.subr.mxu0 0.0
    %9168 = vmatpush1.msra.mxu0 0.0
    %9169 = vmatprep.subr.mxu0 0.0
    %9170 = vmatpush1.msra.mxu0 0.0
    %9171 = vmatprep.subr.mxu0 0.0
    %9172 = vmatpush1.msra.mxu0 0.0
    %9173 = vmatprep.subr.mxu0 0.0
    %9174 = vmatpush1.msra.mxu0 0.0
    %9175 = vmatprep.subr.mxu0 0.0
    %9176 = vmatpush1.msra.mxu0 0.0
    %9177 = vmatprep.subr.mxu0 0.0
    %9178 = vmatpush1.msra.mxu0 0.0
    %9179 = vmatprep.subr.mxu0 0.0
    %v9180 = vand.u32 %v9065, 4294901760
    %v9181 = vsub.f32 %v9065, %v9180
    %v9182 = vand.u32 %v9181, 4294901760
    %v9183 = vsub.f32 %v9181, %v9182
    %v9184 = vand.u32 %v9183, 4294901760
    %9185 = vmatpush1.msra.mxu0 %v9184
    %9186 = vmatprep.subr.mxu0 0.0
    %v9187 = vand.u32 %v9064, 4294901760
    %v9188 = vsub.f32 %v9064, %v9187
    %v9189 = vand.u32 %v9188, 4294901760
    %v9190 = vsub.f32 %v9188, %v9189
    %v9191 = vand.u32 %v9190, 4294901760
    %9192 = vmatpush1.msra.mxu0 %v9191
    %9193 = vmatprep.subr.mxu0 0.0
    %v9194 = vand.u32 %v9063, 4294901760
    %v9195 = vsub.f32 %v9063, %v9194
    %v9196 = vand.u32 %v9195, 4294901760
    %v9197 = vsub.f32 %v9195, %v9196
    %v9198 = vand.u32 %v9197, 4294901760
    %9199 = vmatpush1.msra.mxu0 %v9198
    %9200 = vmatprep.subr.mxu0 0.0
    %v9201 = vand.u32 %v9062, 4294901760
    %v9202 = vsub.f32 %v9062, %v9201
    %v9203 = vand.u32 %v9202, 4294901760
    %v9204 = vsub.f32 %v9202, %v9203
    %v9205 = vand.u32 %v9204, 4294901760
    %9206 = vmatpush1.msra.mxu0 %v9205
    %9207 = vmatprep.subr.mxu0 0.0
    %9208 = vmatpush2.msra.mxu0 0.0
    %9209 = vmatprep.subr.mxu0 0.0
    %9210 = vmatpush2.msra.mxu0 0.0
    %9211 = vmatprep.subr.mxu0 0.0
    %9212 = vmatpush2.msra.mxu0 0.0
    %9213 = vmatprep.subr.mxu0 0.0
    %9214 = vmatpush2.msra.mxu0 0.0
    %9215 = vmatprep.subr.mxu0 0.0
    %9216 = vmatpush2.msra.mxu0 0.0
    %9217 = vmatprep.subr.mxu0 0.0
    %9218 = vmatpush2.msra.mxu0 0.0
    %9219 = vmatprep.subr.mxu0 0.0
    %9220 = vmatpush2.msra.mxu0 0.0
    %9221 = vmatprep.subr.mxu0 0.0
    %9222 = vmatpush2.msra.mxu0 0.0
    %9223 = vmatprep.subr.mxu0 0.0
    %9224 = vmatpush2.msra.mxu0 0.0
    %9225 = vmatprep.subr.mxu0 0.0
    %9226 = vmatpush2.msra.mxu0 0.0
    %9227 = vmatprep.subr.mxu0 0.0
    %9228 = vmatpush2.msra.mxu0 0.0
    %9229 = vmatprep.subr.mxu0 0.0
    %9230 = vmatpush2.msra.mxu0 0.0
    %9231 = vmatprep.subr.mxu0 0.0
    %9232 = vmatpush2.msra.mxu0 0.0
    %9233 = vmatprep.subr.mxu0 0.0
    %9234 = vmatpush2.msra.mxu0 0.0
    %9235 = vmatprep.subr.mxu0 0.0
    %9236 = vmatpush2.msra.mxu0 0.0
    %9237 = vmatprep.subr.mxu0 0.0
    %9238 = vmatpush2.msra.mxu0 0.0
    %9239 = vmatprep.mubr.f32.mxu0 0.0
    %v9240 = vand.u32 %v2606, 4294901760
    %9241 = vmatmul.mubr.f32.gmra.mxu0 %v9240
    %v9242 = vpop.f32.mrf.mxu0
    %v9243 = vadd.f32 %v9142, %v9242
    %v9244 = vpop.f32.mrf.mxu0
    %9245 = vmatprep.mubr.f32.mxu0 0.0
    %v9246 = vand.u32 %v2609, 4294901760
    %9247 = vmatmul.mubr.f32.gmra.mxu0 %v9246
    %v9248 = vpop.f32.mrf.mxu0
    %v9249 = vadd.f32 %v9152, %v9248
    %v9250 = vpop.f32.mrf.mxu0
    %9251 = vdwg.mxu0
    %9252 = vmatprep.subr.mxu0 0.0
    %9253 = vmatpush1.msra.mxu0 0.0
    %9254 = vmatprep.subr.mxu0 0.0
    %9255 = vmatpush1.msra.mxu0 0.0
    %9256 = vmatprep.subr.mxu0 0.0
    %9257 = vmatpush1.msra.mxu0 0.0
    %9258 = vmatprep.subr.mxu0 0.0
    %9259 = vmatpush1.msra.mxu0 0.0
    %9260 = vmatprep.subr.mxu0 0.0
    %9261 = vmatpush1.msra.mxu0 0.0
    %9262 = vmatprep.subr.mxu0 0.0
    %9263 = vmatpush1.msra.mxu0 0.0
    %9264 = vmatprep.subr.mxu0 0.0
    %9265 = vmatpush1.msra.mxu0 0.0
    %9266 = vmatprep.subr.mxu0 0.0
    %9267 = vmatpush1.msra.mxu0 0.0
    %9268 = vmatprep.subr.mxu0 0.0
    %9269 = vmatpush1.msra.mxu0 0.0
    %9270 = vmatprep.subr.mxu0 0.0
    %9271 = vmatpush1.msra.mxu0 0.0
    %9272 = vmatprep.subr.mxu0 0.0
    %9273 = vmatpush1.msra.mxu0 0.0
    %9274 = vmatprep.subr.mxu0 0.0
    %9275 = vmatpush1.msra.mxu0 0.0
    %9276 = vmatprep.subr.mxu0 0.0
    %v9277 = vand.u32 %v9065, 4294901760
    %v9278 = vsub.f32 %v9065, %v9277
    %9279 = vmatpush1.msra.mxu0 %v9278
    %9280 = vmatprep.subr.mxu0 0.0
    %v9281 = vand.u32 %v9064, 4294901760
    %v9282 = vsub.f32 %v9064, %v9281
    %9283 = vmatpush1.msra.mxu0 %v9282
    %9284 = vmatprep.subr.mxu0 0.0
    %v9285 = vand.u32 %v9063, 4294901760
    %v9286 = vsub.f32 %v9063, %v9285
    %9287 = vmatpush1.msra.mxu0 %v9286
    %9288 = vmatprep.subr.mxu0 0.0
    %v9289 = vand.u32 %v9062, 4294901760
    %v9290 = vsub.f32 %v9062, %v9289
    %9291 = vmatpush1.msra.mxu0 %v9290
    %9292 = vmatprep.subr.mxu0 0.0
    %9293 = vmatpush2.msra.mxu0 0.0
    %9294 = vmatprep.subr.mxu0 0.0
    %9295 = vmatpush2.msra.mxu0 0.0
    %9296 = vmatprep.subr.mxu0 0.0
    %9297 = vmatpush2.msra.mxu0 0.0
    %9298 = vmatprep.subr.mxu0 0.0
    %9299 = vmatpush2.msra.mxu0 0.0
    %9300 = vmatprep.subr.mxu0 0.0
    %9301 = vmatpush2.msra.mxu0 0.0
    %9302 = vmatprep.subr.mxu0 0.0
    %9303 = vmatpush2.msra.mxu0 0.0
    %9304 = vmatprep.subr.mxu0 0.0
    %9305 = vmatpush2.msra.mxu0 0.0
    %9306 = vmatprep.subr.mxu0 0.0
    %9307 = vmatpush2.msra.mxu0 0.0
    %9308 = vmatprep.subr.mxu0 0.0
    %9309 = vmatpush2.msra.mxu0 0.0
    %9310 = vmatprep.subr.mxu0 0.0
    %9311 = vmatpush2.msra.mxu0 0.0
    %9312 = vmatprep.subr.mxu0 0.0
    %9313 = vmatpush2.msra.mxu0 0.0
    %9314 = vmatprep.subr.mxu0 0.0
    %9315 = vmatpush2.msra.mxu0 0.0
    %9316 = vmatprep.subr.mxu0 0.0
    %9317 = vmatpush2.msra.mxu0 0.0
    %9318 = vmatprep.subr.mxu0 0.0
    %9319 = vmatpush2.msra.mxu0 0.0
    %9320 = vmatprep.subr.mxu0 0.0
    %9321 = vmatpush2.msra.mxu0 0.0
    %9322 = vmatprep.subr.mxu0 0.0
    %9323 = vmatpush2.msra.mxu0 0.0
    %9324 = vmatprep.mubr.f32.mxu0 0.0
    %v9325 = vand.u32 %v2606, 4294901760
    %v9326 = vsub.f32 %v2606, %v9325
    %9327 = vmatmul.mubr.f32.gmra.mxu0 %v9326
    %v9328 = vpop.f32.mrf.mxu0
    %v9329 = vadd.f32 %v9243, %v9328
    %v9330 = vpop.f32.mrf.mxu0
    %9331 = vmatprep.mubr.f32.mxu0 0.0
    %v9332 = vand.u32 %v2609, 4294901760
    %v9333 = vsub.f32 %v2609, %v9332
    %9334 = vmatmul.mubr.f32.gmra.mxu0 %v9333
    %v9335 = vpop.f32.mrf.mxu0
    %v9336 = vadd.f32 %v9249, %v9335
    %v9337 = vpop.f32.mrf.mxu0
    %9338 = vdwg.mxu0
    %9339 = vmatprep.subr.mxu0 0.0
    %9340 = vmatpush1.msra.mxu0 0.0
    %9341 = vmatprep.subr.mxu0 0.0
    %9342 = vmatpush1.msra.mxu0 0.0
    %9343 = vmatprep.subr.mxu0 0.0
    %9344 = vmatpush1.msra.mxu0 0.0
    %9345 = vmatprep.subr.mxu0 0.0
    %9346 = vmatpush1.msra.mxu0 0.0
    %9347 = vmatprep.subr.mxu0 0.0
    %9348 = vmatpush1.msra.mxu0 0.0
    %9349 = vmatprep.subr.mxu0 0.0
    %9350 = vmatpush1.msra.mxu0 0.0
    %9351 = vmatprep.subr.mxu0 0.0
    %9352 = vmatpush1.msra.mxu0 0.0
    %9353 = vmatprep.subr.mxu0 0.0
    %9354 = vmatpush1.msra.mxu0 0.0
    %9355 = vmatprep.subr.mxu0 0.0
    %9356 = vmatpush1.msra.mxu0 0.0
    %9357 = vmatprep.subr.mxu0 0.0
    %9358 = vmatpush1.msra.mxu0 0.0
    %9359 = vmatprep.subr.mxu0 0.0
    %9360 = vmatpush1.msra.mxu0 0.0
    %9361 = vmatprep.subr.mxu0 0.0
    %9362 = vmatpush1.msra.mxu0 0.0
    %9363 = vmatprep.subr.mxu0 0.0
    %v9364 = vand.u32 %v9065, 4294901760
    %9365 = vmatpush1.msra.mxu0 %v9364
    %9366 = vmatprep.subr.mxu0 0.0
    %v9367 = vand.u32 %v9064, 4294901760
    %9368 = vmatpush1.msra.mxu0 %v9367
    %9369 = vmatprep.subr.mxu0 0.0
    %v9370 = vand.u32 %v9063, 4294901760
    %9371 = vmatpush1.msra.mxu0 %v9370
    %9372 = vmatprep.subr.mxu0 0.0
    %v9373 = vand.u32 %v9062, 4294901760
    %9374 = vmatpush1.msra.mxu0 %v9373
    %9375 = vmatprep.subr.mxu0 0.0
    %9376 = vmatpush2.msra.mxu0 0.0
    %9377 = vmatprep.subr.mxu0 0.0
    %9378 = vmatpush2.msra.mxu0 0.0
    %9379 = vmatprep.subr.mxu0 0.0
    %9380 = vmatpush2.msra.mxu0 0.0
    %9381 = vmatprep.subr.mxu0 0.0
    %9382 = vmatpush2.msra.mxu0 0.0
    %9383 = vmatprep.subr.mxu0 0.0
    %9384 = vmatpush2.msra.mxu0 0.0
    %9385 = vmatprep.subr.mxu0 0.0
    %9386 = vmatpush2.msra.mxu0 0.0
    %9387 = vmatprep.subr.mxu0 0.0
    %9388 = vmatpush2.msra.mxu0 0.0
    %9389 = vmatprep.subr.mxu0 0.0
    %9390 = vmatpush2.msra.mxu0 0.0
    %9391 = vmatprep.subr.mxu0 0.0
    %9392 = vmatpush2.msra.mxu0 0.0
    %9393 = vmatprep.subr.mxu0 0.0
    %9394 = vmatpush2.msra.mxu0 0.0
    %9395 = vmatprep.subr.mxu0 0.0
    %9396 = vmatpush2.msra.mxu0 0.0
    %9397 = vmatprep.subr.mxu0 0.0
    %9398 = vmatpush2.msra.mxu0 0.0
    %9399 = vmatprep.subr.mxu0 0.0
    %9400 = vmatpush2.msra.mxu0 0.0
    %9401 = vmatprep.subr.mxu0 0.0
    %9402 = vmatpush2.msra.mxu0 0.0
    %9403 = vmatprep.subr.mxu0 0.0
    %9404 = vmatpush2.msra.mxu0 0.0
    %9405 = vmatprep.subr.mxu0 0.0
    %9406 = vmatpush2.msra.mxu0 0.0
    %9407 = vmatprep.mubr.f32.mxu0 0.0
    %v9408 = vand.u32 %v2606, 4294901760
    %v9409 = vsub.f32 %v2606, %v9408
    %v9410 = vand.u32 %v9409, 4294901760
    %9411 = vmatmul.mubr.f32.gmra.mxu0 %v9410
    %v9412 = vpop.f32.mrf.mxu0
    %v9413 = vadd.f32 %v9329, %v9412
    %v9414 = vpop.f32.mrf.mxu0
    %9415 = vmatprep.mubr.f32.mxu0 0.0
    %v9416 = vand.u32 %v2609, 4294901760
    %v9417 = vsub.f32 %v2609, %v9416
    %v9418 = vand.u32 %v9417, 4294901760
    %9419 = vmatmul.mubr.f32.gmra.mxu0 %v9418
    %v9420 = vpop.f32.mrf.mxu0
    %v9421 = vadd.f32 %v9336, %v9420
    %v9422 = vpop.f32.mrf.mxu0
    %9423 = vdwg.mxu0
    %9424 = vmatprep.subr.mxu0 0.0
    %9425 = vmatpush1.msra.mxu0 0.0
    %9426 = vmatprep.subr.mxu0 0.0
    %9427 = vmatpush1.msra.mxu0 0.0
    %9428 = vmatprep.subr.mxu0 0.0
    %9429 = vmatpush1.msra.mxu0 0.0
    %9430 = vmatprep.subr.mxu0 0.0
    %9431 = vmatpush1.msra.mxu0 0.0
    %9432 = vmatprep.subr.mxu0 0.0
    %9433 = vmatpush1.msra.mxu0 0.0
    %9434 = vmatprep.subr.mxu0 0.0
    %9435 = vmatpush1.msra.mxu0 0.0
    %9436 = vmatprep.subr.mxu0 0.0
    %9437 = vmatpush1.msra.mxu0 0.0
    %9438 = vmatprep.subr.mxu0 0.0
    %9439 = vmatpush1.msra.mxu0 0.0
    %9440 = vmatprep.subr.mxu0 0.0
    %9441 = vmatpush1.msra.mxu0 0.0
    %9442 = vmatprep.subr.mxu0 0.0
    %9443 = vmatpush1.msra.mxu0 0.0
    %9444 = vmatprep.subr.mxu0 0.0
    %9445 = vmatpush1.msra.mxu0 0.0
    %9446 = vmatprep.subr.mxu0 0.0
    %9447 = vmatpush1.msra.mxu0 0.0
    %9448 = vmatprep.subr.mxu0 0.0
    %v9449 = vand.u32 %v9065, 4294901760
    %v9450 = vsub.f32 %v9065, %v9449
    %v9451 = vand.u32 %v9450, 4294901760
    %9452 = vmatpush1.msra.mxu0 %v9451
    %9453 = vmatprep.subr.mxu0 0.0
    %v9454 = vand.u32 %v9064, 4294901760
    %v9455 = vsub.f32 %v9064, %v9454
    %v9456 = vand.u32 %v9455, 4294901760
    %9457 = vmatpush1.msra.mxu0 %v9456
    %9458 = vmatprep.subr.mxu0 0.0
    %v9459 = vand.u32 %v9063, 4294901760
    %v9460 = vsub.f32 %v9063, %v9459
    %v9461 = vand.u32 %v9460, 4294901760
    %9462 = vmatpush1.msra.mxu0 %v9461
    %9463 = vmatprep.subr.mxu0 0.0
    %v9464 = vand.u32 %v9062, 4294901760
    %v9465 = vsub.f32 %v9062, %v9464
    %v9466 = vand.u32 %v9465, 4294901760
    %9467 = vmatpush1.msra.mxu0 %v9466
    %9468 = vmatprep.subr.mxu0 0.0
    %9469 = vmatpush2.msra.mxu0 0.0
    %9470 = vmatprep.subr.mxu0 0.0
    %9471 = vmatpush2.msra.mxu0 0.0
    %9472 = vmatprep.subr.mxu0 0.0
    %9473 = vmatpush2.msra.mxu0 0.0
    %9474 = vmatprep.subr.mxu0 0.0
    %9475 = vmatpush2.msra.mxu0 0.0
    %9476 = vmatprep.subr.mxu0 0.0
    %9477 = vmatpush2.msra.mxu0 0.0
    %9478 = vmatprep.subr.mxu0 0.0
    %9479 = vmatpush2.msra.mxu0 0.0
    %9480 = vmatprep.subr.mxu0 0.0
    %9481 = vmatpush2.msra.mxu0 0.0
    %9482 = vmatprep.subr.mxu0 0.0
    %9483 = vmatpush2.msra.mxu0 0.0
    %9484 = vmatprep.subr.mxu0 0.0
    %9485 = vmatpush2.msra.mxu0 0.0
    %9486 = vmatprep.subr.mxu0 0.0
    %9487 = vmatpush2.msra.mxu0 0.0
    %9488 = vmatprep.subr.mxu0 0.0
    %9489 = vmatpush2.msra.mxu0 0.0
    %9490 = vmatprep.subr.mxu0 0.0
    %9491 = vmatpush2.msra.mxu0 0.0
    %9492 = vmatprep.subr.mxu0 0.0
    %9493 = vmatpush2.msra.mxu0 0.0
    %9494 = vmatprep.subr.mxu0 0.0
    %9495 = vmatpush2.msra.mxu0 0.0
    %9496 = vmatprep.subr.mxu0 0.0
    %9497 = vmatpush2.msra.mxu0 0.0
    %9498 = vmatprep.subr.mxu0 0.0
    %9499 = vmatpush2.msra.mxu0 0.0
    %9500 = vmatprep.mubr.f32.mxu0 0.0
    %v9501 = vand.u32 %v2606, 4294901760
    %9502 = vmatmul.mubr.f32.gmra.mxu0 %v9501
    %v9503 = vpop.f32.mrf.mxu0
    %v9504 = vadd.f32 %v9413, %v9503
    %v9505 = vpop.f32.mrf.mxu0
    %9506 = vmatprep.mubr.f32.mxu0 0.0
    %v9507 = vand.u32 %v2609, 4294901760
    %9508 = vmatmul.mubr.f32.gmra.mxu0 %v9507
    %v9509 = vpop.f32.mrf.mxu0
    %v9510 = vadd.f32 %v9421, %v9509
    %v9511 = vpop.f32.mrf.mxu0
    %9512 = vdwg.mxu0
    %9513 = vmatprep.subr.mxu0 0.0
    %9514 = vmatpush1.msra.mxu0 0.0
    %9515 = vmatprep.subr.mxu0 0.0
    %9516 = vmatpush1.msra.mxu0 0.0
    %9517 = vmatprep.subr.mxu0 0.0
    %9518 = vmatpush1.msra.mxu0 0.0
    %9519 = vmatprep.subr.mxu0 0.0
    %9520 = vmatpush1.msra.mxu0 0.0
    %9521 = vmatprep.subr.mxu0 0.0
    %9522 = vmatpush1.msra.mxu0 0.0
    %9523 = vmatprep.subr.mxu0 0.0
    %9524 = vmatpush1.msra.mxu0 0.0
    %9525 = vmatprep.subr.mxu0 0.0
    %9526 = vmatpush1.msra.mxu0 0.0
    %9527 = vmatprep.subr.mxu0 0.0
    %9528 = vmatpush1.msra.mxu0 0.0
    %9529 = vmatprep.subr.mxu0 0.0
    %9530 = vmatpush1.msra.mxu0 0.0
    %9531 = vmatprep.subr.mxu0 0.0
    %9532 = vmatpush1.msra.mxu0 0.0
    %9533 = vmatprep.subr.mxu0 0.0
    %9534 = vmatpush1.msra.mxu0 0.0
    %9535 = vmatprep.subr.mxu0 0.0
    %9536 = vmatpush1.msra.mxu0 0.0
    %9537 = vmatprep.subr.mxu0 0.0
    %v9538 = vand.u32 %v9065, 4294901760
    %9539 = vmatpush1.msra.mxu0 %v9538
    %9540 = vmatprep.subr.mxu0 0.0
    %v9541 = vand.u32 %v9064, 4294901760
    %9542 = vmatpush1.msra.mxu0 %v9541
    %9543 = vmatprep.subr.mxu0 0.0
    %v9544 = vand.u32 %v9063, 4294901760
    %9545 = vmatpush1.msra.mxu0 %v9544
    %9546 = vmatprep.subr.mxu0 0.0
    %v9547 = vand.u32 %v9062, 4294901760
    %9548 = vmatpush1.msra.mxu0 %v9547
    %9549 = vmatprep.subr.mxu0 0.0
    %9550 = vmatpush2.msra.mxu0 0.0
    %9551 = vmatprep.subr.mxu0 0.0
    %9552 = vmatpush2.msra.mxu0 0.0
    %9553 = vmatprep.subr.mxu0 0.0
    %9554 = vmatpush2.msra.mxu0 0.0
    %9555 = vmatprep.subr.mxu0 0.0
    %9556 = vmatpush2.msra.mxu0 0.0
    %9557 = vmatprep.subr.mxu0 0.0
    %9558 = vmatpush2.msra.mxu0 0.0
    %9559 = vmatprep.subr.mxu0 0.0
    %9560 = vmatpush2.msra.mxu0 0.0
    %9561 = vmatprep.subr.mxu0 0.0
    %9562 = vmatpush2.msra.mxu0 0.0
    %9563 = vmatprep.subr.mxu0 0.0
    %9564 = vmatpush2.msra.mxu0 0.0
    %9565 = vmatprep.subr.mxu0 0.0
    %9566 = vmatpush2.msra.mxu0 0.0
    %9567 = vmatprep.subr.mxu0 0.0
    %9568 = vmatpush2.msra.mxu0 0.0
    %9569 = vmatprep.subr.mxu0 0.0
    %9570 = vmatpush2.msra.mxu0 0.0
    %9571 = vmatprep.subr.mxu0 0.0
    %9572 = vmatpush2.msra.mxu0 0.0
    %9573 = vmatprep.subr.mxu0 0.0
    %9574 = vmatpush2.msra.mxu0 0.0
    %9575 = vmatprep.subr.mxu0 0.0
    %9576 = vmatpush2.msra.mxu0 0.0
    %9577 = vmatprep.subr.mxu0 0.0
    %9578 = vmatpush2.msra.mxu0 0.0
    %9579 = vmatprep.subr.mxu0 0.0
    %9580 = vmatpush2.msra.mxu0 0.0
    %9581 = vmatprep.mubr.f32.mxu0 0.0
    %v9582 = vand.u32 %v2606, 4294901760
    %9583 = vmatmul.mubr.f32.gmra.mxu0 %v9582
    %v9584 = vpop.f32.mrf.mxu0
    %v9585 = vadd.f32 %v9504, %v9584
    %v9586 = vpop.f32.mrf.mxu0
    %9587 = vmatprep.mubr.f32.mxu0 0.0
    %v9588 = vand.u32 %v2609, 4294901760
    %9589 = vmatmul.mubr.f32.gmra.mxu0 %v9588
    %v9590 = vpop.f32.mrf.mxu0
    %v9591 = vadd.f32 %v9510, %v9590
    %v9592 = vpop.f32.mrf.mxu0
    %9593 = vdwg.mxu0
    %v9594 = vmul.f32 %v9585, %v9585
    %v9595 = vmul.f32 %v9591, %v9591
    %v9596 = vsel %vm1289, %v9594, 0.0
    %9597 = vadd.xlane.f32.xlu0 %v9596
    %v9598 = vpop.xlane.xlu0 %9597
    %v9599 = vsel %vm1289, %v9595, 0.0
    %9600 = vadd.xlane.f32.xlu0 %v9599
    %v9601 = vpop.xlane.xlu0 %9600
    %v9602 = vmul.f32 %v9598, %v1302
    %v9603 = vmul.f32 %v9601, %v1302
    %v9604 = vadd.f32 %v9602, 1e-05
    %v9605 = vadd.f32 %v9603, 1e-05
    %v9606 = vrsqrt.pop %v9604
    %v9607 = vrsqrt.pop %v9605
    %v9608 = vmul.f32 %v9585, %v9606
    %v9609 = vmul.f32 %v9591, %v9607
    %v9610 = vmul.f32 %v9608, %v3158
    %v9611 = vmul.f32 %v9609, %v3158
    %v9613 = vsel %vm1289, %v9610, 0
    %v9616 = vsel %vm1289, %v9611, 0
    %9618 = vmatprep.subr.mxu0 0.0
    %9619 = vmatpush1.xpose.msra.mxu0 0.0
    %9620 = vmatprep.subr.mxu0 0.0
    %9621 = vmatpush1.xpose.msra.mxu0 0.0
    %9622 = vmatprep.subr.mxu0 0.0
    %9623 = vmatpush1.xpose.msra.mxu0 0.0
    %9624 = vmatprep.subr.mxu0 0.0
    %9625 = vmatpush1.xpose.msra.mxu0 0.0
    %9626 = vmatprep.subr.mxu0 0.0
    %9627 = vmatpush1.xpose.msra.mxu0 0.0
    %9628 = vmatprep.subr.mxu0 0.0
    %9629 = vmatpush1.xpose.msra.mxu0 0.0
    %9630 = vmatprep.subr.mxu0 0.0
    %9631 = vmatpush1.xpose.msra.mxu0 0.0
    %9632 = vmatprep.subr.mxu0 0.0
    %9633 = vmatpush1.xpose.msra.mxu0 0.0
    %9634 = vmatprep.subr.mxu0 0.0
    %9635 = vmatpush1.xpose.msra.mxu0 0.0
    %9636 = vmatprep.subr.mxu0 0.0
    %9637 = vmatpush1.xpose.msra.mxu0 0.0
    %9638 = vmatprep.subr.mxu0 0.0
    %9639 = vmatpush1.xpose.msra.mxu0 0.0
    %9640 = vmatprep.subr.mxu0 0.0
    %9641 = vmatpush1.xpose.msra.mxu0 0.0
    %9642 = vmatprep.subr.mxu0 0.0
    %v9643 = vand.u32 %v7472, 4294901760
    %9644 = vmatpush1.xpose.msra.mxu0 %v9643
    %9645 = vmatprep.subr.mxu0 0.0
    %v9646 = vand.u32 %v7469, 4294901760
    %9647 = vmatpush1.xpose.msra.mxu0 %v9646
    %9648 = vmatprep.subr.mxu0 0.0
    %v9649 = vand.u32 %v7466, 4294901760
    %9650 = vmatpush1.xpose.msra.mxu0 %v9649
    %9651 = vmatprep.subr.mxu0 0.0
    %v9652 = vand.u32 %v7463, 4294901760
    %9653 = vmatpush1.xpose.msra.mxu0 %v9652
    %9654 = vmatprep.subr.mxu0 0.0
    %9655 = vmatpush2.xpose.msra.mxu0 0.0
    %9656 = vmatprep.subr.mxu0 0.0
    %9657 = vmatpush2.xpose.msra.mxu0 0.0
    %9658 = vmatprep.subr.mxu0 0.0
    %9659 = vmatpush2.xpose.msra.mxu0 0.0
    %9660 = vmatprep.subr.mxu0 0.0
    %9661 = vmatpush2.xpose.msra.mxu0 0.0
    %9662 = vmatprep.subr.mxu0 0.0
    %9663 = vmatpush2.xpose.msra.mxu0 0.0
    %9664 = vmatprep.subr.mxu0 0.0
    %9665 = vmatpush2.xpose.msra.mxu0 0.0
    %9666 = vmatprep.subr.mxu0 0.0
    %9667 = vmatpush2.xpose.msra.mxu0 0.0
    %9668 = vmatprep.subr.mxu0 0.0
    %9669 = vmatpush2.xpose.msra.mxu0 0.0
    %9670 = vmatprep.subr.mxu0 0.0
    %9671 = vmatpush2.xpose.msra.mxu0 0.0
    %9672 = vmatprep.subr.mxu0 0.0
    %9673 = vmatpush2.xpose.msra.mxu0 0.0
    %9674 = vmatprep.subr.mxu0 0.0
    %9675 = vmatpush2.xpose.msra.mxu0 0.0
    %9676 = vmatprep.subr.mxu0 0.0
    %9677 = vmatpush2.xpose.msra.mxu0 0.0
    %9678 = vmatprep.subr.mxu0 0.0
    %9679 = vmatpush2.xpose.msra.mxu0 0.0
    %9680 = vmatprep.subr.mxu0 0.0
    %9681 = vmatpush2.xpose.msra.mxu0 0.0
    %9682 = vmatprep.subr.mxu0 0.0
    %9683 = vmatpush2.xpose.msra.mxu0 0.0
    %9684 = vmatprep.subr.mxu0 0.0
    %9685 = vmatpush2.xpose.msra.mxu0 0.0
    %9686 = vmatprep.mubr.f32.mxu0 0.0
    %v9687 = vand.u32 %v9613, 4294901760
    %v9688 = vsub.f32 %v9613, %v9687
    %v9689 = vand.u32 %v9688, 4294901760
    %v9690 = vsub.f32 %v9688, %v9689
    %v9691 = vand.u32 %v9690, 4294901760
    %9692 = vmatmul.mubr.f32.gmra.mxu0 %v9691
    %v9693 = vpop.f32.mrf.mxu0
    %v9694 = vadd.f32 0.0, %v9693
    %v9695 = vpop.f32.mrf.mxu0
    %9696 = vmatprep.mubr.f32.mxu0 0.0
    %v9697 = vand.u32 %v9616, 4294901760
    %v9698 = vsub.f32 %v9616, %v9697
    %v9699 = vand.u32 %v9698, 4294901760
    %v9700 = vsub.f32 %v9698, %v9699
    %v9701 = vand.u32 %v9700, 4294901760
    %9702 = vmatmul.mubr.f32.gmra.mxu0 %v9701
    %v9703 = vpop.f32.mrf.mxu0
    %v9704 = vadd.f32 0.0, %v9703
    %v9705 = vpop.f32.mrf.mxu0
    %9706 = vdwg.mxu0
    %9707 = vmatprep.subr.mxu0 0.0
    %9708 = vmatpush1.xpose.msra.mxu0 0.0
    %9709 = vmatprep.subr.mxu0 0.0
    %9710 = vmatpush1.xpose.msra.mxu0 0.0
    %9711 = vmatprep.subr.mxu0 0.0
    %9712 = vmatpush1.xpose.msra.mxu0 0.0
    %9713 = vmatprep.subr.mxu0 0.0
    %9714 = vmatpush1.xpose.msra.mxu0 0.0
    %9715 = vmatprep.subr.mxu0 0.0
    %9716 = vmatpush1.xpose.msra.mxu0 0.0
    %9717 = vmatprep.subr.mxu0 0.0
    %9718 = vmatpush1.xpose.msra.mxu0 0.0
    %9719 = vmatprep.subr.mxu0 0.0
    %9720 = vmatpush1.xpose.msra.mxu0 0.0
    %9721 = vmatprep.subr.mxu0 0.0
    %9722 = vmatpush1.xpose.msra.mxu0 0.0
    %9723 = vmatprep.subr.mxu0 0.0
    %9724 = vmatpush1.xpose.msra.mxu0 0.0
    %9725 = vmatprep.subr.mxu0 0.0
    %9726 = vmatpush1.xpose.msra.mxu0 0.0
    %9727 = vmatprep.subr.mxu0 0.0
    %9728 = vmatpush1.xpose.msra.mxu0 0.0
    %9729 = vmatprep.subr.mxu0 0.0
    %9730 = vmatpush1.xpose.msra.mxu0 0.0
    %9731 = vmatprep.subr.mxu0 0.0
    %v9732 = vand.u32 %v7472, 4294901760
    %v9733 = vsub.f32 %v7472, %v9732
    %v9734 = vand.u32 %v9733, 4294901760
    %v9735 = vsub.f32 %v9733, %v9734
    %v9736 = vand.u32 %v9735, 4294901760
    %9737 = vmatpush1.xpose.msra.mxu0 %v9736
    %9738 = vmatprep.subr.mxu0 0.0
    %v9739 = vand.u32 %v7469, 4294901760
    %v9740 = vsub.f32 %v7469, %v9739
    %v9741 = vand.u32 %v9740, 4294901760
    %v9742 = vsub.f32 %v9740, %v9741
    %v9743 = vand.u32 %v9742, 4294901760
    %9744 = vmatpush1.xpose.msra.mxu0 %v9743
    %9745 = vmatprep.subr.mxu0 0.0
    %v9746 = vand.u32 %v7466, 4294901760
    %v9747 = vsub.f32 %v7466, %v9746
    %v9748 = vand.u32 %v9747, 4294901760
    %v9749 = vsub.f32 %v9747, %v9748
    %v9750 = vand.u32 %v9749, 4294901760
    %9751 = vmatpush1.xpose.msra.mxu0 %v9750
    %9752 = vmatprep.subr.mxu0 0.0
    %v9753 = vand.u32 %v7463, 4294901760
    %v9754 = vsub.f32 %v7463, %v9753
    %v9755 = vand.u32 %v9754, 4294901760
    %v9756 = vsub.f32 %v9754, %v9755
    %v9757 = vand.u32 %v9756, 4294901760
    %9758 = vmatpush1.xpose.msra.mxu0 %v9757
    %9759 = vmatprep.subr.mxu0 0.0
    %9760 = vmatpush2.xpose.msra.mxu0 0.0
    %9761 = vmatprep.subr.mxu0 0.0
    %9762 = vmatpush2.xpose.msra.mxu0 0.0
    %9763 = vmatprep.subr.mxu0 0.0
    %9764 = vmatpush2.xpose.msra.mxu0 0.0
    %9765 = vmatprep.subr.mxu0 0.0
    %9766 = vmatpush2.xpose.msra.mxu0 0.0
    %9767 = vmatprep.subr.mxu0 0.0
    %9768 = vmatpush2.xpose.msra.mxu0 0.0
    %9769 = vmatprep.subr.mxu0 0.0
    %9770 = vmatpush2.xpose.msra.mxu0 0.0
    %9771 = vmatprep.subr.mxu0 0.0
    %9772 = vmatpush2.xpose.msra.mxu0 0.0
    %9773 = vmatprep.subr.mxu0 0.0
    %9774 = vmatpush2.xpose.msra.mxu0 0.0
    %9775 = vmatprep.subr.mxu0 0.0
    %9776 = vmatpush2.xpose.msra.mxu0 0.0
    %9777 = vmatprep.subr.mxu0 0.0
    %9778 = vmatpush2.xpose.msra.mxu0 0.0
    %9779 = vmatprep.subr.mxu0 0.0
    %9780 = vmatpush2.xpose.msra.mxu0 0.0
    %9781 = vmatprep.subr.mxu0 0.0
    %9782 = vmatpush2.xpose.msra.mxu0 0.0
    %9783 = vmatprep.subr.mxu0 0.0
    %9784 = vmatpush2.xpose.msra.mxu0 0.0
    %9785 = vmatprep.subr.mxu0 0.0
    %9786 = vmatpush2.xpose.msra.mxu0 0.0
    %9787 = vmatprep.subr.mxu0 0.0
    %9788 = vmatpush2.xpose.msra.mxu0 0.0
    %9789 = vmatprep.subr.mxu0 0.0
    %9790 = vmatpush2.xpose.msra.mxu0 0.0
    %9791 = vmatprep.mubr.f32.mxu0 0.0
    %v9792 = vand.u32 %v9613, 4294901760
    %9793 = vmatmul.mubr.f32.gmra.mxu0 %v9792
    %v9794 = vpop.f32.mrf.mxu0
    %v9795 = vadd.f32 %v9694, %v9794
    %v9796 = vpop.f32.mrf.mxu0
    %9797 = vmatprep.mubr.f32.mxu0 0.0
    %v9798 = vand.u32 %v9616, 4294901760
    %9799 = vmatmul.mubr.f32.gmra.mxu0 %v9798
    %v9800 = vpop.f32.mrf.mxu0
    %v9801 = vadd.f32 %v9704, %v9800
    %v9802 = vpop.f32.mrf.mxu0
    %9803 = vdwg.mxu0
    %9804 = vmatprep.subr.mxu0 0.0
    %9805 = vmatpush1.xpose.msra.mxu0 0.0
    %9806 = vmatprep.subr.mxu0 0.0
    %9807 = vmatpush1.xpose.msra.mxu0 0.0
    %9808 = vmatprep.subr.mxu0 0.0
    %9809 = vmatpush1.xpose.msra.mxu0 0.0
    %9810 = vmatprep.subr.mxu0 0.0
    %9811 = vmatpush1.xpose.msra.mxu0 0.0
    %9812 = vmatprep.subr.mxu0 0.0
    %9813 = vmatpush1.xpose.msra.mxu0 0.0
    %9814 = vmatprep.subr.mxu0 0.0
    %9815 = vmatpush1.xpose.msra.mxu0 0.0
    %9816 = vmatprep.subr.mxu0 0.0
    %9817 = vmatpush1.xpose.msra.mxu0 0.0
    %9818 = vmatprep.subr.mxu0 0.0
    %9819 = vmatpush1.xpose.msra.mxu0 0.0
    %9820 = vmatprep.subr.mxu0 0.0
    %9821 = vmatpush1.xpose.msra.mxu0 0.0
    %9822 = vmatprep.subr.mxu0 0.0
    %9823 = vmatpush1.xpose.msra.mxu0 0.0
    %9824 = vmatprep.subr.mxu0 0.0
    %9825 = vmatpush1.xpose.msra.mxu0 0.0
    %9826 = vmatprep.subr.mxu0 0.0
    %9827 = vmatpush1.xpose.msra.mxu0 0.0
    %9828 = vmatprep.subr.mxu0 0.0
    %v9829 = vand.u32 %v7472, 4294901760
    %v9830 = vsub.f32 %v7472, %v9829
    %9831 = vmatpush1.xpose.msra.mxu0 %v9830
    %9832 = vmatprep.subr.mxu0 0.0
    %v9833 = vand.u32 %v7469, 4294901760
    %v9834 = vsub.f32 %v7469, %v9833
    %9835 = vmatpush1.xpose.msra.mxu0 %v9834
    %9836 = vmatprep.subr.mxu0 0.0
    %v9837 = vand.u32 %v7466, 4294901760
    %v9838 = vsub.f32 %v7466, %v9837
    %9839 = vmatpush1.xpose.msra.mxu0 %v9838
    %9840 = vmatprep.subr.mxu0 0.0
    %v9841 = vand.u32 %v7463, 4294901760
    %v9842 = vsub.f32 %v7463, %v9841
    %9843 = vmatpush1.xpose.msra.mxu0 %v9842
    %9844 = vmatprep.subr.mxu0 0.0
    %9845 = vmatpush2.xpose.msra.mxu0 0.0
    %9846 = vmatprep.subr.mxu0 0.0
    %9847 = vmatpush2.xpose.msra.mxu0 0.0
    %9848 = vmatprep.subr.mxu0 0.0
    %9849 = vmatpush2.xpose.msra.mxu0 0.0
    %9850 = vmatprep.subr.mxu0 0.0
    %9851 = vmatpush2.xpose.msra.mxu0 0.0
    %9852 = vmatprep.subr.mxu0 0.0
    %9853 = vmatpush2.xpose.msra.mxu0 0.0
    %9854 = vmatprep.subr.mxu0 0.0
    %9855 = vmatpush2.xpose.msra.mxu0 0.0
    %9856 = vmatprep.subr.mxu0 0.0
    %9857 = vmatpush2.xpose.msra.mxu0 0.0
    %9858 = vmatprep.subr.mxu0 0.0
    %9859 = vmatpush2.xpose.msra.mxu0 0.0
    %9860 = vmatprep.subr.mxu0 0.0
    %9861 = vmatpush2.xpose.msra.mxu0 0.0
    %9862 = vmatprep.subr.mxu0 0.0
    %9863 = vmatpush2.xpose.msra.mxu0 0.0
    %9864 = vmatprep.subr.mxu0 0.0
    %9865 = vmatpush2.xpose.msra.mxu0 0.0
    %9866 = vmatprep.subr.mxu0 0.0
    %9867 = vmatpush2.xpose.msra.mxu0 0.0
    %9868 = vmatprep.subr.mxu0 0.0
    %9869 = vmatpush2.xpose.msra.mxu0 0.0
    %9870 = vmatprep.subr.mxu0 0.0
    %9871 = vmatpush2.xpose.msra.mxu0 0.0
    %9872 = vmatprep.subr.mxu0 0.0
    %9873 = vmatpush2.xpose.msra.mxu0 0.0
    %9874 = vmatprep.subr.mxu0 0.0
    %9875 = vmatpush2.xpose.msra.mxu0 0.0
    %9876 = vmatprep.mubr.f32.mxu0 0.0
    %v9877 = vand.u32 %v9613, 4294901760
    %v9878 = vsub.f32 %v9613, %v9877
    %9879 = vmatmul.mubr.f32.gmra.mxu0 %v9878
    %v9880 = vpop.f32.mrf.mxu0
    %v9881 = vadd.f32 %v9795, %v9880
    %v9882 = vpop.f32.mrf.mxu0
    %9883 = vmatprep.mubr.f32.mxu0 0.0
    %v9884 = vand.u32 %v9616, 4294901760
    %v9885 = vsub.f32 %v9616, %v9884
    %9886 = vmatmul.mubr.f32.gmra.mxu0 %v9885
    %v9887 = vpop.f32.mrf.mxu0
    %v9888 = vadd.f32 %v9801, %v9887
    %v9889 = vpop.f32.mrf.mxu0
    %9890 = vdwg.mxu0
    %9891 = vmatprep.subr.mxu0 0.0
    %9892 = vmatpush1.xpose.msra.mxu0 0.0
    %9893 = vmatprep.subr.mxu0 0.0
    %9894 = vmatpush1.xpose.msra.mxu0 0.0
    %9895 = vmatprep.subr.mxu0 0.0
    %9896 = vmatpush1.xpose.msra.mxu0 0.0
    %9897 = vmatprep.subr.mxu0 0.0
    %9898 = vmatpush1.xpose.msra.mxu0 0.0
    %9899 = vmatprep.subr.mxu0 0.0
    %9900 = vmatpush1.xpose.msra.mxu0 0.0
    %9901 = vmatprep.subr.mxu0 0.0
    %9902 = vmatpush1.xpose.msra.mxu0 0.0
    %9903 = vmatprep.subr.mxu0 0.0
    %9904 = vmatpush1.xpose.msra.mxu0 0.0
    %9905 = vmatprep.subr.mxu0 0.0
    %9906 = vmatpush1.xpose.msra.mxu0 0.0
    %9907 = vmatprep.subr.mxu0 0.0
    %9908 = vmatpush1.xpose.msra.mxu0 0.0
    %9909 = vmatprep.subr.mxu0 0.0
    %9910 = vmatpush1.xpose.msra.mxu0 0.0
    %9911 = vmatprep.subr.mxu0 0.0
    %9912 = vmatpush1.xpose.msra.mxu0 0.0
    %9913 = vmatprep.subr.mxu0 0.0
    %9914 = vmatpush1.xpose.msra.mxu0 0.0
    %9915 = vmatprep.subr.mxu0 0.0
    %v9916 = vand.u32 %v7472, 4294901760
    %9917 = vmatpush1.xpose.msra.mxu0 %v9916
    %9918 = vmatprep.subr.mxu0 0.0
    %v9919 = vand.u32 %v7469, 4294901760
    %9920 = vmatpush1.xpose.msra.mxu0 %v9919
    %9921 = vmatprep.subr.mxu0 0.0
    %v9922 = vand.u32 %v7466, 4294901760
    %9923 = vmatpush1.xpose.msra.mxu0 %v9922
    %9924 = vmatprep.subr.mxu0 0.0
    %v9925 = vand.u32 %v7463, 4294901760
    %9926 = vmatpush1.xpose.msra.mxu0 %v9925
    %9927 = vmatprep.subr.mxu0 0.0
    %9928 = vmatpush2.xpose.msra.mxu0 0.0
    %9929 = vmatprep.subr.mxu0 0.0
    %9930 = vmatpush2.xpose.msra.mxu0 0.0
    %9931 = vmatprep.subr.mxu0 0.0
    %9932 = vmatpush2.xpose.msra.mxu0 0.0
    %9933 = vmatprep.subr.mxu0 0.0
    %9934 = vmatpush2.xpose.msra.mxu0 0.0
    %9935 = vmatprep.subr.mxu0 0.0
    %9936 = vmatpush2.xpose.msra.mxu0 0.0
    %9937 = vmatprep.subr.mxu0 0.0
    %9938 = vmatpush2.xpose.msra.mxu0 0.0
    %9939 = vmatprep.subr.mxu0 0.0
    %9940 = vmatpush2.xpose.msra.mxu0 0.0
    %9941 = vmatprep.subr.mxu0 0.0
    %9942 = vmatpush2.xpose.msra.mxu0 0.0
    %9943 = vmatprep.subr.mxu0 0.0
    %9944 = vmatpush2.xpose.msra.mxu0 0.0
    %9945 = vmatprep.subr.mxu0 0.0
    %9946 = vmatpush2.xpose.msra.mxu0 0.0
    %9947 = vmatprep.subr.mxu0 0.0
    %9948 = vmatpush2.xpose.msra.mxu0 0.0
    %9949 = vmatprep.subr.mxu0 0.0
    %9950 = vmatpush2.xpose.msra.mxu0 0.0
    %9951 = vmatprep.subr.mxu0 0.0
    %9952 = vmatpush2.xpose.msra.mxu0 0.0
    %9953 = vmatprep.subr.mxu0 0.0
    %9954 = vmatpush2.xpose.msra.mxu0 0.0
    %9955 = vmatprep.subr.mxu0 0.0
    %9956 = vmatpush2.xpose.msra.mxu0 0.0
    %9957 = vmatprep.subr.mxu0 0.0
    %9958 = vmatpush2.xpose.msra.mxu0 0.0
    %9959 = vmatprep.mubr.f32.mxu0 0.0
    %v9960 = vand.u32 %v9613, 4294901760
    %v9961 = vsub.f32 %v9613, %v9960
    %v9962 = vand.u32 %v9961, 4294901760
    %9963 = vmatmul.mubr.f32.gmra.mxu0 %v9962
    %v9964 = vpop.f32.mrf.mxu0
    %v9965 = vadd.f32 %v9881, %v9964
    %v9966 = vpop.f32.mrf.mxu0
    %9967 = vmatprep.mubr.f32.mxu0 0.0
    %v9968 = vand.u32 %v9616, 4294901760
    %v9969 = vsub.f32 %v9616, %v9968
    %v9970 = vand.u32 %v9969, 4294901760
    %9971 = vmatmul.mubr.f32.gmra.mxu0 %v9970
    %v9972 = vpop.f32.mrf.mxu0
    %v9973 = vadd.f32 %v9888, %v9972
    %v9974 = vpop.f32.mrf.mxu0
    %9975 = vdwg.mxu0
    %9976 = vmatprep.subr.mxu0 0.0
    %9977 = vmatpush1.xpose.msra.mxu0 0.0
    %9978 = vmatprep.subr.mxu0 0.0
    %9979 = vmatpush1.xpose.msra.mxu0 0.0
    %9980 = vmatprep.subr.mxu0 0.0
    %9981 = vmatpush1.xpose.msra.mxu0 0.0
    %9982 = vmatprep.subr.mxu0 0.0
    %9983 = vmatpush1.xpose.msra.mxu0 0.0
    %9984 = vmatprep.subr.mxu0 0.0
    %9985 = vmatpush1.xpose.msra.mxu0 0.0
    %9986 = vmatprep.subr.mxu0 0.0
    %9987 = vmatpush1.xpose.msra.mxu0 0.0
    %9988 = vmatprep.subr.mxu0 0.0
    %9989 = vmatpush1.xpose.msra.mxu0 0.0
    %9990 = vmatprep.subr.mxu0 0.0
    %9991 = vmatpush1.xpose.msra.mxu0 0.0
    %9992 = vmatprep.subr.mxu0 0.0
    %9993 = vmatpush1.xpose.msra.mxu0 0.0
    %9994 = vmatprep.subr.mxu0 0.0
    %9995 = vmatpush1.xpose.msra.mxu0 0.0
    %9996 = vmatprep.subr.mxu0 0.0
    %9997 = vmatpush1.xpose.msra.mxu0 0.0
    %9998 = vmatprep.subr.mxu0 0.0
    %9999 = vmatpush1.xpose.msra.mxu0 0.0
    %10000 = vmatprep.subr.mxu0 0.0
    %v10001 = vand.u32 %v7472, 4294901760
    %v10002 = vsub.f32 %v7472, %v10001
    %v10003 = vand.u32 %v10002, 4294901760
    %10004 = vmatpush1.xpose.msra.mxu0 %v10003
    %10005 = vmatprep.subr.mxu0 0.0
    %v10006 = vand.u32 %v7469, 4294901760
    %v10007 = vsub.f32 %v7469, %v10006
    %v10008 = vand.u32 %v10007, 4294901760
    %10009 = vmatpush1.xpose.msra.mxu0 %v10008
    %10010 = vmatprep.subr.mxu0 0.0
    %v10011 = vand.u32 %v7466, 4294901760
    %v10012 = vsub.f32 %v7466, %v10011
    %v10013 = vand.u32 %v10012, 4294901760
    %10014 = vmatpush1.xpose.msra.mxu0 %v10013
    %10015 = vmatprep.subr.mxu0 0.0
    %v10016 = vand.u32 %v7463, 4294901760
    %v10017 = vsub.f32 %v7463, %v10016
    %v10018 = vand.u32 %v10017, 4294901760
    %10019 = vmatpush1.xpose.msra.mxu0 %v10018
    %10020 = vmatprep.subr.mxu0 0.0
    %10021 = vmatpush2.xpose.msra.mxu0 0.0
    %10022 = vmatprep.subr.mxu0 0.0
    %10023 = vmatpush2.xpose.msra.mxu0 0.0
    %10024 = vmatprep.subr.mxu0 0.0
    %10025 = vmatpush2.xpose.msra.mxu0 0.0
    %10026 = vmatprep.subr.mxu0 0.0
    %10027 = vmatpush2.xpose.msra.mxu0 0.0
    %10028 = vmatprep.subr.mxu0 0.0
    %10029 = vmatpush2.xpose.msra.mxu0 0.0
    %10030 = vmatprep.subr.mxu0 0.0
    %10031 = vmatpush2.xpose.msra.mxu0 0.0
    %10032 = vmatprep.subr.mxu0 0.0
    %10033 = vmatpush2.xpose.msra.mxu0 0.0
    %10034 = vmatprep.subr.mxu0 0.0
    %10035 = vmatpush2.xpose.msra.mxu0 0.0
    %10036 = vmatprep.subr.mxu0 0.0
    %10037 = vmatpush2.xpose.msra.mxu0 0.0
    %10038 = vmatprep.subr.mxu0 0.0
    %10039 = vmatpush2.xpose.msra.mxu0 0.0
    %10040 = vmatprep.subr.mxu0 0.0
    %10041 = vmatpush2.xpose.msra.mxu0 0.0
    %10042 = vmatprep.subr.mxu0 0.0
    %10043 = vmatpush2.xpose.msra.mxu0 0.0
    %10044 = vmatprep.subr.mxu0 0.0
    %10045 = vmatpush2.xpose.msra.mxu0 0.0
    %10046 = vmatprep.subr.mxu0 0.0
    %10047 = vmatpush2.xpose.msra.mxu0 0.0
    %10048 = vmatprep.subr.mxu0 0.0
    %10049 = vmatpush2.xpose.msra.mxu0 0.0
    %10050 = vmatprep.subr.mxu0 0.0
    %10051 = vmatpush2.xpose.msra.mxu0 0.0
    %10052 = vmatprep.mubr.f32.mxu0 0.0
    %v10053 = vand.u32 %v9613, 4294901760
    %10054 = vmatmul.mubr.f32.gmra.mxu0 %v10053
    %v10055 = vpop.f32.mrf.mxu0
    %v10056 = vadd.f32 %v9965, %v10055
    %v10057 = vpop.f32.mrf.mxu0
    %10058 = vmatprep.mubr.f32.mxu0 0.0
    %v10059 = vand.u32 %v9616, 4294901760
    %10060 = vmatmul.mubr.f32.gmra.mxu0 %v10059
    %v10061 = vpop.f32.mrf.mxu0
    %v10062 = vadd.f32 %v9973, %v10061
    %v10063 = vpop.f32.mrf.mxu0
    %10064 = vdwg.mxu0
    %10065 = vmatprep.subr.mxu0 0.0
    %10066 = vmatpush1.xpose.msra.mxu0 0.0
    %10067 = vmatprep.subr.mxu0 0.0
    %10068 = vmatpush1.xpose.msra.mxu0 0.0
    %10069 = vmatprep.subr.mxu0 0.0
    %10070 = vmatpush1.xpose.msra.mxu0 0.0
    %10071 = vmatprep.subr.mxu0 0.0
    %10072 = vmatpush1.xpose.msra.mxu0 0.0
    %10073 = vmatprep.subr.mxu0 0.0
    %10074 = vmatpush1.xpose.msra.mxu0 0.0
    %10075 = vmatprep.subr.mxu0 0.0
    %10076 = vmatpush1.xpose.msra.mxu0 0.0
    %10077 = vmatprep.subr.mxu0 0.0
    %10078 = vmatpush1.xpose.msra.mxu0 0.0
    %10079 = vmatprep.subr.mxu0 0.0
    %10080 = vmatpush1.xpose.msra.mxu0 0.0
    %10081 = vmatprep.subr.mxu0 0.0
    %10082 = vmatpush1.xpose.msra.mxu0 0.0
    %10083 = vmatprep.subr.mxu0 0.0
    %10084 = vmatpush1.xpose.msra.mxu0 0.0
    %10085 = vmatprep.subr.mxu0 0.0
    %10086 = vmatpush1.xpose.msra.mxu0 0.0
    %10087 = vmatprep.subr.mxu0 0.0
    %10088 = vmatpush1.xpose.msra.mxu0 0.0
    %10089 = vmatprep.subr.mxu0 0.0
    %v10090 = vand.u32 %v7472, 4294901760
    %10091 = vmatpush1.xpose.msra.mxu0 %v10090
    %10092 = vmatprep.subr.mxu0 0.0
    %v10093 = vand.u32 %v7469, 4294901760
    %10094 = vmatpush1.xpose.msra.mxu0 %v10093
    %10095 = vmatprep.subr.mxu0 0.0
    %v10096 = vand.u32 %v7466, 4294901760
    %10097 = vmatpush1.xpose.msra.mxu0 %v10096
    %10098 = vmatprep.subr.mxu0 0.0
    %v10099 = vand.u32 %v7463, 4294901760
    %10100 = vmatpush1.xpose.msra.mxu0 %v10099
    %10101 = vmatprep.subr.mxu0 0.0
    %10102 = vmatpush2.xpose.msra.mxu0 0.0
    %10103 = vmatprep.subr.mxu0 0.0
    %10104 = vmatpush2.xpose.msra.mxu0 0.0
    %10105 = vmatprep.subr.mxu0 0.0
    %10106 = vmatpush2.xpose.msra.mxu0 0.0
    %10107 = vmatprep.subr.mxu0 0.0
    %10108 = vmatpush2.xpose.msra.mxu0 0.0
    %10109 = vmatprep.subr.mxu0 0.0
    %10110 = vmatpush2.xpose.msra.mxu0 0.0
    %10111 = vmatprep.subr.mxu0 0.0
    %10112 = vmatpush2.xpose.msra.mxu0 0.0
    %10113 = vmatprep.subr.mxu0 0.0
    %10114 = vmatpush2.xpose.msra.mxu0 0.0
    %10115 = vmatprep.subr.mxu0 0.0
    %10116 = vmatpush2.xpose.msra.mxu0 0.0
    %10117 = vmatprep.subr.mxu0 0.0
    %10118 = vmatpush2.xpose.msra.mxu0 0.0
    %10119 = vmatprep.subr.mxu0 0.0
    %10120 = vmatpush2.xpose.msra.mxu0 0.0
    %10121 = vmatprep.subr.mxu0 0.0
    %10122 = vmatpush2.xpose.msra.mxu0 0.0
    %10123 = vmatprep.subr.mxu0 0.0
    %10124 = vmatpush2.xpose.msra.mxu0 0.0
    %10125 = vmatprep.subr.mxu0 0.0
    %10126 = vmatpush2.xpose.msra.mxu0 0.0
    %10127 = vmatprep.subr.mxu0 0.0
    %10128 = vmatpush2.xpose.msra.mxu0 0.0
    %10129 = vmatprep.subr.mxu0 0.0
    %10130 = vmatpush2.xpose.msra.mxu0 0.0
    %10131 = vmatprep.subr.mxu0 0.0
    %10132 = vmatpush2.xpose.msra.mxu0 0.0
    %10133 = vmatprep.mubr.f32.mxu0 0.0
    %v10134 = vand.u32 %v9613, 4294901760
    %10135 = vmatmul.mubr.f32.gmra.mxu0 %v10134
    %v10136 = vpop.f32.mrf.mxu0
    %v10137 = vadd.f32 %v10056, %v10136
    %v10138 = vpop.f32.mrf.mxu0
    %10139 = vmatprep.mubr.f32.mxu0 0.0
    %v10140 = vand.u32 %v9616, 4294901760
    %10141 = vmatmul.mubr.f32.gmra.mxu0 %v10140
    %v10142 = vpop.f32.mrf.mxu0
    %v10143 = vadd.f32 %v10062, %v10142
    %v10144 = vpop.f32.mrf.mxu0
    %10145 = vdwg.mxu0
    %v10146 = vmul.f32 %v10137, 0.35355338
    %v10147 = vmul.f32 %v10143, 0.35355338
    %v10148 = vadd.f32 %v10146, %v30
    %v10149 = vadd.f32 %v10147, %v31
    %v10150 = vsel %vm39, %v10148, -inf
    %10151 = vmax.xlane.f32.xlu0 %v10150
    %v10152 = vpop.xlane.xlu0 %10151
    %v10153 = vsel %vm39, %v10149, -inf
    %10154 = vmax.xlane.f32.xlu0 %v10153
    %v10155 = vpop.xlane.xlu0 %10154
    %v10156 = vsub.f32 %v10148, %v10152
    %v10157 = vsub.f32 %v10149, %v10155
    %v10158 = vmul.f32 %v10156, 1.442695
    %v10159 = vpow.pop %v10158
    %v10160 = vmul.f32 %v10157, 1.442695
    %v10161 = vpow.pop %v10160
    %v10162 = vsel %vm39, %v10159, 0.0
    %10163 = vadd.xlane.f32.xlu0 %v10162
    %v10164 = vpop.xlane.xlu0 %10163
    %v10165 = vsel %vm39, %v10161, 0.0
    %10166 = vadd.xlane.f32.xlu0 %v10165
    %v10167 = vpop.xlane.xlu0 %10166
    %v10168 = vrcp.pop %v10164
    %v10169 = vmul.f32 %v10159, %v10168
    %v10170 = vrcp.pop %v10167
    %v10171 = vmul.f32 %v10161, %v10170
    %v10173 = vsel %vm39, %v10169, 0
    %v10176 = vsel %vm39, %v10171, 0
    %10178 = vmatprep.subr.mxu0 0.0
    %10179 = vmatpush1.msra.mxu0 0.0
    %10180 = vmatprep.subr.mxu0 0.0
    %10181 = vmatpush1.msra.mxu0 0.0
    %10182 = vmatprep.subr.mxu0 0.0
    %10183 = vmatpush1.msra.mxu0 0.0
    %10184 = vmatprep.subr.mxu0 0.0
    %10185 = vmatpush1.msra.mxu0 0.0
    %10186 = vmatprep.subr.mxu0 0.0
    %10187 = vmatpush1.msra.mxu0 0.0
    %10188 = vmatprep.subr.mxu0 0.0
    %10189 = vmatpush1.msra.mxu0 0.0
    %10190 = vmatprep.subr.mxu0 0.0
    %10191 = vmatpush1.msra.mxu0 0.0
    %10192 = vmatprep.subr.mxu0 0.0
    %10193 = vmatpush1.msra.mxu0 0.0
    %10194 = vmatprep.subr.mxu0 0.0
    %10195 = vmatpush1.msra.mxu0 0.0
    %10196 = vmatprep.subr.mxu0 0.0
    %10197 = vmatpush1.msra.mxu0 0.0
    %10198 = vmatprep.subr.mxu0 0.0
    %10199 = vmatpush1.msra.mxu0 0.0
    %10200 = vmatprep.subr.mxu0 0.0
    %10201 = vmatpush1.msra.mxu0 0.0
    %10202 = vmatprep.subr.mxu0 0.0
    %v10203 = vand.u32 %v2562, 4294901760
    %10204 = vmatpush1.msra.mxu0 %v10203
    %10205 = vmatprep.subr.mxu0 0.0
    %v10206 = vand.u32 %v2556, 4294901760
    %10207 = vmatpush1.msra.mxu0 %v10206
    %10208 = vmatprep.subr.mxu0 0.0
    %v10209 = vand.u32 %v2550, 4294901760
    %10210 = vmatpush1.msra.mxu0 %v10209
    %10211 = vmatprep.subr.mxu0 0.0
    %v10212 = vand.u32 %v2544, 4294901760
    %10213 = vmatpush1.msra.mxu0 %v10212
    %10214 = vmatprep.subr.mxu0 0.0
    %10215 = vmatpush2.msra.mxu0 0.0
    %10216 = vmatprep.subr.mxu0 0.0
    %10217 = vmatpush2.msra.mxu0 0.0
    %10218 = vmatprep.subr.mxu0 0.0
    %10219 = vmatpush2.msra.mxu0 0.0
    %10220 = vmatprep.subr.mxu0 0.0
    %10221 = vmatpush2.msra.mxu0 0.0
    %10222 = vmatprep.subr.mxu0 0.0
    %10223 = vmatpush2.msra.mxu0 0.0
    %10224 = vmatprep.subr.mxu0 0.0
    %10225 = vmatpush2.msra.mxu0 0.0
    %10226 = vmatprep.subr.mxu0 0.0
    %10227 = vmatpush2.msra.mxu0 0.0
    %10228 = vmatprep.subr.mxu0 0.0
    %10229 = vmatpush2.msra.mxu0 0.0
    %10230 = vmatprep.subr.mxu0 0.0
    %10231 = vmatpush2.msra.mxu0 0.0
    %10232 = vmatprep.subr.mxu0 0.0
    %10233 = vmatpush2.msra.mxu0 0.0
    %10234 = vmatprep.subr.mxu0 0.0
    %10235 = vmatpush2.msra.mxu0 0.0
    %10236 = vmatprep.subr.mxu0 0.0
    %10237 = vmatpush2.msra.mxu0 0.0
    %10238 = vmatprep.subr.mxu0 0.0
    %10239 = vmatpush2.msra.mxu0 0.0
    %10240 = vmatprep.subr.mxu0 0.0
    %10241 = vmatpush2.msra.mxu0 0.0
    %10242 = vmatprep.subr.mxu0 0.0
    %10243 = vmatpush2.msra.mxu0 0.0
    %10244 = vmatprep.subr.mxu0 0.0
    %10245 = vmatpush2.msra.mxu0 0.0
    %10246 = vmatprep.mubr.f32.mxu0 0.0
    %v10247 = vand.u32 %v10173, 4294901760
    %v10248 = vsub.f32 %v10173, %v10247
    %v10249 = vand.u32 %v10248, 4294901760
    %v10250 = vsub.f32 %v10248, %v10249
    %v10251 = vand.u32 %v10250, 4294901760
    %10252 = vmatmul.mubr.f32.gmra.mxu0 %v10251
    %v10253 = vpop.f32.mrf.mxu0
    %v10254 = vadd.f32 0.0, %v10253
    %v10255 = vpop.f32.mrf.mxu0
    %10256 = vmatprep.mubr.f32.mxu0 0.0
    %v10257 = vand.u32 %v10176, 4294901760
    %v10258 = vsub.f32 %v10176, %v10257
    %v10259 = vand.u32 %v10258, 4294901760
    %v10260 = vsub.f32 %v10258, %v10259
    %v10261 = vand.u32 %v10260, 4294901760
    %10262 = vmatmul.mubr.f32.gmra.mxu0 %v10261
    %v10263 = vpop.f32.mrf.mxu0
    %v10264 = vadd.f32 0.0, %v10263
    %v10265 = vpop.f32.mrf.mxu0
    %10266 = vdwg.mxu0
    %10267 = vmatprep.subr.mxu0 0.0
    %10268 = vmatpush1.msra.mxu0 0.0
    %10269 = vmatprep.subr.mxu0 0.0
    %10270 = vmatpush1.msra.mxu0 0.0
    %10271 = vmatprep.subr.mxu0 0.0
    %10272 = vmatpush1.msra.mxu0 0.0
    %10273 = vmatprep.subr.mxu0 0.0
    %10274 = vmatpush1.msra.mxu0 0.0
    %10275 = vmatprep.subr.mxu0 0.0
    %10276 = vmatpush1.msra.mxu0 0.0
    %10277 = vmatprep.subr.mxu0 0.0
    %10278 = vmatpush1.msra.mxu0 0.0
    %10279 = vmatprep.subr.mxu0 0.0
    %10280 = vmatpush1.msra.mxu0 0.0
    %10281 = vmatprep.subr.mxu0 0.0
    %10282 = vmatpush1.msra.mxu0 0.0
    %10283 = vmatprep.subr.mxu0 0.0
    %10284 = vmatpush1.msra.mxu0 0.0
    %10285 = vmatprep.subr.mxu0 0.0
    %10286 = vmatpush1.msra.mxu0 0.0
    %10287 = vmatprep.subr.mxu0 0.0
    %10288 = vmatpush1.msra.mxu0 0.0
    %10289 = vmatprep.subr.mxu0 0.0
    %10290 = vmatpush1.msra.mxu0 0.0
    %10291 = vmatprep.subr.mxu0 0.0
    %v10292 = vand.u32 %v2562, 4294901760
    %v10293 = vsub.f32 %v2562, %v10292
    %v10294 = vand.u32 %v10293, 4294901760
    %v10295 = vsub.f32 %v10293, %v10294
    %v10296 = vand.u32 %v10295, 4294901760
    %10297 = vmatpush1.msra.mxu0 %v10296
    %10298 = vmatprep.subr.mxu0 0.0
    %v10299 = vand.u32 %v2556, 4294901760
    %v10300 = vsub.f32 %v2556, %v10299
    %v10301 = vand.u32 %v10300, 4294901760
    %v10302 = vsub.f32 %v10300, %v10301
    %v10303 = vand.u32 %v10302, 4294901760
    %10304 = vmatpush1.msra.mxu0 %v10303
    %10305 = vmatprep.subr.mxu0 0.0
    %v10306 = vand.u32 %v2550, 4294901760
    %v10307 = vsub.f32 %v2550, %v10306
    %v10308 = vand.u32 %v10307, 4294901760
    %v10309 = vsub.f32 %v10307, %v10308
    %v10310 = vand.u32 %v10309, 4294901760
    %10311 = vmatpush1.msra.mxu0 %v10310
    %10312 = vmatprep.subr.mxu0 0.0
    %v10313 = vand.u32 %v2544, 4294901760
    %v10314 = vsub.f32 %v2544, %v10313
    %v10315 = vand.u32 %v10314, 4294901760
    %v10316 = vsub.f32 %v10314, %v10315
    %v10317 = vand.u32 %v10316, 4294901760
    %10318 = vmatpush1.msra.mxu0 %v10317
    %10319 = vmatprep.subr.mxu0 0.0
    %10320 = vmatpush2.msra.mxu0 0.0
    %10321 = vmatprep.subr.mxu0 0.0
    %10322 = vmatpush2.msra.mxu0 0.0
    %10323 = vmatprep.subr.mxu0 0.0
    %10324 = vmatpush2.msra.mxu0 0.0
    %10325 = vmatprep.subr.mxu0 0.0
    %10326 = vmatpush2.msra.mxu0 0.0
    %10327 = vmatprep.subr.mxu0 0.0
    %10328 = vmatpush2.msra.mxu0 0.0
    %10329 = vmatprep.subr.mxu0 0.0
    %10330 = vmatpush2.msra.mxu0 0.0
    %10331 = vmatprep.subr.mxu0 0.0
    %10332 = vmatpush2.msra.mxu0 0.0
    %10333 = vmatprep.subr.mxu0 0.0
    %10334 = vmatpush2.msra.mxu0 0.0
    %10335 = vmatprep.subr.mxu0 0.0
    %10336 = vmatpush2.msra.mxu0 0.0
    %10337 = vmatprep.subr.mxu0 0.0
    %10338 = vmatpush2.msra.mxu0 0.0
    %10339 = vmatprep.subr.mxu0 0.0
    %10340 = vmatpush2.msra.mxu0 0.0
    %10341 = vmatprep.subr.mxu0 0.0
    %10342 = vmatpush2.msra.mxu0 0.0
    %10343 = vmatprep.subr.mxu0 0.0
    %10344 = vmatpush2.msra.mxu0 0.0
    %10345 = vmatprep.subr.mxu0 0.0
    %10346 = vmatpush2.msra.mxu0 0.0
    %10347 = vmatprep.subr.mxu0 0.0
    %10348 = vmatpush2.msra.mxu0 0.0
    %10349 = vmatprep.subr.mxu0 0.0
    %10350 = vmatpush2.msra.mxu0 0.0
    %10351 = vmatprep.mubr.f32.mxu0 0.0
    %v10352 = vand.u32 %v10173, 4294901760
    %10353 = vmatmul.mubr.f32.gmra.mxu0 %v10352
    %v10354 = vpop.f32.mrf.mxu0
    %v10355 = vadd.f32 %v10254, %v10354
    %v10356 = vpop.f32.mrf.mxu0
    %10357 = vmatprep.mubr.f32.mxu0 0.0
    %v10358 = vand.u32 %v10176, 4294901760
    %10359 = vmatmul.mubr.f32.gmra.mxu0 %v10358
    %v10360 = vpop.f32.mrf.mxu0
    %v10361 = vadd.f32 %v10264, %v10360
    %v10362 = vpop.f32.mrf.mxu0
    %10363 = vdwg.mxu0
    %10364 = vmatprep.subr.mxu0 0.0
    %10365 = vmatpush1.msra.mxu0 0.0
    %10366 = vmatprep.subr.mxu0 0.0
    %10367 = vmatpush1.msra.mxu0 0.0
    %10368 = vmatprep.subr.mxu0 0.0
    %10369 = vmatpush1.msra.mxu0 0.0
    %10370 = vmatprep.subr.mxu0 0.0
    %10371 = vmatpush1.msra.mxu0 0.0
    %10372 = vmatprep.subr.mxu0 0.0
    %10373 = vmatpush1.msra.mxu0 0.0
    %10374 = vmatprep.subr.mxu0 0.0
    %10375 = vmatpush1.msra.mxu0 0.0
    %10376 = vmatprep.subr.mxu0 0.0
    %10377 = vmatpush1.msra.mxu0 0.0
    %10378 = vmatprep.subr.mxu0 0.0
    %10379 = vmatpush1.msra.mxu0 0.0
    %10380 = vmatprep.subr.mxu0 0.0
    %10381 = vmatpush1.msra.mxu0 0.0
    %10382 = vmatprep.subr.mxu0 0.0
    %10383 = vmatpush1.msra.mxu0 0.0
    %10384 = vmatprep.subr.mxu0 0.0
    %10385 = vmatpush1.msra.mxu0 0.0
    %10386 = vmatprep.subr.mxu0 0.0
    %10387 = vmatpush1.msra.mxu0 0.0
    %10388 = vmatprep.subr.mxu0 0.0
    %v10389 = vand.u32 %v2562, 4294901760
    %v10390 = vsub.f32 %v2562, %v10389
    %10391 = vmatpush1.msra.mxu0 %v10390
    %10392 = vmatprep.subr.mxu0 0.0
    %v10393 = vand.u32 %v2556, 4294901760
    %v10394 = vsub.f32 %v2556, %v10393
    %10395 = vmatpush1.msra.mxu0 %v10394
    %10396 = vmatprep.subr.mxu0 0.0
    %v10397 = vand.u32 %v2550, 4294901760
    %v10398 = vsub.f32 %v2550, %v10397
    %10399 = vmatpush1.msra.mxu0 %v10398
    %10400 = vmatprep.subr.mxu0 0.0
    %v10401 = vand.u32 %v2544, 4294901760
    %v10402 = vsub.f32 %v2544, %v10401
    %10403 = vmatpush1.msra.mxu0 %v10402
    %10404 = vmatprep.subr.mxu0 0.0
    %10405 = vmatpush2.msra.mxu0 0.0
    %10406 = vmatprep.subr.mxu0 0.0
    %10407 = vmatpush2.msra.mxu0 0.0
    %10408 = vmatprep.subr.mxu0 0.0
    %10409 = vmatpush2.msra.mxu0 0.0
    %10410 = vmatprep.subr.mxu0 0.0
    %10411 = vmatpush2.msra.mxu0 0.0
    %10412 = vmatprep.subr.mxu0 0.0
    %10413 = vmatpush2.msra.mxu0 0.0
    %10414 = vmatprep.subr.mxu0 0.0
    %10415 = vmatpush2.msra.mxu0 0.0
    %10416 = vmatprep.subr.mxu0 0.0
    %10417 = vmatpush2.msra.mxu0 0.0
    %10418 = vmatprep.subr.mxu0 0.0
    %10419 = vmatpush2.msra.mxu0 0.0
    %10420 = vmatprep.subr.mxu0 0.0
    %10421 = vmatpush2.msra.mxu0 0.0
    %10422 = vmatprep.subr.mxu0 0.0
    %10423 = vmatpush2.msra.mxu0 0.0
    %10424 = vmatprep.subr.mxu0 0.0
    %10425 = vmatpush2.msra.mxu0 0.0
    %10426 = vmatprep.subr.mxu0 0.0
    %10427 = vmatpush2.msra.mxu0 0.0
    %10428 = vmatprep.subr.mxu0 0.0
    %10429 = vmatpush2.msra.mxu0 0.0
    %10430 = vmatprep.subr.mxu0 0.0
    %10431 = vmatpush2.msra.mxu0 0.0
    %10432 = vmatprep.subr.mxu0 0.0
    %10433 = vmatpush2.msra.mxu0 0.0
    %10434 = vmatprep.subr.mxu0 0.0
    %10435 = vmatpush2.msra.mxu0 0.0
    %10436 = vmatprep.mubr.f32.mxu0 0.0
    %v10437 = vand.u32 %v10173, 4294901760
    %v10438 = vsub.f32 %v10173, %v10437
    %10439 = vmatmul.mubr.f32.gmra.mxu0 %v10438
    %v10440 = vpop.f32.mrf.mxu0
    %v10441 = vadd.f32 %v10355, %v10440
    %v10442 = vpop.f32.mrf.mxu0
    %10443 = vmatprep.mubr.f32.mxu0 0.0
    %v10444 = vand.u32 %v10176, 4294901760
    %v10445 = vsub.f32 %v10176, %v10444
    %10446 = vmatmul.mubr.f32.gmra.mxu0 %v10445
    %v10447 = vpop.f32.mrf.mxu0
    %v10448 = vadd.f32 %v10361, %v10447
    %v10449 = vpop.f32.mrf.mxu0
    %10450 = vdwg.mxu0
    %10451 = vmatprep.subr.mxu0 0.0
    %10452 = vmatpush1.msra.mxu0 0.0
    %10453 = vmatprep.subr.mxu0 0.0
    %10454 = vmatpush1.msra.mxu0 0.0
    %10455 = vmatprep.subr.mxu0 0.0
    %10456 = vmatpush1.msra.mxu0 0.0
    %10457 = vmatprep.subr.mxu0 0.0
    %10458 = vmatpush1.msra.mxu0 0.0
    %10459 = vmatprep.subr.mxu0 0.0
    %10460 = vmatpush1.msra.mxu0 0.0
    %10461 = vmatprep.subr.mxu0 0.0
    %10462 = vmatpush1.msra.mxu0 0.0
    %10463 = vmatprep.subr.mxu0 0.0
    %10464 = vmatpush1.msra.mxu0 0.0
    %10465 = vmatprep.subr.mxu0 0.0
    %10466 = vmatpush1.msra.mxu0 0.0
    %10467 = vmatprep.subr.mxu0 0.0
    %10468 = vmatpush1.msra.mxu0 0.0
    %10469 = vmatprep.subr.mxu0 0.0
    %10470 = vmatpush1.msra.mxu0 0.0
    %10471 = vmatprep.subr.mxu0 0.0
    %10472 = vmatpush1.msra.mxu0 0.0
    %10473 = vmatprep.subr.mxu0 0.0
    %10474 = vmatpush1.msra.mxu0 0.0
    %10475 = vmatprep.subr.mxu0 0.0
    %v10476 = vand.u32 %v2562, 4294901760
    %10477 = vmatpush1.msra.mxu0 %v10476
    %10478 = vmatprep.subr.mxu0 0.0
    %v10479 = vand.u32 %v2556, 4294901760
    %10480 = vmatpush1.msra.mxu0 %v10479
    %10481 = vmatprep.subr.mxu0 0.0
    %v10482 = vand.u32 %v2550, 4294901760
    %10483 = vmatpush1.msra.mxu0 %v10482
    %10484 = vmatprep.subr.mxu0 0.0
    %v10485 = vand.u32 %v2544, 4294901760
    %10486 = vmatpush1.msra.mxu0 %v10485
    %10487 = vmatprep.subr.mxu0 0.0
    %10488 = vmatpush2.msra.mxu0 0.0
    %10489 = vmatprep.subr.mxu0 0.0
    %10490 = vmatpush2.msra.mxu0 0.0
    %10491 = vmatprep.subr.mxu0 0.0
    %10492 = vmatpush2.msra.mxu0 0.0
    %10493 = vmatprep.subr.mxu0 0.0
    %10494 = vmatpush2.msra.mxu0 0.0
    %10495 = vmatprep.subr.mxu0 0.0
    %10496 = vmatpush2.msra.mxu0 0.0
    %10497 = vmatprep.subr.mxu0 0.0
    %10498 = vmatpush2.msra.mxu0 0.0
    %10499 = vmatprep.subr.mxu0 0.0
    %10500 = vmatpush2.msra.mxu0 0.0
    %10501 = vmatprep.subr.mxu0 0.0
    %10502 = vmatpush2.msra.mxu0 0.0
    %10503 = vmatprep.subr.mxu0 0.0
    %10504 = vmatpush2.msra.mxu0 0.0
    %10505 = vmatprep.subr.mxu0 0.0
    %10506 = vmatpush2.msra.mxu0 0.0
    %10507 = vmatprep.subr.mxu0 0.0
    %10508 = vmatpush2.msra.mxu0 0.0
    %10509 = vmatprep.subr.mxu0 0.0
    %10510 = vmatpush2.msra.mxu0 0.0
    %10511 = vmatprep.subr.mxu0 0.0
    %10512 = vmatpush2.msra.mxu0 0.0
    %10513 = vmatprep.subr.mxu0 0.0
    %10514 = vmatpush2.msra.mxu0 0.0
    %10515 = vmatprep.subr.mxu0 0.0
    %10516 = vmatpush2.msra.mxu0 0.0
    %10517 = vmatprep.subr.mxu0 0.0
    %10518 = vmatpush2.msra.mxu0 0.0
    %10519 = vmatprep.mubr.f32.mxu0 0.0
    %v10520 = vand.u32 %v10173, 4294901760
    %v10521 = vsub.f32 %v10173, %v10520
    %v10522 = vand.u32 %v10521, 4294901760
    %10523 = vmatmul.mubr.f32.gmra.mxu0 %v10522
    %v10524 = vpop.f32.mrf.mxu0
    %v10525 = vadd.f32 %v10441, %v10524
    %v10526 = vpop.f32.mrf.mxu0
    %10527 = vmatprep.mubr.f32.mxu0 0.0
    %v10528 = vand.u32 %v10176, 4294901760
    %v10529 = vsub.f32 %v10176, %v10528
    %v10530 = vand.u32 %v10529, 4294901760
    %10531 = vmatmul.mubr.f32.gmra.mxu0 %v10530
    %v10532 = vpop.f32.mrf.mxu0
    %v10533 = vadd.f32 %v10448, %v10532
    %v10534 = vpop.f32.mrf.mxu0
    %10535 = vdwg.mxu0
    %10536 = vmatprep.subr.mxu0 0.0
    %10537 = vmatpush1.msra.mxu0 0.0
    %10538 = vmatprep.subr.mxu0 0.0
    %10539 = vmatpush1.msra.mxu0 0.0
    %10540 = vmatprep.subr.mxu0 0.0
    %10541 = vmatpush1.msra.mxu0 0.0
    %10542 = vmatprep.subr.mxu0 0.0
    %10543 = vmatpush1.msra.mxu0 0.0
    %10544 = vmatprep.subr.mxu0 0.0
    %10545 = vmatpush1.msra.mxu0 0.0
    %10546 = vmatprep.subr.mxu0 0.0
    %10547 = vmatpush1.msra.mxu0 0.0
    %10548 = vmatprep.subr.mxu0 0.0
    %10549 = vmatpush1.msra.mxu0 0.0
    %10550 = vmatprep.subr.mxu0 0.0
    %10551 = vmatpush1.msra.mxu0 0.0
    %10552 = vmatprep.subr.mxu0 0.0
    %10553 = vmatpush1.msra.mxu0 0.0
    %10554 = vmatprep.subr.mxu0 0.0
    %10555 = vmatpush1.msra.mxu0 0.0
    %10556 = vmatprep.subr.mxu0 0.0
    %10557 = vmatpush1.msra.mxu0 0.0
    %10558 = vmatprep.subr.mxu0 0.0
    %10559 = vmatpush1.msra.mxu0 0.0
    %10560 = vmatprep.subr.mxu0 0.0
    %v10561 = vand.u32 %v2562, 4294901760
    %v10562 = vsub.f32 %v2562, %v10561
    %v10563 = vand.u32 %v10562, 4294901760
    %10564 = vmatpush1.msra.mxu0 %v10563
    %10565 = vmatprep.subr.mxu0 0.0
    %v10566 = vand.u32 %v2556, 4294901760
    %v10567 = vsub.f32 %v2556, %v10566
    %v10568 = vand.u32 %v10567, 4294901760
    %10569 = vmatpush1.msra.mxu0 %v10568
    %10570 = vmatprep.subr.mxu0 0.0
    %v10571 = vand.u32 %v2550, 4294901760
    %v10572 = vsub.f32 %v2550, %v10571
    %v10573 = vand.u32 %v10572, 4294901760
    %10574 = vmatpush1.msra.mxu0 %v10573
    %10575 = vmatprep.subr.mxu0 0.0
    %v10576 = vand.u32 %v2544, 4294901760
    %v10577 = vsub.f32 %v2544, %v10576
    %v10578 = vand.u32 %v10577, 4294901760
    %10579 = vmatpush1.msra.mxu0 %v10578
    %10580 = vmatprep.subr.mxu0 0.0
    %10581 = vmatpush2.msra.mxu0 0.0
    %10582 = vmatprep.subr.mxu0 0.0
    %10583 = vmatpush2.msra.mxu0 0.0
    %10584 = vmatprep.subr.mxu0 0.0
    %10585 = vmatpush2.msra.mxu0 0.0
    %10586 = vmatprep.subr.mxu0 0.0
    %10587 = vmatpush2.msra.mxu0 0.0
    %10588 = vmatprep.subr.mxu0 0.0
    %10589 = vmatpush2.msra.mxu0 0.0
    %10590 = vmatprep.subr.mxu0 0.0
    %10591 = vmatpush2.msra.mxu0 0.0
    %10592 = vmatprep.subr.mxu0 0.0
    %10593 = vmatpush2.msra.mxu0 0.0
    %10594 = vmatprep.subr.mxu0 0.0
    %10595 = vmatpush2.msra.mxu0 0.0
    %10596 = vmatprep.subr.mxu0 0.0
    %10597 = vmatpush2.msra.mxu0 0.0
    %10598 = vmatprep.subr.mxu0 0.0
    %10599 = vmatpush2.msra.mxu0 0.0
    %10600 = vmatprep.subr.mxu0 0.0
    %10601 = vmatpush2.msra.mxu0 0.0
    %10602 = vmatprep.subr.mxu0 0.0
    %10603 = vmatpush2.msra.mxu0 0.0
    %10604 = vmatprep.subr.mxu0 0.0
    %10605 = vmatpush2.msra.mxu0 0.0
    %10606 = vmatprep.subr.mxu0 0.0
    %10607 = vmatpush2.msra.mxu0 0.0
    %10608 = vmatprep.subr.mxu0 0.0
    %10609 = vmatpush2.msra.mxu0 0.0
    %10610 = vmatprep.subr.mxu0 0.0
    %10611 = vmatpush2.msra.mxu0 0.0
    %10612 = vmatprep.mubr.f32.mxu0 0.0
    %v10613 = vand.u32 %v10173, 4294901760
    %10614 = vmatmul.mubr.f32.gmra.mxu0 %v10613
    %v10615 = vpop.f32.mrf.mxu0
    %v10616 = vadd.f32 %v10525, %v10615
    %v10617 = vpop.f32.mrf.mxu0
    %10618 = vmatprep.mubr.f32.mxu0 0.0
    %v10619 = vand.u32 %v10176, 4294901760
    %10620 = vmatmul.mubr.f32.gmra.mxu0 %v10619
    %v10621 = vpop.f32.mrf.mxu0
    %v10622 = vadd.f32 %v10533, %v10621
    %v10623 = vpop.f32.mrf.mxu0
    %10624 = vdwg.mxu0
    %10625 = vmatprep.subr.mxu0 0.0
    %10626 = vmatpush1.msra.mxu0 0.0
    %10627 = vmatprep.subr.mxu0 0.0
    %10628 = vmatpush1.msra.mxu0 0.0
    %10629 = vmatprep.subr.mxu0 0.0
    %10630 = vmatpush1.msra.mxu0 0.0
    %10631 = vmatprep.subr.mxu0 0.0
    %10632 = vmatpush1.msra.mxu0 0.0
    %10633 = vmatprep.subr.mxu0 0.0
    %10634 = vmatpush1.msra.mxu0 0.0
    %10635 = vmatprep.subr.mxu0 0.0
    %10636 = vmatpush1.msra.mxu0 0.0
    %10637 = vmatprep.subr.mxu0 0.0
    %10638 = vmatpush1.msra.mxu0 0.0
    %10639 = vmatprep.subr.mxu0 0.0
    %10640 = vmatpush1.msra.mxu0 0.0
    %10641 = vmatprep.subr.mxu0 0.0
    %10642 = vmatpush1.msra.mxu0 0.0
    %10643 = vmatprep.subr.mxu0 0.0
    %10644 = vmatpush1.msra.mxu0 0.0
    %10645 = vmatprep.subr.mxu0 0.0
    %10646 = vmatpush1.msra.mxu0 0.0
    %10647 = vmatprep.subr.mxu0 0.0
    %10648 = vmatpush1.msra.mxu0 0.0
    %10649 = vmatprep.subr.mxu0 0.0
    %v10650 = vand.u32 %v2562, 4294901760
    %10651 = vmatpush1.msra.mxu0 %v10650
    %10652 = vmatprep.subr.mxu0 0.0
    %v10653 = vand.u32 %v2556, 4294901760
    %10654 = vmatpush1.msra.mxu0 %v10653
    %10655 = vmatprep.subr.mxu0 0.0
    %v10656 = vand.u32 %v2550, 4294901760
    %10657 = vmatpush1.msra.mxu0 %v10656
    %10658 = vmatprep.subr.mxu0 0.0
    %v10659 = vand.u32 %v2544, 4294901760
    %10660 = vmatpush1.msra.mxu0 %v10659
    %10661 = vmatprep.subr.mxu0 0.0
    %10662 = vmatpush2.msra.mxu0 0.0
    %10663 = vmatprep.subr.mxu0 0.0
    %10664 = vmatpush2.msra.mxu0 0.0
    %10665 = vmatprep.subr.mxu0 0.0
    %10666 = vmatpush2.msra.mxu0 0.0
    %10667 = vmatprep.subr.mxu0 0.0
    %10668 = vmatpush2.msra.mxu0 0.0
    %10669 = vmatprep.subr.mxu0 0.0
    %10670 = vmatpush2.msra.mxu0 0.0
    %10671 = vmatprep.subr.mxu0 0.0
    %10672 = vmatpush2.msra.mxu0 0.0
    %10673 = vmatprep.subr.mxu0 0.0
    %10674 = vmatpush2.msra.mxu0 0.0
    %10675 = vmatprep.subr.mxu0 0.0
    %10676 = vmatpush2.msra.mxu0 0.0
    %10677 = vmatprep.subr.mxu0 0.0
    %10678 = vmatpush2.msra.mxu0 0.0
    %10679 = vmatprep.subr.mxu0 0.0
    %10680 = vmatpush2.msra.mxu0 0.0
    %10681 = vmatprep.subr.mxu0 0.0
    %10682 = vmatpush2.msra.mxu0 0.0
    %10683 = vmatprep.subr.mxu0 0.0
    %10684 = vmatpush2.msra.mxu0 0.0
    %10685 = vmatprep.subr.mxu0 0.0
    %10686 = vmatpush2.msra.mxu0 0.0
    %10687 = vmatprep.subr.mxu0 0.0
    %10688 = vmatpush2.msra.mxu0 0.0
    %10689 = vmatprep.subr.mxu0 0.0
    %10690 = vmatpush2.msra.mxu0 0.0
    %10691 = vmatprep.subr.mxu0 0.0
    %10692 = vmatpush2.msra.mxu0 0.0
    %10693 = vmatprep.mubr.f32.mxu0 0.0
    %v10694 = vand.u32 %v10173, 4294901760
    %10695 = vmatmul.mubr.f32.gmra.mxu0 %v10694
    %v10696 = vpop.f32.mrf.mxu0
    %v10697 = vadd.f32 %v10616, %v10696
    %v10698 = vpop.f32.mrf.mxu0
    %10699 = vmatprep.mubr.f32.mxu0 0.0
    %v10700 = vand.u32 %v10176, 4294901760
    %10701 = vmatmul.mubr.f32.gmra.mxu0 %v10700
    %v10702 = vpop.f32.mrf.mxu0
    %v10703 = vadd.f32 %v10622, %v10702
    %v10704 = vpop.f32.mrf.mxu0
    %10705 = vdwg.mxu0
    %s10706 = scalar_lea.vmem %s4, 24
    %v10707 = vld [vmem:[%s10706] sm:$0xff]
    %v10709 = vsel %vm1289, %v10697, 0
    %v10712 = vsel %vm1289, %v10703, 0
    %10714 = vmatprep.subr.mxu0 0.0
    %10715 = vmatpush1.msra.mxu0 0.0
    %10716 = vmatprep.subr.mxu0 0.0
    %10717 = vmatpush1.msra.mxu0 0.0
    %10718 = vmatprep.subr.mxu0 0.0
    %10719 = vmatpush1.msra.mxu0 0.0
    %10720 = vmatprep.subr.mxu0 0.0
    %10721 = vmatpush1.msra.mxu0 0.0
    %10722 = vmatprep.subr.mxu0 0.0
    %10723 = vmatpush1.msra.mxu0 0.0
    %10724 = vmatprep.subr.mxu0 0.0
    %10725 = vmatpush1.msra.mxu0 0.0
    %10726 = vmatprep.subr.mxu0 0.0
    %10727 = vmatpush1.msra.mxu0 0.0
    %10728 = vmatprep.subr.mxu0 0.0
    %10729 = vmatpush1.msra.mxu0 0.0
    %10730 = vmatprep.subr.mxu0 0.0
    %10731 = vmatpush1.msra.mxu0 0.0
    %10732 = vmatprep.subr.mxu0 0.0
    %10733 = vmatpush1.msra.mxu0 0.0
    %10734 = vmatprep.subr.mxu0 0.0
    %10735 = vmatpush1.msra.mxu0 0.0
    %10736 = vmatprep.subr.mxu0 0.0
    %10737 = vmatpush1.msra.mxu0 0.0
    %10738 = vmatprep.subr.mxu0 0.0
    %10739 = vmatpush1.msra.mxu0 0.0
    %10740 = vmatprep.subr.mxu0 0.0
    %10741 = vmatpush1.msra.mxu0 0.0
    %10742 = vmatprep.subr.mxu0 0.0
    %10743 = vmatpush1.msra.mxu0 0.0
    %10744 = vmatprep.subr.mxu0 0.0
    %v10745 = vand.u32 %v10707, 4294901760
    %10746 = vmatpush1.msra.mxu0 %v10745
    %10747 = vmatprep.subr.mxu0 0.0
    %10748 = vmatpush2.msra.mxu0 0.0
    %10749 = vmatprep.subr.mxu0 0.0
    %10750 = vmatpush2.msra.mxu0 0.0
    %10751 = vmatprep.subr.mxu0 0.0
    %10752 = vmatpush2.msra.mxu0 0.0
    %10753 = vmatprep.subr.mxu0 0.0
    %10754 = vmatpush2.msra.mxu0 0.0
    %10755 = vmatprep.subr.mxu0 0.0
    %10756 = vmatpush2.msra.mxu0 0.0
    %10757 = vmatprep.subr.mxu0 0.0
    %10758 = vmatpush2.msra.mxu0 0.0
    %10759 = vmatprep.subr.mxu0 0.0
    %10760 = vmatpush2.msra.mxu0 0.0
    %10761 = vmatprep.subr.mxu0 0.0
    %10762 = vmatpush2.msra.mxu0 0.0
    %10763 = vmatprep.subr.mxu0 0.0
    %10764 = vmatpush2.msra.mxu0 0.0
    %10765 = vmatprep.subr.mxu0 0.0
    %10766 = vmatpush2.msra.mxu0 0.0
    %10767 = vmatprep.subr.mxu0 0.0
    %10768 = vmatpush2.msra.mxu0 0.0
    %10769 = vmatprep.subr.mxu0 0.0
    %10770 = vmatpush2.msra.mxu0 0.0
    %10771 = vmatprep.subr.mxu0 0.0
    %10772 = vmatpush2.msra.mxu0 0.0
    %10773 = vmatprep.subr.mxu0 0.0
    %10774 = vmatpush2.msra.mxu0 0.0
    %10775 = vmatprep.subr.mxu0 0.0
    %10776 = vmatpush2.msra.mxu0 0.0
    %10777 = vmatprep.subr.mxu0 0.0
    %10778 = vmatpush2.msra.mxu0 0.0
    %10779 = vmatprep.mubr.f32.mxu0 0.0
    %v10780 = vand.u32 %v10709, 4294901760
    %v10781 = vsub.f32 %v10709, %v10780
    %v10782 = vand.u32 %v10781, 4294901760
    %v10783 = vsub.f32 %v10781, %v10782
    %v10784 = vand.u32 %v10783, 4294901760
    %10785 = vmatmul.mubr.f32.gmra.mxu0 %v10784
    %v10786 = vpop.f32.mrf.mxu0
    %v10787 = vadd.f32 0.0, %v10786
    %v10788 = vpop.f32.mrf.mxu0
    %10789 = vmatprep.mubr.f32.mxu0 0.0
    %v10790 = vand.u32 %v10712, 4294901760
    %v10791 = vsub.f32 %v10712, %v10790
    %v10792 = vand.u32 %v10791, 4294901760
    %v10793 = vsub.f32 %v10791, %v10792
    %v10794 = vand.u32 %v10793, 4294901760
    %10795 = vmatmul.mubr.f32.gmra.mxu0 %v10794
    %v10796 = vpop.f32.mrf.mxu0
    %v10797 = vadd.f32 0.0, %v10796
    %v10798 = vpop.f32.mrf.mxu0
    %10799 = vdwg.mxu0
    %10800 = vmatprep.subr.mxu0 0.0
    %10801 = vmatpush1.msra.mxu0 0.0
    %10802 = vmatprep.subr.mxu0 0.0
    %10803 = vmatpush1.msra.mxu0 0.0
    %10804 = vmatprep.subr.mxu0 0.0
    %10805 = vmatpush1.msra.mxu0 0.0
    %10806 = vmatprep.subr.mxu0 0.0
    %10807 = vmatpush1.msra.mxu0 0.0
    %10808 = vmatprep.subr.mxu0 0.0
    %10809 = vmatpush1.msra.mxu0 0.0
    %10810 = vmatprep.subr.mxu0 0.0
    %10811 = vmatpush1.msra.mxu0 0.0
    %10812 = vmatprep.subr.mxu0 0.0
    %10813 = vmatpush1.msra.mxu0 0.0
    %10814 = vmatprep.subr.mxu0 0.0
    %10815 = vmatpush1.msra.mxu0 0.0
    %10816 = vmatprep.subr.mxu0 0.0
    %10817 = vmatpush1.msra.mxu0 0.0
    %10818 = vmatprep.subr.mxu0 0.0
    %10819 = vmatpush1.msra.mxu0 0.0
    %10820 = vmatprep.subr.mxu0 0.0
    %10821 = vmatpush1.msra.mxu0 0.0
    %10822 = vmatprep.subr.mxu0 0.0
    %10823 = vmatpush1.msra.mxu0 0.0
    %10824 = vmatprep.subr.mxu0 0.0
    %10825 = vmatpush1.msra.mxu0 0.0
    %10826 = vmatprep.subr.mxu0 0.0
    %10827 = vmatpush1.msra.mxu0 0.0
    %10828 = vmatprep.subr.mxu0 0.0
    %10829 = vmatpush1.msra.mxu0 0.0
    %10830 = vmatprep.subr.mxu0 0.0
    %v10831 = vand.u32 %v10707, 4294901760
    %v10832 = vsub.f32 %v10707, %v10831
    %v10833 = vand.u32 %v10832, 4294901760
    %v10834 = vsub.f32 %v10832, %v10833
    %v10835 = vand.u32 %v10834, 4294901760
    %10836 = vmatpush1.msra.mxu0 %v10835
    %10837 = vmatprep.subr.mxu0 0.0
    %10838 = vmatpush2.msra.mxu0 0.0
    %10839 = vmatprep.subr.mxu0 0.0
    %10840 = vmatpush2.msra.mxu0 0.0
    %10841 = vmatprep.subr.mxu0 0.0
    %10842 = vmatpush2.msra.mxu0 0.0
    %10843 = vmatprep.subr.mxu0 0.0
    %10844 = vmatpush2.msra.mxu0 0.0
    %10845 = vmatprep.subr.mxu0 0.0
    %10846 = vmatpush2.msra.mxu0 0.0
    %10847 = vmatprep.subr.mxu0 0.0
    %10848 = vmatpush2.msra.mxu0 0.0
    %10849 = vmatprep.subr.mxu0 0.0
    %10850 = vmatpush2.msra.mxu0 0.0
    %10851 = vmatprep.subr.mxu0 0.0
    %10852 = vmatpush2.msra.mxu0 0.0
    %10853 = vmatprep.subr.mxu0 0.0
    %10854 = vmatpush2.msra.mxu0 0.0
    %10855 = vmatprep.subr.mxu0 0.0
    %10856 = vmatpush2.msra.mxu0 0.0
    %10857 = vmatprep.subr.mxu0 0.0
    %10858 = vmatpush2.msra.mxu0 0.0
    %10859 = vmatprep.subr.mxu0 0.0
    %10860 = vmatpush2.msra.mxu0 0.0
    %10861 = vmatprep.subr.mxu0 0.0
    %10862 = vmatpush2.msra.mxu0 0.0
    %10863 = vmatprep.subr.mxu0 0.0
    %10864 = vmatpush2.msra.mxu0 0.0
    %10865 = vmatprep.subr.mxu0 0.0
    %10866 = vmatpush2.msra.mxu0 0.0
    %10867 = vmatprep.subr.mxu0 0.0
    %10868 = vmatpush2.msra.mxu0 0.0
    %10869 = vmatprep.mubr.f32.mxu0 0.0
    %v10870 = vand.u32 %v10709, 4294901760
    %10871 = vmatmul.mubr.f32.gmra.mxu0 %v10870
    %v10872 = vpop.f32.mrf.mxu0
    %v10873 = vadd.f32 %v10787, %v10872
    %v10874 = vpop.f32.mrf.mxu0
    %10875 = vmatprep.mubr.f32.mxu0 0.0
    %v10876 = vand.u32 %v10712, 4294901760
    %10877 = vmatmul.mubr.f32.gmra.mxu0 %v10876
    %v10878 = vpop.f32.mrf.mxu0
    %v10879 = vadd.f32 %v10797, %v10878
    %v10880 = vpop.f32.mrf.mxu0
    %10881 = vdwg.mxu0
    %10882 = vmatprep.subr.mxu0 0.0
    %10883 = vmatpush1.msra.mxu0 0.0
    %10884 = vmatprep.subr.mxu0 0.0
    %10885 = vmatpush1.msra.mxu0 0.0
    %10886 = vmatprep.subr.mxu0 0.0
    %10887 = vmatpush1.msra.mxu0 0.0
    %10888 = vmatprep.subr.mxu0 0.0
    %10889 = vmatpush1.msra.mxu0 0.0
    %10890 = vmatprep.subr.mxu0 0.0
    %10891 = vmatpush1.msra.mxu0 0.0
    %10892 = vmatprep.subr.mxu0 0.0
    %10893 = vmatpush1.msra.mxu0 0.0
    %10894 = vmatprep.subr.mxu0 0.0
    %10895 = vmatpush1.msra.mxu0 0.0
    %10896 = vmatprep.subr.mxu0 0.0
    %10897 = vmatpush1.msra.mxu0 0.0
    %10898 = vmatprep.subr.mxu0 0.0
    %10899 = vmatpush1.msra.mxu0 0.0
    %10900 = vmatprep.subr.mxu0 0.0
    %10901 = vmatpush1.msra.mxu0 0.0
    %10902 = vmatprep.subr.mxu0 0.0
    %10903 = vmatpush1.msra.mxu0 0.0
    %10904 = vmatprep.subr.mxu0 0.0
    %10905 = vmatpush1.msra.mxu0 0.0
    %10906 = vmatprep.subr.mxu0 0.0
    %10907 = vmatpush1.msra.mxu0 0.0
    %10908 = vmatprep.subr.mxu0 0.0
    %10909 = vmatpush1.msra.mxu0 0.0
    %10910 = vmatprep.subr.mxu0 0.0
    %10911 = vmatpush1.msra.mxu0 0.0
    %10912 = vmatprep.subr.mxu0 0.0
    %v10913 = vand.u32 %v10707, 4294901760
    %v10914 = vsub.f32 %v10707, %v10913
    %10915 = vmatpush1.msra.mxu0 %v10914
    %10916 = vmatprep.subr.mxu0 0.0
    %10917 = vmatpush2.msra.mxu0 0.0
    %10918 = vmatprep.subr.mxu0 0.0
    %10919 = vmatpush2.msra.mxu0 0.0
    %10920 = vmatprep.subr.mxu0 0.0
    %10921 = vmatpush2.msra.mxu0 0.0
    %10922 = vmatprep.subr.mxu0 0.0
    %10923 = vmatpush2.msra.mxu0 0.0
    %10924 = vmatprep.subr.mxu0 0.0
    %10925 = vmatpush2.msra.mxu0 0.0
    %10926 = vmatprep.subr.mxu0 0.0
    %10927 = vmatpush2.msra.mxu0 0.0
    %10928 = vmatprep.subr.mxu0 0.0
    %10929 = vmatpush2.msra.mxu0 0.0
    %10930 = vmatprep.subr.mxu0 0.0
    %10931 = vmatpush2.msra.mxu0 0.0
    %10932 = vmatprep.subr.mxu0 0.0
    %10933 = vmatpush2.msra.mxu0 0.0
    %10934 = vmatprep.subr.mxu0 0.0
    %10935 = vmatpush2.msra.mxu0 0.0
    %10936 = vmatprep.subr.mxu0 0.0
    %10937 = vmatpush2.msra.mxu0 0.0
    %10938 = vmatprep.subr.mxu0 0.0
    %10939 = vmatpush2.msra.mxu0 0.0
    %10940 = vmatprep.subr.mxu0 0.0
    %10941 = vmatpush2.msra.mxu0 0.0
    %10942 = vmatprep.subr.mxu0 0.0
    %10943 = vmatpush2.msra.mxu0 0.0
    %10944 = vmatprep.subr.mxu0 0.0
    %10945 = vmatpush2.msra.mxu0 0.0
    %10946 = vmatprep.subr.mxu0 0.0
    %10947 = vmatpush2.msra.mxu0 0.0
    %10948 = vmatprep.mubr.f32.mxu0 0.0
    %v10949 = vand.u32 %v10709, 4294901760
    %v10950 = vsub.f32 %v10709, %v10949
    %10951 = vmatmul.mubr.f32.gmra.mxu0 %v10950
    %v10952 = vpop.f32.mrf.mxu0
    %v10953 = vadd.f32 %v10873, %v10952
    %v10954 = vpop.f32.mrf.mxu0
    %10955 = vmatprep.mubr.f32.mxu0 0.0
    %v10956 = vand.u32 %v10712, 4294901760
    %v10957 = vsub.f32 %v10712, %v10956
    %10958 = vmatmul.mubr.f32.gmra.mxu0 %v10957
    %v10959 = vpop.f32.mrf.mxu0
    %v10960 = vadd.f32 %v10879, %v10959
    %v10961 = vpop.f32.mrf.mxu0
    %10962 = vdwg.mxu0
    %10963 = vmatprep.subr.mxu0 0.0
    %10964 = vmatpush1.msra.mxu0 0.0
    %10965 = vmatprep.subr.mxu0 0.0
    %10966 = vmatpush1.msra.mxu0 0.0
    %10967 = vmatprep.subr.mxu0 0.0
    %10968 = vmatpush1.msra.mxu0 0.0
    %10969 = vmatprep.subr.mxu0 0.0
    %10970 = vmatpush1.msra.mxu0 0.0
    %10971 = vmatprep.subr.mxu0 0.0
    %10972 = vmatpush1.msra.mxu0 0.0
    %10973 = vmatprep.subr.mxu0 0.0
    %10974 = vmatpush1.msra.mxu0 0.0
    %10975 = vmatprep.subr.mxu0 0.0
    %10976 = vmatpush1.msra.mxu0 0.0
    %10977 = vmatprep.subr.mxu0 0.0
    %10978 = vmatpush1.msra.mxu0 0.0
    %10979 = vmatprep.subr.mxu0 0.0
    %10980 = vmatpush1.msra.mxu0 0.0
    %10981 = vmatprep.subr.mxu0 0.0
    %10982 = vmatpush1.msra.mxu0 0.0
    %10983 = vmatprep.subr.mxu0 0.0
    %10984 = vmatpush1.msra.mxu0 0.0
    %10985 = vmatprep.subr.mxu0 0.0
    %10986 = vmatpush1.msra.mxu0 0.0
    %10987 = vmatprep.subr.mxu0 0.0
    %10988 = vmatpush1.msra.mxu0 0.0
    %10989 = vmatprep.subr.mxu0 0.0
    %10990 = vmatpush1.msra.mxu0 0.0
    %10991 = vmatprep.subr.mxu0 0.0
    %10992 = vmatpush1.msra.mxu0 0.0
    %10993 = vmatprep.subr.mxu0 0.0
    %v10994 = vand.u32 %v10707, 4294901760
    %10995 = vmatpush1.msra.mxu0 %v10994
    %10996 = vmatprep.subr.mxu0 0.0
    %10997 = vmatpush2.msra.mxu0 0.0
    %10998 = vmatprep.subr.mxu0 0.0
    %10999 = vmatpush2.msra.mxu0 0.0
    %11000 = vmatprep.subr.mxu0 0.0
    %11001 = vmatpush2.msra.mxu0 0.0
    %11002 = vmatprep.subr.mxu0 0.0
    %11003 = vmatpush2.msra.mxu0 0.0
    %11004 = vmatprep.subr.mxu0 0.0
    %11005 = vmatpush2.msra.mxu0 0.0
    %11006 = vmatprep.subr.mxu0 0.0
    %11007 = vmatpush2.msra.mxu0 0.0
    %11008 = vmatprep.subr.mxu0 0.0
    %11009 = vmatpush2.msra.mxu0 0.0
    %11010 = vmatprep.subr.mxu0 0.0
    %11011 = vmatpush2.msra.mxu0 0.0
    %11012 = vmatprep.subr.mxu0 0.0
    %11013 = vmatpush2.msra.mxu0 0.0
    %11014 = vmatprep.subr.mxu0 0.0
    %11015 = vmatpush2.msra.mxu0 0.0
    %11016 = vmatprep.subr.mxu0 0.0
    %11017 = vmatpush2.msra.mxu0 0.0
    %11018 = vmatprep.subr.mxu0 0.0
    %11019 = vmatpush2.msra.mxu0 0.0
    %11020 = vmatprep.subr.mxu0 0.0
    %11021 = vmatpush2.msra.mxu0 0.0
    %11022 = vmatprep.subr.mxu0 0.0
    %11023 = vmatpush2.msra.mxu0 0.0
    %11024 = vmatprep.subr.mxu0 0.0
    %11025 = vmatpush2.msra.mxu0 0.0
    %11026 = vmatprep.subr.mxu0 0.0
    %11027 = vmatpush2.msra.mxu0 0.0
    %11028 = vmatprep.mubr.f32.mxu0 0.0
    %v11029 = vand.u32 %v10709, 4294901760
    %v11030 = vsub.f32 %v10709, %v11029
    %v11031 = vand.u32 %v11030, 4294901760
    %11032 = vmatmul.mubr.f32.gmra.mxu0 %v11031
    %v11033 = vpop.f32.mrf.mxu0
    %v11034 = vadd.f32 %v10953, %v11033
    %v11035 = vpop.f32.mrf.mxu0
    %11036 = vmatprep.mubr.f32.mxu0 0.0
    %v11037 = vand.u32 %v10712, 4294901760
    %v11038 = vsub.f32 %v10712, %v11037
    %v11039 = vand.u32 %v11038, 4294901760
    %11040 = vmatmul.mubr.f32.gmra.mxu0 %v11039
    %v11041 = vpop.f32.mrf.mxu0
    %v11042 = vadd.f32 %v10960, %v11041
    %v11043 = vpop.f32.mrf.mxu0
    %11044 = vdwg.mxu0
    %11045 = vmatprep.subr.mxu0 0.0
    %11046 = vmatpush1.msra.mxu0 0.0
    %11047 = vmatprep.subr.mxu0 0.0
    %11048 = vmatpush1.msra.mxu0 0.0
    %11049 = vmatprep.subr.mxu0 0.0
    %11050 = vmatpush1.msra.mxu0 0.0
    %11051 = vmatprep.subr.mxu0 0.0
    %11052 = vmatpush1.msra.mxu0 0.0
    %11053 = vmatprep.subr.mxu0 0.0
    %11054 = vmatpush1.msra.mxu0 0.0
    %11055 = vmatprep.subr.mxu0 0.0
    %11056 = vmatpush1.msra.mxu0 0.0
    %11057 = vmatprep.subr.mxu0 0.0
    %11058 = vmatpush1.msra.mxu0 0.0
    %11059 = vmatprep.subr.mxu0 0.0
    %11060 = vmatpush1.msra.mxu0 0.0
    %11061 = vmatprep.subr.mxu0 0.0
    %11062 = vmatpush1.msra.mxu0 0.0
    %11063 = vmatprep.subr.mxu0 0.0
    %11064 = vmatpush1.msra.mxu0 0.0
    %11065 = vmatprep.subr.mxu0 0.0
    %11066 = vmatpush1.msra.mxu0 0.0
    %11067 = vmatprep.subr.mxu0 0.0
    %11068 = vmatpush1.msra.mxu0 0.0
    %11069 = vmatprep.subr.mxu0 0.0
    %11070 = vmatpush1.msra.mxu0 0.0
    %11071 = vmatprep.subr.mxu0 0.0
    %11072 = vmatpush1.msra.mxu0 0.0
    %11073 = vmatprep.subr.mxu0 0.0
    %11074 = vmatpush1.msra.mxu0 0.0
    %11075 = vmatprep.subr.mxu0 0.0
    %v11076 = vand.u32 %v10707, 4294901760
    %v11077 = vsub.f32 %v10707, %v11076
    %v11078 = vand.u32 %v11077, 4294901760
    %11079 = vmatpush1.msra.mxu0 %v11078
    %11080 = vmatprep.subr.mxu0 0.0
    %11081 = vmatpush2.msra.mxu0 0.0
    %11082 = vmatprep.subr.mxu0 0.0
    %11083 = vmatpush2.msra.mxu0 0.0
    %11084 = vmatprep.subr.mxu0 0.0
    %11085 = vmatpush2.msra.mxu0 0.0
    %11086 = vmatprep.subr.mxu0 0.0
    %11087 = vmatpush2.msra.mxu0 0.0
    %11088 = vmatprep.subr.mxu0 0.0
    %11089 = vmatpush2.msra.mxu0 0.0
    %11090 = vmatprep.subr.mxu0 0.0
    %11091 = vmatpush2.msra.mxu0 0.0
    %11092 = vmatprep.subr.mxu0 0.0
    %11093 = vmatpush2.msra.mxu0 0.0
    %11094 = vmatprep.subr.mxu0 0.0
    %11095 = vmatpush2.msra.mxu0 0.0
    %11096 = vmatprep.subr.mxu0 0.0
    %11097 = vmatpush2.msra.mxu0 0.0
    %11098 = vmatprep.subr.mxu0 0.0
    %11099 = vmatpush2.msra.mxu0 0.0
    %11100 = vmatprep.subr.mxu0 0.0
    %11101 = vmatpush2.msra.mxu0 0.0
    %11102 = vmatprep.subr.mxu0 0.0
    %11103 = vmatpush2.msra.mxu0 0.0
    %11104 = vmatprep.subr.mxu0 0.0
    %11105 = vmatpush2.msra.mxu0 0.0
    %11106 = vmatprep.subr.mxu0 0.0
    %11107 = vmatpush2.msra.mxu0 0.0
    %11108 = vmatprep.subr.mxu0 0.0
    %11109 = vmatpush2.msra.mxu0 0.0
    %11110 = vmatprep.subr.mxu0 0.0
    %11111 = vmatpush2.msra.mxu0 0.0
    %11112 = vmatprep.mubr.f32.mxu0 0.0
    %v11113 = vand.u32 %v10709, 4294901760
    %11114 = vmatmul.mubr.f32.gmra.mxu0 %v11113
    %v11115 = vpop.f32.mrf.mxu0
    %v11116 = vadd.f32 %v11034, %v11115
    %v11117 = vpop.f32.mrf.mxu0
    %11118 = vmatprep.mubr.f32.mxu0 0.0
    %v11119 = vand.u32 %v10712, 4294901760
    %11120 = vmatmul.mubr.f32.gmra.mxu0 %v11119
    %v11121 = vpop.f32.mrf.mxu0
    %v11122 = vadd.f32 %v11042, %v11121
    %v11123 = vpop.f32.mrf.mxu0
    %11124 = vdwg.mxu0
    %11125 = vmatprep.subr.mxu0 0.0
    %11126 = vmatpush1.msra.mxu0 0.0
    %11127 = vmatprep.subr.mxu0 0.0
    %11128 = vmatpush1.msra.mxu0 0.0
    %11129 = vmatprep.subr.mxu0 0.0
    %11130 = vmatpush1.msra.mxu0 0.0
    %11131 = vmatprep.subr.mxu0 0.0
    %11132 = vmatpush1.msra.mxu0 0.0
    %11133 = vmatprep.subr.mxu0 0.0
    %11134 = vmatpush1.msra.mxu0 0.0
    %11135 = vmatprep.subr.mxu0 0.0
    %11136 = vmatpush1.msra.mxu0 0.0
    %11137 = vmatprep.subr.mxu0 0.0
    %11138 = vmatpush1.msra.mxu0 0.0
    %11139 = vmatprep.subr.mxu0 0.0
    %11140 = vmatpush1.msra.mxu0 0.0
    %11141 = vmatprep.subr.mxu0 0.0
    %11142 = vmatpush1.msra.mxu0 0.0
    %11143 = vmatprep.subr.mxu0 0.0
    %11144 = vmatpush1.msra.mxu0 0.0
    %11145 = vmatprep.subr.mxu0 0.0
    %11146 = vmatpush1.msra.mxu0 0.0
    %11147 = vmatprep.subr.mxu0 0.0
    %11148 = vmatpush1.msra.mxu0 0.0
    %11149 = vmatprep.subr.mxu0 0.0
    %11150 = vmatpush1.msra.mxu0 0.0
    %11151 = vmatprep.subr.mxu0 0.0
    %11152 = vmatpush1.msra.mxu0 0.0
    %11153 = vmatprep.subr.mxu0 0.0
    %11154 = vmatpush1.msra.mxu0 0.0
    %11155 = vmatprep.subr.mxu0 0.0
    %v11156 = vand.u32 %v10707, 4294901760
    %11157 = vmatpush1.msra.mxu0 %v11156
    %11158 = vmatprep.subr.mxu0 0.0
    %11159 = vmatpush2.msra.mxu0 0.0
    %11160 = vmatprep.subr.mxu0 0.0
    %11161 = vmatpush2.msra.mxu0 0.0
    %11162 = vmatprep.subr.mxu0 0.0
    %11163 = vmatpush2.msra.mxu0 0.0
    %11164 = vmatprep.subr.mxu0 0.0
    %11165 = vmatpush2.msra.mxu0 0.0
    %11166 = vmatprep.subr.mxu0 0.0
    %11167 = vmatpush2.msra.mxu0 0.0
    %11168 = vmatprep.subr.mxu0 0.0
    %11169 = vmatpush2.msra.mxu0 0.0
    %11170 = vmatprep.subr.mxu0 0.0
    %11171 = vmatpush2.msra.mxu0 0.0
    %11172 = vmatprep.subr.mxu0 0.0
    %11173 = vmatpush2.msra.mxu0 0.0
    %11174 = vmatprep.subr.mxu0 0.0
    %11175 = vmatpush2.msra.mxu0 0.0
    %11176 = vmatprep.subr.mxu0 0.0
    %11177 = vmatpush2.msra.mxu0 0.0
    %11178 = vmatprep.subr.mxu0 0.0
    %11179 = vmatpush2.msra.mxu0 0.0
    %11180 = vmatprep.subr.mxu0 0.0
    %11181 = vmatpush2.msra.mxu0 0.0
    %11182 = vmatprep.subr.mxu0 0.0
    %11183 = vmatpush2.msra.mxu0 0.0
    %11184 = vmatprep.subr.mxu0 0.0
    %11185 = vmatpush2.msra.mxu0 0.0
    %11186 = vmatprep.subr.mxu0 0.0
    %11187 = vmatpush2.msra.mxu0 0.0
    %11188 = vmatprep.subr.mxu0 0.0
    %11189 = vmatpush2.msra.mxu0 0.0
    %11190 = vmatprep.mubr.f32.mxu0 0.0
    %v11191 = vand.u32 %v10709, 4294901760
    %11192 = vmatmul.mubr.f32.gmra.mxu0 %v11191
    %v11193 = vpop.f32.mrf.mxu0
    %v11194 = vadd.f32 %v11116, %v11193
    %v11195 = vpop.f32.mrf.mxu0
    %11196 = vmatprep.mubr.f32.mxu0 0.0
    %v11197 = vand.u32 %v10712, 4294901760
    %11198 = vmatmul.mubr.f32.gmra.mxu0 %v11197
    %v11199 = vpop.f32.mrf.mxu0
    %v11200 = vadd.f32 %v11122, %v11199
    %v11201 = vpop.f32.mrf.mxu0
    %11202 = vdwg.mxu0
    %v11203 = vadd.f32 %v9059, %v11194
    %v11204 = vadd.f32 %v9060, %v11200
    %11205 = vst.msk [vmem:[#allocation2] sm:$0xff] %vm39, %v11203
    %11206 = vst.msk [vmem:[#allocation2 + $0x8] sm:$0xff] %vm39, %v11204
    // Predicated region
    $region26: #{tpu_custom_call.1} parent=1 // pred_check
      _
    $region27: #{tpu_custom_call.1} parent=1 // pred_check_branch
      %11208 = sbr.rel (0) target = $region29
    $region28: #{tpu_custom_call.1} parent=1 // pred_region
      %s11210 = ssub.s32 256, 256
      %11211 = vsyncadd [#allocation3], %s11210
      %s11212 = sshll.u32 [#allocation2], 4
      %s11213 = int_to_ptr.vmem [resolvable:$true] %s11212
      %11218 = dma.vmem_to_hbm [thread:$0]  %s11213, 256, %s6, [#allocation3], 128, 128, 8
    $region29: #{tpu_custom_call.1} parent=1 // pred_fallthru
      _
    // Predicated region
    $region30: #{tpu_custom_call.1} parent=1 // pred_check
      _
    $region31: #{tpu_custom_call.1} parent=1 // pred_check_branch
      %11220 = sbr.rel (0) target = $region33
    $region32: #{tpu_custom_call.1} parent=1 // pred_region
      %11221 = dma.done [#allocation3], 256
    $region33: #{tpu_custom_call.1} parent=1 // pred_fallthru
      _
    %11222 = vsyncpa [#allocation3], 1

</llo_original>
